<compile_context>
chip_gen: v7x
topology: tpu7x:2x2x1
jax: 0.10.0
libtpu: 0.0.40
codegen_flags: <defaults>
</compile_context>

<pallas_src>
import functools

import jax
import jax.numpy as jnp
from jax.experimental import pallas as pl
from jax.experimental.pallas import tpu as pltpu

N_CLASSES = 1
OUTC_PAD = 128    # lane-dense head: pad the 1-class 1x1-conv output to 128 lanes
CO_TILE = 256     # Cout tile of the second conv of every DoubleConv


# ----------------------------------------------------------------------------
# In-kernel helpers
# ----------------------------------------------------------------------------
def _rows(ref, lo, hi):
    """Row slice [lo, hi) of a (R, C) ref or a (1, R, C) ref (static slice)."""
    if len(ref.shape) == 3:
        return ref[0, lo:hi, :]
    return ref[lo:hi, :]


def _accum_conv3x3(acc, src, w, cin, col, M, W):
    """acc += 3x3 'same' conv: 9 accumulated (M, cin) @ (cin, C) MXU matmuls.

    src: padded-flat source ((L, cin) or (1, L, cin) ref), leading/trailing
         (W+1) rows are zero (row halo).  Column halo is masked on the patch.
    w:   weight rows ordered (dy, dx, cin); (9*cin, C) or (1, 9*cin, C) ref.
    """
    for dx in range(3):
        for dy in range(3):
            tap = dy * 3 + dx
            off = dy * W + dx
            patch = _rows(src, off, off + M).astype(jnp.bfloat16)
            if dx == 0:
                patch = jnp.where(col >= 1, patch, jnp.zeros_like(patch))
            elif dx == 2:
                patch = jnp.where(col <= W - 2, patch, jnp.zeros_like(patch))
            acc = acc + jnp.dot(patch, _rows(w, tap * cin, (tap + 1) * cin),
                                preferred_element_type=jnp.float32)
    return acc


def _double_conv_core(sources, b1_ref, w2_ref, b2_ref, o_ref, mid_scr, H, W):
    """conv3x3+ReLU (all Cmid channels, VMEM scratch) -> conv3x3+ReLU (Cout tile)."""
    M, PAD = H * W, W + 1
    Cmid = mid_scr.shape[-1]
    TC = o_ref.shape[-1]
    col = jax.lax.broadcasted_iota(jnp.int32, (M, 1), 0) % W

    # first conv + ReLU over the full Cmid width, into the zero-padded scratch
    acc1 = jnp.zeros((M, Cmid), jnp.float32)
    for src, w1, cin in sources:
        acc1 = _accum_conv3x3(acc1, src, w1, cin, col, M, W)
    acc1 = jnp.maximum(acc1 + b1_ref[...], 0.0)
    mid_scr[:PAD, :] = jnp.zeros((PAD, Cmid), mid_scr.dtype)
    mid_scr[PAD + M:, :] = jnp.zeros((PAD, Cmid), mid_scr.dtype)
    mid_scr[PAD:PAD + M, :] = acc1

    # second conv + ReLU, this grid step's Cout tile only
    acc2 = jnp.zeros((M, TC), jnp.float32)
    acc2 = _accum_conv3x3(acc2, mid_scr, w2_ref, Cmid, col, M, W)
    acc2 = jnp.maximum(acc2 + b2_ref[...], 0.0)
    o_ref[0] = acc2.astype(o_ref.dtype)


# ----------------------------------------------------------------------------
# Pallas kernels
# ----------------------------------------------------------------------------
def fused_dc_kernel(x_ref, w1_ref, b1_ref, w2_ref, b2_ref, o_ref, mid_scr, *, H, W):
    """DoubleConv on a pre-padded flat input (1, H*W + 2*(W+1), Cin)."""
    _double_conv_core([(x_ref, w1_ref, x_ref.shape[-1])],
                      b1_ref, w2_ref, b2_ref, o_ref, mid_scr, H, W)


def fused_dc_cat_kernel(xa_ref, xb_ref, w1a_ref, w1b_ref, b1_ref, w2_ref, b2_ref,
                        o_ref, mid_scr, *, H, W):
    """DoubleConv on cat([x2, x1], channel) without materializing the concat:
    the first conv accumulates two matmul groups (split weight row blocks)."""
    _double_conv_core([(xa_ref, w1a_ref, xa_ref.shape[-1]),
                       (xb_ref, w1b_ref, xb_ref.shape[-1])],
                      b1_ref, w2_ref, b2_ref, o_ref, mid_scr, H, W)


def fused_dc_pool_kernel(x_ref, w1_ref, b1_ref, w2_ref, b2_ref, o_ref,
                         xin_scr, mid_scr, *, H, W):
    """Down block: 2x2 maxpool (into a padded VMEM scratch) + DoubleConv.

    x_ref: (1, H, 2, W, 2, Cin) where (H, W) are the POST-pool dims.
    """
    Cin = x_ref.shape[-1]
    M, PAD = H * W, W + 1
    xin_scr[:PAD, :] = jnp.zeros((PAD, Cin), xin_scr.dtype)
    xin_scr[PAD + M:, :] = jnp.zeros((PAD, Cin), xin_scr.dtype)
    for ho in range(H):
        r0 = jnp.maximum(x_ref[0, ho, 0, :, 0, :], x_ref[0, ho, 0, :, 1, :])
        r1 = jnp.maximum(x_ref[0, ho, 1, :, 0, :], x_ref[0, ho, 1, :, 1, :])
        xin_scr[PAD + ho * W:PAD + (ho + 1) * W, :] = jnp.maximum(r0, r1)
    _double_conv_core([(xin_scr, w1_ref, Cin)],
                      b1_ref, w2_ref, b2_ref, o_ref, mid_scr, H, W)


def dense_kernel(x_ref, w_ref, b_ref, o_ref, *, relu):
    """1x1 conv / dense: single (M, Cin) @ (Cin, TC) matmul over flat spatial."""
    acc = jnp.dot(x_ref[0].astype(jnp.bfloat16), w_ref[...],
                  preferred_element_type=jnp.float32) + b_ref[...]
    if relu:
        acc = jnp.maximum(acc, 0.0)
    o_ref[0] = acc.astype(o_ref.dtype)


def convT2x2_kernel(x_ref, w_ref, b_ref, o_ref, *, H, W):
    """2x2 stride-2 ConvTranspose as one (H*W, Cin) @ (Cin, 4*Cout) matmul.

    The 4 kernel taps are stored interleaved so the wrapper only needs a free
    reshape.  o_ref: (1, H, 2, W, 2*Cout) with dims (h, kh, w, (kw, c)).
    """
    C2 = o_ref.shape[-1]                                        # 2*Cout
    acc = jnp.dot(x_ref[0].astype(jnp.bfloat16), w_ref[...],
                  preferred_element_type=jnp.float32) + b_ref[...]   # (H*W, 4*Cout)
    for kh in range(2):
        part = acc[:, kh * C2:(kh + 1) * C2]                    # (H*W, 2*Cout)
        for h in range(H):
            o_ref[0, h, kh, :, :] = part[h * W:(h + 1) * W, :].astype(o_ref.dtype)


# ----------------------------------------------------------------------------
# Wrappers (pallas_call + BlockSpecs)
# ----------------------------------------------------------------------------
def _nbytes(a):
    return int(a.size) * a.dtype.itemsize


def _vmem_limit(block_bytes, scratch_bytes):
    est = 2 * block_bytes + scratch_bytes + (4 << 20)
    return int(min(max(est, 32 << 20), 60 << 20))


def _fused_compiler_params(block_bytes, scratch_bytes):
    return pltpu.CompilerParams(
        dimension_semantics=("parallel", "parallel"),
        vmem_limit_bytes=_vmem_limit(block_bytes, scratch_bytes))


def fused_double_conv(x, w1, b1, w2t, b2):
    """conv3x3+ReLU -> conv3x3+ReLU.  x: (N,H,W,Cin) f32 -> (N,H,W,Cout) f32."""
    N, H, W, Cin = x.shape
    M, PAD = H * W, W + 1
    L = M + 2 * PAD
    K1, Cmid = w1.shape
    J, K2, TC = w2t.shape
    Cout = J * TC
    assert K1 == 9 * Cin and K2 == 9 * Cmid
    xp = jnp.pad(x.reshape(N, M, Cin), ((0, 0), (PAD, PAD), (0, 0)))
    block_bytes = (L * Cin * 4 + _nbytes(w1) + _nbytes(b1)
                   + K2 * TC * 2 + TC * 4 + M * TC * 4)
    scratch_bytes = L * Cmid * 4
    out = pl.pallas_call(
        functools.partial(fused_dc_kernel, H=H, W=W),
        out_shape=jax.ShapeDtypeStruct((N, M, Cout), jnp.float32),
        grid=(J, N),                       # Cout tile outer, batch inner: every
        in_specs=[                         # weight block is DMA'd exactly once.
            pl.BlockSpec((1, L, Cin), lambda j, n: (n, 0, 0)),
            pl.BlockSpec((K1, Cmid), lambda j, n: (0, 0)),
            pl.BlockSpec((1, Cmid), lambda j, n: (0, 0)),
            pl.BlockSpec((1, K2, TC), lambda j, n: (j, 0, 0)),
            pl.BlockSpec((1, TC), lambda j, n: (0, j)),
        ],
        out_specs=pl.BlockSpec((1, M, TC), lambda j, n: (n, 0, j)),
        scratch_shapes=[pltpu.VMEM((L, Cmid), jnp.float32)],
        compiler_params=_fused_compiler_params(block_bytes, scratch_bytes),
    )(xp, w1, b1, w2t, b2)
    return out.reshape(N, H, W, Cout)


def fused_down(x, w1, b1, w2t, b2):
    """Down block: 2x2 maxpool + DoubleConv.  x: (N,2H,2W,Cin) -> (N,H,W,Cout)."""
    N, H2, W2, Cin = x.shape
    H, W = H2 // 2, W2 // 2
    M, PAD = H * W, W + 1
    L = M + 2 * PAD
    K1, Cmid = w1.shape
    J, K2, TC = w2t.shape
    Cout = J * TC
    assert K1 == 9 * Cin and K2 == 9 * Cmid
    xr = x.reshape(N, H, 2, W, 2, Cin)      # free reshape; pooled in-kernel
    block_bytes = (H2 * W2 * Cin * 4 + _nbytes(w1) + _nbytes(b1)
                   + K2 * TC * 2 + TC * 4 + M * TC * 4)
    scratch_bytes = L * (Cin + Cmid) * 4
    out = pl.pallas_call(
        functools.partial(fused_dc_pool_kernel, H=H, W=W),
        out_shape=jax.ShapeDtypeStruct((N, M, Cout), jnp.float32),
        grid=(J, N),
        in_specs=[
            pl.BlockSpec((1, H, 2, W, 2, Cin), lambda j, n: (n, 0, 0, 0, 0, 0)),
            pl.BlockSpec((K1, Cmid), lambda j, n: (0, 0)),
            pl.BlockSpec((1, Cmid), lambda j, n: (0, 0)),
            pl.BlockSpec((1, K2, TC), lambda j, n: (j, 0, 0)),
            pl.BlockSpec((1, TC), lambda j, n: (0, j)),
        ],
        out_specs=pl.BlockSpec((1, M, TC), lambda j, n: (n, 0, j)),
        scratch_shapes=[pltpu.VMEM((L, Cin), jnp.float32),
                        pltpu.VMEM((L, Cmid), jnp.float32)],
        compiler_params=_fused_compiler_params(block_bytes, scratch_bytes),
    )(xr, w1, b1, w2t, b2)
    return out.reshape(N, H, W, Cout)


def fused_up_conv(x2, x1, w1a, w1b, b1, w2t, b2):
    """DoubleConv over cat([x2, x1], channel) with split first-conv weights
    (x2 = skip connection first, matching torch.cat([x2, x1], dim=1))."""
    N, H, W, C2 = x2.shape
    C1 = x1.shape[-1]
    M, PAD = H * W, W + 1
    L = M + 2 * PAD
    Cmid = w1a.shape[1]
    J, K2, TC = w2t.shape
    Cout = J * TC
    assert w1a.shape[0] == 9 * C2 and w1b.shape[0] == 9 * C1 and K2 == 9 * Cmid
    x2p = jnp.pad(x2.reshape(N, M, C2), ((0, 0), (PAD, PAD), (0, 0)))
    x1p = jnp.pad(x1.reshape(N, M, C1), ((0, 0), (PAD, PAD), (0, 0)))
    block_bytes = (L * (C2 + C1) * 4 + _nbytes(w1a) + _nbytes(w1b) + _nbytes(b1)
                   + K2 * TC * 2 + TC * 4 + M * TC * 4)
    scratch_bytes = L * Cmid * 4
    out = pl.pallas_call(
        functools.partial(fused_dc_cat_kernel, H=H, W=W),
        out_shape=jax.ShapeDtypeStruct((N, M, Cout), jnp.float32),
        grid=(J, N),
        in_specs=[
            pl.BlockSpec((1, L, C2), lambda j, n: (n, 0, 0)),
            pl.BlockSpec((1, L, C1), lambda j, n: (n, 0, 0)),
            pl.BlockSpec((9 * C2, Cmid), lambda j, n: (0, 0)),
            pl.BlockSpec((9 * C1, Cmid), lambda j, n: (0, 0)),
            pl.BlockSpec((1, Cmid), lambda j, n: (0, 0)),
            pl.BlockSpec((1, K2, TC), lambda j, n: (j, 0, 0)),
            pl.BlockSpec((1, TC), lambda j, n: (0, j)),
        ],
        out_specs=pl.BlockSpec((1, M, TC), lambda j, n: (n, 0, j)),
        scratch_shapes=[pltpu.VMEM((L, Cmid), jnp.float32)],
        compiler_params=_fused_compiler_params(block_bytes, scratch_bytes),
    )(x2p, x1p, w1a, w1b, b1, w2t, b2)
    return out.reshape(N, H, W, Cout)


def dense(x_flat, w_packed, b_packed, relu=False, co_tile=256):
    """x_flat: (N, M, Cin); w_packed: (Cin, C) bf16; b_packed: (1, C) f32."""
    N, M, Cin = x_flat.shape
    C = w_packed.shape[1]
    TC = min(C, co_tile)
    assert C % TC == 0
    return pl.pallas_call(
        functools.partial(dense_kernel, relu=relu),
        out_shape=jax.ShapeDtypeStruct((N, M, C), jnp.float32),
        grid=(C // TC, N),
        in_specs=[
            pl.BlockSpec((1, M, Cin), lambda j, n: (n, 0, 0)),
            pl.BlockSpec((Cin, TC), lambda j, n: (0, j)),
            pl.BlockSpec((1, TC), lambda j, n: (0, j)),
        ],
        out_specs=pl.BlockSpec((1, M, TC), lambda j, n: (n, 0, j)),
        compiler_params=pltpu.CompilerParams(
            dimension_semantics=("parallel", "parallel")),
    )(x_flat, w_packed, b_packed)


def conv_transpose2x2(x, w_packed, b_packed):
    """x: (N,H,W,Cin); w_packed: (Cin, 4*Cout) bf16; b_packed: (1, 4*Cout) f32.
    Output: (N, 2H, 2W, Cout)."""
    N, H, W, Cin = x.shape
    C4 = w_packed.shape[1]
    Cout = C4 // 4
    xf = x.reshape(N, H * W, Cin)
    out = pl.pallas_call(
        functools.partial(convT2x2_kernel, H=H, W=W),
        out_shape=jax.ShapeDtypeStruct((N, H, 2, W, 2 * Cout), jnp.float32),
        grid=(N,),
        in_specs=[
            pl.BlockSpec((1, H * W, Cin), lambda n: (n, 0, 0)),
            pl.BlockSpec((Cin, C4), lambda n: (0, 0)),
            pl.BlockSpec((1, C4), lambda n: (0, 0)),
        ],
        out_specs=pl.BlockSpec((1, H, 2, W, 2 * Cout),
                               lambda n: (n, 0, 0, 0, 0)),
        compiler_params=pltpu.CompilerParams(dimension_semantics=("parallel",)),
    )(xf, w_packed, b_packed)
    # (n, h, kh, w, (kw, c)) -> (n, 2h+kh, 2w+kw, c): pure (free) reshape.
    return out.reshape(N, 2 * H, 2 * W, Cout)


# ----------------------------------------------------------------------------
# UNet_4ch forward
# ----------------------------------------------------------------------------
def _dc_args(q, prefix):
    return (q[prefix + ".w1"], q[prefix + ".b1"],
            q[prefix + ".w2"], q[prefix + ".b2"])


def up_block(x1, x2, q, prefix):
    x1 = conv_transpose2x2(x1, q[prefix + ".up.w"], q[prefix + ".up.b"])
    dY = x2.shape[1] - x1.shape[1]
    dX = x2.shape[2] - x1.shape[2]
    if dY or dX:
        x1 = jnp.pad(x1, ((0, 0), (dY // 2, dY - dY // 2),
                          (dX // 2, dX - dX // 2), (0, 0)))
    c = prefix + ".conv"
    return fused_up_conv(x2, x1, q[c + ".w1a"], q[c + ".w1b"], q[c + ".b1"],
                         q[c + ".w2"], q[c + ".b2"])


def unet_forward(x_nchw, q):
    x = jnp.transpose(x_nchw, (0, 2, 3, 1))     # NCHW -> NHWC
    x1 = fused_double_conv(x, *_dc_args(q, "inc"))
    x2 = fused_down(x1, *_dc_args(q, "down1"))
    x3 = fused_down(x2, *_dc_args(q, "down2"))
    x4 = fused_down(x3, *_dc_args(q, "down3"))
    x5 = fused_down(x4, *_dc_args(q, "down4"))
    y = up_block(x5, x4, q, "up1")
    y = up_block(y, x3, q, "up2")
    y = up_block(y, x2, q, "up3")
    y = up_block(y, x1, q, "up4")
    N, H, W, C = y.shape
    head = dense(y.reshape(N, H * W, C), q["outc.w"], q["outc.b"], relu=False)
    logits = head[:, :, :N_CLASSES].reshape(N, H, W, N_CLASSES)
    return jnp.transpose(logits, (0, 3, 1, 2))  # NHWC -> NCHW


# ----------------------------------------------------------------------------
# Parameter creation (torch layouts) and packing into kernel layouts
# ----------------------------------------------------------------------------
def make_params(key):
    p = {}
    ctr = [0]

    def rnd(shape, scale):
        ctr[0] += 1
        k = jax.random.fold_in(key, ctr[0])
        return (scale * jax.random.normal(k, shape)).astype(jnp.float32)

    def add_conv(name, cin, cout):
        p[name + ".w"] = rnd((cout, cin, 3, 3), (2.0 / (9 * cin)) ** 0.5)
        p[name + ".b"] = rnd((cout,), 0.01)

    def add_convT(name, cin, cout):
        p[name + ".w"] = rnd((cin, cout, 2, 2), (1.0 / (4 * cin)) ** 0.5)
        p[name + ".b"] = rnd((cout,), 0.01)

    def add_double(name, cin, cout):
        add_conv(name + ".0", cin, cout)
        add_conv(name + ".1", cout, cout)

    add_double("inc", 4, 64)
    add_double("down1", 64, 128)
    add_double("down2", 128, 256)
    add_double("down3", 256, 512)
    add_double("down4", 512, 1024)
    for idx, (cin, cout) in enumerate([(1024, 512), (512, 256),
                                       (256, 128), (128, 64)], start=1):
        add_convT(f"up{idx}.up", cin, cin // 2)
        add_double(f"up{idx}.conv", cin, cout)
    p["outc.w"] = rnd((N_CLASSES, 64, 1, 1), (1.0 / 64) ** 0.5)
    p["outc.b"] = rnd((N_CLASSES,), 0.01)
    return p


DC_DOWN_PREFIXES = ["inc", "down1", "down2", "down3", "down4"]
DC_UP_PREFIXES = [f"up{i}.conv" for i in range(1, 5)]
CONVT_NAMES = [f"up{i}.up" for i in range(1, 5)]


def _pack3x3_full(w):
    """(Cout, Cin, 3, 3) -> (9*Cin, Cout) bf16, rows ordered (dy, dx, cin)."""
    cout, cin = w.shape[0], w.shape[1]
    return (jnp.transpose(w, (2, 3, 1, 0)).reshape(9 * cin, cout)
            .astype(jnp.bfloat16))


def _pack3x3_tiled(w, co_tile):
    """(Cout, Cin, 3, 3) -> tile-major (Cout//TC, 9*Cin, TC) bf16 so each weight
    DMA is one contiguous slab."""
    cout, cin = w.shape[0], w.shape[1]
    tc = min(cout, co_tile)
    j = cout // tc
    wf = jnp.transpose(w, (2, 3, 1, 0)).reshape(9 * cin, cout)
    wt = jnp.transpose(wf.reshape(9 * cin, j, tc), (1, 0, 2))
    return wt.astype(jnp.bfloat16)


def pack_params(p):
    """Pre-pack torch-layout weights into bf16 matmul slabs (done once)."""
    q = {}
    for name in DC_DOWN_PREFIXES + DC_UP_PREFIXES:
        w0, b0 = p[name + ".0.w"], p[name + ".0.b"]
        w1, b1 = p[name + ".1.w"], p[name + ".1.b"]
        if name in DC_UP_PREFIXES:
            c2 = w0.shape[1] // 2                 # cat order: [x2 (skip), x1 (up)]
            q[name + ".w1a"] = _pack3x3_full(w0[:, :c2])
            q[name + ".w1b"] = _pack3x3_full(w0[:, c2:])
        else:
            q[name + ".w1"] = _pack3x3_full(w0)
        q[name + ".b1"] = b0.reshape(1, -1).astype(jnp.float32)
        q[name + ".w2"] = _pack3x3_tiled(w1, CO_TILE)
        q[name + ".b2"] = b1.reshape(1, -1).astype(jnp.float32)
    for name in CONVT_NAMES:
        w = p[name + ".w"]                                  # (Cin, Cout, 2, 2)
        cin, cout = w.shape[0], w.shape[1]
        q[name + ".w"] = (jnp.transpose(w, (0, 2, 3, 1))    # (cin, kh, kw, cout)
                          .reshape(cin, 4 * cout).astype(jnp.bfloat16))
        q[name + ".b"] = (jnp.tile(p[name + ".b"].reshape(1, 1, cout), (1, 4, 1))
                          .reshape(1, 4 * cout).astype(jnp.float32))
    # 1x1 head, padded to a lane-dense 128-wide output.
    w = p["outc.w"].reshape(N_CLASSES, -1)                  # (n_classes, 64)
    cin = w.shape[1]
    wm = jnp.zeros((cin, OUTC_PAD), jnp.float32).at[:, :N_CLASSES].set(w.T)
    bm = jnp.zeros((1, OUTC_PAD), jnp.float32).at[:, :N_CLASSES].set(
        p["outc.b"].reshape(1, N_CLASSES))
    q["outc.w"] = wm.astype(jnp.bfloat16)
    q["outc.b"] = bm
    return q


# ----------------------------------------------------------------------------
# Pure-JAX references for sanity checks
# ----------------------------------------------------------------------------
def bf16r(a):
    return a.astype(jnp.bfloat16).astype(jnp.float32)


def ref_conv3x3(x, w, b):
    out = jax.lax.conv_general_dilated(
        x, jnp.transpose(w, (2, 3, 1, 0)), window_strides=(1, 1),
        padding=((1, 1), (1, 1)), dimension_numbers=("NHWC", "HWIO", "NHWC"))
    return out + b.reshape(1, 1, 1, -1)


def ref_conv_transpose2x2(x, w, b):
    k = jnp.transpose(w[:, :, ::-1, ::-1], (2, 3, 0, 1))    # (kh, kw, Cin, Cout)
    out = jax.lax.conv_general_dilated(
        x, k, window_strides=(1, 1), padding=((1, 1), (1, 1)),
        lhs_dilation=(2, 2), dimension_numbers=("NHWC", "HWIO", "NHWC"))
    return out + b.reshape(1, 1, 1, -1)


def ref_maxpool2x2(x):
    return jax.lax.reduce_window(x, -jnp.inf, jax.lax.max,
                                 (1, 2, 2, 1), (1, 2, 2, 1), "VALID")


def ref_double_conv(x, p, prefix):
    y = jnp.maximum(ref_conv3x3(bf16r(x), bf16r(p[prefix + ".0.w"]),
                                p[prefix + ".0.b"]), 0.0)
    return jnp.maximum(ref_conv3x3(bf16r(y), bf16r(p[prefix + ".1.w"]),
                                   p[prefix + ".1.b"]), 0.0)


def ref_forward(x_nchw, p):
    x = jnp.transpose(x_nchw, (0, 2, 3, 1))
    x1 = ref_double_conv(x, p, "inc")
    x2 = ref_double_conv(ref_maxpool2x2(x1), p, "down1")
    x3 = ref_double_conv(ref_maxpool2x2(x2), p, "down2")
    x4 = ref_double_conv(ref_maxpool2x2(x3), p, "down3")
    x5 = ref_double_conv(ref_maxpool2x2(x4), p, "down4")

    def up(y, skip, pfx):
        y = ref_conv_transpose2x2(bf16r(y), bf16r(p[pfx + ".up.w"]),
                                  p[pfx + ".up.b"])
        dY = skip.shape[1] - y.shape[1]
        dX = skip.shape[2] - y.shape[2]
        if dY or dX:
            y = jnp.pad(y, ((0, 0), (dY // 2, dY - dY // 2),
                            (dX // 2, dX - dX // 2), (0, 0)))
        return ref_double_conv(jnp.concatenate([skip, y], axis=-1), p,
                               pfx + ".conv")

    y = up(x5, x4, "up1")
    y = up(y, x3, "up2")
    y = up(y, x2, "up3")
    y = up(y, x1, "up4")
    N, H, W, C = y.shape
    w = p["outc.w"].reshape(N_CLASSES, C)
    logits = (bf16r(y).reshape(N, H * W, C) @ bf16r(w).T
              + p["outc.b"].reshape(1, 1, N_CLASSES)).reshape(N, H, W, N_CLASSES)
    return jnp.transpose(logits, (0, 3, 1, 2))


def _check(name, got, want, atol=1e-2, rtol=1e-2):
    err = float(jnp.max(jnp.abs(got - want)))
    if not bool(jnp.allclose(got, want, atol=atol, rtol=rtol)):
        raise AssertionError(f"{name} mismatch: max abs err {err}")


# ----------------------------------------------------------------------------
if __name__ == "__main__":
    params = make_params(jax.random.PRNGKey(42))
    packed = pack_params(params)

    # torch-convention input: NCHW, batch=2, 4 channels, 16x16 spatial
    key = jax.random.PRNGKey(0)
    x_nchw = jax.random.normal(key, (2, 4, 16, 16), dtype=jnp.float32)
    x_nhwc = jnp.transpose(x_nchw, (0, 2, 3, 1))

    # --- per-kernel sanity checks (refs use bf16-rounded operands) -----------
    out_inc = fused_double_conv(x_nhwc, *_dc_args(packed, "inc"))
    _check("fused DoubleConv (inc)", out_inc,
           ref_double_conv(x_nhwc, params, "inc"))

    out_d1 = fused_down(out_inc, *_dc_args(packed, "down1"))
    _check("fused Down (down1: pool + DoubleConv)", out_d1,
           ref_double_conv(ref_maxpool2x2(out_inc), params, "down1"))

    t3 = jax.random.normal(jax.random.PRNGKey(3), (2, 4, 4, 256), jnp.float32)
    out_d3 = fused_down(t3, *_dc_args(packed, "down3"))
    _check("fused Down (down3: tiled Cout)", out_d3,
           ref_double_conv(ref_maxpool2x2(t3), params, "down3"))

    t = jax.random.normal(jax.random.PRNGKey(7), (2, 4, 4, 256), jnp.float32)
    out_t = conv_transpose2x2(t, packed["up3.up.w"], packed["up3.up.b"])
    ref_t = ref_conv_transpose2x2(bf16r(t), bf16r(params["up3.up.w"]),
                                  params["up3.up.b"])
    _check("conv_transpose2x2 (up3.up)", out_t, ref_t)

    s2 = jax.random.normal(jax.random.PRNGKey(11), (2, 8, 8, 128), jnp.float32)
    s1 = jax.random.normal(jax.random.PRNGKey(13), (2, 8, 8, 128), jnp.float32)
    out_u = fused_up_conv(s2, s1, packed["up3.conv.w1a"], packed["up3.conv.w1b"],
                          packed["up3.conv.b1"], packed["up3.conv.w2"],
                          packed["up3.conv.b2"])
    _check("fused Up DoubleConv (up3.conv, split weights)", out_u,
           ref_double_conv(jnp.concatenate([s2, s1], axis=-1), params,
                           "up3.conv"))

    u = jax.random.normal(jax.random.PRNGKey(9), (2, 16, 16, 64), jnp.float32)
    out_o = dense(u.reshape(2, 256, 64), packed["outc.w"],
                  packed["outc.b"])[:, :, :N_CLASSES]
    ref_o = (bf16r(u).reshape(2, 256, 64)
             @ bf16r(params["outc.w"]).reshape(N_CLASSES, 64).T
             + params["outc.b"])
    _check("conv1x1 head", out_o, ref_o)

    # --- full UNet forward ----------------------------------------------------
    fwd = jax.jit(unet_forward)
    logits = jax.block_until_ready(fwd(x_nchw, packed))
    assert logits.shape == (2, 1, 16, 16), logits.shape
    assert bool(jnp.all(jnp.isfinite(logits)))
    _check("full UNet_4ch forward", logits, ref_forward(x_nchw, params),
           atol=3e-2, rtol=3e-2)

    print("KERNEL_OK")
</pallas_src>

<mosaic_0001>
module attributes {stable_mosaic.version = 11 : i64} {
  func.func @fused_dc_kernel(%arg0: i32, %arg1: i32, %arg2: memref<1x290x4xf32, #tpu.memory_space<vmem>>, %arg3: memref<36x64xbf16, #tpu.memory_space<vmem>>, %arg4: memref<1x64xf32, #tpu.memory_space<vmem>>, %arg5: memref<1x576x64xbf16, #tpu.memory_space<vmem>>, %arg6: memref<1x64xf32, #tpu.memory_space<vmem>>, %arg7: memref<1x256x64xf32, #tpu.memory_space<vmem>>, %arg8: memref<290x64xf32, #tpu.memory_space<vmem>>) attributes {dimension_semantics = [#tpu.dimension_semantics<parallel>, #tpu.dimension_semantics<parallel>], iteration_bounds = array<i64: 1, 2>, scalar_prefetch = 0 : i64, scratch_operands = 1 : i64, tpu.core_type = #tpu.core_type<tc>, window_params = [{transform_indices = @transform_0, window_bounds = array<i64: 1, 290, 4>}, {pipeline_mode = #tpu.pipeline_mode<synchronous>, transform_indices = @transform_1, window_bounds = array<i64: 36, 64>}, {pipeline_mode = #tpu.pipeline_mode<synchronous>, transform_indices = @transform_2, window_bounds = array<i64: 1, 64>}, {transform_indices = @transform_3, window_bounds = array<i64: 1, 576, 64>}, {transform_indices = @transform_4, window_bounds = array<i64: 1, 64>}, {transform_indices = @transform_5, window_bounds = array<i64: 1, 256, 64>}]} {
    %0 = tpu.iota {dimensions = array<i32: 0>} : vector<256x1xi32>
    %c16_i32 = arith.constant 16 : i32
    %c0_i32 = arith.constant 0 : i32
    %1 = arith.cmpi eq, %c16_i32, %c0_i32 : i32
    %c1_i32 = arith.constant 1 : i32
    %2 = arith.select %1, %c1_i32, %c16_i32 : i32
    %3 = vector.broadcast %2 : i32 to vector<256x1xi32>
    %4 = arith.remsi %0, %3 : vector<256x1xi32>
    %c0_i32_0 = arith.constant 0 : i32
    %5 = vector.broadcast %c0_i32_0 : i32 to vector<256x1xi32>
    %6 = arith.cmpi ne, %4, %5 : vector<256x1xi32>
    %c0_i32_1 = arith.constant 0 : i32
    %7 = vector.broadcast %c0_i32_1 : i32 to vector<256x1xi32>
    %8 = arith.cmpi slt, %4, %7 : vector<256x1xi32>
    %c0_i32_2 = arith.constant 0 : i32
    %9 = arith.cmpi slt, %2, %c0_i32_2 : i32
    %10 = vector.broadcast %9 : i1 to vector<256x1xi1>
    %11 = vector.broadcast %10 : vector<256x1xi1> to vector<256x1xi1>
    %12 = arith.xori %8, %11 : vector<256x1xi1>
    %13 = arith.andi %12, %6 : vector<256x1xi1>
    %14 = vector.broadcast %2 : i32 to vector<256x1xi32>
    %15 = arith.addi %4, %14 : vector<256x1xi32>
    %16 = arith.select %13, %15, %4 : vector<256x1xi1>, vector<256x1xi32>
    %cst = arith.constant 0.000000e+00 : f32
    %17 = vector.broadcast %cst : f32 to vector<256x64xf32>
    %c0 = arith.constant 0 : index
    %c0_3 = arith.constant 0 : index
    %c0_4 = arith.constant 0 : index
    %18 = vector.load %arg2[%c0, %c0_3, %c0_4] : memref<1x290x4xf32, #tpu.memory_space<vmem>>, vector<1x256x4xf32>
    %19 = vector.shape_cast %18 : vector<1x256x4xf32> to vector<256x4xf32>
    %20 = arith.truncf %19 : vector<256x4xf32> to vector<256x4xbf16>
    %c1_i32_5 = arith.constant 1 : i32
    %21 = vector.broadcast %c1_i32_5 : i32 to vector<256x1xi32>
    %22 = arith.cmpi sge, %16, %21 : vector<256x1xi32>
    %cst_6 = arith.constant 0.000000e+00 : bf16
    %23 = vector.broadcast %cst_6 : bf16 to vector<256x4xbf16>
    %24 = vector.shape_cast %22 : vector<256x1xi1> to vector<256x1xi1>
    %25 = vector.broadcast %24 : vector<256x1xi1> to vector<256x4xi1>
    %26 = arith.select %25, %20, %23 : vector<256x4xi1>, vector<256x4xbf16>
    %c0_7 = arith.constant 0 : index
    %c0_8 = arith.constant 0 : index
    %27 = vector.load %arg3[%c0_7, %c0_8] : memref<36x64xbf16, #tpu.memory_space<vmem>>, vector<4x64xbf16>
    %cst_9 = arith.constant dense<0.000000e+00> : vector<256x64xf32>
    %28 = tpu.matmul %26, %27, %cst_9 {dimension_numbers = #tpu.dot_dimension_numbers<[1], [0], [0], [1], [0, 0, 1, 1], [], []>} : vector<256x4xbf16>, vector<4x64xbf16>, vector<256x64xf32> -> vector<256x64xf32>
    %29 = arith.addf %17, %28 : vector<256x64xf32>
    %c0_10 = arith.constant 0 : index
    %c16 = arith.constant 16 : index
    %c0_11 = arith.constant 0 : index
    %30 = vector.load %arg2[%c0_10, %c16, %c0_11] : memref<1x290x4xf32, #tpu.memory_space<vmem>>, vector<1x256x4xf32>
    %31 = vector.shape_cast %30 : vector<1x256x4xf32> to vector<256x4xf32>
    %32 = arith.truncf %31 : vector<256x4xf32> to vector<256x4xbf16>
    %c1_i32_12 = arith.constant 1 : i32
    %33 = vector.broadcast %c1_i32_12 : i32 to vector<256x1xi32>
    %34 = arith.cmpi sge, %16, %33 : vector<256x1xi32>
    %cst_13 = arith.constant 0.000000e+00 : bf16
    %35 = vector.broadcast %cst_13 : bf16 to vector<256x4xbf16>
    %36 = vector.shape_cast %34 : vector<256x1xi1> to vector<256x1xi1>
    %37 = vector.broadcast %36 : vector<256x1xi1> to vector<256x4xi1>
    %38 = arith.select %37, %32, %35 : vector<256x4xi1>, vector<256x4xbf16>
    %c12 = arith.constant 12 : index
    %c0_14 = arith.constant 0 : index
    %39 = vector.load %arg3[%c12, %c0_14] : memref<36x64xbf16, #tpu.memory_space<vmem>>, vector<4x64xbf16>
    %cst_15 = arith.constant dense<0.000000e+00> : vector<256x64xf32>
    %40 = tpu.matmul %38, %39, %cst_15 {dimension_numbers = #tpu.dot_dimension_numbers<[1], [0], [0], [1], [0, 0, 1, 1], [], []>} : vector<256x4xbf16>, vector<4x64xbf16>, vector<256x64xf32> -> vector<256x64xf32>
    %41 = arith.addf %29, %40 : vector<256x64xf32>
    %c0_16 = arith.constant 0 : index
    %c32 = arith.constant 32 : index
    %c0_17 = arith.constant 0 : index
    %42 = vector.load %arg2[%c0_16, %c32, %c0_17] : memref<1x290x4xf32, #tpu.memory_space<vmem>>, vector<1x256x4xf32>
    %43 = vector.shape_cast %42 : vector<1x256x4xf32> to vector<256x4xf32>
    %44 = arith.truncf %43 : vector<256x4xf32> to vector<256x4xbf16>
    %c1_i32_18 = arith.constant 1 : i32
    %45 = vector.broadcast %c1_i32_18 : i32 to vector<256x1xi32>
    %46 = arith.cmpi sge, %16, %45 : vector<256x1xi32>
    %cst_19 = arith.constant 0.000000e+00 : bf16
    %47 = vector.broadcast %cst_19 : bf16 to vector<256x4xbf16>
    %48 = vector.shape_cast %46 : vector<256x1xi1> to vector<256x1xi1>
    %49 = vector.broadcast %48 : vector<256x1xi1> to vector<256x4xi1>
    %50 = arith.select %49, %44, %47 : vector<256x4xi1>, vector<256x4xbf16>
    %c24 = arith.constant 24 : index
    %c0_20 = arith.constant 0 : index
    %51 = vector.load %arg3[%c24, %c0_20] : memref<36x64xbf16, #tpu.memory_space<vmem>>, vector<4x64xbf16>
    %cst_21 = arith.constant dense<0.000000e+00> : vector<256x64xf32>
    %52 = tpu.matmul %50, %51, %cst_21 {dimension_numbers = #tpu.dot_dimension_numbers<[1], [0], [0], [1], [0, 0, 1, 1], [], []>} : vector<256x4xbf16>, vector<4x64xbf16>, vector<256x64xf32> -> vector<256x64xf32>
    %53 = arith.addf %41, %52 : vector<256x64xf32>
    %c0_22 = arith.constant 0 : index
    %c1 = arith.constant 1 : index
    %c0_23 = arith.constant 0 : index
    %54 = vector.load %arg2[%c0_22, %c1, %c0_23] : memref<1x290x4xf32, #tpu.memory_space<vmem>>, vector<1x256x4xf32>
    %55 = vector.shape_cast %54 : vector<1x256x4xf32> to vector<256x4xf32>
    %56 = arith.truncf %55 : vector<256x4xf32> to vector<256x4xbf16>
    %c4 = arith.constant 4 : index
    %c0_24 = arith.constant 0 : index
    %57 = vector.load %arg3[%c4, %c0_24] : memref<36x64xbf16, #tpu.memory_space<vmem>>, vector<4x64xbf16>
    %cst_25 = arith.constant dense<0.000000e+00> : vector<256x64xf32>
    %58 = tpu.matmul %56, %57, %cst_25 {dimension_numbers = #tpu.dot_dimension_numbers<[1], [0], [0], [1], [0, 0, 1, 1], [], []>} : vector<256x4xbf16>, vector<4x64xbf16>, vector<256x64xf32> -> vector<256x64xf32>
    %59 = arith.addf %53, %58 : vector<256x64xf32>
    %c0_26 = arith.constant 0 : index
    %c17 = arith.constant 17 : index
    %c0_27 = arith.constant 0 : index
    %60 = vector.load %arg2[%c0_26, %c17, %c0_27] : memref<1x290x4xf32, #tpu.memory_space<vmem>>, vector<1x256x4xf32>
    %61 = vector.shape_cast %60 : vector<1x256x4xf32> to vector<256x4xf32>
    %62 = arith.truncf %61 : vector<256x4xf32> to vector<256x4xbf16>
    %c16_28 = arith.constant 16 : index
    %c0_29 = arith.constant 0 : index
    %63 = vector.load %arg3[%c16_28, %c0_29] : memref<36x64xbf16, #tpu.memory_space<vmem>>, vector<4x64xbf16>
    %cst_30 = arith.constant dense<0.000000e+00> : vector<256x64xf32>
    %64 = tpu.matmul %62, %63, %cst_30 {dimension_numbers = #tpu.dot_dimension_numbers<[1], [0], [0], [1], [0, 0, 1, 1], [], []>} : vector<256x4xbf16>, vector<4x64xbf16>, vector<256x64xf32> -> vector<256x64xf32>
    %65 = arith.addf %59, %64 : vector<256x64xf32>
    %c0_31 = arith.constant 0 : index
    %c33 = arith.constant 33 : index
    %c0_32 = arith.constant 0 : index
    %66 = vector.load %arg2[%c0_31, %c33, %c0_32] : memref<1x290x4xf32, #tpu.memory_space<vmem>>, vector<1x256x4xf32>
    %67 = vector.shape_cast %66 : vector<1x256x4xf32> to vector<256x4xf32>
    %68 = arith.truncf %67 : vector<256x4xf32> to vector<256x4xbf16>
    %c28 = arith.constant 28 : index
    %c0_33 = arith.constant 0 : index
    %69 = vector.load %arg3[%c28, %c0_33] : memref<36x64xbf16, #tpu.memory_space<vmem>>, vector<4x64xbf16>
    %cst_34 = arith.constant dense<0.000000e+00> : vector<256x64xf32>
    %70 = tpu.matmul %68, %69, %cst_34 {dimension_numbers = #tpu.dot_dimension_numbers<[1], [0], [0], [1], [0, 0, 1, 1], [], []>} : vector<256x4xbf16>, vector<4x64xbf16>, vector<256x64xf32> -> vector<256x64xf32>
    %71 = arith.addf %65, %70 : vector<256x64xf32>
    %c0_35 = arith.constant 0 : index
    %c2 = arith.constant 2 : index
    %c0_36 = arith.constant 0 : index
    %72 = vector.load %arg2[%c0_35, %c2, %c0_36] : memref<1x290x4xf32, #tpu.memory_space<vmem>>, vector<1x256x4xf32>
    %73 = vector.shape_cast %72 : vector<1x256x4xf32> to vector<256x4xf32>
    %74 = arith.truncf %73 : vector<256x4xf32> to vector<256x4xbf16>
    %c14_i32 = arith.constant 14 : i32
    %75 = vector.broadcast %c14_i32 : i32 to vector<256x1xi32>
    %76 = arith.cmpi sle, %16, %75 : vector<256x1xi32>
    %cst_37 = arith.constant 0.000000e+00 : bf16
    %77 = vector.broadcast %cst_37 : bf16 to vector<256x4xbf16>
    %78 = vector.shape_cast %76 : vector<256x1xi1> to vector<256x1xi1>
    %79 = vector.broadcast %78 : vector<256x1xi1> to vector<256x4xi1>
    %80 = arith.select %79, %74, %77 : vector<256x4xi1>, vector<256x4xbf16>
    %c8 = arith.constant 8 : index
    %c0_38 = arith.constant 0 : index
    %81 = vector.load %arg3[%c8, %c0_38] : memref<36x64xbf16, #tpu.memory_space<vmem>>, vector<4x64xbf16>
    %cst_39 = arith.constant dense<0.000000e+00> : vector<256x64xf32>
    %82 = tpu.matmul %80, %81, %cst_39 {dimension_numbers = #tpu.dot_dimension_numbers<[1], [0], [0], [1], [0, 0, 1, 1], [], []>} : vector<256x4xbf16>, vector<4x64xbf16>, vector<256x64xf32> -> vector<256x64xf32>
    %83 = arith.addf %71, %82 : vector<256x64xf32>
    %c0_40 = arith.constant 0 : index
    %c18 = arith.constant 18 : index
    %c0_41 = arith.constant 0 : index
    %84 = vector.load %arg2[%c0_40, %c18, %c0_41] : memref<1x290x4xf32, #tpu.memory_space<vmem>>, vector<1x256x4xf32>
    %85 = vector.shape_cast %84 : vector<1x256x4xf32> to vector<256x4xf32>
    %86 = arith.truncf %85 : vector<256x4xf32> to vector<256x4xbf16>
    %c14_i32_42 = arith.constant 14 : i32
    %87 = vector.broadcast %c14_i32_42 : i32 to vector<256x1xi32>
    %88 = arith.cmpi sle, %16, %87 : vector<256x1xi32>
    %cst_43 = arith.constant 0.000000e+00 : bf16
    %89 = vector.broadcast %cst_43 : bf16 to vector<256x4xbf16>
    %90 = vector.shape_cast %88 : vector<256x1xi1> to vector<256x1xi1>
    %91 = vector.broadcast %90 : vector<256x1xi1> to vector<256x4xi1>
    %92 = arith.select %91, %86, %89 : vector<256x4xi1>, vector<256x4xbf16>
    %c20 = arith.constant 20 : index
    %c0_44 = arith.constant 0 : index
    %93 = vector.load %arg3[%c20, %c0_44] : memref<36x64xbf16, #tpu.memory_space<vmem>>, vector<4x64xbf16>
    %cst_45 = arith.constant dense<0.000000e+00> : vector<256x64xf32>
    %94 = tpu.matmul %92, %93, %cst_45 {dimension_numbers = #tpu.dot_dimension_numbers<[1], [0], [0], [1], [0, 0, 1, 1], [], []>} : vector<256x4xbf16>, vector<4x64xbf16>, vector<256x64xf32> -> vector<256x64xf32>
    %95 = arith.addf %83, %94 : vector<256x64xf32>
    %c0_46 = arith.constant 0 : index
    %c34 = arith.constant 34 : index
    %c0_47 = arith.constant 0 : index
    %96 = vector.load %arg2[%c0_46, %c34, %c0_47] : memref<1x290x4xf32, #tpu.memory_space<vmem>>, vector<1x256x4xf32>
    %97 = vector.shape_cast %96 : vector<1x256x4xf32> to vector<256x4xf32>
    %98 = arith.truncf %97 : vector<256x4xf32> to vector<256x4xbf16>
    %c14_i32_48 = arith.constant 14 : i32
    %99 = vector.broadcast %c14_i32_48 : i32 to vector<256x1xi32>
    %100 = arith.cmpi sle, %16, %99 : vector<256x1xi32>
    %cst_49 = arith.constant 0.000000e+00 : bf16
    %101 = vector.broadcast %cst_49 : bf16 to vector<256x4xbf16>
    %102 = vector.shape_cast %100 : vector<256x1xi1> to vector<256x1xi1>
    %103 = vector.broadcast %102 : vector<256x1xi1> to vector<256x4xi1>
    %104 = arith.select %103, %98, %101 : vector<256x4xi1>, vector<256x4xbf16>
    %c32_50 = arith.constant 32 : index
    %c0_51 = arith.constant 0 : index
    %105 = vector.load %arg3[%c32_50, %c0_51] : memref<36x64xbf16, #tpu.memory_space<vmem>>, vector<4x64xbf16>
    %cst_52 = arith.constant dense<0.000000e+00> : vector<256x64xf32>
    %106 = tpu.matmul %104, %105, %cst_52 {dimension_numbers = #tpu.dot_dimension_numbers<[1], [0], [0], [1], [0, 0, 1, 1], [], []>} : vector<256x4xbf16>, vector<4x64xbf16>, vector<256x64xf32> -> vector<256x64xf32>
    %107 = arith.addf %95, %106 : vector<256x64xf32>
    %c0_53 = arith.constant 0 : index
    %c0_54 = arith.constant 0 : index
    %108 = vector.load %arg4[%c0_53, %c0_54] : memref<1x64xf32, #tpu.memory_space<vmem>>, vector<1x64xf32>
    %109 = vector.broadcast %108 : vector<1x64xf32> to vector<256x64xf32>
    %110 = arith.addf %107, %109 : vector<256x64xf32>
    %cst_55 = arith.constant 0.000000e+00 : f32
    %111 = vector.broadcast %cst_55 : f32 to vector<256x64xf32>
    %112 = arith.maximumf %110, %111 : vector<256x64xf32>
    %cst_56 = arith.constant 0.000000e+00 : f32
    %113 = vector.broadcast %cst_56 : f32 to vector<17x64xf32>
    %c0_57 = arith.constant 0 : index
    %c0_58 = arith.constant 0 : index
    %114 = vector.load %arg8[%c0_57, %c0_58] : memref<290x64xf32, #tpu.memory_space<vmem>>, vector<17x64xf32>
    tpu.vector_store %arg8[%c0_57, %c0_58], %113 {strides = array<i32>} : memref<290x64xf32, #tpu.memory_space<vmem>>, vector<17x64xf32>,
    %cst_59 = arith.constant 0.000000e+00 : f32
    %115 = vector.broadcast %cst_59 : f32 to vector<17x64xf32>
    %c273 = arith.constant 273 : index
    %c0_60 = arith.constant 0 : index
    %116 = vector.load %arg8[%c273, %c0_60] : memref<290x64xf32, #tpu.memory_space<vmem>>, vector<17x64xf32>
    tpu.vector_store %arg8[%c273, %c0_60], %115 {strides = array<i32>} : memref<290x64xf32, #tpu.memory_space<vmem>>, vector<17x64xf32>,
    %c17_61 = arith.constant 17 : index
    %c0_62 = arith.constant 0 : index
    %117 = vector.load %arg8[%c17_61, %c0_62] : memref<290x64xf32, #tpu.memory_space<vmem>>, vector<256x64xf32>
    tpu.vector_store %arg8[%c17_61, %c0_62], %112 {strides = array<i32>} : memref<290x64xf32, #tpu.memory_space<vmem>>, vector<256x64xf32>,
    %cst_63 = arith.constant 0.000000e+00 : f32
    %118 = vector.broadcast %cst_63 : f32 to vector<256x64xf32>
    %c0_64 = arith.constant 0 : index
    %c0_65 = arith.constant 0 : index
    %119 = vector.load %arg8[%c0_64, %c0_65] : memref<290x64xf32, #tpu.memory_space<vmem>>, vector<256x64xf32>
    %120 = arith.truncf %119 : vector<256x64xf32> to vector<256x64xbf16>
    %c1_i32_66 = arith.constant 1 : i32
    %121 = vector.broadcast %c1_i32_66 : i32 to vector<256x1xi32>
    %122 = arith.cmpi sge, %16, %121 : vector<256x1xi32>
    %cst_67 = arith.constant 0.000000e+00 : bf16
    %123 = vector.broadcast %cst_67 : bf16 to vector<256x64xbf16>
    %124 = vector.shape_cast %122 : vector<256x1xi1> to vector<256x1xi1>
    %125 = vector.broadcast %124 : vector<256x1xi1> to vector<256x64xi1>
    %126 = arith.select %125, %120, %123 : vector<256x64xi1>, vector<256x64xbf16>
    %c0_68 = arith.constant 0 : index
    %c0_69 = arith.constant 0 : index
    %c0_70 = arith.constant 0 : index
    %127 = vector.load %arg5[%c0_68, %c0_69, %c0_70] : memref<1x576x64xbf16, #tpu.memory_space<vmem>>, vector<1x64x64xbf16>
    %128 = vector.shape_cast %127 : vector<1x64x64xbf16> to vector<64x64xbf16>
    %cst_71 = arith.constant dense<0.000000e+00> : vector<256x64xf32>
    %129 = tpu.matmul %126, %128, %cst_71 {dimension_numbers = #tpu.dot_dimension_numbers<[1], [0], [0], [1], [0, 0, 1, 1], [], []>} : vector<256x64xbf16>, vector<64x64xbf16>, vector<256x64xf32> -> vector<256x64xf32>
    %130 = arith.addf %118, %129 : vector<256x64xf32>
    %c16_72 = arith.constant 16 : index
    %c0_73 = arith.constant 0 : index
    %131 = vector.load %arg8[%c16_72, %c0_73] : memref<290x64xf32, #tpu.memory_space<vmem>>, vector<256x64xf32>
    %132 = arith.truncf %131 : vector<256x64xf32> to vector<256x64xbf16>
    %c1_i32_74 = arith.constant 1 : i32
    %133 = vector.broadcast %c1_i32_74 : i32 to vector<256x1xi32>
    %134 = arith.cmpi sge, %16, %133 : vector<256x1xi32>
    %cst_75 = arith.constant 0.000000e+00 : bf16
    %135 = vector.broadcast %cst_75 : bf16 to vector<256x64xbf16>
    %136 = vector.shape_cast %134 : vector<256x1xi1> to vector<256x1xi1>
    %137 = vector.broadcast %136 : vector<256x1xi1> to vector<256x64xi1>
    %138 = arith.select %137, %132, %135 : vector<256x64xi1>, vector<256x64xbf16>
    %c0_76 = arith.constant 0 : index
    %c192 = arith.constant 192 : index
    %c0_77 = arith.constant 0 : index
    %139 = vector.load %arg5[%c0_76, %c192, %c0_77] : memref<1x576x64xbf16, #tpu.memory_space<vmem>>, vector<1x64x64xbf16>
    %140 = vector.shape_cast %139 : vector<1x64x64xbf16> to vector<64x64xbf16>
    %cst_78 = arith.constant dense<0.000000e+00> : vector<256x64xf32>
    %141 = tpu.matmul %138, %140, %cst_78 {dimension_numbers = #tpu.dot_dimension_numbers<[1], [0], [0], [1], [0, 0, 1, 1], [], []>} : vector<256x64xbf16>, vector<64x64xbf16>, vector<256x64xf32> -> vector<256x64xf32>
    %142 = arith.addf %130, %141 : vector<256x64xf32>
    %c32_79 = arith.constant 32 : index
    %c0_80 = arith.constant 0 : index
    %143 = vector.load %arg8[%c32_79, %c0_80] : memref<290x64xf32, #tpu.memory_space<vmem>>, vector<256x64xf32>
    %144 = arith.truncf %143 : vector<256x64xf32> to vector<256x64xbf16>
    %c1_i32_81 = arith.constant 1 : i32
    %145 = vector.broadcast %c1_i32_81 : i32 to vector<256x1xi32>
    %146 = arith.cmpi sge, %16, %145 : vector<256x1xi32>
    %cst_82 = arith.constant 0.000000e+00 : bf16
    %147 = vector.broadcast %cst_82 : bf16 to vector<256x64xbf16>
    %148 = vector.shape_cast %146 : vector<256x1xi1> to vector<256x1xi1>
    %149 = vector.broadcast %148 : vector<256x1xi1> to vector<256x64xi1>
    %150 = arith.select %149, %144, %147 : vector<256x64xi1>, vector<256x64xbf16>
    %c0_83 = arith.constant 0 : index
    %c384 = arith.constant 384 : index
    %c0_84 = arith.constant 0 : index
    %151 = vector.load %arg5[%c0_83, %c384, %c0_84] : memref<1x576x64xbf16, #tpu.memory_space<vmem>>, vector<1x64x64xbf16>
    %152 = vector.shape_cast %151 : vector<1x64x64xbf16> to vector<64x64xbf16>
    %cst_85 = arith.constant dense<0.000000e+00> : vector<256x64xf32>
    %153 = tpu.matmul %150, %152, %cst_85 {dimension_numbers = #tpu.dot_dimension_numbers<[1], [0], [0], [1], [0, 0, 1, 1], [], []>} : vector<256x64xbf16>, vector<64x64xbf16>, vector<256x64xf32> -> vector<256x64xf32>
    %154 = arith.addf %142, %153 : vector<256x64xf32>
    %c1_86 = arith.constant 1 : index
    %c0_87 = arith.constant 0 : index
    %155 = vector.load %arg8[%c1_86, %c0_87] : memref<290x64xf32, #tpu.memory_space<vmem>>, vector<256x64xf32>
    %156 = arith.truncf %155 : vector<256x64xf32> to vector<256x64xbf16>
    %c0_88 = arith.constant 0 : index
    %c64 = arith.constant 64 : index
    %c0_89 = arith.constant 0 : index
    %157 = vector.load %arg5[%c0_88, %c64, %c0_89] : memref<1x576x64xbf16, #tpu.memory_space<vmem>>, vector<1x64x64xbf16>
    %158 = vector.shape_cast %157 : vector<1x64x64xbf16> to vector<64x64xbf16>
    %cst_90 = arith.constant dense<0.000000e+00> : vector<256x64xf32>
    %159 = tpu.matmul %156, %158, %cst_90 {dimension_numbers = #tpu.dot_dimension_numbers<[1], [0], [0], [1], [0, 0, 1, 1], [], []>} : vector<256x64xbf16>, vector<64x64xbf16>, vector<256x64xf32> -> vector<256x64xf32>
    %160 = arith.addf %154, %159 : vector<256x64xf32>
    %c17_91 = arith.constant 17 : index
    %c0_92 = arith.constant 0 : index
    %161 = vector.load %arg8[%c17_91, %c0_92] : memref<290x64xf32, #tpu.memory_space<vmem>>, vector<256x64xf32>
    %162 = arith.truncf %161 : vector<256x64xf32> to vector<256x64xbf16>
    %c0_93 = arith.constant 0 : index
    %c256 = arith.constant 256 : index
    %c0_94 = arith.constant 0 : index
    %163 = vector.load %arg5[%c0_93, %c256, %c0_94] : memref<1x576x64xbf16, #tpu.memory_space<vmem>>, vector<1x64x64xbf16>
    %164 = vector.shape_cast %163 : vector<1x64x64xbf16> to vector<64x64xbf16>
    %cst_95 = arith.constant dense<0.000000e+00> : vector<256x64xf32>
    %165 = tpu.matmul %162, %164, %cst_95 {dimension_numbers = #tpu.dot_dimension_numbers<[1], [0], [0], [1], [0, 0, 1, 1], [], []>} : vector<256x64xbf16>, vector<64x64xbf16>, vector<256x64xf32> -> vector<256x64xf32>
    %166 = arith.addf %160, %165 : vector<256x64xf32>
    %c33_96 = arith.constant 33 : index
    %c0_97 = arith.constant 0 : index
    %167 = vector.load %arg8[%c33_96, %c0_97] : memref<290x64xf32, #tpu.memory_space<vmem>>, vector<256x64xf32>
    %168 = arith.truncf %167 : vector<256x64xf32> to vector<256x64xbf16>
    %c0_98 = arith.constant 0 : index
    %c448 = arith.constant 448 : index
    %c0_99 = arith.constant 0 : index
    %169 = vector.load %arg5[%c0_98, %c448, %c0_99] : memref<1x576x64xbf16, #tpu.memory_space<vmem>>, vector<1x64x64xbf16>
    %170 = vector.shape_cast %169 : vector<1x64x64xbf16> to vector<64x64xbf16>
    %cst_100 = arith.constant dense<0.000000e+00> : vector<256x64xf32>
    %171 = tpu.matmul %168, %170, %cst_100 {dimension_numbers = #tpu.dot_dimension_numbers<[1], [0], [0], [1], [0, 0, 1, 1], [], []>} : vector<256x64xbf16>, vector<64x64xbf16>, vector<256x64xf32> -> vector<256x64xf32>
    %172 = arith.addf %166, %171 : vector<256x64xf32>
    %c2_101 = arith.constant 2 : index
    %c0_102 = arith.constant 0 : index
    %173 = vector.load %arg8[%c2_101, %c0_102] : memref<290x64xf32, #tpu.memory_space<vmem>>, vector<256x64xf32>
    %174 = arith.truncf %173 : vector<256x64xf32> to vector<256x64xbf16>
    %c14_i32_103 = arith.constant 14 : i32
    %175 = vector.broadcast %c14_i32_103 : i32 to vector<256x1xi32>
    %176 = arith.cmpi sle, %16, %175 : vector<256x1xi32>
    %cst_104 = arith.constant 0.000000e+00 : bf16
    %177 = vector.broadcast %cst_104 : bf16 to vector<256x64xbf16>
    %178 = vector.shape_cast %176 : vector<256x1xi1> to vector<256x1xi1>
    %179 = vector.broadcast %178 : vector<256x1xi1> to vector<256x64xi1>
    %180 = arith.select %179, %174, %177 : vector<256x64xi1>, vector<256x64xbf16>
    %c0_105 = arith.constant 0 : index
    %c128 = arith.constant 128 : index
    %c0_106 = arith.constant 0 : index
    %181 = vector.load %arg5[%c0_105, %c128, %c0_106] : memref<1x576x64xbf16, #tpu.memory_space<vmem>>, vector<1x64x64xbf16>
    %182 = vector.shape_cast %181 : vector<1x64x64xbf16> to vector<64x64xbf16>
    %cst_107 = arith.constant dense<0.000000e+00> : vector<256x64xf32>
    %183 = tpu.matmul %180, %182, %cst_107 {dimension_numbers = #tpu.dot_dimension_numbers<[1], [0], [0], [1], [0, 0, 1, 1], [], []>} : vector<256x64xbf16>, vector<64x64xbf16>, vector<256x64xf32> -> vector<256x64xf32>
    %184 = arith.addf %172, %183 : vector<256x64xf32>
    %c18_108 = arith.constant 18 : index
    %c0_109 = arith.constant 0 : index
    %185 = vector.load %arg8[%c18_108, %c0_109] : memref<290x64xf32, #tpu.memory_space<vmem>>, vector<256x64xf32>
    %186 = arith.truncf %185 : vector<256x64xf32> to vector<256x64xbf16>
    %c14_i32_110 = arith.constant 14 : i32
    %187 = vector.broadcast %c14_i32_110 : i32 to vector<256x1xi32>
    %188 = arith.cmpi sle, %16, %187 : vector<256x1xi32>
    %cst_111 = arith.constant 0.000000e+00 : bf16
    %189 = vector.broadcast %cst_111 : bf16 to vector<256x64xbf16>
    %190 = vector.shape_cast %188 : vector<256x1xi1> to vector<256x1xi1>
    %191 = vector.broadcast %190 : vector<256x1xi1> to vector<256x64xi1>
    %192 = arith.select %191, %186, %189 : vector<256x64xi1>, vector<256x64xbf16>
    %c0_112 = arith.constant 0 : index
    %c320 = arith.constant 320 : index
    %c0_113 = arith.constant 0 : index
    %193 = vector.load %arg5[%c0_112, %c320, %c0_113] : memref<1x576x64xbf16, #tpu.memory_space<vmem>>, vector<1x64x64xbf16>
    %194 = vector.shape_cast %193 : vector<1x64x64xbf16> to vector<64x64xbf16>
    %cst_114 = arith.constant dense<0.000000e+00> : vector<256x64xf32>
    %195 = tpu.matmul %192, %194, %cst_114 {dimension_numbers = #tpu.dot_dimension_numbers<[1], [0], [0], [1], [0, 0, 1, 1], [], []>} : vector<256x64xbf16>, vector<64x64xbf16>, vector<256x64xf32> -> vector<256x64xf32>
    %196 = arith.addf %184, %195 : vector<256x64xf32>
    %c34_115 = arith.constant 34 : index
    %c0_116 = arith.constant 0 : index
    %197 = vector.load %arg8[%c34_115, %c0_116] : memref<290x64xf32, #tpu.memory_space<vmem>>, vector<256x64xf32>
    %198 = arith.truncf %197 : vector<256x64xf32> to vector<256x64xbf16>
    %c14_i32_117 = arith.constant 14 : i32
    %199 = vector.broadcast %c14_i32_117 : i32 to vector<256x1xi32>
    %200 = arith.cmpi sle, %16, %199 : vector<256x1xi32>
    %cst_118 = arith.constant 0.000000e+00 : bf16
    %201 = vector.broadcast %cst_118 : bf16 to vector<256x64xbf16>
    %202 = vector.shape_cast %200 : vector<256x1xi1> to vector<256x1xi1>
    %203 = vector.broadcast %202 : vector<256x1xi1> to vector<256x64xi1>
    %204 = arith.select %203, %198, %201 : vector<256x64xi1>, vector<256x64xbf16>
    %c0_119 = arith.constant 0 : index
    %c512 = arith.constant 512 : index
    %c0_120 = arith.constant 0 : index
    %205 = vector.load %arg5[%c0_119, %c512, %c0_120] : memref<1x576x64xbf16, #tpu.memory_space<vmem>>, vector<1x64x64xbf16>
    %206 = vector.shape_cast %205 : vector<1x64x64xbf16> to vector<64x64xbf16>
    %cst_121 = arith.constant dense<0.000000e+00> : vector<256x64xf32>
    %207 = tpu.matmul %204, %206, %cst_121 {dimension_numbers = #tpu.dot_dimension_numbers<[1], [0], [0], [1], [0, 0, 1, 1], [], []>} : vector<256x64xbf16>, vector<64x64xbf16>, vector<256x64xf32> -> vector<256x64xf32>
    %208 = arith.addf %196, %207 : vector<256x64xf32>
    %c0_122 = arith.constant 0 : index
    %c0_123 = arith.constant 0 : index
    %209 = vector.load %arg6[%c0_122, %c0_123] : memref<1x64xf32, #tpu.memory_space<vmem>>, vector<1x64xf32>
    %210 = vector.broadcast %209 : vector<1x64xf32> to vector<256x64xf32>
    %211 = arith.addf %208, %210 : vector<256x64xf32>
    %cst_124 = arith.constant 0.000000e+00 : f32
    %212 = vector.broadcast %cst_124 : f32 to vector<256x64xf32>
    %213 = arith.maximumf %211, %212 : vector<256x64xf32>
    %c0_125 = arith.constant 0 : index
    %c0_126 = arith.constant 0 : index
    %c0_127 = arith.constant 0 : index
    %214 = vector.load %arg7[%c0_125, %c0_126, %c0_127] : memref<1x256x64xf32, #tpu.memory_space<vmem>>, vector<1x256x64xf32>
    %215 = vector.shape_cast %214 : vector<1x256x64xf32> to vector<256x64xf32>
    %216 = vector.shape_cast %213 : vector<256x64xf32> to vector<1x256x64xf32>
    tpu.vector_store %arg7[%c0_125, %c0_126, %c0_127], %216 {strides = array<i32>} : memref<1x256x64xf32, #tpu.memory_space<vmem>>, vector<1x256x64xf32>,
    return
  }
  func.func @transform_0(%arg0: i32, %arg1: i32) -> (i32, i32, i32) {
    %c0_i32 = arith.constant 0 : i32
    %c0_i32_0 = arith.constant 0 : i32
    %c0_i32_1 = arith.constant 0 : i32
    return %arg1, %c0_i32, %c0_i32_0 : i32, i32, i32
  }
  func.func @transform_1(%arg0: i32, %arg1: i32) -> (i32, i32) {
    %c0_i32 = arith.constant 0 : i32
    %c0_i32_0 = arith.constant 0 : i32
    %c0_i32_1 = arith.constant 0 : i32
    return %c0_i32, %c0_i32_0 : i32, i32
  }
  func.func @transform_2(%arg0: i32, %arg1: i32) -> (i32, i32) {
    %c0_i32 = arith.constant 0 : i32
    %c0_i32_0 = arith.constant 0 : i32
    %c0_i32_1 = arith.constant 0 : i32
    return %c0_i32, %c0_i32_0 : i32, i32
  }
  func.func @transform_3(%arg0: i32, %arg1: i32) -> (i32, i32, i32) {
    %c0_i32 = arith.constant 0 : i32
    %c0_i32_0 = arith.constant 0 : i32
    %c0_i32_1 = arith.constant 0 : i32
    return %arg0, %c0_i32, %c0_i32_0 : i32, i32, i32
  }
  func.func @transform_4(%arg0: i32, %arg1: i32) -> (i32, i32) {
    %c0_i32 = arith.constant 0 : i32
    %c0_i32_0 = arith.constant 0 : i32
    return %c0_i32, %arg0 : i32, i32
  }
  func.func @transform_5(%arg0: i32, %arg1: i32) -> (i32, i32, i32) {
    %c0_i32 = arith.constant 0 : i32
    %c0_i32_0 = arith.constant 0 : i32
    return %arg1, %c0_i32, %arg0 : i32, i32, i32
  }
}

</mosaic_0001>

<llo_original>
// kernel: tpu_custom_call.1
$region0: #{tpu_custom_call.1}
  #allocation0 [shape = 'u32[]', space=smem, size = 0x4, offset = 0x4, fixed_abs, tag = 'smem constant byte address 0x4 - core index']
  #allocation1 [shape = 'u32[144,128]{1,0:T(1,128)}', space=vmem, size = 0x12000, scoped, tag = 'internal scratch']
  #allocation2 [shape = 'f32[290,64]{1,0:T(8,128)}', space=vmem, size = 0x25000, scoped, tag = 'scratch operand']
  %s0 = inlined_call_operand.vmem [shape: f32[2,290,4], index: 0, kind: input, shape index: {}]
  %s1 = inlined_call_operand.vmem [shape: bf16[36,64], index: 1, kind: input, shape index: {}]
  %s2 = inlined_call_operand.vmem [shape: f32[1,64], index: 2, kind: input, shape index: {}]
  %s3 = inlined_call_operand.vmem [shape: bf16[1,576,64], index: 3, kind: input, shape index: {}]
  %s4 = inlined_call_operand.vmem [shape: f32[1,64], index: 4, kind: input, shape index: {}]
  %s5 = inlined_call_operand.vmem [shape: f32[2,256,64], index: 5, kind: output, shape index: {}]
  %s6 = sld [smem:[#allocation0]]
  $region53: #{tpu_custom_call.1} parent=0
    _
  %s8 = ssub.s32 1, %s6
  %s9 = scalar_select 0, %s8, %s6
  loop: start=0, step=1, limit=4
  $region2: #{tpu_custom_call.1} parent=0 // loop_pre_header
    _
  $region3: #{tpu_custom_call.1} parent=0 // loop_header
    %s11 = sphi 0, %s15
    %p12 = scmp.ge.s32.totalorder %s11, 4
    %s18 = sphi 0, %s30
    %s19 = sphi 0, %s26
    %s20 = sphi 0, %s18
    %s21 = sphi 0, %s19
    %s22 = sphi 0, %s20
    %s23 = sphi 0, %s21
    %s33 = sphi 0, %s35
    %s36 = sphi 0, %s33
    %s37 = sphi 0, %s36
    %s53 = sphi 0, %s37
    %s57 = sphi 0, %s57
    %s59 = sphi 0, %s57
    %s60 = sphi 0, %s59
    %s74 = sphi 0, %s60
    %s78 = sphi 0, %s78
    %s80 = sphi 0, %s78
    %s81 = sphi 0, %s80
    %s95 = sphi 0, %s81
    %s101 = sphi 0, %s103
    %s104 = sphi 0, %s101
    %s105 = sphi 0, %s104
    %s121 = sphi 0, %s105
    %s127 = sphi 0, %s129
    %s130 = sphi 0, %s127
    %s131 = sphi 0, %s130
    %s147 = sphi 0, %s131
    %s155 = sphi 0, %s157
    %s158 = sphi 0, %s155
    %s159 = sphi 0, %s158
    %s175 = sphi 0, %s159
  $region4: #{tpu_custom_call.1} parent=0 // loop_header_branch
    %14 = sbr.rel (%p12) target = $region8
  $region5: #{tpu_custom_call.1} parent=0 // loop_body
    %s16 = ssub.s32 %s11, 1
    %s17 = ssub.s32 %s11, 2
    %s24 = sadd.s32 1, %s19
    %p25 = scmp.ge.s32.totalorder %s24, 2
    %s26 = scalar_select %p25, 0, %s24
    %s27 = sadd.s32 1, %s18
    %s28 = scalar_select %p25, %s27, %s18
    %p29 = scmp.ge.s32.totalorder %s28, 1
    %s30 = scalar_select %p29, 0, %s28
    %s31 = ssub.s32 %s19, %s26
    %p32 = scmp.eq.s32.totalorder %s31, 0
    %s34 = sadd.s32 %s33, 1
    %s35 = scalar_select %p32, %s33, %s34
    %p38 = pneg %p32
    %p39 = scmp.eq.s32.totalorder %s11, 1
    %p40 = por %p38, %p39
    %p41 = scmp.ne.s32.totalorder %s33, %s36
    %p42 = scmp.eq.s32.totalorder %s11, 0
    %p43 = por %p41, %p42
    %p44 = scmp.ne.s32.totalorder %s33, %s36
    %p45 = scmp.eq.s32.totalorder %s16, 1
    %p46 = por %p44, %p45
    %p47 = scmp.ne.s32.totalorder %s36, %s37
    %p48 = scmp.eq.s32.totalorder %s16, 0
    %p49 = por %p47, %p48
    %p50 = scmp.ne.s32.totalorder %s36, %s37
    %p51 = scmp.eq.s32.totalorder %s17, 1
    %p52 = por %p50, %p51
    %p54 = scmp.ne.s32.totalorder %s37, %s53
    %p55 = scmp.eq.s32.totalorder %s17, 0
    %p56 = por %p54, %p55
    %s58 = sadd.s32 %s57, 1
    %p61 = scmp.eq.s32.totalorder %s11, 1
    %p62 = scmp.ne.s32.totalorder %s57, %s59
    %p63 = scmp.eq.s32.totalorder %s11, 0
    %p64 = por %p62, %p63
    %p65 = scmp.ne.s32.totalorder %s57, %s59
    %p66 = scmp.eq.s32.totalorder %s16, 1
    %p67 = por %p65, %p66
    %p68 = scmp.ne.s32.totalorder %s59, %s60
    %p69 = scmp.eq.s32.totalorder %s16, 0
    %p70 = por %p68, %p69
    %p71 = scmp.ne.s32.totalorder %s59, %s60
    %p72 = scmp.eq.s32.totalorder %s17, 1
    %p73 = por %p71, %p72
    %p75 = scmp.ne.s32.totalorder %s60, %s74
    %p76 = scmp.eq.s32.totalorder %s17, 0
    %p77 = por %p75, %p76
    %s79 = sadd.s32 %s78, 1
    %p82 = scmp.eq.s32.totalorder %s11, 1
    %p83 = scmp.ne.s32.totalorder %s78, %s80
    %p84 = scmp.eq.s32.totalorder %s11, 0
    %p85 = por %p83, %p84
    %p86 = scmp.ne.s32.totalorder %s78, %s80
    %p87 = scmp.eq.s32.totalorder %s16, 1
    %p88 = por %p86, %p87
    %p89 = scmp.ne.s32.totalorder %s80, %s81
    %p90 = scmp.eq.s32.totalorder %s16, 0
    %p91 = por %p89, %p90
    %p92 = scmp.ne.s32.totalorder %s80, %s81
    %p93 = scmp.eq.s32.totalorder %s17, 1
    %p94 = por %p92, %p93
    %p96 = scmp.ne.s32.totalorder %s81, %s95
    %p97 = scmp.eq.s32.totalorder %s17, 0
    %p98 = por %p96, %p97
    %s99 = ssub.s32 %s18, %s30
    %p100 = scmp.eq.s32.totalorder %s99, 0
    %s102 = sadd.s32 %s101, 1
    %s103 = scalar_select %p100, %s101, %s102
    %p106 = pneg %p100
    %p107 = scmp.eq.s32.totalorder %s11, 1
    %p108 = por %p106, %p107
    %p109 = scmp.ne.s32.totalorder %s101, %s104
    %p110 = scmp.eq.s32.totalorder %s11, 0
    %p111 = por %p109, %p110
    %p112 = scmp.ne.s32.totalorder %s101, %s104
    %p113 = scmp.eq.s32.totalorder %s16, 1
    %p114 = por %p112, %p113
    %p115 = scmp.ne.s32.totalorder %s104, %s105
    %p116 = scmp.eq.s32.totalorder %s16, 0
    %p117 = por %p115, %p116
    %p118 = scmp.ne.s32.totalorder %s104, %s105
    %p119 = scmp.eq.s32.totalorder %s17, 1
    %p120 = por %p118, %p119
    %p122 = scmp.ne.s32.totalorder %s105, %s121
    %p123 = scmp.eq.s32.totalorder %s17, 0
    %p124 = por %p122, %p123
    %s125 = ssub.s32 %s18, %s30
    %p126 = scmp.eq.s32.totalorder %s125, 0
    %s128 = sadd.s32 %s127, 1
    %s129 = scalar_select %p126, %s127, %s128
    %p132 = pneg %p126
    %p133 = scmp.eq.s32.totalorder %s11, 1
    %p134 = por %p132, %p133
    %p135 = scmp.ne.s32.totalorder %s127, %s130
    %p136 = scmp.eq.s32.totalorder %s11, 0
    %p137 = por %p135, %p136
    %p138 = scmp.ne.s32.totalorder %s127, %s130
    %p139 = scmp.eq.s32.totalorder %s16, 1
    %p140 = por %p138, %p139
    %p141 = scmp.ne.s32.totalorder %s130, %s131
    %p142 = scmp.eq.s32.totalorder %s16, 0
    %p143 = por %p141, %p142
    %p144 = scmp.ne.s32.totalorder %s130, %s131
    %p145 = scmp.eq.s32.totalorder %s17, 1
    %p146 = por %p144, %p145
    %p148 = scmp.ne.s32.totalorder %s131, %s147
    %p149 = scmp.eq.s32.totalorder %s17, 0
    %p150 = por %p148, %p149
    %s151 = ssub.s32 %s19, %s26
    %s152 = ssub.s32 %s18, %s30
    %s153 = sor.u32 %s151, %s152
    %p154 = scmp.eq.s32.totalorder %s153, 0
    %s156 = sadd.s32 %s155, 1
    %s157 = scalar_select %p154, %s155, %s156
    %p160 = pneg %p154
    %p161 = scmp.eq.s32.totalorder %s11, 1
    %p162 = por %p160, %p161
    %p163 = scmp.ne.s32.totalorder %s155, %s158
    %p164 = scmp.eq.s32.totalorder %s11, 0
    %p165 = por %p163, %p164
    %p166 = scmp.ne.s32.totalorder %s155, %s158
    %p167 = scmp.eq.s32.totalorder %s16, 1
    %p168 = por %p166, %p167
    %p169 = scmp.ne.s32.totalorder %s158, %s159
    %p170 = scmp.eq.s32.totalorder %s16, 0
    %p171 = por %p169, %p170
    %p172 = scmp.ne.s32.totalorder %s158, %s159
    %p173 = scmp.eq.s32.totalorder %s17, 1
    %p174 = por %p172, %p173
    %p176 = scmp.ne.s32.totalorder %s159, %s175
    %p177 = scmp.eq.s32.totalorder %s17, 0
    %p178 = por %p176, %p177
    %p179 = scmp.le.s32.totalorder 1, %s11
    %p180 = scmp.lt.s32.totalorder %s11, 3
    %p181 = pnand %p179, %p180
    %p182 = pneg %p181
    // Predicated region
    $region9: #{tpu_custom_call.1} parent=5 // pred_check
      _
    $region10: #{tpu_custom_call.1} parent=5 // pred_check_branch
      %184 = sbr.rel (%p181) target = $region12
    $region11: #{tpu_custom_call.1} parent=5 // pred_region
      %s185 = ssub.s32 %s11, 1
      // Predicated region
      $region13: #{tpu_custom_call.1} parent=11 // pred_check
        %p186 = pneg %p70
      $region14: #{tpu_custom_call.1} parent=11 // pred_check_branch
        %188 = sbr.rel (%p186) target = $region16
      $region15: #{tpu_custom_call.1} parent=11 // pred_region
        _
      $region16: #{tpu_custom_call.1} parent=11 // pred_fallthru
        _
      // Predicated region
      $region17: #{tpu_custom_call.1} parent=11 // pred_check
        %p189 = pneg %p91
      $region18: #{tpu_custom_call.1} parent=11 // pred_check_branch
        %191 = sbr.rel (%p189) target = $region20
      $region19: #{tpu_custom_call.1} parent=11 // pred_region
        _
      $region20: #{tpu_custom_call.1} parent=11 // pred_fallthru
        _
      // Predicated region
      $region21: #{tpu_custom_call.1} parent=11 // pred_check
        %p192 = pneg %p117
      $region22: #{tpu_custom_call.1} parent=11 // pred_check_branch
        %194 = sbr.rel (%p192) target = $region24
      $region23: #{tpu_custom_call.1} parent=11 // pred_region
        %p195 = scmp.lt.s32.totalorder %s20, 0
        %s196 = scalar_select %p195, %s20, 0
        %s197 = smul.addr %s196, 72
        %s198 = smul.addr %s197, 4
        %s199 = scalar_lea.vmem %s3, %s198
      $region24: #{tpu_custom_call.1} parent=11 // pred_fallthru
        _
      // Predicated region
      $region25: #{tpu_custom_call.1} parent=11 // pred_check
        %p200 = pneg %p143
      $region26: #{tpu_custom_call.1} parent=11 // pred_check_branch
        %202 = sbr.rel (%p200) target = $region28
      $region27: #{tpu_custom_call.1} parent=11 // pred_region
        %p203 = scmp.lt.s32.totalorder %s20, 0
        %s204 = scalar_select %p203, %s20, 0
        %s205 = scalar_lea.vmem %s4, %s204
      $region28: #{tpu_custom_call.1} parent=11 // pred_fallthru
        _
    $region12: #{tpu_custom_call.1} parent=5 // pred_fallthru
      _
    %p206 = scmp.lt.s32.totalorder %s11, 2
    // Predicated region
    $region29: #{tpu_custom_call.1} parent=5 // pred_check
      %p207 = pneg %p206
    $region30: #{tpu_custom_call.1} parent=5 // pred_check_branch
      %209 = sbr.rel (%p207) target = $region32
    $region31: #{tpu_custom_call.1} parent=5 // pred_region
      // Predicated region
      $region33: #{tpu_custom_call.1} parent=31 // pred_check
        %p210 = pneg %p43
      $region34: #{tpu_custom_call.1} parent=31 // pred_check_branch
        %212 = sbr.rel (%p210) target = $region36
      $region35: #{tpu_custom_call.1} parent=31 // pred_region
        %p213 = scmp.lt.s32.totalorder %s19, 1
        %s214 = scalar_select %p213, %s19, 1
        %s215 = smul.addr %s214, 37
        %s216 = smul.addr %s215, 8
        %s217 = scalar_lea.vmem %s0, %s216
      $region36: #{tpu_custom_call.1} parent=31 // pred_fallthru
        _
    $region32: #{tpu_custom_call.1} parent=5 // pred_fallthru
      _
    %p218 = scmp.le.s32.totalorder 1, %s11
    %p219 = scmp.lt.s32.totalorder %s11, 3
    %p220 = pnand %p218, %p219
    %p221 = pneg %p220
    // Predicated region
    $region37: #{tpu_custom_call.1} parent=5 // pred_check
      _
    $region38: #{tpu_custom_call.1} parent=5 // pred_check_branch
      %223 = sbr.rel (%p220) target = $region40
    $region39: #{tpu_custom_call.1} parent=5 // pred_region
      %s224 = ssub.s32 %s11, 1
      %p225 = scmp.lt.s32.totalorder %s21, 1
      %s226 = scalar_select %p225, %s21, 1
      %s227 = smul.addr %s226, 37
      %s228 = smul.addr %s227, 8
      %s229 = scalar_lea.vmem %s0, %s228
      %p230 = pneg %p49
      %p231 = pneg %p46
      %p232 = pneg %p70
      %p233 = pneg %p67
      %p234 = pneg %p91
      %p235 = pneg %p88
      %p236 = scmp.lt.s32.totalorder %s20, 0
      %s237 = scalar_select %p236, %s20, 0
      %s238 = smul.addr %s237, 72
      %s239 = smul.addr %s238, 4
      %s240 = scalar_lea.vmem %s3, %s239
      %p241 = pneg %p117
      %p242 = pneg %p114
      %p243 = scmp.lt.s32.totalorder %s20, 0
      %s244 = scalar_select %p243, %s20, 0
      %s245 = scalar_lea.vmem %s4, %s244
      %p246 = pneg %p143
      %p247 = pneg %p140
      %p248 = pneg %p171
      %p249 = pneg %p168
      %p250 = scmp.lt.s32.totalorder %s21, 1
      %s251 = scalar_select %p250, %s21, 1
      %p252 = scmp.lt.s32.totalorder %s20, 0
      %s253 = scalar_select %p252, %s20, 0
      %s254 = smul.addr %s251, 32
      %s255 = sadd.s32 %s253, %s254
      %s256 = smul.addr %s255, 8
      %s257 = scalar_lea.vmem %s5, %s256
      %p258 = scmp.lt.s32.totalorder %s21, 1
      %s259 = scalar_select %p258, %s21, 1
      %s260 = smul.addr %s259, 37
      %s261 = smul.addr %s260, 8
      %s262 = scalar_lea.vmem %s0, %s261
      %p263 = scmp.lt.s32.totalorder %s20, 0
      %s264 = scalar_select %p263, %s20, 0
      %s265 = smul.addr %s264, 72
      %s266 = smul.addr %s265, 4
      %s267 = scalar_lea.vmem %s3, %s266
      %p268 = scmp.lt.s32.totalorder %s20, 0
      %s269 = scalar_select %p268, %s20, 0
      %s270 = scalar_lea.vmem %s4, %s269
      %p271 = scmp.lt.s32.totalorder %s21, 1
      %s272 = scalar_select %p271, %s21, 1
      %p273 = scmp.lt.s32.totalorder %s20, 0
      %s274 = scalar_select %p273, %s20, 0
      %s275 = smul.addr %s272, 32
      %s276 = sadd.s32 %s274, %s275
      %s277 = smul.addr %s276, 8
      %s278 = scalar_lea.vmem %s5, %s277
      %v282 = vlaneseq
      %v283 = vshrl.u32 %v282, 7
      %v284 = vadd.s32 %v283, 8
      %v285 = vadd.s32 %v283, 16
      %v286 = vadd.s32 %v283, 24
      %v287 = vadd.s32 %v283, 32
      %v288 = vadd.s32 %v283, 40
      %v289 = vadd.s32 %v283, 48
      %v290 = vadd.s32 %v283, 56
      %v291 = vadd.s32 %v283, 64
      %v292 = vadd.s32 %v283, 72
      %v293 = vadd.s32 %v283, 80
      %v294 = vadd.s32 %v283, 88
      %v295 = vadd.s32 %v283, 96
      %v296 = vadd.s32 %v283, 104
      %v297 = vadd.s32 %v283, 112
      %v298 = vadd.s32 %v283, 120
      %v299 = vadd.s32 %v283, 128
      %v300 = vadd.s32 %v283, 136
      %v301 = vadd.s32 %v283, 144
      %v302 = vadd.s32 %v283, 152
      %v303 = vadd.s32 %v283, 160
      %v304 = vadd.s32 %v283, 168
      %v305 = vadd.s32 %v283, 176
      %v306 = vadd.s32 %v283, 184
      %v307 = vadd.s32 %v283, 192
      %v308 = vadd.s32 %v283, 200
      %v309 = vadd.s32 %v283, 208
      %v310 = vadd.s32 %v283, 216
      %v311 = vadd.s32 %v283, 224
      %v312 = vadd.s32 %v283, 232
      %v313 = vadd.s32 %v283, 240
      %v314 = vadd.s32 %v283, 248
      %vm315 = vcmp.lt.s32.totalorder %v283, 0
      %v316 = vsub.s32 0, %v283
      %v317 = vsel %vm315, %v316, %v283
      %v318 = vshrl.u32 %v317, 4
      %v319 = vand.u32 %v317, 15
      %v320 = vsub.s32 0, %v319
      %v321 = vsel %vm315, %v320, %v319
      %vm322 = vcmp.lt.s32.totalorder %v284, 0
      %v323 = vsub.s32 0, %v284
      %v324 = vsel %vm322, %v323, %v284
      %v325 = vshrl.u32 %v324, 4
      %v326 = vand.u32 %v324, 15
      %v327 = vsub.s32 0, %v326
      %v328 = vsel %vm322, %v327, %v326
      %vm329 = vcmp.lt.s32.totalorder %v285, 0
      %v330 = vsub.s32 0, %v285
      %v331 = vsel %vm329, %v330, %v285
      %v332 = vshrl.u32 %v331, 4
      %v333 = vand.u32 %v331, 15
      %v334 = vsub.s32 0, %v333
      %v335 = vsel %vm329, %v334, %v333
      %vm336 = vcmp.lt.s32.totalorder %v286, 0
      %v337 = vsub.s32 0, %v286
      %v338 = vsel %vm336, %v337, %v286
      %v339 = vshrl.u32 %v338, 4
      %v340 = vand.u32 %v338, 15
      %v341 = vsub.s32 0, %v340
      %v342 = vsel %vm336, %v341, %v340
      %vm343 = vcmp.lt.s32.totalorder %v287, 0
      %v344 = vsub.s32 0, %v287
      %v345 = vsel %vm343, %v344, %v287
      %v346 = vshrl.u32 %v345, 4
      %v347 = vand.u32 %v345, 15
      %v348 = vsub.s32 0, %v347
      %v349 = vsel %vm343, %v348, %v347
      %vm350 = vcmp.lt.s32.totalorder %v288, 0
      %v351 = vsub.s32 0, %v288
      %v352 = vsel %vm350, %v351, %v288
      %v353 = vshrl.u32 %v352, 4
      %v354 = vand.u32 %v352, 15
      %v355 = vsub.s32 0, %v354
      %v356 = vsel %vm350, %v355, %v354
      %vm357 = vcmp.lt.s32.totalorder %v289, 0
      %v358 = vsub.s32 0, %v289
      %v359 = vsel %vm357, %v358, %v289
      %v360 = vshrl.u32 %v359, 4
      %v361 = vand.u32 %v359, 15
      %v362 = vsub.s32 0, %v361
      %v363 = vsel %vm357, %v362, %v361
      %vm364 = vcmp.lt.s32.totalorder %v290, 0
      %v365 = vsub.s32 0, %v290
      %v366 = vsel %vm364, %v365, %v290
      %v367 = vshrl.u32 %v366, 4
      %v368 = vand.u32 %v366, 15
      %v369 = vsub.s32 0, %v368
      %v370 = vsel %vm364, %v369, %v368
      %vm371 = vcmp.lt.s32.totalorder %v291, 0
      %v372 = vsub.s32 0, %v291
      %v373 = vsel %vm371, %v372, %v291
      %v374 = vshrl.u32 %v373, 4
      %v375 = vand.u32 %v373, 15
      %v376 = vsub.s32 0, %v375
      %v377 = vsel %vm371, %v376, %v375
      %vm378 = vcmp.lt.s32.totalorder %v292, 0
      %v379 = vsub.s32 0, %v292
      %v380 = vsel %vm378, %v379, %v292
      %v381 = vshrl.u32 %v380, 4
      %v382 = vand.u32 %v380, 15
      %v383 = vsub.s32 0, %v382
      %v384 = vsel %vm378, %v383, %v382
      %vm385 = vcmp.lt.s32.totalorder %v293, 0
      %v386 = vsub.s32 0, %v293
      %v387 = vsel %vm385, %v386, %v293
      %v388 = vshrl.u32 %v387, 4
      %v389 = vand.u32 %v387, 15
      %v390 = vsub.s32 0, %v389
      %v391 = vsel %vm385, %v390, %v389
      %vm392 = vcmp.lt.s32.totalorder %v294, 0
      %v393 = vsub.s32 0, %v294
      %v394 = vsel %vm392, %v393, %v294
      %v395 = vshrl.u32 %v394, 4
      %v396 = vand.u32 %v394, 15
      %v397 = vsub.s32 0, %v396
      %v398 = vsel %vm392, %v397, %v396
      %vm399 = vcmp.lt.s32.totalorder %v295, 0
      %v400 = vsub.s32 0, %v295
      %v401 = vsel %vm399, %v400, %v295
      %v402 = vshrl.u32 %v401, 4
      %v403 = vand.u32 %v401, 15
      %v404 = vsub.s32 0, %v403
      %v405 = vsel %vm399, %v404, %v403
      %vm406 = vcmp.lt.s32.totalorder %v296, 0
      %v407 = vsub.s32 0, %v296
      %v408 = vsel %vm406, %v407, %v296
      %v409 = vshrl.u32 %v408, 4
      %v410 = vand.u32 %v408, 15
      %v411 = vsub.s32 0, %v410
      %v412 = vsel %vm406, %v411, %v410
      %vm413 = vcmp.lt.s32.totalorder %v297, 0
      %v414 = vsub.s32 0, %v297
      %v415 = vsel %vm413, %v414, %v297
      %v416 = vshrl.u32 %v415, 4
      %v417 = vand.u32 %v415, 15
      %v418 = vsub.s32 0, %v417
      %v419 = vsel %vm413, %v418, %v417
      %vm420 = vcmp.lt.s32.totalorder %v298, 0
      %v421 = vsub.s32 0, %v298
      %v422 = vsel %vm420, %v421, %v298
      %v423 = vshrl.u32 %v422, 4
      %v424 = vand.u32 %v422, 15
      %v425 = vsub.s32 0, %v424
      %v426 = vsel %vm420, %v425, %v424
      %vm427 = vcmp.lt.s32.totalorder %v299, 0
      %v428 = vsub.s32 0, %v299
      %v429 = vsel %vm427, %v428, %v299
      %v430 = vshrl.u32 %v429, 4
      %v431 = vand.u32 %v429, 15
      %v432 = vsub.s32 0, %v431
      %v433 = vsel %vm427, %v432, %v431
      %vm434 = vcmp.lt.s32.totalorder %v300, 0
      %v435 = vsub.s32 0, %v300
      %v436 = vsel %vm434, %v435, %v300
      %v437 = vshrl.u32 %v436, 4
      %v438 = vand.u32 %v436, 15
      %v439 = vsub.s32 0, %v438
      %v440 = vsel %vm434, %v439, %v438
      %vm441 = vcmp.lt.s32.totalorder %v301, 0
      %v442 = vsub.s32 0, %v301
      %v443 = vsel %vm441, %v442, %v301
      %v444 = vshrl.u32 %v443, 4
      %v445 = vand.u32 %v443, 15
      %v446 = vsub.s32 0, %v445
      %v447 = vsel %vm441, %v446, %v445
      %vm448 = vcmp.lt.s32.totalorder %v302, 0
      %v449 = vsub.s32 0, %v302
      %v450 = vsel %vm448, %v449, %v302
      %v451 = vshrl.u32 %v450, 4
      %v452 = vand.u32 %v450, 15
      %v453 = vsub.s32 0, %v452
      %v454 = vsel %vm448, %v453, %v452
      %vm455 = vcmp.lt.s32.totalorder %v303, 0
      %v456 = vsub.s32 0, %v303
      %v457 = vsel %vm455, %v456, %v303
      %v458 = vshrl.u32 %v457, 4
      %v459 = vand.u32 %v457, 15
      %v460 = vsub.s32 0, %v459
      %v461 = vsel %vm455, %v460, %v459
      %vm462 = vcmp.lt.s32.totalorder %v304, 0
      %v463 = vsub.s32 0, %v304
      %v464 = vsel %vm462, %v463, %v304
      %v465 = vshrl.u32 %v464, 4
      %v466 = vand.u32 %v464, 15
      %v467 = vsub.s32 0, %v466
      %v468 = vsel %vm462, %v467, %v466
      %vm469 = vcmp.lt.s32.totalorder %v305, 0
      %v470 = vsub.s32 0, %v305
      %v471 = vsel %vm469, %v470, %v305
      %v472 = vshrl.u32 %v471, 4
      %v473 = vand.u32 %v471, 15
      %v474 = vsub.s32 0, %v473
      %v475 = vsel %vm469, %v474, %v473
      %vm476 = vcmp.lt.s32.totalorder %v306, 0
      %v477 = vsub.s32 0, %v306
      %v478 = vsel %vm476, %v477, %v306
      %v479 = vshrl.u32 %v478, 4
      %v480 = vand.u32 %v478, 15
      %v481 = vsub.s32 0, %v480
      %v482 = vsel %vm476, %v481, %v480
      %vm483 = vcmp.lt.s32.totalorder %v307, 0
      %v484 = vsub.s32 0, %v307
      %v485 = vsel %vm483, %v484, %v307
      %v486 = vshrl.u32 %v485, 4
      %v487 = vand.u32 %v485, 15
      %v488 = vsub.s32 0, %v487
      %v489 = vsel %vm483, %v488, %v487
      %vm490 = vcmp.lt.s32.totalorder %v308, 0
      %v491 = vsub.s32 0, %v308
      %v492 = vsel %vm490, %v491, %v308
      %v493 = vshrl.u32 %v492, 4
      %v494 = vand.u32 %v492, 15
      %v495 = vsub.s32 0, %v494
      %v496 = vsel %vm490, %v495, %v494
      %vm497 = vcmp.lt.s32.totalorder %v309, 0
      %v498 = vsub.s32 0, %v309
      %v499 = vsel %vm497, %v498, %v309
      %v500 = vshrl.u32 %v499, 4
      %v501 = vand.u32 %v499, 15
      %v502 = vsub.s32 0, %v501
      %v503 = vsel %vm497, %v502, %v501
      %vm504 = vcmp.lt.s32.totalorder %v310, 0
      %v505 = vsub.s32 0, %v310
      %v506 = vsel %vm504, %v505, %v310
      %v507 = vshrl.u32 %v506, 4
      %v508 = vand.u32 %v506, 15
      %v509 = vsub.s32 0, %v508
      %v510 = vsel %vm504, %v509, %v508
      %vm511 = vcmp.lt.s32.totalorder %v311, 0
      %v512 = vsub.s32 0, %v311
      %v513 = vsel %vm511, %v512, %v311
      %v514 = vshrl.u32 %v513, 4
      %v515 = vand.u32 %v513, 15
      %v516 = vsub.s32 0, %v515
      %v517 = vsel %vm511, %v516, %v515
      %vm518 = vcmp.lt.s32.totalorder %v312, 0
      %v519 = vsub.s32 0, %v312
      %v520 = vsel %vm518, %v519, %v312
      %v521 = vshrl.u32 %v520, 4
      %v522 = vand.u32 %v520, 15
      %v523 = vsub.s32 0, %v522
      %v524 = vsel %vm518, %v523, %v522
      %vm525 = vcmp.lt.s32.totalorder %v313, 0
      %v526 = vsub.s32 0, %v313
      %v527 = vsel %vm525, %v526, %v313
      %v528 = vshrl.u32 %v527, 4
      %v529 = vand.u32 %v527, 15
      %v530 = vsub.s32 0, %v529
      %v531 = vsel %vm525, %v530, %v529
      %vm532 = vcmp.lt.s32.totalorder %v314, 0
      %v533 = vsub.s32 0, %v314
      %v534 = vsel %vm532, %v533, %v314
      %v535 = vshrl.u32 %v534, 4
      %v536 = vand.u32 %v534, 15
      %v537 = vsub.s32 0, %v536
      %v538 = vsel %vm532, %v537, %v536
      %vm539 = vcmp.ne.s32.totalorder %v321, 0
      %vm540 = vcmp.ne.s32.totalorder %v328, 0
      %vm541 = vcmp.ne.s32.totalorder %v335, 0
      %vm542 = vcmp.ne.s32.totalorder %v342, 0
      %vm543 = vcmp.ne.s32.totalorder %v349, 0
      %vm544 = vcmp.ne.s32.totalorder %v356, 0
      %vm545 = vcmp.ne.s32.totalorder %v363, 0
      %vm546 = vcmp.ne.s32.totalorder %v370, 0
      %vm547 = vcmp.ne.s32.totalorder %v377, 0
      %vm548 = vcmp.ne.s32.totalorder %v384, 0
      %vm549 = vcmp.ne.s32.totalorder %v391, 0
      %vm550 = vcmp.ne.s32.totalorder %v398, 0
      %vm551 = vcmp.ne.s32.totalorder %v405, 0
      %vm552 = vcmp.ne.s32.totalorder %v412, 0
      %vm553 = vcmp.ne.s32.totalorder %v419, 0
      %vm554 = vcmp.ne.s32.totalorder %v426, 0
      %vm555 = vcmp.ne.s32.totalorder %v433, 0
      %vm556 = vcmp.ne.s32.totalorder %v440, 0
      %vm557 = vcmp.ne.s32.totalorder %v447, 0
      %vm558 = vcmp.ne.s32.totalorder %v454, 0
      %vm559 = vcmp.ne.s32.totalorder %v461, 0
      %vm560 = vcmp.ne.s32.totalorder %v468, 0
      %vm561 = vcmp.ne.s32.totalorder %v475, 0
      %vm562 = vcmp.ne.s32.totalorder %v482, 0
      %vm563 = vcmp.ne.s32.totalorder %v489, 0
      %vm564 = vcmp.ne.s32.totalorder %v496, 0
      %vm565 = vcmp.ne.s32.totalorder %v503, 0
      %vm566 = vcmp.ne.s32.totalorder %v510, 0
      %vm567 = vcmp.ne.s32.totalorder %v517, 0
      %vm568 = vcmp.ne.s32.totalorder %v524, 0
      %vm569 = vcmp.ne.s32.totalorder %v531, 0
      %vm570 = vcmp.ne.s32.totalorder %v538, 0
      %vm571 = vcmp.lt.s32.totalorder %v321, 0
      %vm572 = vcmp.lt.s32.totalorder %v328, 0
      %vm573 = vcmp.lt.s32.totalorder %v335, 0
      %vm574 = vcmp.lt.s32.totalorder %v342, 0
      %vm575 = vcmp.lt.s32.totalorder %v349, 0
      %vm576 = vcmp.lt.s32.totalorder %v356, 0
      %vm577 = vcmp.lt.s32.totalorder %v363, 0
      %vm578 = vcmp.lt.s32.totalorder %v370, 0
      %vm579 = vcmp.lt.s32.totalorder %v377, 0
      %vm580 = vcmp.lt.s32.totalorder %v384, 0
      %vm581 = vcmp.lt.s32.totalorder %v391, 0
      %vm582 = vcmp.lt.s32.totalorder %v398, 0
      %vm583 = vcmp.lt.s32.totalorder %v405, 0
      %vm584 = vcmp.lt.s32.totalorder %v412, 0
      %vm585 = vcmp.lt.s32.totalorder %v419, 0
      %vm586 = vcmp.lt.s32.totalorder %v426, 0
      %vm587 = vcmp.lt.s32.totalorder %v433, 0
      %vm588 = vcmp.lt.s32.totalorder %v440, 0
      %vm589 = vcmp.lt.s32.totalorder %v447, 0
      %vm590 = vcmp.lt.s32.totalorder %v454, 0
      %vm591 = vcmp.lt.s32.totalorder %v461, 0
      %vm592 = vcmp.lt.s32.totalorder %v468, 0
      %vm593 = vcmp.lt.s32.totalorder %v475, 0
      %vm594 = vcmp.lt.s32.totalorder %v482, 0
      %vm595 = vcmp.lt.s32.totalorder %v489, 0
      %vm596 = vcmp.lt.s32.totalorder %v496, 0
      %vm597 = vcmp.lt.s32.totalorder %v503, 0
      %vm598 = vcmp.lt.s32.totalorder %v510, 0
      %vm599 = vcmp.lt.s32.totalorder %v517, 0
      %vm600 = vcmp.lt.s32.totalorder %v524, 0
      %vm601 = vcmp.lt.s32.totalorder %v531, 0
      %vm602 = vcmp.lt.s32.totalorder %v538, 0
      %vm603 = vmand %vm571, %vm539
      %vm604 = vmand %vm572, %vm540
      %vm605 = vmand %vm573, %vm541
      %vm606 = vmand %vm574, %vm542
      %vm607 = vmand %vm575, %vm543
      %vm608 = vmand %vm576, %vm544
      %vm609 = vmand %vm577, %vm545
      %vm610 = vmand %vm578, %vm546
      %vm611 = vmand %vm579, %vm547
      %vm612 = vmand %vm580, %vm548
      %vm613 = vmand %vm581, %vm549
      %vm614 = vmand %vm582, %vm550
      %vm615 = vmand %vm583, %vm551
      %vm616 = vmand %vm584, %vm552
      %vm617 = vmand %vm585, %vm553
      %vm618 = vmand %vm586, %vm554
      %vm619 = vmand %vm587, %vm555
      %vm620 = vmand %vm588, %vm556
      %vm621 = vmand %vm589, %vm557
      %vm622 = vmand %vm590, %vm558
      %vm623 = vmand %vm591, %vm559
      %vm624 = vmand %vm592, %vm560
      %vm625 = vmand %vm593, %vm561
      %vm626 = vmand %vm594, %vm562
      %vm627 = vmand %vm595, %vm563
      %vm628 = vmand %vm596, %vm564
      %vm629 = vmand %vm597, %vm565
      %vm630 = vmand %vm598, %vm566
      %vm631 = vmand %vm599, %vm567
      %vm632 = vmand %vm600, %vm568
      %vm633 = vmand %vm601, %vm569
      %vm634 = vmand %vm602, %vm570
      %v635 = vadd.s32 %v321, 16
      %v636 = vadd.s32 %v328, 16
      %v637 = vadd.s32 %v335, 16
      %v638 = vadd.s32 %v342, 16
      %v639 = vadd.s32 %v349, 16
      %v640 = vadd.s32 %v356, 16
      %v641 = vadd.s32 %v363, 16
      %v642 = vadd.s32 %v370, 16
      %v643 = vadd.s32 %v377, 16
      %v644 = vadd.s32 %v384, 16
      %v645 = vadd.s32 %v391, 16
      %v646 = vadd.s32 %v398, 16
      %v647 = vadd.s32 %v405, 16
      %v648 = vadd.s32 %v412, 16
      %v649 = vadd.s32 %v419, 16
      %v650 = vadd.s32 %v426, 16
      %v651 = vadd.s32 %v433, 16
      %v652 = vadd.s32 %v440, 16
      %v653 = vadd.s32 %v447, 16
      %v654 = vadd.s32 %v454, 16
      %v655 = vadd.s32 %v461, 16
      %v656 = vadd.s32 %v468, 16
      %v657 = vadd.s32 %v475, 16
      %v658 = vadd.s32 %v482, 16
      %v659 = vadd.s32 %v489, 16
      %v660 = vadd.s32 %v496, 16
      %v661 = vadd.s32 %v503, 16
      %v662 = vadd.s32 %v510, 16
      %v663 = vadd.s32 %v517, 16
      %v664 = vadd.s32 %v524, 16
      %v665 = vadd.s32 %v531, 16
      %v666 = vadd.s32 %v538, 16
      %v667 = vsel %vm603, %v635, %v321
      %v668 = vsel %vm604, %v636, %v328
      %v669 = vsel %vm605, %v637, %v335
      %v670 = vsel %vm606, %v638, %v342
      %v671 = vsel %vm607, %v639, %v349
      %v672 = vsel %vm608, %v640, %v356
      %v673 = vsel %vm609, %v641, %v363
      %v674 = vsel %vm610, %v642, %v370
      %v675 = vsel %vm611, %v643, %v377
      %v676 = vsel %vm612, %v644, %v384
      %v677 = vsel %vm613, %v645, %v391
      %v678 = vsel %vm614, %v646, %v398
      %v679 = vsel %vm615, %v647, %v405
      %v680 = vsel %vm616, %v648, %v412
      %v681 = vsel %vm617, %v649, %v419
      %v682 = vsel %vm618, %v650, %v426
      %v683 = vsel %vm619, %v651, %v433
      %v684 = vsel %vm620, %v652, %v440
      %v685 = vsel %vm621, %v653, %v447
      %v686 = vsel %vm622, %v654, %v454
      %v687 = vsel %vm623, %v655, %v461
      %v688 = vsel %vm624, %v656, %v468
      %v689 = vsel %vm625, %v657, %v475
      %v690 = vsel %vm626, %v658, %v482
      %v691 = vsel %vm627, %v659, %v489
      %v692 = vsel %vm628, %v660, %v496
      %v693 = vsel %vm629, %v661, %v503
      %v694 = vsel %vm630, %v662, %v510
      %v695 = vsel %vm631, %v663, %v517
      %v696 = vsel %vm632, %v664, %v524
      %v697 = vsel %vm633, %v665, %v531
      %v698 = vsel %vm634, %v666, %v538
      %v699 = vld [vmem:[%s262] sm:$0xff]
      %v700 = vld [vmem:[%s262 + $0x8] sm:$0xff]
      %v701 = vld [vmem:[%s262 + $0x10] sm:$0xff]
      %v702 = vld [vmem:[%s262 + $0x18] sm:$0xff]
      %v703 = vld [vmem:[%s262 + $0x20] sm:$0xff]
      %v704 = vld [vmem:[%s262 + $0x28] sm:$0xff]
      %v705 = vld [vmem:[%s262 + $0x30] sm:$0xff]
      %v706 = vld [vmem:[%s262 + $0x38] sm:$0xff]
      %v707 = vld [vmem:[%s262 + $0x40] sm:$0xff]
      %v708 = vld [vmem:[%s262 + $0x48] sm:$0xff]
      %v709 = vld [vmem:[%s262 + $0x50] sm:$0xff]
      %v710 = vld [vmem:[%s262 + $0x58] sm:$0xff]
      %v711 = vld [vmem:[%s262 + $0x60] sm:$0xff]
      %v712 = vld [vmem:[%s262 + $0x68] sm:$0xff]
      %v713 = vld [vmem:[%s262 + $0x70] sm:$0xff]
      %v714 = vld [vmem:[%s262 + $0x78] sm:$0xff]
      %v715 = vld [vmem:[%s262 + $0x80] sm:$0xff]
      %v716 = vld [vmem:[%s262 + $0x88] sm:$0xff]
      %v717 = vld [vmem:[%s262 + $0x90] sm:$0xff]
      %v718 = vld [vmem:[%s262 + $0x98] sm:$0xff]
      %v719 = vld [vmem:[%s262 + $0xa0] sm:$0xff]
      %v720 = vld [vmem:[%s262 + $0xa8] sm:$0xff]
      %v721 = vld [vmem:[%s262 + $0xb0] sm:$0xff]
      %v722 = vld [vmem:[%s262 + $0xb8] sm:$0xff]
      %v723 = vld [vmem:[%s262 + $0xc0] sm:$0xff]
      %v724 = vld [vmem:[%s262 + $0xc8] sm:$0xff]
      %v725 = vld [vmem:[%s262 + $0xd0] sm:$0xff]
      %v726 = vld [vmem:[%s262 + $0xd8] sm:$0xff]
      %v727 = vld [vmem:[%s262 + $0xe0] sm:$0xff]
      %v728 = vld [vmem:[%s262 + $0xe8] sm:$0xff]
      %v729 = vld [vmem:[%s262 + $0xf0] sm:$0xff]
      %v730 = vld [vmem:[%s262 + $0xf8] sm:$0xff]
      %v731 = vpack.c.bf16 %v700, %v699
      %v732 = vpack.c.bf16 %v702, %v701
      %v733 = vpack.c.bf16 %v704, %v703
      %v734 = vpack.c.bf16 %v706, %v705
      %v735 = vpack.c.bf16 %v708, %v707
      %v736 = vpack.c.bf16 %v710, %v709
      %v737 = vpack.c.bf16 %v712, %v711
      %v738 = vpack.c.bf16 %v714, %v713
      %v739 = vpack.c.bf16 %v716, %v715
      %v740 = vpack.c.bf16 %v718, %v717
      %v741 = vpack.c.bf16 %v720, %v719
      %v742 = vpack.c.bf16 %v722, %v721
      %v743 = vpack.c.bf16 %v724, %v723
      %v744 = vpack.c.bf16 %v726, %v725
      %v745 = vpack.c.bf16 %v728, %v727
      %v746 = vpack.c.bf16 %v730, %v729
      %vm747 = vcmp.ge.s32.totalorder %v667, 1
      %vm748 = vcmp.ge.s32.totalorder %v668, 1
      %vm749 = vcmp.ge.s32.totalorder %v669, 1
      %vm750 = vcmp.ge.s32.totalorder %v670, 1
      %vm751 = vcmp.ge.s32.totalorder %v671, 1
      %vm752 = vcmp.ge.s32.totalorder %v672, 1
      %vm753 = vcmp.ge.s32.totalorder %v673, 1
      %vm754 = vcmp.ge.s32.totalorder %v674, 1
      %vm755 = vcmp.ge.s32.totalorder %v675, 1
      %vm756 = vcmp.ge.s32.totalorder %v676, 1
      %vm757 = vcmp.ge.s32.totalorder %v677, 1
      %vm758 = vcmp.ge.s32.totalorder %v678, 1
      %vm759 = vcmp.ge.s32.totalorder %v679, 1
      %vm760 = vcmp.ge.s32.totalorder %v680, 1
      %vm761 = vcmp.ge.s32.totalorder %v681, 1
      %vm762 = vcmp.ge.s32.totalorder %v682, 1
      %vm763 = vcmp.ge.s32.totalorder %v683, 1
      %vm764 = vcmp.ge.s32.totalorder %v684, 1
      %vm765 = vcmp.ge.s32.totalorder %v685, 1
      %vm766 = vcmp.ge.s32.totalorder %v686, 1
      %vm767 = vcmp.ge.s32.totalorder %v687, 1
      %vm768 = vcmp.ge.s32.totalorder %v688, 1
      %vm769 = vcmp.ge.s32.totalorder %v689, 1
      %vm770 = vcmp.ge.s32.totalorder %v690, 1
      %vm771 = vcmp.ge.s32.totalorder %v691, 1
      %vm772 = vcmp.ge.s32.totalorder %v692, 1
      %vm773 = vcmp.ge.s32.totalorder %v693, 1
      %vm774 = vcmp.ge.s32.totalorder %v694, 1
      %vm775 = vcmp.ge.s32.totalorder %v695, 1
      %vm776 = vcmp.ge.s32.totalorder %v696, 1
      %vm777 = vcmp.ge.s32.totalorder %v697, 1
      %vm778 = vcmp.ge.s32.totalorder %v698, 1
      %v779 = vsel %vm747, 1, 0
      %v780 = vsel %vm748, 1, 0
      %v781 = vsel %vm749, 1, 0
      %v782 = vsel %vm750, 1, 0
      %v783 = vsel %vm751, 1, 0
      %v784 = vsel %vm752, 1, 0
      %v785 = vsel %vm753, 1, 0
      %v786 = vsel %vm754, 1, 0
      %v787 = vsel %vm755, 1, 0
      %v788 = vsel %vm756, 1, 0
      %v789 = vsel %vm757, 1, 0
      %v790 = vsel %vm758, 1, 0
      %v791 = vsel %vm759, 1, 0
      %v792 = vsel %vm760, 1, 0
      %v793 = vsel %vm761, 1, 0
      %v794 = vsel %vm762, 1, 0
      %v795 = vsel %vm763, 1, 0
      %v796 = vsel %vm764, 1, 0
      %v797 = vsel %vm765, 1, 0
      %v798 = vsel %vm766, 1, 0
      %v799 = vsel %vm767, 1, 0
      %v800 = vsel %vm768, 1, 0
      %v801 = vsel %vm769, 1, 0
      %v802 = vsel %vm770, 1, 0
      %v803 = vsel %vm771, 1, 0
      %v804 = vsel %vm772, 1, 0
      %v805 = vsel %vm773, 1, 0
      %v806 = vsel %vm774, 1, 0
      %v807 = vsel %vm775, 1, 0
      %v808 = vsel %vm776, 1, 0
      %v809 = vsel %vm777, 1, 0
      %v810 = vsel %vm778, 1, 0
      %vm811 = vcmp.eq.s32.totalorder %v779, 1
      %vm812 = vcmp.eq.s32.totalorder %v780, 1
      %vm813 = vcmp.eq.s32.totalorder %v781, 1
      %vm814 = vcmp.eq.s32.totalorder %v782, 1
      %vm815 = vcmp.eq.s32.totalorder %v783, 1
      %vm816 = vcmp.eq.s32.totalorder %v784, 1
      %vm817 = vcmp.eq.s32.totalorder %v785, 1
      %vm818 = vcmp.eq.s32.totalorder %v786, 1
      %vm819 = vcmp.eq.s32.totalorder %v787, 1
      %vm820 = vcmp.eq.s32.totalorder %v788, 1
      %vm821 = vcmp.eq.s32.totalorder %v789, 1
      %vm822 = vcmp.eq.s32.totalorder %v790, 1
      %vm823 = vcmp.eq.s32.totalorder %v791, 1
      %vm824 = vcmp.eq.s32.totalorder %v792, 1
      %vm825 = vcmp.eq.s32.totalorder %v793, 1
      %vm826 = vcmp.eq.s32.totalorder %v794, 1
      %vm827 = vcmp.eq.s32.totalorder %v795, 1
      %vm828 = vcmp.eq.s32.totalorder %v796, 1
      %vm829 = vcmp.eq.s32.totalorder %v797, 1
      %vm830 = vcmp.eq.s32.totalorder %v798, 1
      %vm831 = vcmp.eq.s32.totalorder %v799, 1
      %vm832 = vcmp.eq.s32.totalorder %v800, 1
      %vm833 = vcmp.eq.s32.totalorder %v801, 1
      %vm834 = vcmp.eq.s32.totalorder %v802, 1
      %vm835 = vcmp.eq.s32.totalorder %v803, 1
      %vm836 = vcmp.eq.s32.totalorder %v804, 1
      %vm837 = vcmp.eq.s32.totalorder %v805, 1
      %vm838 = vcmp.eq.s32.totalorder %v806, 1
      %vm839 = vcmp.eq.s32.totalorder %v807, 1
      %vm840 = vcmp.eq.s32.totalorder %v808, 1
      %vm841 = vcmp.eq.s32.totalorder %v809, 1
      %vm842 = vcmp.eq.s32.totalorder %v810, 1
      %vm843 = vmpackc.low %vm811, %vm811
      %vm844 = vmpackc.low %vm812, %vm812
      %vm845 = vmpackc.low %vm813, %vm813
      %vm846 = vmpackc.low %vm814, %vm814
      %vm847 = vmpackc.low %vm815, %vm815
      %vm848 = vmpackc.low %vm816, %vm816
      %vm849 = vmpackc.low %vm817, %vm817
      %vm850 = vmpackc.low %vm818, %vm818
      %vm851 = vmpackc.low %vm819, %vm819
      %vm852 = vmpackc.low %vm820, %vm820
      %vm853 = vmpackc.low %vm821, %vm821
      %vm854 = vmpackc.low %vm822, %vm822
      %vm855 = vmpackc.low %vm823, %vm823
      %vm856 = vmpackc.low %vm824, %vm824
      %vm857 = vmpackc.low %vm825, %vm825
      %vm858 = vmpackc.low %vm826, %vm826
      %vm859 = vmpackc.low %vm827, %vm827
      %vm860 = vmpackc.low %vm828, %vm828
      %vm861 = vmpackc.low %vm829, %vm829
      %vm862 = vmpackc.low %vm830, %vm830
      %vm863 = vmpackc.low %vm831, %vm831
      %vm864 = vmpackc.low %vm832, %vm832
      %vm865 = vmpackc.low %vm833, %vm833
      %vm866 = vmpackc.low %vm834, %vm834
      %vm867 = vmpackc.low %vm835, %vm835
      %vm868 = vmpackc.low %vm836, %vm836
      %vm869 = vmpackc.low %vm837, %vm837
      %vm870 = vmpackc.low %vm838, %vm838
      %vm871 = vmpackc.low %vm839, %vm839
      %vm872 = vmpackc.low %vm840, %vm840
      %vm873 = vmpackc.low %vm841, %vm841
      %vm874 = vmpackc.low %vm842, %vm842
      %v875 = vsel %vm843, 65537, 0
      %v876 = vsel %vm844, 65537, 0
      %v877 = vsel %vm845, 65537, 0
      %v878 = vsel %vm846, 65537, 0
      %v879 = vsel %vm847, 65537, 0
      %v880 = vsel %vm848, 65537, 0
      %v881 = vsel %vm849, 65537, 0
      %v882 = vsel %vm850, 65537, 0
      %v883 = vsel %vm851, 65537, 0
      %v884 = vsel %vm852, 65537, 0
      %v885 = vsel %vm853, 65537, 0
      %v886 = vsel %vm854, 65537, 0
      %v887 = vsel %vm855, 65537, 0
      %v888 = vsel %vm856, 65537, 0
      %v889 = vsel %vm857, 65537, 0
      %v890 = vsel %vm858, 65537, 0
      %v891 = vsel %vm859, 65537, 0
      %v892 = vsel %vm860, 65537, 0
      %v893 = vsel %vm861, 65537, 0
      %v894 = vsel %vm862, 65537, 0
      %v895 = vsel %vm863, 65537, 0
      %v896 = vsel %vm864, 65537, 0
      %v897 = vsel %vm865, 65537, 0
      %v898 = vsel %vm866, 65537, 0
      %v899 = vsel %vm867, 65537, 0
      %v900 = vsel %vm868, 65537, 0
      %v901 = vsel %vm869, 65537, 0
      %v902 = vsel %vm870, 65537, 0
      %v903 = vsel %vm871, 65537, 0
      %v904 = vsel %vm872, 65537, 0
      %v905 = vsel %vm873, 65537, 0
      %v906 = vsel %vm874, 65537, 0
      %v907 = vunpack.c.l.b16 %v875
      %v908 = vunpack.c.l.b16 %v876
      %v909 = vunpack.c.l.b16 %v877
      %v910 = vunpack.c.l.b16 %v878
      %v911 = vunpack.c.l.b16 %v879
      %v912 = vunpack.c.l.b16 %v880
      %v913 = vunpack.c.l.b16 %v881
      %v914 = vunpack.c.l.b16 %v882
      %v915 = vunpack.c.l.b16 %v883
      %v916 = vunpack.c.l.b16 %v884
      %v917 = vunpack.c.l.b16 %v885
      %v918 = vunpack.c.l.b16 %v886
      %v919 = vunpack.c.l.b16 %v887
      %v920 = vunpack.c.l.b16 %v888
      %v921 = vunpack.c.l.b16 %v889
      %v922 = vunpack.c.l.b16 %v890
      %v923 = vunpack.c.l.b16 %v891
      %v924 = vunpack.c.l.b16 %v892
      %v925 = vunpack.c.l.b16 %v893
      %v926 = vunpack.c.l.b16 %v894
      %v927 = vunpack.c.l.b16 %v895
      %v928 = vunpack.c.l.b16 %v896
      %v929 = vunpack.c.l.b16 %v897
      %v930 = vunpack.c.l.b16 %v898
      %v931 = vunpack.c.l.b16 %v899
      %v932 = vunpack.c.l.b16 %v900
      %v933 = vunpack.c.l.b16 %v901
      %v934 = vunpack.c.l.b16 %v902
      %v935 = vunpack.c.l.b16 %v903
      %v936 = vunpack.c.l.b16 %v904
      %v937 = vunpack.c.l.b16 %v905
      %v938 = vunpack.c.l.b16 %v906
      %v939 = vpack.c.b16 %v908, %v907
      %v940 = vpack.c.b16 %v910, %v909
      %v941 = vpack.c.b16 %v912, %v911
      %v942 = vpack.c.b16 %v914, %v913
      %v943 = vpack.c.b16 %v916, %v915
      %v944 = vpack.c.b16 %v918, %v917
      %v945 = vpack.c.b16 %v920, %v919
      %v946 = vpack.c.b16 %v922, %v921
      %v947 = vpack.c.b16 %v924, %v923
      %v948 = vpack.c.b16 %v926, %v925
      %v949 = vpack.c.b16 %v928, %v927
      %v950 = vpack.c.b16 %v930, %v929
      %v951 = vpack.c.b16 %v932, %v931
      %v952 = vpack.c.b16 %v934, %v933
      %v953 = vpack.c.b16 %v936, %v935
      %v954 = vpack.c.b16 %v938, %v937
      %vm955 = vcmp.ne.s16.totalorder %v939, 0
      %vm956 = vcmp.ne.s16.totalorder %v940, 0
      %vm957 = vcmp.ne.s16.totalorder %v941, 0
      %vm958 = vcmp.ne.s16.totalorder %v942, 0
      %vm959 = vcmp.ne.s16.totalorder %v943, 0
      %vm960 = vcmp.ne.s16.totalorder %v944, 0
      %vm961 = vcmp.ne.s16.totalorder %v945, 0
      %vm962 = vcmp.ne.s16.totalorder %v946, 0
      %vm963 = vcmp.ne.s16.totalorder %v947, 0
      %vm964 = vcmp.ne.s16.totalorder %v948, 0
      %vm965 = vcmp.ne.s16.totalorder %v949, 0
      %vm966 = vcmp.ne.s16.totalorder %v950, 0
      %vm967 = vcmp.ne.s16.totalorder %v951, 0
      %vm968 = vcmp.ne.s16.totalorder %v952, 0
      %vm969 = vcmp.ne.s16.totalorder %v953, 0
      %vm970 = vcmp.ne.s16.totalorder %v954, 0
      %v971 = vsel %vm955, %v731, 0
      %v972 = vsel %vm956, %v732, 0
      %v973 = vsel %vm957, %v733, 0
      %v974 = vsel %vm958, %v734, 0
      %v975 = vsel %vm959, %v735, 0
      %v976 = vsel %vm960, %v736, 0
      %v977 = vsel %vm961, %v737, 0
      %v978 = vsel %vm962, %v738, 0
      %v979 = vsel %vm963, %v739, 0
      %v980 = vsel %vm964, %v740, 0
      %v981 = vsel %vm965, %v741, 0
      %v982 = vsel %vm966, %v742, 0
      %v983 = vsel %vm967, %v743, 0
      %v984 = vsel %vm968, %v744, 0
      %v985 = vsel %vm969, %v745, 0
      %v986 = vsel %vm970, %v746, 0
      %v987 = vld [vmem:[%s1] sm:$0x3]
      %v988 = vld [vmem:[%s262 + $0x100] sm:$0xff]
      %v989 = vld [vmem:[%s262 + $0x108] sm:$0xff]
      %v990 = vpack.c.bf16 %v989, %v988
      %v991 = vsel %vm955, %v732, 0
      %v992 = vsel %vm956, %v733, 0
      %v993 = vsel %vm957, %v734, 0
      %v994 = vsel %vm958, %v735, 0
      %v995 = vsel %vm959, %v736, 0
      %v996 = vsel %vm960, %v737, 0
      %v997 = vsel %vm961, %v738, 0
      %v998 = vsel %vm962, %v739, 0
      %v999 = vsel %vm963, %v740, 0
      %v1000 = vsel %vm964, %v741, 0
      %v1001 = vsel %vm965, %v742, 0
      %v1002 = vsel %vm966, %v743, 0
      %v1003 = vsel %vm967, %v744, 0
      %v1004 = vsel %vm968, %v745, 0
      %v1005 = vsel %vm969, %v746, 0
      %v1006 = vsel %vm970, %v990, 0
      %v1007 = vld [vmem:[%s1 + $0x4] sm:$0xc]
      %v1009 = vunpack.c.l.b16 %v1007
      %v1010 = vpack.c.b16 %v1009, %v1009
      %v1011 = vrot.slane %v1010, 2
      %vm1012 = vcmask 31744
      %v1014 = vsel %vm1012, %v991, 0
      %v1017 = vsel %vm1012, %v992, 0
      %v1020 = vsel %vm1012, %v993, 0
      %v1023 = vsel %vm1012, %v994, 0
      %v1026 = vsel %vm1012, %v995, 0
      %v1029 = vsel %vm1012, %v996, 0
      %v1032 = vsel %vm1012, %v997, 0
      %v1035 = vsel %vm1012, %v998, 0
      %v1038 = vsel %vm1012, %v999, 0
      %v1041 = vsel %vm1012, %v1000, 0
      %v1044 = vsel %vm1012, %v1001, 0
      %v1047 = vsel %vm1012, %v1002, 0
      %v1050 = vsel %vm1012, %v1003, 0
      %v1053 = vsel %vm1012, %v1004, 0
      %v1056 = vsel %vm1012, %v1005, 0
      %v1059 = vsel %vm1012, %v1006, 0
      %vm1061 = vcmask 1041408
      %v1063 = vsel %vm1061, %v1011, 0
      %1065 = vmatprep.subr.bf16.mxu0 0
      %1066 = vmatpush1.bf16.msra.mxu0 %v1063
      %1067 = vmatprep.subr.bf16.mxu0 0
      %1068 = vmatpush1.bf16.msra.mxu0 0
      %1069 = vmatprep.subr.bf16.mxu0 0
      %1070 = vmatpush1.bf16.msra.mxu0 0
      %1071 = vmatprep.subr.bf16.mxu0 0
      %1072 = vmatpush1.bf16.msra.mxu0 0
      %1073 = vmatprep.subr.bf16.mxu0 0
      %1074 = vmatpush1.bf16.msra.mxu0 0
      %1075 = vmatprep.subr.bf16.mxu0 0
      %1076 = vmatpush1.bf16.msra.mxu0 0
      %1077 = vmatprep.subr.bf16.mxu0 0
      %1078 = vmatpush1.bf16.msra.mxu0 0
      %1079 = vmatprep.subr.bf16.mxu0 0
      %1080 = vmatpush1.bf16.msra.mxu0 0
      %1081 = vmatprep.subr.bf16.mxu0 0
      %1082 = vmatpush1.bf16.msra.mxu0 0
      %1083 = vmatprep.subr.bf16.mxu0 0
      %1084 = vmatpush1.bf16.msra.mxu0 0
      %1085 = vmatprep.subr.bf16.mxu0 0
      %1086 = vmatpush1.bf16.msra.mxu0 0
      %1087 = vmatprep.subr.bf16.mxu0 0
      %1088 = vmatpush1.bf16.msra.mxu0 0
      %1089 = vmatprep.subr.bf16.mxu0 0
      %1090 = vmatpush1.bf16.msra.mxu0 0
      %1091 = vmatprep.subr.bf16.mxu0 0
      %1092 = vmatpush1.bf16.msra.mxu0 0
      %1093 = vmatprep.subr.bf16.mxu0 0
      %1094 = vmatpush1.bf16.msra.mxu0 0
      %1095 = vmatprep.subr.bf16.mxu0 0
      %1096 = vmatpush1.bf16.msra.mxu0 0
      %1097 = vmatprep.mubr.bf16.mxu0 0
      %1098 = vmatmul.mubr.bf16.gmra.mrb[0].mxu0 %v1014
      %v1099 = vpop.f32.mrb[0].mxu0
      %v1100 = vadd.f32 0.0, %v1099
      %v1101 = vpop.f32.mrb[0].mxu0
      %v1102 = vpop.f32.mrb[0].mxu0
      %v1103 = vadd.f32 0.0, %v1102
      %v1104 = vpop.f32.mrb[0].mxu0
      %1105 = vmatprep.mubr.bf16.mxu0 0
      %1106 = vmatmul.mubr.bf16.gmra.mrb[0].mxu0 %v1017
      %v1107 = vpop.f32.mrb[0].mxu0
      %v1108 = vadd.f32 0.0, %v1107
      %v1109 = vpop.f32.mrb[0].mxu0
      %v1110 = vpop.f32.mrb[0].mxu0
      %v1111 = vadd.f32 0.0, %v1110
      %v1112 = vpop.f32.mrb[0].mxu0
      %1113 = vmatprep.mubr.bf16.mxu0 0
      %1114 = vmatmul.mubr.bf16.gmra.mrb[0].mxu0 %v1020
      %v1115 = vpop.f32.mrb[0].mxu0
      %v1116 = vadd.f32 0.0, %v1115
      %v1117 = vpop.f32.mrb[0].mxu0
      %v1118 = vpop.f32.mrb[0].mxu0
      %v1119 = vadd.f32 0.0, %v1118
      %v1120 = vpop.f32.mrb[0].mxu0
      %1121 = vmatprep.mubr.bf16.mxu0 0
      %1122 = vmatmul.mubr.bf16.gmra.mrb[0].mxu0 %v1023
      %v1123 = vpop.f32.mrb[0].mxu0
      %v1124 = vadd.f32 0.0, %v1123
      %v1125 = vpop.f32.mrb[0].mxu0
      %v1126 = vpop.f32.mrb[0].mxu0
      %v1127 = vadd.f32 0.0, %v1126
      %v1128 = vpop.f32.mrb[0].mxu0
      %1129 = vmatprep.mubr.bf16.mxu0 0
      %1130 = vmatmul.mubr.bf16.gmra.mrb[0].mxu0 %v1026
      %v1131 = vpop.f32.mrb[0].mxu0
      %v1132 = vadd.f32 0.0, %v1131
      %v1133 = vpop.f32.mrb[0].mxu0
      %v1134 = vpop.f32.mrb[0].mxu0
      %v1135 = vadd.f32 0.0, %v1134
      %v1136 = vpop.f32.mrb[0].mxu0
      %1137 = vmatprep.mubr.bf16.mxu0 0
      %1138 = vmatmul.mubr.bf16.gmra.mrb[0].mxu0 %v1029
      %v1139 = vpop.f32.mrb[0].mxu0
      %v1140 = vadd.f32 0.0, %v1139
      %v1141 = vpop.f32.mrb[0].mxu0
      %v1142 = vpop.f32.mrb[0].mxu0
      %v1143 = vadd.f32 0.0, %v1142
      %v1144 = vpop.f32.mrb[0].mxu0
      %1145 = vmatprep.mubr.bf16.mxu0 0
      %1146 = vmatmul.mubr.bf16.gmra.mrb[0].mxu0 %v1032
      %v1147 = vpop.f32.mrb[0].mxu0
      %v1148 = vadd.f32 0.0, %v1147
      %v1149 = vpop.f32.mrb[0].mxu0
      %v1150 = vpop.f32.mrb[0].mxu0
      %v1151 = vadd.f32 0.0, %v1150
      %v1152 = vpop.f32.mrb[0].mxu0
      %1153 = vmatprep.mubr.bf16.mxu0 0
      %1154 = vmatmul.mubr.bf16.gmra.mrb[0].mxu0 %v1035
      %v1155 = vpop.f32.mrb[0].mxu0
      %v1156 = vadd.f32 0.0, %v1155
      %v1157 = vpop.f32.mrb[0].mxu0
      %v1158 = vpop.f32.mrb[0].mxu0
      %v1159 = vadd.f32 0.0, %v1158
      %v1160 = vpop.f32.mrb[0].mxu0
      %1161 = vmatprep.mubr.bf16.mxu0 0
      %1162 = vmatmul.mubr.bf16.gmra.mrb[0].mxu0 %v1038
      %v1163 = vpop.f32.mrb[0].mxu0
      %v1164 = vadd.f32 0.0, %v1163
      %v1165 = vpop.f32.mrb[0].mxu0
      %v1166 = vpop.f32.mrb[0].mxu0
      %v1167 = vadd.f32 0.0, %v1166
      %v1168 = vpop.f32.mrb[0].mxu0
      %1169 = vmatprep.mubr.bf16.mxu0 0
      %1170 = vmatmul.mubr.bf16.gmra.mrb[0].mxu0 %v1041
      %v1171 = vpop.f32.mrb[0].mxu0
      %v1172 = vadd.f32 0.0, %v1171
      %v1173 = vpop.f32.mrb[0].mxu0
      %v1174 = vpop.f32.mrb[0].mxu0
      %v1175 = vadd.f32 0.0, %v1174
      %v1176 = vpop.f32.mrb[0].mxu0
      %1177 = vmatprep.mubr.bf16.mxu0 0
      %1178 = vmatmul.mubr.bf16.gmra.mrb[0].mxu0 %v1044
      %v1179 = vpop.f32.mrb[0].mxu0
      %v1180 = vadd.f32 0.0, %v1179
      %v1181 = vpop.f32.mrb[0].mxu0
      %v1182 = vpop.f32.mrb[0].mxu0
      %v1183 = vadd.f32 0.0, %v1182
      %v1184 = vpop.f32.mrb[0].mxu0
      %1185 = vmatprep.mubr.bf16.mxu0 0
      %1186 = vmatmul.mubr.bf16.gmra.mrb[0].mxu0 %v1047
      %v1187 = vpop.f32.mrb[0].mxu0
      %v1188 = vadd.f32 0.0, %v1187
      %v1189 = vpop.f32.mrb[0].mxu0
      %v1190 = vpop.f32.mrb[0].mxu0
      %v1191 = vadd.f32 0.0, %v1190
      %v1192 = vpop.f32.mrb[0].mxu0
      %1193 = vmatprep.mubr.bf16.mxu0 0
      %1194 = vmatmul.mubr.bf16.gmra.mrb[0].mxu0 %v1050
      %v1195 = vpop.f32.mrb[0].mxu0
      %v1196 = vadd.f32 0.0, %v1195
      %v1197 = vpop.f32.mrb[0].mxu0
      %v1198 = vpop.f32.mrb[0].mxu0
      %v1199 = vadd.f32 0.0, %v1198
      %v1200 = vpop.f32.mrb[0].mxu0
      %1201 = vmatprep.mubr.bf16.mxu0 0
      %1202 = vmatmul.mubr.bf16.gmra.mrb[0].mxu0 %v1053
      %v1203 = vpop.f32.mrb[0].mxu0
      %v1204 = vadd.f32 0.0, %v1203
      %v1205 = vpop.f32.mrb[0].mxu0
      %v1206 = vpop.f32.mrb[0].mxu0
      %v1207 = vadd.f32 0.0, %v1206
      %v1208 = vpop.f32.mrb[0].mxu0
      %1209 = vmatprep.mubr.bf16.mxu0 0
      %1210 = vmatmul.mubr.bf16.gmra.mrb[0].mxu0 %v1056
      %v1211 = vpop.f32.mrb[0].mxu0
      %v1212 = vadd.f32 0.0, %v1211
      %v1213 = vpop.f32.mrb[0].mxu0
      %v1214 = vpop.f32.mrb[0].mxu0
      %v1215 = vadd.f32 0.0, %v1214
      %v1216 = vpop.f32.mrb[0].mxu0
      %1217 = vmatprep.mubr.bf16.mxu0 0
      %1218 = vmatmul.mubr.bf16.gmra.mrb[0].mxu0 %v1059
      %v1219 = vpop.f32.mrb[0].mxu0
      %v1220 = vadd.f32 0.0, %v1219
      %v1221 = vpop.f32.mrb[0].mxu0
      %v1222 = vpop.f32.mrb[0].mxu0
      %v1223 = vadd.f32 0.0, %v1222
      %v1224 = vpop.f32.mrb[0].mxu0
      %1225 = vdwg.mxu0
      %v1227 = vsel %vm1012, %v971, 0
      %v1230 = vsel %vm1012, %v972, 0
      %v1233 = vsel %vm1012, %v973, 0
      %v1236 = vsel %vm1012, %v974, 0
      %v1239 = vsel %vm1012, %v975, 0
      %v1242 = vsel %vm1012, %v976, 0
      %v1245 = vsel %vm1012, %v977, 0
      %v1248 = vsel %vm1012, %v978, 0
      %v1251 = vsel %vm1012, %v979, 0
      %v1254 = vsel %vm1012, %v980, 0
      %v1257 = vsel %vm1012, %v981, 0
      %v1260 = vsel %vm1012, %v982, 0
      %v1263 = vsel %vm1012, %v983, 0
      %v1266 = vsel %vm1012, %v984, 0
      %v1269 = vsel %vm1012, %v985, 0
      %v1272 = vsel %vm1012, %v986, 0
      %v1275 = vsel %vm1061, %v987, 0
      %1277 = vmatprep.subr.bf16.mxu0 0
      %1278 = vmatpush1.bf16.msra.mxu0 %v1275
      %1279 = vmatprep.subr.bf16.mxu0 0
      %1280 = vmatpush1.bf16.msra.mxu0 0
      %1281 = vmatprep.subr.bf16.mxu0 0
      %1282 = vmatpush1.bf16.msra.mxu0 0
      %1283 = vmatprep.subr.bf16.mxu0 0
      %1284 = vmatpush1.bf16.msra.mxu0 0
      %1285 = vmatprep.subr.bf16.mxu0 0
      %1286 = vmatpush1.bf16.msra.mxu0 0
      %1287 = vmatprep.subr.bf16.mxu0 0
      %1288 = vmatpush1.bf16.msra.mxu0 0
      %1289 = vmatprep.subr.bf16.mxu0 0
      %1290 = vmatpush1.bf16.msra.mxu0 0
      %1291 = vmatprep.subr.bf16.mxu0 0
      %1292 = vmatpush1.bf16.msra.mxu0 0
      %1293 = vmatprep.subr.bf16.mxu0 0
      %1294 = vmatpush1.bf16.msra.mxu0 0
      %1295 = vmatprep.subr.bf16.mxu0 0
      %1296 = vmatpush1.bf16.msra.mxu0 0
      %1297 = vmatprep.subr.bf16.mxu0 0
      %1298 = vmatpush1.bf16.msra.mxu0 0
      %1299 = vmatprep.subr.bf16.mxu0 0
      %1300 = vmatpush1.bf16.msra.mxu0 0
      %1301 = vmatprep.subr.bf16.mxu0 0
      %1302 = vmatpush1.bf16.msra.mxu0 0
      %1303 = vmatprep.subr.bf16.mxu0 0
      %1304 = vmatpush1.bf16.msra.mxu0 0
      %1305 = vmatprep.subr.bf16.mxu0 0
      %1306 = vmatpush1.bf16.msra.mxu0 0
      %1307 = vmatprep.subr.bf16.mxu0 0
      %1308 = vmatpush1.bf16.msra.mxu0 0
      %1309 = vmatprep.mubr.bf16.mxu0 0
      %1310 = vmatmul.mubr.bf16.gmra.mrb[0].mxu0 %v1227
      %v1311 = vpop.f32.mrb[0].mxu0
      %v1312 = vadd.f32 %v1100, %v1311
      %v1313 = vpop.f32.mrb[0].mxu0
      %v1314 = vpop.f32.mrb[0].mxu0
      %v1315 = vadd.f32 %v1103, %v1314
      %v1316 = vpop.f32.mrb[0].mxu0
      %1317 = vmatprep.mubr.bf16.mxu0 0
      %1318 = vmatmul.mubr.bf16.gmra.mrb[0].mxu0 %v1230
      %v1319 = vpop.f32.mrb[0].mxu0
      %v1320 = vadd.f32 %v1108, %v1319
      %v1321 = vpop.f32.mrb[0].mxu0
      %v1322 = vpop.f32.mrb[0].mxu0
      %v1323 = vadd.f32 %v1111, %v1322
      %v1324 = vpop.f32.mrb[0].mxu0
      %1325 = vmatprep.mubr.bf16.mxu0 0
      %1326 = vmatmul.mubr.bf16.gmra.mrb[0].mxu0 %v1233
      %v1327 = vpop.f32.mrb[0].mxu0
      %v1328 = vadd.f32 %v1116, %v1327
      %v1329 = vpop.f32.mrb[0].mxu0
      %v1330 = vpop.f32.mrb[0].mxu0
      %v1331 = vadd.f32 %v1119, %v1330
      %v1332 = vpop.f32.mrb[0].mxu0
      %1333 = vmatprep.mubr.bf16.mxu0 0
      %1334 = vmatmul.mubr.bf16.gmra.mrb[0].mxu0 %v1236
      %v1335 = vpop.f32.mrb[0].mxu0
      %v1336 = vadd.f32 %v1124, %v1335
      %v1337 = vpop.f32.mrb[0].mxu0
      %v1338 = vpop.f32.mrb[0].mxu0
      %v1339 = vadd.f32 %v1127, %v1338
      %v1340 = vpop.f32.mrb[0].mxu0
      %1341 = vmatprep.mubr.bf16.mxu0 0
      %1342 = vmatmul.mubr.bf16.gmra.mrb[0].mxu0 %v1239
      %v1343 = vpop.f32.mrb[0].mxu0
      %v1344 = vadd.f32 %v1132, %v1343
      %v1345 = vpop.f32.mrb[0].mxu0
      %v1346 = vpop.f32.mrb[0].mxu0
      %v1347 = vadd.f32 %v1135, %v1346
      %v1348 = vpop.f32.mrb[0].mxu0
      %1349 = vmatprep.mubr.bf16.mxu0 0
      %1350 = vmatmul.mubr.bf16.gmra.mrb[0].mxu0 %v1242
      %v1351 = vpop.f32.mrb[0].mxu0
      %v1352 = vadd.f32 %v1140, %v1351
      %v1353 = vpop.f32.mrb[0].mxu0
      %v1354 = vpop.f32.mrb[0].mxu0
      %v1355 = vadd.f32 %v1143, %v1354
      %v1356 = vpop.f32.mrb[0].mxu0
      %1357 = vmatprep.mubr.bf16.mxu0 0
      %1358 = vmatmul.mubr.bf16.gmra.mrb[0].mxu0 %v1245
      %v1359 = vpop.f32.mrb[0].mxu0
      %v1360 = vadd.f32 %v1148, %v1359
      %v1361 = vpop.f32.mrb[0].mxu0
      %v1362 = vpop.f32.mrb[0].mxu0
      %v1363 = vadd.f32 %v1151, %v1362
      %v1364 = vpop.f32.mrb[0].mxu0
      %1365 = vmatprep.mubr.bf16.mxu0 0
      %1366 = vmatmul.mubr.bf16.gmra.mrb[0].mxu0 %v1248
      %v1367 = vpop.f32.mrb[0].mxu0
      %v1368 = vadd.f32 %v1156, %v1367
      %v1369 = vpop.f32.mrb[0].mxu0
      %v1370 = vpop.f32.mrb[0].mxu0
      %v1371 = vadd.f32 %v1159, %v1370
      %v1372 = vpop.f32.mrb[0].mxu0
      %1373 = vmatprep.mubr.bf16.mxu0 0
      %1374 = vmatmul.mubr.bf16.gmra.mrb[0].mxu0 %v1251
      %v1375 = vpop.f32.mrb[0].mxu0
      %v1376 = vadd.f32 %v1164, %v1375
      %v1377 = vpop.f32.mrb[0].mxu0
      %v1378 = vpop.f32.mrb[0].mxu0
      %v1379 = vadd.f32 %v1167, %v1378
      %v1380 = vpop.f32.mrb[0].mxu0
      %1381 = vmatprep.mubr.bf16.mxu0 0
      %1382 = vmatmul.mubr.bf16.gmra.mrb[0].mxu0 %v1254
      %v1383 = vpop.f32.mrb[0].mxu0
      %v1384 = vadd.f32 %v1172, %v1383
      %v1385 = vpop.f32.mrb[0].mxu0
      %v1386 = vpop.f32.mrb[0].mxu0
      %v1387 = vadd.f32 %v1175, %v1386
      %v1388 = vpop.f32.mrb[0].mxu0
      %1389 = vmatprep.mubr.bf16.mxu0 0
      %1390 = vmatmul.mubr.bf16.gmra.mrb[0].mxu0 %v1257
      %v1391 = vpop.f32.mrb[0].mxu0
      %v1392 = vadd.f32 %v1180, %v1391
      %v1393 = vpop.f32.mrb[0].mxu0
      %v1394 = vpop.f32.mrb[0].mxu0
      %v1395 = vadd.f32 %v1183, %v1394
      %v1396 = vpop.f32.mrb[0].mxu0
      %1397 = vmatprep.mubr.bf16.mxu0 0
      %1398 = vmatmul.mubr.bf16.gmra.mrb[0].mxu0 %v1260
      %v1399 = vpop.f32.mrb[0].mxu0
      %v1400 = vadd.f32 %v1188, %v1399
      %v1401 = vpop.f32.mrb[0].mxu0
      %v1402 = vpop.f32.mrb[0].mxu0
      %v1403 = vadd.f32 %v1191, %v1402
      %v1404 = vpop.f32.mrb[0].mxu0
      %1405 = vmatprep.mubr.bf16.mxu0 0
      %1406 = vmatmul.mubr.bf16.gmra.mrb[0].mxu0 %v1263
      %v1407 = vpop.f32.mrb[0].mxu0
      %v1408 = vadd.f32 %v1196, %v1407
      %v1409 = vpop.f32.mrb[0].mxu0
      %v1410 = vpop.f32.mrb[0].mxu0
      %v1411 = vadd.f32 %v1199, %v1410
      %v1412 = vpop.f32.mrb[0].mxu0
      %1413 = vmatprep.mubr.bf16.mxu0 0
      %1414 = vmatmul.mubr.bf16.gmra.mrb[0].mxu0 %v1266
      %v1415 = vpop.f32.mrb[0].mxu0
      %v1416 = vadd.f32 %v1204, %v1415
      %v1417 = vpop.f32.mrb[0].mxu0
      %v1418 = vpop.f32.mrb[0].mxu0
      %v1419 = vadd.f32 %v1207, %v1418
      %v1420 = vpop.f32.mrb[0].mxu0
      %1421 = vmatprep.mubr.bf16.mxu0 0
      %1422 = vmatmul.mubr.bf16.gmra.mrb[0].mxu0 %v1269
      %v1423 = vpop.f32.mrb[0].mxu0
      %v1424 = vadd.f32 %v1212, %v1423
      %v1425 = vpop.f32.mrb[0].mxu0
      %v1426 = vpop.f32.mrb[0].mxu0
      %v1427 = vadd.f32 %v1215, %v1426
      %v1428 = vpop.f32.mrb[0].mxu0
      %1429 = vmatprep.mubr.bf16.mxu0 0
      %1430 = vmatmul.mubr.bf16.gmra.mrb[0].mxu0 %v1272
      %v1431 = vpop.f32.mrb[0].mxu0
      %v1432 = vadd.f32 %v1220, %v1431
      %v1433 = vpop.f32.mrb[0].mxu0
      %v1434 = vpop.f32.mrb[0].mxu0
      %v1435 = vadd.f32 %v1223, %v1434
      %v1436 = vpop.f32.mrb[0].mxu0
      %1437 = vdwg.mxu0
      %v1438 = vld [vmem:[%s262 + $0x20] sm:$0xff]
      %v1439 = vld [vmem:[%s262 + $0x28] sm:$0xff]
      %v1440 = vld [vmem:[%s262 + $0x30] sm:$0xff]
      %v1441 = vld [vmem:[%s262 + $0x38] sm:$0xff]
      %v1442 = vld [vmem:[%s262 + $0x40] sm:$0xff]
      %v1443 = vld [vmem:[%s262 + $0x48] sm:$0xff]
      %v1444 = vld [vmem:[%s262 + $0x50] sm:$0xff]
      %v1445 = vld [vmem:[%s262 + $0x58] sm:$0xff]
      %v1446 = vld [vmem:[%s262 + $0x60] sm:$0xff]
      %v1447 = vld [vmem:[%s262 + $0x68] sm:$0xff]
      %v1448 = vld [vmem:[%s262 + $0x70] sm:$0xff]
      %v1449 = vld [vmem:[%s262 + $0x78] sm:$0xff]
      %v1450 = vld [vmem:[%s262 + $0x80] sm:$0xff]
      %v1451 = vld [vmem:[%s262 + $0x88] sm:$0xff]
      %v1452 = vld [vmem:[%s262 + $0x90] sm:$0xff]
      %v1453 = vld [vmem:[%s262 + $0x98] sm:$0xff]
      %v1454 = vld [vmem:[%s262 + $0xa0] sm:$0xff]
      %v1455 = vld [vmem:[%s262 + $0xa8] sm:$0xff]
      %v1456 = vld [vmem:[%s262 + $0xb0] sm:$0xff]
      %v1457 = vld [vmem:[%s262 + $0xb8] sm:$0xff]
      %v1458 = vld [vmem:[%s262 + $0xc0] sm:$0xff]
      %v1459 = vld [vmem:[%s262 + $0xc8] sm:$0xff]
      %v1460 = vld [vmem:[%s262 + $0xd0] sm:$0xff]
      %v1461 = vld [vmem:[%s262 + $0xd8] sm:$0xff]
      %v1462 = vld [vmem:[%s262 + $0xe0] sm:$0xff]
      %v1463 = vld [vmem:[%s262 + $0xe8] sm:$0xff]
      %v1464 = vld [vmem:[%s262 + $0xf0] sm:$0xff]
      %v1465 = vld [vmem:[%s262 + $0xf8] sm:$0xff]
      %v1466 = vld [vmem:[%s262 + $0x100] sm:$0xff]
      %v1467 = vld [vmem:[%s262 + $0x108] sm:$0xff]
      %v1468 = vld [vmem:[%s262 + $0x110] sm:$0xff]
      %v1469 = vld [vmem:[%s262 + $0x118] sm:$0xff]
      %v1470 = vpack.c.bf16 %v1439, %v1438
      %v1471 = vpack.c.bf16 %v1441, %v1440
      %v1472 = vpack.c.bf16 %v1443, %v1442
      %v1473 = vpack.c.bf16 %v1445, %v1444
      %v1474 = vpack.c.bf16 %v1447, %v1446
      %v1475 = vpack.c.bf16 %v1449, %v1448
      %v1476 = vpack.c.bf16 %v1451, %v1450
      %v1477 = vpack.c.bf16 %v1453, %v1452
      %v1478 = vpack.c.bf16 %v1455, %v1454
      %v1479 = vpack.c.bf16 %v1457, %v1456
      %v1480 = vpack.c.bf16 %v1459, %v1458
      %v1481 = vpack.c.bf16 %v1461, %v1460
      %v1482 = vpack.c.bf16 %v1463, %v1462
      %v1483 = vpack.c.bf16 %v1465, %v1464
      %v1484 = vpack.c.bf16 %v1467, %v1466
      %v1485 = vpack.c.bf16 %v1469, %v1468
      %v1486 = vsel %vm955, %v1470, 0
      %v1487 = vsel %vm956, %v1471, 0
      %v1488 = vsel %vm957, %v1472, 0
      %v1489 = vsel %vm958, %v1473, 0
      %v1490 = vsel %vm959, %v1474, 0
      %v1491 = vsel %vm960, %v1475, 0
      %v1492 = vsel %vm961, %v1476, 0
      %v1493 = vsel %vm962, %v1477, 0
      %v1494 = vsel %vm963, %v1478, 0
      %v1495 = vsel %vm964, %v1479, 0
      %v1496 = vsel %vm965, %v1480, 0
      %v1497 = vsel %vm966, %v1481, 0
      %v1498 = vsel %vm967, %v1482, 0
      %v1499 = vsel %vm968, %v1483, 0
      %v1500 = vsel %vm969, %v1484, 0
      %v1501 = vsel %vm970, %v1485, 0
      %v1502 = vld [vmem:[%s1 + $0xc] sm:$0x3]
      %v1504 = vsel %vm1012, %v1486, 0
      %v1507 = vsel %vm1012, %v1487, 0
      %v1510 = vsel %vm1012, %v1488, 0
      %v1513 = vsel %vm1012, %v1489, 0
      %v1516 = vsel %vm1012, %v1490, 0
      %v1519 = vsel %vm1012, %v1491, 0
      %v1522 = vsel %vm1012, %v1492, 0
      %v1525 = vsel %vm1012, %v1493, 0
      %v1528 = vsel %vm1012, %v1494, 0
      %v1531 = vsel %vm1012, %v1495, 0
      %v1534 = vsel %vm1012, %v1496, 0
      %v1537 = vsel %vm1012, %v1497, 0
      %v1540 = vsel %vm1012, %v1498, 0
      %v1543 = vsel %vm1012, %v1499, 0
      %v1546 = vsel %vm1012, %v1500, 0
      %v1549 = vsel %vm1012, %v1501, 0
      %v1552 = vsel %vm1061, %v1502, 0
      %1554 = vmatprep.subr.bf16.mxu0 0
      %1555 = vmatpush1.bf16.msra.mxu0 %v1552
      %1556 = vmatprep.subr.bf16.mxu0 0
      %1557 = vmatpush1.bf16.msra.mxu0 0
      %1558 = vmatprep.subr.bf16.mxu0 0
      %1559 = vmatpush1.bf16.msra.mxu0 0
      %1560 = vmatprep.subr.bf16.mxu0 0
      %1561 = vmatpush1.bf16.msra.mxu0 0
      %1562 = vmatprep.subr.bf16.mxu0 0
      %1563 = vmatpush1.bf16.msra.mxu0 0
      %1564 = vmatprep.subr.bf16.mxu0 0
      %1565 = vmatpush1.bf16.msra.mxu0 0
      %1566 = vmatprep.subr.bf16.mxu0 0
      %1567 = vmatpush1.bf16.msra.mxu0 0
      %1568 = vmatprep.subr.bf16.mxu0 0
      %1569 = vmatpush1.bf16.msra.mxu0 0
      %1570 = vmatprep.subr.bf16.mxu0 0
      %1571 = vmatpush1.bf16.msra.mxu0 0
      %1572 = vmatprep.subr.bf16.mxu0 0
      %1573 = vmatpush1.bf16.msra.mxu0 0
      %1574 = vmatprep.subr.bf16.mxu0 0
      %1575 = vmatpush1.bf16.msra.mxu0 0
      %1576 = vmatprep.subr.bf16.mxu0 0
      %1577 = vmatpush1.bf16.msra.mxu0 0
      %1578 = vmatprep.subr.bf16.mxu0 0
      %1579 = vmatpush1.bf16.msra.mxu0 0
      %1580 = vmatprep.subr.bf16.mxu0 0
      %1581 = vmatpush1.bf16.msra.mxu0 0
      %1582 = vmatprep.subr.bf16.mxu0 0
      %1583 = vmatpush1.bf16.msra.mxu0 0
      %1584 = vmatprep.subr.bf16.mxu0 0
      %1585 = vmatpush1.bf16.msra.mxu0 0
      %1586 = vmatprep.mubr.bf16.mxu0 0
      %1587 = vmatmul.mubr.bf16.gmra.mrb[0].mxu0 %v1504
      %v1588 = vpop.f32.mrb[0].mxu0
      %v1589 = vadd.f32 0.0, %v1588
      %v1590 = vpop.f32.mrb[0].mxu0
      %v1591 = vpop.f32.mrb[0].mxu0
      %v1592 = vadd.f32 0.0, %v1591
      %v1593 = vpop.f32.mrb[0].mxu0
      %1594 = vmatprep.mubr.bf16.mxu0 0
      %1595 = vmatmul.mubr.bf16.gmra.mrb[0].mxu0 %v1507
      %v1596 = vpop.f32.mrb[0].mxu0
      %v1597 = vadd.f32 0.0, %v1596
      %v1598 = vpop.f32.mrb[0].mxu0
      %v1599 = vpop.f32.mrb[0].mxu0
      %v1600 = vadd.f32 0.0, %v1599
      %v1601 = vpop.f32.mrb[0].mxu0
      %1602 = vmatprep.mubr.bf16.mxu0 0
      %1603 = vmatmul.mubr.bf16.gmra.mrb[0].mxu0 %v1510
      %v1604 = vpop.f32.mrb[0].mxu0
      %v1605 = vadd.f32 0.0, %v1604
      %v1606 = vpop.f32.mrb[0].mxu0
      %v1607 = vpop.f32.mrb[0].mxu0
      %v1608 = vadd.f32 0.0, %v1607
      %v1609 = vpop.f32.mrb[0].mxu0
      %1610 = vmatprep.mubr.bf16.mxu0 0
      %1611 = vmatmul.mubr.bf16.gmra.mrb[0].mxu0 %v1513
      %v1612 = vpop.f32.mrb[0].mxu0
      %v1613 = vadd.f32 0.0, %v1612
      %v1614 = vpop.f32.mrb[0].mxu0
      %v1615 = vpop.f32.mrb[0].mxu0
      %v1616 = vadd.f32 0.0, %v1615
      %v1617 = vpop.f32.mrb[0].mxu0
      %1618 = vmatprep.mubr.bf16.mxu0 0
      %1619 = vmatmul.mubr.bf16.gmra.mrb[0].mxu0 %v1516
      %v1620 = vpop.f32.mrb[0].mxu0
      %v1621 = vadd.f32 0.0, %v1620
      %v1622 = vpop.f32.mrb[0].mxu0
      %v1623 = vpop.f32.mrb[0].mxu0
      %v1624 = vadd.f32 0.0, %v1623
      %v1625 = vpop.f32.mrb[0].mxu0
      %1626 = vmatprep.mubr.bf16.mxu0 0
      %1627 = vmatmul.mubr.bf16.gmra.mrb[0].mxu0 %v1519
      %v1628 = vpop.f32.mrb[0].mxu0
      %v1629 = vadd.f32 0.0, %v1628
      %v1630 = vpop.f32.mrb[0].mxu0
      %v1631 = vpop.f32.mrb[0].mxu0
      %v1632 = vadd.f32 0.0, %v1631
      %v1633 = vpop.f32.mrb[0].mxu0
      %1634 = vmatprep.mubr.bf16.mxu0 0
      %1635 = vmatmul.mubr.bf16.gmra.mrb[0].mxu0 %v1522
      %v1636 = vpop.f32.mrb[0].mxu0
      %v1637 = vadd.f32 0.0, %v1636
      %v1638 = vpop.f32.mrb[0].mxu0
      %v1639 = vpop.f32.mrb[0].mxu0
      %v1640 = vadd.f32 0.0, %v1639
      %v1641 = vpop.f32.mrb[0].mxu0
      %1642 = vmatprep.mubr.bf16.mxu0 0
      %1643 = vmatmul.mubr.bf16.gmra.mrb[0].mxu0 %v1525
      %v1644 = vpop.f32.mrb[0].mxu0
      %v1645 = vadd.f32 0.0, %v1644
      %v1646 = vpop.f32.mrb[0].mxu0
      %v1647 = vpop.f32.mrb[0].mxu0
      %v1648 = vadd.f32 0.0, %v1647
      %v1649 = vpop.f32.mrb[0].mxu0
      %1650 = vmatprep.mubr.bf16.mxu0 0
      %1651 = vmatmul.mubr.bf16.gmra.mrb[0].mxu0 %v1528
      %v1652 = vpop.f32.mrb[0].mxu0
      %v1653 = vadd.f32 0.0, %v1652
      %v1654 = vpop.f32.mrb[0].mxu0
      %v1655 = vpop.f32.mrb[0].mxu0
      %v1656 = vadd.f32 0.0, %v1655
      %v1657 = vpop.f32.mrb[0].mxu0
      %1658 = vmatprep.mubr.bf16.mxu0 0
      %1659 = vmatmul.mubr.bf16.gmra.mrb[0].mxu0 %v1531
      %v1660 = vpop.f32.mrb[0].mxu0
      %v1661 = vadd.f32 0.0, %v1660
      %v1662 = vpop.f32.mrb[0].mxu0
      %v1663 = vpop.f32.mrb[0].mxu0
      %v1664 = vadd.f32 0.0, %v1663
      %v1665 = vpop.f32.mrb[0].mxu0
      %1666 = vmatprep.mubr.bf16.mxu0 0
      %1667 = vmatmul.mubr.bf16.gmra.mrb[0].mxu0 %v1534
      %v1668 = vpop.f32.mrb[0].mxu0
      %v1669 = vadd.f32 0.0, %v1668
      %v1670 = vpop.f32.mrb[0].mxu0
      %v1671 = vpop.f32.mrb[0].mxu0
      %v1672 = vadd.f32 0.0, %v1671
      %v1673 = vpop.f32.mrb[0].mxu0
      %1674 = vmatprep.mubr.bf16.mxu0 0
      %1675 = vmatmul.mubr.bf16.gmra.mrb[0].mxu0 %v1537
      %v1676 = vpop.f32.mrb[0].mxu0
      %v1677 = vadd.f32 0.0, %v1676
      %v1678 = vpop.f32.mrb[0].mxu0
      %v1679 = vpop.f32.mrb[0].mxu0
      %v1680 = vadd.f32 0.0, %v1679
      %v1681 = vpop.f32.mrb[0].mxu0
      %1682 = vmatprep.mubr.bf16.mxu0 0
      %1683 = vmatmul.mubr.bf16.gmra.mrb[0].mxu0 %v1540
      %v1684 = vpop.f32.mrb[0].mxu0
      %v1685 = vadd.f32 0.0, %v1684
      %v1686 = vpop.f32.mrb[0].mxu0
      %v1687 = vpop.f32.mrb[0].mxu0
      %v1688 = vadd.f32 0.0, %v1687
      %v1689 = vpop.f32.mrb[0].mxu0
      %1690 = vmatprep.mubr.bf16.mxu0 0
      %1691 = vmatmul.mubr.bf16.gmra.mrb[0].mxu0 %v1543
      %v1692 = vpop.f32.mrb[0].mxu0
      %v1693 = vadd.f32 0.0, %v1692
      %v1694 = vpop.f32.mrb[0].mxu0
      %v1695 = vpop.f32.mrb[0].mxu0
      %v1696 = vadd.f32 0.0, %v1695
      %v1697 = vpop.f32.mrb[0].mxu0
      %1698 = vmatprep.mubr.bf16.mxu0 0
      %1699 = vmatmul.mubr.bf16.gmra.mrb[0].mxu0 %v1546
      %v1700 = vpop.f32.mrb[0].mxu0
      %v1701 = vadd.f32 0.0, %v1700
      %v1702 = vpop.f32.mrb[0].mxu0
      %v1703 = vpop.f32.mrb[0].mxu0
      %v1704 = vadd.f32 0.0, %v1703
      %v1705 = vpop.f32.mrb[0].mxu0
      %1706 = vmatprep.mubr.bf16.mxu0 0
      %1707 = vmatmul.mubr.bf16.gmra.mrb[0].mxu0 %v1549
      %v1708 = vpop.f32.mrb[0].mxu0
      %v1709 = vadd.f32 0.0, %v1708
      %v1710 = vpop.f32.mrb[0].mxu0
      %v1711 = vpop.f32.mrb[0].mxu0
      %v1712 = vadd.f32 0.0, %v1711
      %v1713 = vpop.f32.mrb[0].mxu0
      %1714 = vdwg.mxu0
      %v1715 = vadd.f32 %v1312, %v1589
      %v1716 = vadd.f32 %v1315, %v1592
      %v1717 = vadd.f32 %v1320, %v1597
      %v1718 = vadd.f32 %v1323, %v1600
      %v1719 = vadd.f32 %v1328, %v1605
      %v1720 = vadd.f32 %v1331, %v1608
      %v1721 = vadd.f32 %v1336, %v1613
      %v1722 = vadd.f32 %v1339, %v1616
      %v1723 = vadd.f32 %v1344, %v1621
      %v1724 = vadd.f32 %v1347, %v1624
      %v1725 = vadd.f32 %v1352, %v1629
      %v1726 = vadd.f32 %v1355, %v1632
      %v1727 = vadd.f32 %v1360, %v1637
      %v1728 = vadd.f32 %v1363, %v1640
      %v1729 = vadd.f32 %v1368, %v1645
      %v1730 = vadd.f32 %v1371, %v1648
      %v1731 = vadd.f32 %v1376, %v1653
      %v1732 = vadd.f32 %v1379, %v1656
      %v1733 = vadd.f32 %v1384, %v1661
      %v1734 = vadd.f32 %v1387, %v1664
      %v1735 = vadd.f32 %v1392, %v1669
      %v1736 = vadd.f32 %v1395, %v1672
      %v1737 = vadd.f32 %v1400, %v1677
      %v1738 = vadd.f32 %v1403, %v1680
      %v1739 = vadd.f32 %v1408, %v1685
      %v1740 = vadd.f32 %v1411, %v1688
      %v1741 = vadd.f32 %v1416, %v1693
      %v1742 = vadd.f32 %v1419, %v1696
      %v1743 = vadd.f32 %v1424, %v1701
      %v1744 = vadd.f32 %v1427, %v1704
      %v1745 = vadd.f32 %v1432, %v1709
      %v1746 = vadd.f32 %v1435, %v1712
      %v1747 = vld [vmem:[%s262 + $0x1] sm:$0xff]
      %v1748 = vld [vmem:[%s262 + $0x9] sm:$0xff]
      %v1749 = vld [vmem:[%s262 + $0x11] sm:$0xff]
      %v1750 = vld [vmem:[%s262 + $0x19] sm:$0xff]
      %v1751 = vld [vmem:[%s262 + $0x21] sm:$0xff]
      %v1752 = vld [vmem:[%s262 + $0x29] sm:$0xff]
      %v1753 = vld [vmem:[%s262 + $0x31] sm:$0xff]
      %v1754 = vld [vmem:[%s262 + $0x39] sm:$0xff]
      %v1755 = vld [vmem:[%s262 + $0x41] sm:$0xff]
      %v1756 = vld [vmem:[%s262 + $0x49] sm:$0xff]
      %v1757 = vld [vmem:[%s262 + $0x51] sm:$0xff]
      %v1758 = vld [vmem:[%s262 + $0x59] sm:$0xff]
      %v1759 = vld [vmem:[%s262 + $0x61] sm:$0xff]
      %v1760 = vld [vmem:[%s262 + $0x69] sm:$0xff]
      %v1761 = vld [vmem:[%s262 + $0x71] sm:$0xff]
      %v1762 = vld [vmem:[%s262 + $0x79] sm:$0xff]
      %v1763 = vld [vmem:[%s262 + $0x81] sm:$0xff]
      %v1764 = vld [vmem:[%s262 + $0x89] sm:$0xff]
      %v1765 = vld [vmem:[%s262 + $0x91] sm:$0xff]
      %v1766 = vld [vmem:[%s262 + $0x99] sm:$0xff]
      %v1767 = vld [vmem:[%s262 + $0xa1] sm:$0xff]
      %v1768 = vld [vmem:[%s262 + $0xa9] sm:$0xff]
      %v1769 = vld [vmem:[%s262 + $0xb1] sm:$0xff]
      %v1770 = vld [vmem:[%s262 + $0xb9] sm:$0xff]
      %v1771 = vld [vmem:[%s262 + $0xc1] sm:$0xff]
      %v1772 = vld [vmem:[%s262 + $0xc9] sm:$0xff]
      %v1773 = vld [vmem:[%s262 + $0xd1] sm:$0xff]
      %v1774 = vld [vmem:[%s262 + $0xd9] sm:$0xff]
      %v1775 = vld [vmem:[%s262 + $0xe1] sm:$0xff]
      %v1776 = vld [vmem:[%s262 + $0xe9] sm:$0xff]
      %v1777 = vld [vmem:[%s262 + $0xf1] sm:$0xff]
      %v1778 = vld [vmem:[%s262 + $0xf9] sm:$0xff]
      %v1779 = vpack.c.bf16 %v1748, %v1747
      %v1780 = vpack.c.bf16 %v1750, %v1749
      %v1781 = vpack.c.bf16 %v1752, %v1751
      %v1782 = vpack.c.bf16 %v1754, %v1753
      %v1783 = vpack.c.bf16 %v1756, %v1755
      %v1784 = vpack.c.bf16 %v1758, %v1757
      %v1785 = vpack.c.bf16 %v1760, %v1759
      %v1786 = vpack.c.bf16 %v1762, %v1761
      %v1787 = vpack.c.bf16 %v1764, %v1763
      %v1788 = vpack.c.bf16 %v1766, %v1765
      %v1789 = vpack.c.bf16 %v1768, %v1767
      %v1790 = vpack.c.bf16 %v1770, %v1769
      %v1791 = vpack.c.bf16 %v1772, %v1771
      %v1792 = vpack.c.bf16 %v1774, %v1773
      %v1793 = vpack.c.bf16 %v1776, %v1775
      %v1794 = vpack.c.bf16 %v1778, %v1777
      %v1795 = vld [vmem:[%s1] sm:$0xc]
      %v1797 = vunpack.c.l.b16 %v1795
      %v1798 = vpack.c.b16 %v1797, %v1797
      %v1799 = vrot.slane %v1798, 2
      %v1801 = vsel %vm1012, %v1779, 0
      %v1804 = vsel %vm1012, %v1780, 0
      %v1807 = vsel %vm1012, %v1781, 0
      %v1810 = vsel %vm1012, %v1782, 0
      %v1813 = vsel %vm1012, %v1783, 0
      %v1816 = vsel %vm1012, %v1784, 0
      %v1819 = vsel %vm1012, %v1785, 0
      %v1822 = vsel %vm1012, %v1786, 0
      %v1825 = vsel %vm1012, %v1787, 0
      %v1828 = vsel %vm1012, %v1788, 0
      %v1831 = vsel %vm1012, %v1789, 0
      %v1834 = vsel %vm1012, %v1790, 0
      %v1837 = vsel %vm1012, %v1791, 0
      %v1840 = vsel %vm1012, %v1792, 0
      %v1843 = vsel %vm1012, %v1793, 0
      %v1846 = vsel %vm1012, %v1794, 0
      %v1849 = vsel %vm1061, %v1799, 0
      %1851 = vmatprep.subr.bf16.mxu0 0
      %1852 = vmatpush1.bf16.msra.mxu0 %v1849
      %1853 = vmatprep.subr.bf16.mxu0 0
      %1854 = vmatpush1.bf16.msra.mxu0 0
      %1855 = vmatprep.subr.bf16.mxu0 0
      %1856 = vmatpush1.bf16.msra.mxu0 0
      %1857 = vmatprep.subr.bf16.mxu0 0
      %1858 = vmatpush1.bf16.msra.mxu0 0
      %1859 = vmatprep.subr.bf16.mxu0 0
      %1860 = vmatpush1.bf16.msra.mxu0 0
      %1861 = vmatprep.subr.bf16.mxu0 0
      %1862 = vmatpush1.bf16.msra.mxu0 0
      %1863 = vmatprep.subr.bf16.mxu0 0
      %1864 = vmatpush1.bf16.msra.mxu0 0
      %1865 = vmatprep.subr.bf16.mxu0 0
      %1866 = vmatpush1.bf16.msra.mxu0 0
      %1867 = vmatprep.subr.bf16.mxu0 0
      %1868 = vmatpush1.bf16.msra.mxu0 0
      %1869 = vmatprep.subr.bf16.mxu0 0
      %1870 = vmatpush1.bf16.msra.mxu0 0
      %1871 = vmatprep.subr.bf16.mxu0 0
      %1872 = vmatpush1.bf16.msra.mxu0 0
      %1873 = vmatprep.subr.bf16.mxu0 0
      %1874 = vmatpush1.bf16.msra.mxu0 0
      %1875 = vmatprep.subr.bf16.mxu0 0
      %1876 = vmatpush1.bf16.msra.mxu0 0
      %1877 = vmatprep.subr.bf16.mxu0 0
      %1878 = vmatpush1.bf16.msra.mxu0 0
      %1879 = vmatprep.subr.bf16.mxu0 0
      %1880 = vmatpush1.bf16.msra.mxu0 0
      %1881 = vmatprep.subr.bf16.mxu0 0
      %1882 = vmatpush1.bf16.msra.mxu0 0
      %1883 = vmatprep.mubr.bf16.mxu0 0
      %1884 = vmatmul.mubr.bf16.gmra.mrb[0].mxu0 %v1801
      %v1885 = vpop.f32.mrb[0].mxu0
      %v1886 = vadd.f32 0.0, %v1885
      %v1887 = vpop.f32.mrb[0].mxu0
      %v1888 = vpop.f32.mrb[0].mxu0
      %v1889 = vadd.f32 0.0, %v1888
      %v1890 = vpop.f32.mrb[0].mxu0
      %1891 = vmatprep.mubr.bf16.mxu0 0
      %1892 = vmatmul.mubr.bf16.gmra.mrb[0].mxu0 %v1804
      %v1893 = vpop.f32.mrb[0].mxu0
      %v1894 = vadd.f32 0.0, %v1893
      %v1895 = vpop.f32.mrb[0].mxu0
      %v1896 = vpop.f32.mrb[0].mxu0
      %v1897 = vadd.f32 0.0, %v1896
      %v1898 = vpop.f32.mrb[0].mxu0
      %1899 = vmatprep.mubr.bf16.mxu0 0
      %1900 = vmatmul.mubr.bf16.gmra.mrb[0].mxu0 %v1807
      %v1901 = vpop.f32.mrb[0].mxu0
      %v1902 = vadd.f32 0.0, %v1901
      %v1903 = vpop.f32.mrb[0].mxu0
      %v1904 = vpop.f32.mrb[0].mxu0
      %v1905 = vadd.f32 0.0, %v1904
      %v1906 = vpop.f32.mrb[0].mxu0
      %1907 = vmatprep.mubr.bf16.mxu0 0
      %1908 = vmatmul.mubr.bf16.gmra.mrb[0].mxu0 %v1810
      %v1909 = vpop.f32.mrb[0].mxu0
      %v1910 = vadd.f32 0.0, %v1909
      %v1911 = vpop.f32.mrb[0].mxu0
      %v1912 = vpop.f32.mrb[0].mxu0
      %v1913 = vadd.f32 0.0, %v1912
      %v1914 = vpop.f32.mrb[0].mxu0
      %1915 = vmatprep.mubr.bf16.mxu0 0
      %1916 = vmatmul.mubr.bf16.gmra.mrb[0].mxu0 %v1813
      %v1917 = vpop.f32.mrb[0].mxu0
      %v1918 = vadd.f32 0.0, %v1917
      %v1919 = vpop.f32.mrb[0].mxu0
      %v1920 = vpop.f32.mrb[0].mxu0
      %v1921 = vadd.f32 0.0, %v1920
      %v1922 = vpop.f32.mrb[0].mxu0
      %1923 = vmatprep.mubr.bf16.mxu0 0
      %1924 = vmatmul.mubr.bf16.gmra.mrb[0].mxu0 %v1816
      %v1925 = vpop.f32.mrb[0].mxu0
      %v1926 = vadd.f32 0.0, %v1925
      %v1927 = vpop.f32.mrb[0].mxu0
      %v1928 = vpop.f32.mrb[0].mxu0
      %v1929 = vadd.f32 0.0, %v1928
      %v1930 = vpop.f32.mrb[0].mxu0
      %1931 = vmatprep.mubr.bf16.mxu0 0
      %1932 = vmatmul.mubr.bf16.gmra.mrb[0].mxu0 %v1819
      %v1933 = vpop.f32.mrb[0].mxu0
      %v1934 = vadd.f32 0.0, %v1933
      %v1935 = vpop.f32.mrb[0].mxu0
      %v1936 = vpop.f32.mrb[0].mxu0
      %v1937 = vadd.f32 0.0, %v1936
      %v1938 = vpop.f32.mrb[0].mxu0
      %1939 = vmatprep.mubr.bf16.mxu0 0
      %1940 = vmatmul.mubr.bf16.gmra.mrb[0].mxu0 %v1822
      %v1941 = vpop.f32.mrb[0].mxu0
      %v1942 = vadd.f32 0.0, %v1941
      %v1943 = vpop.f32.mrb[0].mxu0
      %v1944 = vpop.f32.mrb[0].mxu0
      %v1945 = vadd.f32 0.0, %v1944
      %v1946 = vpop.f32.mrb[0].mxu0
      %1947 = vmatprep.mubr.bf16.mxu0 0
      %1948 = vmatmul.mubr.bf16.gmra.mrb[0].mxu0 %v1825
      %v1949 = vpop.f32.mrb[0].mxu0
      %v1950 = vadd.f32 0.0, %v1949
      %v1951 = vpop.f32.mrb[0].mxu0
      %v1952 = vpop.f32.mrb[0].mxu0
      %v1953 = vadd.f32 0.0, %v1952
      %v1954 = vpop.f32.mrb[0].mxu0
      %1955 = vmatprep.mubr.bf16.mxu0 0
      %1956 = vmatmul.mubr.bf16.gmra.mrb[0].mxu0 %v1828
      %v1957 = vpop.f32.mrb[0].mxu0
      %v1958 = vadd.f32 0.0, %v1957
      %v1959 = vpop.f32.mrb[0].mxu0
      %v1960 = vpop.f32.mrb[0].mxu0
      %v1961 = vadd.f32 0.0, %v1960
      %v1962 = vpop.f32.mrb[0].mxu0
      %1963 = vmatprep.mubr.bf16.mxu0 0
      %1964 = vmatmul.mubr.bf16.gmra.mrb[0].mxu0 %v1831
      %v1965 = vpop.f32.mrb[0].mxu0
      %v1966 = vadd.f32 0.0, %v1965
      %v1967 = vpop.f32.mrb[0].mxu0
      %v1968 = vpop.f32.mrb[0].mxu0
      %v1969 = vadd.f32 0.0, %v1968
      %v1970 = vpop.f32.mrb[0].mxu0
      %1971 = vmatprep.mubr.bf16.mxu0 0
      %1972 = vmatmul.mubr.bf16.gmra.mrb[0].mxu0 %v1834
      %v1973 = vpop.f32.mrb[0].mxu0
      %v1974 = vadd.f32 0.0, %v1973
      %v1975 = vpop.f32.mrb[0].mxu0
      %v1976 = vpop.f32.mrb[0].mxu0
      %v1977 = vadd.f32 0.0, %v1976
      %v1978 = vpop.f32.mrb[0].mxu0
      %1979 = vmatprep.mubr.bf16.mxu0 0
      %1980 = vmatmul.mubr.bf16.gmra.mrb[0].mxu0 %v1837
      %v1981 = vpop.f32.mrb[0].mxu0
      %v1982 = vadd.f32 0.0, %v1981
      %v1983 = vpop.f32.mrb[0].mxu0
      %v1984 = vpop.f32.mrb[0].mxu0
      %v1985 = vadd.f32 0.0, %v1984
      %v1986 = vpop.f32.mrb[0].mxu0
      %1987 = vmatprep.mubr.bf16.mxu0 0
      %1988 = vmatmul.mubr.bf16.gmra.mrb[0].mxu0 %v1840
      %v1989 = vpop.f32.mrb[0].mxu0
      %v1990 = vadd.f32 0.0, %v1989
      %v1991 = vpop.f32.mrb[0].mxu0
      %v1992 = vpop.f32.mrb[0].mxu0
      %v1993 = vadd.f32 0.0, %v1992
      %v1994 = vpop.f32.mrb[0].mxu0
      %1995 = vmatprep.mubr.bf16.mxu0 0
      %1996 = vmatmul.mubr.bf16.gmra.mrb[0].mxu0 %v1843
      %v1997 = vpop.f32.mrb[0].mxu0
      %v1998 = vadd.f32 0.0, %v1997
      %v1999 = vpop.f32.mrb[0].mxu0
      %v2000 = vpop.f32.mrb[0].mxu0
      %v2001 = vadd.f32 0.0, %v2000
      %v2002 = vpop.f32.mrb[0].mxu0
      %2003 = vmatprep.mubr.bf16.mxu0 0
      %2004 = vmatmul.mubr.bf16.gmra.mrb[0].mxu0 %v1846
      %v2005 = vpop.f32.mrb[0].mxu0
      %v2006 = vadd.f32 0.0, %v2005
      %v2007 = vpop.f32.mrb[0].mxu0
      %v2008 = vpop.f32.mrb[0].mxu0
      %v2009 = vadd.f32 0.0, %v2008
      %v2010 = vpop.f32.mrb[0].mxu0
      %2011 = vdwg.mxu0
      %v2012 = vadd.f32 %v1715, %v1886
      %v2013 = vadd.f32 %v1716, %v1889
      %v2014 = vadd.f32 %v1717, %v1894
      %v2015 = vadd.f32 %v1718, %v1897
      %v2016 = vadd.f32 %v1719, %v1902
      %v2017 = vadd.f32 %v1720, %v1905
      %v2018 = vadd.f32 %v1721, %v1910
      %v2019 = vadd.f32 %v1722, %v1913
      %v2020 = vadd.f32 %v1723, %v1918
      %v2021 = vadd.f32 %v1724, %v1921
      %v2022 = vadd.f32 %v1725, %v1926
      %v2023 = vadd.f32 %v1726, %v1929
      %v2024 = vadd.f32 %v1727, %v1934
      %v2025 = vadd.f32 %v1728, %v1937
      %v2026 = vadd.f32 %v1729, %v1942
      %v2027 = vadd.f32 %v1730, %v1945
      %v2028 = vadd.f32 %v1731, %v1950
      %v2029 = vadd.f32 %v1732, %v1953
      %v2030 = vadd.f32 %v1733, %v1958
      %v2031 = vadd.f32 %v1734, %v1961
      %v2032 = vadd.f32 %v1735, %v1966
      %v2033 = vadd.f32 %v1736, %v1969
      %v2034 = vadd.f32 %v1737, %v1974
      %v2035 = vadd.f32 %v1738, %v1977
      %v2036 = vadd.f32 %v1739, %v1982
      %v2037 = vadd.f32 %v1740, %v1985
      %v2038 = vadd.f32 %v1741, %v1990
      %v2039 = vadd.f32 %v1742, %v1993
      %v2040 = vadd.f32 %v1743, %v1998
      %v2041 = vadd.f32 %v1744, %v2001
      %v2042 = vadd.f32 %v1745, %v2006
      %v2043 = vadd.f32 %v1746, %v2009
      %v2044 = vld [vmem:[%s262 + $0x11] sm:$0xff]
      %v2045 = vld [vmem:[%s262 + $0x19] sm:$0xff]
      %v2046 = vld [vmem:[%s262 + $0x21] sm:$0xff]
      %v2047 = vld [vmem:[%s262 + $0x29] sm:$0xff]
      %v2048 = vld [vmem:[%s262 + $0x31] sm:$0xff]
      %v2049 = vld [vmem:[%s262 + $0x39] sm:$0xff]
      %v2050 = vld [vmem:[%s262 + $0x41] sm:$0xff]
      %v2051 = vld [vmem:[%s262 + $0x49] sm:$0xff]
      %v2052 = vld [vmem:[%s262 + $0x51] sm:$0xff]
      %v2053 = vld [vmem:[%s262 + $0x59] sm:$0xff]
      %v2054 = vld [vmem:[%s262 + $0x61] sm:$0xff]
      %v2055 = vld [vmem:[%s262 + $0x69] sm:$0xff]
      %v2056 = vld [vmem:[%s262 + $0x71] sm:$0xff]
      %v2057 = vld [vmem:[%s262 + $0x79] sm:$0xff]
      %v2058 = vld [vmem:[%s262 + $0x81] sm:$0xff]
      %v2059 = vld [vmem:[%s262 + $0x89] sm:$0xff]
      %v2060 = vld [vmem:[%s262 + $0x91] sm:$0xff]
      %v2061 = vld [vmem:[%s262 + $0x99] sm:$0xff]
      %v2062 = vld [vmem:[%s262 + $0xa1] sm:$0xff]
      %v2063 = vld [vmem:[%s262 + $0xa9] sm:$0xff]
      %v2064 = vld [vmem:[%s262 + $0xb1] sm:$0xff]
      %v2065 = vld [vmem:[%s262 + $0xb9] sm:$0xff]
      %v2066 = vld [vmem:[%s262 + $0xc1] sm:$0xff]
      %v2067 = vld [vmem:[%s262 + $0xc9] sm:$0xff]
      %v2068 = vld [vmem:[%s262 + $0xd1] sm:$0xff]
      %v2069 = vld [vmem:[%s262 + $0xd9] sm:$0xff]
      %v2070 = vld [vmem:[%s262 + $0xe1] sm:$0xff]
      %v2071 = vld [vmem:[%s262 + $0xe9] sm:$0xff]
      %v2072 = vld [vmem:[%s262 + $0xf1] sm:$0xff]
      %v2073 = vld [vmem:[%s262 + $0xf9] sm:$0xff]
      %v2074 = vld [vmem:[%s262 + $0x101] sm:$0xff]
      %v2075 = vld [vmem:[%s262 + $0x109] sm:$0xff]
      %v2076 = vpack.c.bf16 %v2045, %v2044
      %v2077 = vpack.c.bf16 %v2047, %v2046
      %v2078 = vpack.c.bf16 %v2049, %v2048
      %v2079 = vpack.c.bf16 %v2051, %v2050
      %v2080 = vpack.c.bf16 %v2053, %v2052
      %v2081 = vpack.c.bf16 %v2055, %v2054
      %v2082 = vpack.c.bf16 %v2057, %v2056
      %v2083 = vpack.c.bf16 %v2059, %v2058
      %v2084 = vpack.c.bf16 %v2061, %v2060
      %v2085 = vpack.c.bf16 %v2063, %v2062
      %v2086 = vpack.c.bf16 %v2065, %v2064
      %v2087 = vpack.c.bf16 %v2067, %v2066
      %v2088 = vpack.c.bf16 %v2069, %v2068
      %v2089 = vpack.c.bf16 %v2071, %v2070
      %v2090 = vpack.c.bf16 %v2073, %v2072
      %v2091 = vpack.c.bf16 %v2075, %v2074
      %v2092 = vld [vmem:[%s1 + $0x8] sm:$0x3]
      %v2094 = vsel %vm1012, %v2076, 0
      %v2097 = vsel %vm1012, %v2077, 0
      %v2100 = vsel %vm1012, %v2078, 0
      %v2103 = vsel %vm1012, %v2079, 0
      %v2106 = vsel %vm1012, %v2080, 0
      %v2109 = vsel %vm1012, %v2081, 0
      %v2112 = vsel %vm1012, %v2082, 0
      %v2115 = vsel %vm1012, %v2083, 0
      %v2118 = vsel %vm1012, %v2084, 0
      %v2121 = vsel %vm1012, %v2085, 0
      %v2124 = vsel %vm1012, %v2086, 0
      %v2127 = vsel %vm1012, %v2087, 0
      %v2130 = vsel %vm1012, %v2088, 0
      %v2133 = vsel %vm1012, %v2089, 0
      %v2136 = vsel %vm1012, %v2090, 0
      %v2139 = vsel %vm1012, %v2091, 0
      %v2142 = vsel %vm1061, %v2092, 0
      %2144 = vmatprep.subr.bf16.mxu0 0
      %2145 = vmatpush1.bf16.msra.mxu0 %v2142
      %2146 = vmatprep.subr.bf16.mxu0 0
      %2147 = vmatpush1.bf16.msra.mxu0 0
      %2148 = vmatprep.subr.bf16.mxu0 0
      %2149 = vmatpush1.bf16.msra.mxu0 0
      %2150 = vmatprep.subr.bf16.mxu0 0
      %2151 = vmatpush1.bf16.msra.mxu0 0
      %2152 = vmatprep.subr.bf16.mxu0 0
      %2153 = vmatpush1.bf16.msra.mxu0 0
      %2154 = vmatprep.subr.bf16.mxu0 0
      %2155 = vmatpush1.bf16.msra.mxu0 0
      %2156 = vmatprep.subr.bf16.mxu0 0
      %2157 = vmatpush1.bf16.msra.mxu0 0
      %2158 = vmatprep.subr.bf16.mxu0 0
      %2159 = vmatpush1.bf16.msra.mxu0 0
      %2160 = vmatprep.subr.bf16.mxu0 0
      %2161 = vmatpush1.bf16.msra.mxu0 0
      %2162 = vmatprep.subr.bf16.mxu0 0
      %2163 = vmatpush1.bf16.msra.mxu0 0
      %2164 = vmatprep.subr.bf16.mxu0 0
      %2165 = vmatpush1.bf16.msra.mxu0 0
      %2166 = vmatprep.subr.bf16.mxu0 0
      %2167 = vmatpush1.bf16.msra.mxu0 0
      %2168 = vmatprep.subr.bf16.mxu0 0
      %2169 = vmatpush1.bf16.msra.mxu0 0
      %2170 = vmatprep.subr.bf16.mxu0 0
      %2171 = vmatpush1.bf16.msra.mxu0 0
      %2172 = vmatprep.subr.bf16.mxu0 0
      %2173 = vmatpush1.bf16.msra.mxu0 0
      %2174 = vmatprep.subr.bf16.mxu0 0
      %2175 = vmatpush1.bf16.msra.mxu0 0
      %2176 = vmatprep.mubr.bf16.mxu0 0
      %2177 = vmatmul.mubr.bf16.gmra.mrb[0].mxu0 %v2094
      %v2178 = vpop.f32.mrb[0].mxu0
      %v2179 = vadd.f32 0.0, %v2178
      %v2180 = vpop.f32.mrb[0].mxu0
      %v2181 = vpop.f32.mrb[0].mxu0
      %v2182 = vadd.f32 0.0, %v2181
      %v2183 = vpop.f32.mrb[0].mxu0
      %2184 = vmatprep.mubr.bf16.mxu0 0
      %2185 = vmatmul.mubr.bf16.gmra.mrb[0].mxu0 %v2097
      %v2186 = vpop.f32.mrb[0].mxu0
      %v2187 = vadd.f32 0.0, %v2186
      %v2188 = vpop.f32.mrb[0].mxu0
      %v2189 = vpop.f32.mrb[0].mxu0
      %v2190 = vadd.f32 0.0, %v2189
      %v2191 = vpop.f32.mrb[0].mxu0
      %2192 = vmatprep.mubr.bf16.mxu0 0
      %2193 = vmatmul.mubr.bf16.gmra.mrb[0].mxu0 %v2100
      %v2194 = vpop.f32.mrb[0].mxu0
      %v2195 = vadd.f32 0.0, %v2194
      %v2196 = vpop.f32.mrb[0].mxu0
      %v2197 = vpop.f32.mrb[0].mxu0
      %v2198 = vadd.f32 0.0, %v2197
      %v2199 = vpop.f32.mrb[0].mxu0
      %2200 = vmatprep.mubr.bf16.mxu0 0
      %2201 = vmatmul.mubr.bf16.gmra.mrb[0].mxu0 %v2103
      %v2202 = vpop.f32.mrb[0].mxu0
      %v2203 = vadd.f32 0.0, %v2202
      %v2204 = vpop.f32.mrb[0].mxu0
      %v2205 = vpop.f32.mrb[0].mxu0
      %v2206 = vadd.f32 0.0, %v2205
      %v2207 = vpop.f32.mrb[0].mxu0
      %2208 = vmatprep.mubr.bf16.mxu0 0
      %2209 = vmatmul.mubr.bf16.gmra.mrb[0].mxu0 %v2106
      %v2210 = vpop.f32.mrb[0].mxu0
      %v2211 = vadd.f32 0.0, %v2210
      %v2212 = vpop.f32.mrb[0].mxu0
      %v2213 = vpop.f32.mrb[0].mxu0
      %v2214 = vadd.f32 0.0, %v2213
      %v2215 = vpop.f32.mrb[0].mxu0
      %2216 = vmatprep.mubr.bf16.mxu0 0
      %2217 = vmatmul.mubr.bf16.gmra.mrb[0].mxu0 %v2109
      %v2218 = vpop.f32.mrb[0].mxu0
      %v2219 = vadd.f32 0.0, %v2218
      %v2220 = vpop.f32.mrb[0].mxu0
      %v2221 = vpop.f32.mrb[0].mxu0
      %v2222 = vadd.f32 0.0, %v2221
      %v2223 = vpop.f32.mrb[0].mxu0
      %2224 = vmatprep.mubr.bf16.mxu0 0
      %2225 = vmatmul.mubr.bf16.gmra.mrb[0].mxu0 %v2112
      %v2226 = vpop.f32.mrb[0].mxu0
      %v2227 = vadd.f32 0.0, %v2226
      %v2228 = vpop.f32.mrb[0].mxu0
      %v2229 = vpop.f32.mrb[0].mxu0
      %v2230 = vadd.f32 0.0, %v2229
      %v2231 = vpop.f32.mrb[0].mxu0
      %2232 = vmatprep.mubr.bf16.mxu0 0
      %2233 = vmatmul.mubr.bf16.gmra.mrb[0].mxu0 %v2115
      %v2234 = vpop.f32.mrb[0].mxu0
      %v2235 = vadd.f32 0.0, %v2234
      %v2236 = vpop.f32.mrb[0].mxu0
      %v2237 = vpop.f32.mrb[0].mxu0
      %v2238 = vadd.f32 0.0, %v2237
      %v2239 = vpop.f32.mrb[0].mxu0
      %2240 = vmatprep.mubr.bf16.mxu0 0
      %2241 = vmatmul.mubr.bf16.gmra.mrb[0].mxu0 %v2118
      %v2242 = vpop.f32.mrb[0].mxu0
      %v2243 = vadd.f32 0.0, %v2242
      %v2244 = vpop.f32.mrb[0].mxu0
      %v2245 = vpop.f32.mrb[0].mxu0
      %v2246 = vadd.f32 0.0, %v2245
      %v2247 = vpop.f32.mrb[0].mxu0
      %2248 = vmatprep.mubr.bf16.mxu0 0
      %2249 = vmatmul.mubr.bf16.gmra.mrb[0].mxu0 %v2121
      %v2250 = vpop.f32.mrb[0].mxu0
      %v2251 = vadd.f32 0.0, %v2250
      %v2252 = vpop.f32.mrb[0].mxu0
      %v2253 = vpop.f32.mrb[0].mxu0
      %v2254 = vadd.f32 0.0, %v2253
      %v2255 = vpop.f32.mrb[0].mxu0
      %2256 = vmatprep.mubr.bf16.mxu0 0
      %2257 = vmatmul.mubr.bf16.gmra.mrb[0].mxu0 %v2124
      %v2258 = vpop.f32.mrb[0].mxu0
      %v2259 = vadd.f32 0.0, %v2258
      %v2260 = vpop.f32.mrb[0].mxu0
      %v2261 = vpop.f32.mrb[0].mxu0
      %v2262 = vadd.f32 0.0, %v2261
      %v2263 = vpop.f32.mrb[0].mxu0
      %2264 = vmatprep.mubr.bf16.mxu0 0
      %2265 = vmatmul.mubr.bf16.gmra.mrb[0].mxu0 %v2127
      %v2266 = vpop.f32.mrb[0].mxu0
      %v2267 = vadd.f32 0.0, %v2266
      %v2268 = vpop.f32.mrb[0].mxu0
      %v2269 = vpop.f32.mrb[0].mxu0
      %v2270 = vadd.f32 0.0, %v2269
      %v2271 = vpop.f32.mrb[0].mxu0
      %2272 = vmatprep.mubr.bf16.mxu0 0
      %2273 = vmatmul.mubr.bf16.gmra.mrb[0].mxu0 %v2130
      %v2274 = vpop.f32.mrb[0].mxu0
      %v2275 = vadd.f32 0.0, %v2274
      %v2276 = vpop.f32.mrb[0].mxu0
      %v2277 = vpop.f32.mrb[0].mxu0
      %v2278 = vadd.f32 0.0, %v2277
      %v2279 = vpop.f32.mrb[0].mxu0
      %2280 = vmatprep.mubr.bf16.mxu0 0
      %2281 = vmatmul.mubr.bf16.gmra.mrb[0].mxu0 %v2133
      %v2282 = vpop.f32.mrb[0].mxu0
      %v2283 = vadd.f32 0.0, %v2282
      %v2284 = vpop.f32.mrb[0].mxu0
      %v2285 = vpop.f32.mrb[0].mxu0
      %v2286 = vadd.f32 0.0, %v2285
      %v2287 = vpop.f32.mrb[0].mxu0
      %2288 = vmatprep.mubr.bf16.mxu0 0
      %2289 = vmatmul.mubr.bf16.gmra.mrb[0].mxu0 %v2136
      %v2290 = vpop.f32.mrb[0].mxu0
      %v2291 = vadd.f32 0.0, %v2290
      %v2292 = vpop.f32.mrb[0].mxu0
      %v2293 = vpop.f32.mrb[0].mxu0
      %v2294 = vadd.f32 0.0, %v2293
      %v2295 = vpop.f32.mrb[0].mxu0
      %2296 = vmatprep.mubr.bf16.mxu0 0
      %2297 = vmatmul.mubr.bf16.gmra.mrb[0].mxu0 %v2139
      %v2298 = vpop.f32.mrb[0].mxu0
      %v2299 = vadd.f32 0.0, %v2298
      %v2300 = vpop.f32.mrb[0].mxu0
      %v2301 = vpop.f32.mrb[0].mxu0
      %v2302 = vadd.f32 0.0, %v2301
      %v2303 = vpop.f32.mrb[0].mxu0
      %2304 = vdwg.mxu0
      %v2305 = vadd.f32 %v2012, %v2179
      %v2306 = vadd.f32 %v2013, %v2182
      %v2307 = vadd.f32 %v2014, %v2187
      %v2308 = vadd.f32 %v2015, %v2190
      %v2309 = vadd.f32 %v2016, %v2195
      %v2310 = vadd.f32 %v2017, %v2198
      %v2311 = vadd.f32 %v2018, %v2203
      %v2312 = vadd.f32 %v2019, %v2206
      %v2313 = vadd.f32 %v2020, %v2211
      %v2314 = vadd.f32 %v2021, %v2214
      %v2315 = vadd.f32 %v2022, %v2219
      %v2316 = vadd.f32 %v2023, %v2222
      %v2317 = vadd.f32 %v2024, %v2227
      %v2318 = vadd.f32 %v2025, %v2230
      %v2319 = vadd.f32 %v2026, %v2235
      %v2320 = vadd.f32 %v2027, %v2238
      %v2321 = vadd.f32 %v2028, %v2243
      %v2322 = vadd.f32 %v2029, %v2246
      %v2323 = vadd.f32 %v2030, %v2251
      %v2324 = vadd.f32 %v2031, %v2254
      %v2325 = vadd.f32 %v2032, %v2259
      %v2326 = vadd.f32 %v2033, %v2262
      %v2327 = vadd.f32 %v2034, %v2267
      %v2328 = vadd.f32 %v2035, %v2270
      %v2329 = vadd.f32 %v2036, %v2275
      %v2330 = vadd.f32 %v2037, %v2278
      %v2331 = vadd.f32 %v2038, %v2283
      %v2332 = vadd.f32 %v2039, %v2286
      %v2333 = vadd.f32 %v2040, %v2291
      %v2334 = vadd.f32 %v2041, %v2294
      %v2335 = vadd.f32 %v2042, %v2299
      %v2336 = vadd.f32 %v2043, %v2302
      %v2337 = vld [vmem:[%s262 + $0x21] sm:$0xff]
      %v2338 = vld [vmem:[%s262 + $0x29] sm:$0xff]
      %v2339 = vld [vmem:[%s262 + $0x31] sm:$0xff]
      %v2340 = vld [vmem:[%s262 + $0x39] sm:$0xff]
      %v2341 = vld [vmem:[%s262 + $0x41] sm:$0xff]
      %v2342 = vld [vmem:[%s262 + $0x49] sm:$0xff]
      %v2343 = vld [vmem:[%s262 + $0x51] sm:$0xff]
      %v2344 = vld [vmem:[%s262 + $0x59] sm:$0xff]
      %v2345 = vld [vmem:[%s262 + $0x61] sm:$0xff]
      %v2346 = vld [vmem:[%s262 + $0x69] sm:$0xff]
      %v2347 = vld [vmem:[%s262 + $0x71] sm:$0xff]
      %v2348 = vld [vmem:[%s262 + $0x79] sm:$0xff]
      %v2349 = vld [vmem:[%s262 + $0x81] sm:$0xff]
      %v2350 = vld [vmem:[%s262 + $0x89] sm:$0xff]
      %v2351 = vld [vmem:[%s262 + $0x91] sm:$0xff]
      %v2352 = vld [vmem:[%s262 + $0x99] sm:$0xff]
      %v2353 = vld [vmem:[%s262 + $0xa1] sm:$0xff]
      %v2354 = vld [vmem:[%s262 + $0xa9] sm:$0xff]
      %v2355 = vld [vmem:[%s262 + $0xb1] sm:$0xff]
      %v2356 = vld [vmem:[%s262 + $0xb9] sm:$0xff]
      %v2357 = vld [vmem:[%s262 + $0xc1] sm:$0xff]
      %v2358 = vld [vmem:[%s262 + $0xc9] sm:$0xff]
      %v2359 = vld [vmem:[%s262 + $0xd1] sm:$0xff]
      %v2360 = vld [vmem:[%s262 + $0xd9] sm:$0xff]
      %v2361 = vld [vmem:[%s262 + $0xe1] sm:$0xff]
      %v2362 = vld [vmem:[%s262 + $0xe9] sm:$0xff]
      %v2363 = vld [vmem:[%s262 + $0xf1] sm:$0xff]
      %v2364 = vld [vmem:[%s262 + $0xf9] sm:$0xff]
      %v2365 = vld [vmem:[%s262 + $0x101] sm:$0xff]
      %v2366 = vld [vmem:[%s262 + $0x109] sm:$0xff]
      %v2367 = vld [vmem:[%s262 + $0x111] sm:$0xff]
      %v2368 = vld [vmem:[%s262 + $0x119] sm:$0xff]
      %v2369 = vpack.c.bf16 %v2338, %v2337
      %v2370 = vpack.c.bf16 %v2340, %v2339
      %v2371 = vpack.c.bf16 %v2342, %v2341
      %v2372 = vpack.c.bf16 %v2344, %v2343
      %v2373 = vpack.c.bf16 %v2346, %v2345
      %v2374 = vpack.c.bf16 %v2348, %v2347
      %v2375 = vpack.c.bf16 %v2350, %v2349
      %v2376 = vpack.c.bf16 %v2352, %v2351
      %v2377 = vpack.c.bf16 %v2354, %v2353
      %v2378 = vpack.c.bf16 %v2356, %v2355
      %v2379 = vpack.c.bf16 %v2358, %v2357
      %v2380 = vpack.c.bf16 %v2360, %v2359
      %v2381 = vpack.c.bf16 %v2362, %v2361
      %v2382 = vpack.c.bf16 %v2364, %v2363
      %v2383 = vpack.c.bf16 %v2366, %v2365
      %v2384 = vpack.c.bf16 %v2368, %v2367
      %v2385 = vld [vmem:[%s1 + $0xc] sm:$0xc]
      %v2387 = vunpack.c.l.b16 %v2385
      %v2388 = vpack.c.b16 %v2387, %v2387
      %v2389 = vrot.slane %v2388, 2
      %v2391 = vsel %vm1012, %v2369, 0
      %v2394 = vsel %vm1012, %v2370, 0
      %v2397 = vsel %vm1012, %v2371, 0
      %v2400 = vsel %vm1012, %v2372, 0
      %v2403 = vsel %vm1012, %v2373, 0
      %v2406 = vsel %vm1012, %v2374, 0
      %v2409 = vsel %vm1012, %v2375, 0
      %v2412 = vsel %vm1012, %v2376, 0
      %v2415 = vsel %vm1012, %v2377, 0
      %v2418 = vsel %vm1012, %v2378, 0
      %v2421 = vsel %vm1012, %v2379, 0
      %v2424 = vsel %vm1012, %v2380, 0
      %v2427 = vsel %vm1012, %v2381, 0
      %v2430 = vsel %vm1012, %v2382, 0
      %v2433 = vsel %vm1012, %v2383, 0
      %v2436 = vsel %vm1012, %v2384, 0
      %v2439 = vsel %vm1061, %v2389, 0
      %2441 = vmatprep.subr.bf16.mxu0 0
      %2442 = vmatpush1.bf16.msra.mxu0 %v2439
      %2443 = vmatprep.subr.bf16.mxu0 0
      %2444 = vmatpush1.bf16.msra.mxu0 0
      %2445 = vmatprep.subr.bf16.mxu0 0
      %2446 = vmatpush1.bf16.msra.mxu0 0
      %2447 = vmatprep.subr.bf16.mxu0 0
      %2448 = vmatpush1.bf16.msra.mxu0 0
      %2449 = vmatprep.subr.bf16.mxu0 0
      %2450 = vmatpush1.bf16.msra.mxu0 0
      %2451 = vmatprep.subr.bf16.mxu0 0
      %2452 = vmatpush1.bf16.msra.mxu0 0
      %2453 = vmatprep.subr.bf16.mxu0 0
      %2454 = vmatpush1.bf16.msra.mxu0 0
      %2455 = vmatprep.subr.bf16.mxu0 0
      %2456 = vmatpush1.bf16.msra.mxu0 0
      %2457 = vmatprep.subr.bf16.mxu0 0
      %2458 = vmatpush1.bf16.msra.mxu0 0
      %2459 = vmatprep.subr.bf16.mxu0 0
      %2460 = vmatpush1.bf16.msra.mxu0 0
      %2461 = vmatprep.subr.bf16.mxu0 0
      %2462 = vmatpush1.bf16.msra.mxu0 0
      %2463 = vmatprep.subr.bf16.mxu0 0
      %2464 = vmatpush1.bf16.msra.mxu0 0
      %2465 = vmatprep.subr.bf16.mxu0 0
      %2466 = vmatpush1.bf16.msra.mxu0 0
      %2467 = vmatprep.subr.bf16.mxu0 0
      %2468 = vmatpush1.bf16.msra.mxu0 0
      %2469 = vmatprep.subr.bf16.mxu0 0
      %2470 = vmatpush1.bf16.msra.mxu0 0
      %2471 = vmatprep.subr.bf16.mxu0 0
      %2472 = vmatpush1.bf16.msra.mxu0 0
      %2473 = vmatprep.mubr.bf16.mxu0 0
      %2474 = vmatmul.mubr.bf16.gmra.mrb[0].mxu0 %v2391
      %v2475 = vpop.f32.mrb[0].mxu0
      %v2476 = vadd.f32 0.0, %v2475
      %v2477 = vpop.f32.mrb[0].mxu0
      %v2478 = vpop.f32.mrb[0].mxu0
      %v2479 = vadd.f32 0.0, %v2478
      %v2480 = vpop.f32.mrb[0].mxu0
      %2481 = vmatprep.mubr.bf16.mxu0 0
      %2482 = vmatmul.mubr.bf16.gmra.mrb[0].mxu0 %v2394
      %v2483 = vpop.f32.mrb[0].mxu0
      %v2484 = vadd.f32 0.0, %v2483
      %v2485 = vpop.f32.mrb[0].mxu0
      %v2486 = vpop.f32.mrb[0].mxu0
      %v2487 = vadd.f32 0.0, %v2486
      %v2488 = vpop.f32.mrb[0].mxu0
      %2489 = vmatprep.mubr.bf16.mxu0 0
      %2490 = vmatmul.mubr.bf16.gmra.mrb[0].mxu0 %v2397
      %v2491 = vpop.f32.mrb[0].mxu0
      %v2492 = vadd.f32 0.0, %v2491
      %v2493 = vpop.f32.mrb[0].mxu0
      %v2494 = vpop.f32.mrb[0].mxu0
      %v2495 = vadd.f32 0.0, %v2494
      %v2496 = vpop.f32.mrb[0].mxu0
      %2497 = vmatprep.mubr.bf16.mxu0 0
      %2498 = vmatmul.mubr.bf16.gmra.mrb[0].mxu0 %v2400
      %v2499 = vpop.f32.mrb[0].mxu0
      %v2500 = vadd.f32 0.0, %v2499
      %v2501 = vpop.f32.mrb[0].mxu0
      %v2502 = vpop.f32.mrb[0].mxu0
      %v2503 = vadd.f32 0.0, %v2502
      %v2504 = vpop.f32.mrb[0].mxu0
      %2505 = vmatprep.mubr.bf16.mxu0 0
      %2506 = vmatmul.mubr.bf16.gmra.mrb[0].mxu0 %v2403
      %v2507 = vpop.f32.mrb[0].mxu0
      %v2508 = vadd.f32 0.0, %v2507
      %v2509 = vpop.f32.mrb[0].mxu0
      %v2510 = vpop.f32.mrb[0].mxu0
      %v2511 = vadd.f32 0.0, %v2510
      %v2512 = vpop.f32.mrb[0].mxu0
      %2513 = vmatprep.mubr.bf16.mxu0 0
      %2514 = vmatmul.mubr.bf16.gmra.mrb[0].mxu0 %v2406
      %v2515 = vpop.f32.mrb[0].mxu0
      %v2516 = vadd.f32 0.0, %v2515
      %v2517 = vpop.f32.mrb[0].mxu0
      %v2518 = vpop.f32.mrb[0].mxu0
      %v2519 = vadd.f32 0.0, %v2518
      %v2520 = vpop.f32.mrb[0].mxu0
      %2521 = vmatprep.mubr.bf16.mxu0 0
      %2522 = vmatmul.mubr.bf16.gmra.mrb[0].mxu0 %v2409
      %v2523 = vpop.f32.mrb[0].mxu0
      %v2524 = vadd.f32 0.0, %v2523
      %v2525 = vpop.f32.mrb[0].mxu0
      %v2526 = vpop.f32.mrb[0].mxu0
      %v2527 = vadd.f32 0.0, %v2526
      %v2528 = vpop.f32.mrb[0].mxu0
      %2529 = vmatprep.mubr.bf16.mxu0 0
      %2530 = vmatmul.mubr.bf16.gmra.mrb[0].mxu0 %v2412
      %v2531 = vpop.f32.mrb[0].mxu0
      %v2532 = vadd.f32 0.0, %v2531
      %v2533 = vpop.f32.mrb[0].mxu0
      %v2534 = vpop.f32.mrb[0].mxu0
      %v2535 = vadd.f32 0.0, %v2534
      %v2536 = vpop.f32.mrb[0].mxu0
      %2537 = vmatprep.mubr.bf16.mxu0 0
      %2538 = vmatmul.mubr.bf16.gmra.mrb[0].mxu0 %v2415
      %v2539 = vpop.f32.mrb[0].mxu0
      %v2540 = vadd.f32 0.0, %v2539
      %v2541 = vpop.f32.mrb[0].mxu0
      %v2542 = vpop.f32.mrb[0].mxu0
      %v2543 = vadd.f32 0.0, %v2542
      %v2544 = vpop.f32.mrb[0].mxu0
      %2545 = vmatprep.mubr.bf16.mxu0 0
      %2546 = vmatmul.mubr.bf16.gmra.mrb[0].mxu0 %v2418
      %v2547 = vpop.f32.mrb[0].mxu0
      %v2548 = vadd.f32 0.0, %v2547
      %v2549 = vpop.f32.mrb[0].mxu0
      %v2550 = vpop.f32.mrb[0].mxu0
      %v2551 = vadd.f32 0.0, %v2550
      %v2552 = vpop.f32.mrb[0].mxu0
      %2553 = vmatprep.mubr.bf16.mxu0 0
      %2554 = vmatmul.mubr.bf16.gmra.mrb[0].mxu0 %v2421
      %v2555 = vpop.f32.mrb[0].mxu0
      %v2556 = vadd.f32 0.0, %v2555
      %v2557 = vpop.f32.mrb[0].mxu0
      %v2558 = vpop.f32.mrb[0].mxu0
      %v2559 = vadd.f32 0.0, %v2558
      %v2560 = vpop.f32.mrb[0].mxu0
      %2561 = vmatprep.mubr.bf16.mxu0 0
      %2562 = vmatmul.mubr.bf16.gmra.mrb[0].mxu0 %v2424
      %v2563 = vpop.f32.mrb[0].mxu0
      %v2564 = vadd.f32 0.0, %v2563
      %v2565 = vpop.f32.mrb[0].mxu0
      %v2566 = vpop.f32.mrb[0].mxu0
      %v2567 = vadd.f32 0.0, %v2566
      %v2568 = vpop.f32.mrb[0].mxu0
      %2569 = vmatprep.mubr.bf16.mxu0 0
      %2570 = vmatmul.mubr.bf16.gmra.mrb[0].mxu0 %v2427
      %v2571 = vpop.f32.mrb[0].mxu0
      %v2572 = vadd.f32 0.0, %v2571
      %v2573 = vpop.f32.mrb[0].mxu0
      %v2574 = vpop.f32.mrb[0].mxu0
      %v2575 = vadd.f32 0.0, %v2574
      %v2576 = vpop.f32.mrb[0].mxu0
      %2577 = vmatprep.mubr.bf16.mxu0 0
      %2578 = vmatmul.mubr.bf16.gmra.mrb[0].mxu0 %v2430
      %v2579 = vpop.f32.mrb[0].mxu0
      %v2580 = vadd.f32 0.0, %v2579
      %v2581 = vpop.f32.mrb[0].mxu0
      %v2582 = vpop.f32.mrb[0].mxu0
      %v2583 = vadd.f32 0.0, %v2582
      %v2584 = vpop.f32.mrb[0].mxu0
      %2585 = vmatprep.mubr.bf16.mxu0 0
      %2586 = vmatmul.mubr.bf16.gmra.mrb[0].mxu0 %v2433
      %v2587 = vpop.f32.mrb[0].mxu0
      %v2588 = vadd.f32 0.0, %v2587
      %v2589 = vpop.f32.mrb[0].mxu0
      %v2590 = vpop.f32.mrb[0].mxu0
      %v2591 = vadd.f32 0.0, %v2590
      %v2592 = vpop.f32.mrb[0].mxu0
      %2593 = vmatprep.mubr.bf16.mxu0 0
      %2594 = vmatmul.mubr.bf16.gmra.mrb[0].mxu0 %v2436
      %v2595 = vpop.f32.mrb[0].mxu0
      %v2596 = vadd.f32 0.0, %v2595
      %v2597 = vpop.f32.mrb[0].mxu0
      %v2598 = vpop.f32.mrb[0].mxu0
      %v2599 = vadd.f32 0.0, %v2598
      %v2600 = vpop.f32.mrb[0].mxu0
      %2601 = vdwg.mxu0
      %v2602 = vadd.f32 %v2305, %v2476
      %v2603 = vadd.f32 %v2306, %v2479
      %v2604 = vadd.f32 %v2307, %v2484
      %v2605 = vadd.f32 %v2308, %v2487
      %v2606 = vadd.f32 %v2309, %v2492
      %v2607 = vadd.f32 %v2310, %v2495
      %v2608 = vadd.f32 %v2311, %v2500
      %v2609 = vadd.f32 %v2312, %v2503
      %v2610 = vadd.f32 %v2313, %v2508
      %v2611 = vadd.f32 %v2314, %v2511
      %v2612 = vadd.f32 %v2315, %v2516
      %v2613 = vadd.f32 %v2316, %v2519
      %v2614 = vadd.f32 %v2317, %v2524
      %v2615 = vadd.f32 %v2318, %v2527
      %v2616 = vadd.f32 %v2319, %v2532
      %v2617 = vadd.f32 %v2320, %v2535
      %v2618 = vadd.f32 %v2321, %v2540
      %v2619 = vadd.f32 %v2322, %v2543
      %v2620 = vadd.f32 %v2323, %v2548
      %v2621 = vadd.f32 %v2324, %v2551
      %v2622 = vadd.f32 %v2325, %v2556
      %v2623 = vadd.f32 %v2326, %v2559
      %v2624 = vadd.f32 %v2327, %v2564
      %v2625 = vadd.f32 %v2328, %v2567
      %v2626 = vadd.f32 %v2329, %v2572
      %v2627 = vadd.f32 %v2330, %v2575
      %v2628 = vadd.f32 %v2331, %v2580
      %v2629 = vadd.f32 %v2332, %v2583
      %v2630 = vadd.f32 %v2333, %v2588
      %v2631 = vadd.f32 %v2334, %v2591
      %v2632 = vadd.f32 %v2335, %v2596
      %v2633 = vadd.f32 %v2336, %v2599
      %v2634 = vld [vmem:[%s262 + $0x2] sm:$0xff]
      %v2635 = vld [vmem:[%s262 + $0xa] sm:$0xff]
      %v2636 = vld [vmem:[%s262 + $0x12] sm:$0xff]
      %v2637 = vld [vmem:[%s262 + $0x1a] sm:$0xff]
      %v2638 = vld [vmem:[%s262 + $0x22] sm:$0xff]
      %v2639 = vld [vmem:[%s262 + $0x2a] sm:$0xff]
      %v2640 = vld [vmem:[%s262 + $0x32] sm:$0xff]
      %v2641 = vld [vmem:[%s262 + $0x3a] sm:$0xff]
      %v2642 = vld [vmem:[%s262 + $0x42] sm:$0xff]
      %v2643 = vld [vmem:[%s262 + $0x4a] sm:$0xff]
      %v2644 = vld [vmem:[%s262 + $0x52] sm:$0xff]
      %v2645 = vld [vmem:[%s262 + $0x5a] sm:$0xff]
      %v2646 = vld [vmem:[%s262 + $0x62] sm:$0xff]
      %v2647 = vld [vmem:[%s262 + $0x6a] sm:$0xff]
      %v2648 = vld [vmem:[%s262 + $0x72] sm:$0xff]
      %v2649 = vld [vmem:[%s262 + $0x7a] sm:$0xff]
      %v2650 = vld [vmem:[%s262 + $0x82] sm:$0xff]
      %v2651 = vld [vmem:[%s262 + $0x8a] sm:$0xff]
      %v2652 = vld [vmem:[%s262 + $0x92] sm:$0xff]
      %v2653 = vld [vmem:[%s262 + $0x9a] sm:$0xff]
      %v2654 = vld [vmem:[%s262 + $0xa2] sm:$0xff]
      %v2655 = vld [vmem:[%s262 + $0xaa] sm:$0xff]
      %v2656 = vld [vmem:[%s262 + $0xb2] sm:$0xff]
      %v2657 = vld [vmem:[%s262 + $0xba] sm:$0xff]
      %v2658 = vld [vmem:[%s262 + $0xc2] sm:$0xff]
      %v2659 = vld [vmem:[%s262 + $0xca] sm:$0xff]
      %v2660 = vld [vmem:[%s262 + $0xd2] sm:$0xff]
      %v2661 = vld [vmem:[%s262 + $0xda] sm:$0xff]
      %v2662 = vld [vmem:[%s262 + $0xe2] sm:$0xff]
      %v2663 = vld [vmem:[%s262 + $0xea] sm:$0xff]
      %v2664 = vld [vmem:[%s262 + $0xf2] sm:$0xff]
      %v2665 = vld [vmem:[%s262 + $0xfa] sm:$0xff]
      %v2666 = vpack.c.bf16 %v2635, %v2634
      %v2667 = vpack.c.bf16 %v2637, %v2636
      %v2668 = vpack.c.bf16 %v2639, %v2638
      %v2669 = vpack.c.bf16 %v2641, %v2640
      %v2670 = vpack.c.bf16 %v2643, %v2642
      %v2671 = vpack.c.bf16 %v2645, %v2644
      %v2672 = vpack.c.bf16 %v2647, %v2646
      %v2673 = vpack.c.bf16 %v2649, %v2648
      %v2674 = vpack.c.bf16 %v2651, %v2650
      %v2675 = vpack.c.bf16 %v2653, %v2652
      %v2676 = vpack.c.bf16 %v2655, %v2654
      %v2677 = vpack.c.bf16 %v2657, %v2656
      %v2678 = vpack.c.bf16 %v2659, %v2658
      %v2679 = vpack.c.bf16 %v2661, %v2660
      %v2680 = vpack.c.bf16 %v2663, %v2662
      %v2681 = vpack.c.bf16 %v2665, %v2664
      %vm2682 = vcmp.le.s32.totalorder %v667, 14
      %vm2683 = vcmp.le.s32.totalorder %v668, 14
      %vm2684 = vcmp.le.s32.totalorder %v669, 14
      %vm2685 = vcmp.le.s32.totalorder %v670, 14
      %vm2686 = vcmp.le.s32.totalorder %v671, 14
      %vm2687 = vcmp.le.s32.totalorder %v672, 14
      %vm2688 = vcmp.le.s32.totalorder %v673, 14
      %vm2689 = vcmp.le.s32.totalorder %v674, 14
      %vm2690 = vcmp.le.s32.totalorder %v675, 14
      %vm2691 = vcmp.le.s32.totalorder %v676, 14
      %vm2692 = vcmp.le.s32.totalorder %v677, 14
      %vm2693 = vcmp.le.s32.totalorder %v678, 14
      %vm2694 = vcmp.le.s32.totalorder %v679, 14
      %vm2695 = vcmp.le.s32.totalorder %v680, 14
      %vm2696 = vcmp.le.s32.totalorder %v681, 14
      %vm2697 = vcmp.le.s32.totalorder %v682, 14
      %vm2698 = vcmp.le.s32.totalorder %v683, 14
      %vm2699 = vcmp.le.s32.totalorder %v684, 14
      %vm2700 = vcmp.le.s32.totalorder %v685, 14
      %vm2701 = vcmp.le.s32.totalorder %v686, 14
      %vm2702 = vcmp.le.s32.totalorder %v687, 14
      %vm2703 = vcmp.le.s32.totalorder %v688, 14
      %vm2704 = vcmp.le.s32.totalorder %v689, 14
      %vm2705 = vcmp.le.s32.totalorder %v690, 14
      %vm2706 = vcmp.le.s32.totalorder %v691, 14
      %vm2707 = vcmp.le.s32.totalorder %v692, 14
      %vm2708 = vcmp.le.s32.totalorder %v693, 14
      %vm2709 = vcmp.le.s32.totalorder %v694, 14
      %vm2710 = vcmp.le.s32.totalorder %v695, 14
      %vm2711 = vcmp.le.s32.totalorder %v696, 14
      %vm2712 = vcmp.le.s32.totalorder %v697, 14
      %vm2713 = vcmp.le.s32.totalorder %v698, 14
      %v2714 = vsel %vm2682, 1, 0
      %v2715 = vsel %vm2683, 1, 0
      %v2716 = vsel %vm2684, 1, 0
      %v2717 = vsel %vm2685, 1, 0
      %v2718 = vsel %vm2686, 1, 0
      %v2719 = vsel %vm2687, 1, 0
      %v2720 = vsel %vm2688, 1, 0
      %v2721 = vsel %vm2689, 1, 0
      %v2722 = vsel %vm2690, 1, 0
      %v2723 = vsel %vm2691, 1, 0
      %v2724 = vsel %vm2692, 1, 0
      %v2725 = vsel %vm2693, 1, 0
      %v2726 = vsel %vm2694, 1, 0
      %v2727 = vsel %vm2695, 1, 0
      %v2728 = vsel %vm2696, 1, 0
      %v2729 = vsel %vm2697, 1, 0
      %v2730 = vsel %vm2698, 1, 0
      %v2731 = vsel %vm2699, 1, 0
      %v2732 = vsel %vm2700, 1, 0
      %v2733 = vsel %vm2701, 1, 0
      %v2734 = vsel %vm2702, 1, 0
      %v2735 = vsel %vm2703, 1, 0
      %v2736 = vsel %vm2704, 1, 0
      %v2737 = vsel %vm2705, 1, 0
      %v2738 = vsel %vm2706, 1, 0
      %v2739 = vsel %vm2707, 1, 0
      %v2740 = vsel %vm2708, 1, 0
      %v2741 = vsel %vm2709, 1, 0
      %v2742 = vsel %vm2710, 1, 0
      %v2743 = vsel %vm2711, 1, 0
      %v2744 = vsel %vm2712, 1, 0
      %v2745 = vsel %vm2713, 1, 0
      %vm2746 = vcmp.eq.s32.totalorder %v2714, 1
      %vm2747 = vcmp.eq.s32.totalorder %v2715, 1
      %vm2748 = vcmp.eq.s32.totalorder %v2716, 1
      %vm2749 = vcmp.eq.s32.totalorder %v2717, 1
      %vm2750 = vcmp.eq.s32.totalorder %v2718, 1
      %vm2751 = vcmp.eq.s32.totalorder %v2719, 1
      %vm2752 = vcmp.eq.s32.totalorder %v2720, 1
      %vm2753 = vcmp.eq.s32.totalorder %v2721, 1
      %vm2754 = vcmp.eq.s32.totalorder %v2722, 1
      %vm2755 = vcmp.eq.s32.totalorder %v2723, 1
      %vm2756 = vcmp.eq.s32.totalorder %v2724, 1
      %vm2757 = vcmp.eq.s32.totalorder %v2725, 1
      %vm2758 = vcmp.eq.s32.totalorder %v2726, 1
      %vm2759 = vcmp.eq.s32.totalorder %v2727, 1
      %vm2760 = vcmp.eq.s32.totalorder %v2728, 1
      %vm2761 = vcmp.eq.s32.totalorder %v2729, 1
      %vm2762 = vcmp.eq.s32.totalorder %v2730, 1
      %vm2763 = vcmp.eq.s32.totalorder %v2731, 1
      %vm2764 = vcmp.eq.s32.totalorder %v2732, 1
      %vm2765 = vcmp.eq.s32.totalorder %v2733, 1
      %vm2766 = vcmp.eq.s32.totalorder %v2734, 1
      %vm2767 = vcmp.eq.s32.totalorder %v2735, 1
      %vm2768 = vcmp.eq.s32.totalorder %v2736, 1
      %vm2769 = vcmp.eq.s32.totalorder %v2737, 1
      %vm2770 = vcmp.eq.s32.totalorder %v2738, 1
      %vm2771 = vcmp.eq.s32.totalorder %v2739, 1
      %vm2772 = vcmp.eq.s32.totalorder %v2740, 1
      %vm2773 = vcmp.eq.s32.totalorder %v2741, 1
      %vm2774 = vcmp.eq.s32.totalorder %v2742, 1
      %vm2775 = vcmp.eq.s32.totalorder %v2743, 1
      %vm2776 = vcmp.eq.s32.totalorder %v2744, 1
      %vm2777 = vcmp.eq.s32.totalorder %v2745, 1
      %vm2778 = vmpackc.low %vm2746, %vm2746
      %vm2779 = vmpackc.low %vm2747, %vm2747
      %vm2780 = vmpackc.low %vm2748, %vm2748
      %vm2781 = vmpackc.low %vm2749, %vm2749
      %vm2782 = vmpackc.low %vm2750, %vm2750
      %vm2783 = vmpackc.low %vm2751, %vm2751
      %vm2784 = vmpackc.low %vm2752, %vm2752
      %vm2785 = vmpackc.low %vm2753, %vm2753
      %vm2786 = vmpackc.low %vm2754, %vm2754
      %vm2787 = vmpackc.low %vm2755, %vm2755
      %vm2788 = vmpackc.low %vm2756, %vm2756
      %vm2789 = vmpackc.low %vm2757, %vm2757
      %vm2790 = vmpackc.low %vm2758, %vm2758
      %vm2791 = vmpackc.low %vm2759, %vm2759
      %vm2792 = vmpackc.low %vm2760, %vm2760
      %vm2793 = vmpackc.low %vm2761, %vm2761
      %vm2794 = vmpackc.low %vm2762, %vm2762
      %vm2795 = vmpackc.low %vm2763, %vm2763
      %vm2796 = vmpackc.low %vm2764, %vm2764
      %vm2797 = vmpackc.low %vm2765, %vm2765
      %vm2798 = vmpackc.low %vm2766, %vm2766
      %vm2799 = vmpackc.low %vm2767, %vm2767
      %vm2800 = vmpackc.low %vm2768, %vm2768
      %vm2801 = vmpackc.low %vm2769, %vm2769
      %vm2802 = vmpackc.low %vm2770, %vm2770
      %vm2803 = vmpackc.low %vm2771, %vm2771
      %vm2804 = vmpackc.low %vm2772, %vm2772
      %vm2805 = vmpackc.low %vm2773, %vm2773
      %vm2806 = vmpackc.low %vm2774, %vm2774
      %vm2807 = vmpackc.low %vm2775, %vm2775
      %vm2808 = vmpackc.low %vm2776, %vm2776
      %vm2809 = vmpackc.low %vm2777, %vm2777
      %v2810 = vsel %vm2778, 65537, 0
      %v2811 = vsel %vm2779, 65537, 0
      %v2812 = vsel %vm2780, 65537, 0
      %v2813 = vsel %vm2781, 65537, 0
      %v2814 = vsel %vm2782, 65537, 0
      %v2815 = vsel %vm2783, 65537, 0
      %v2816 = vsel %vm2784, 65537, 0
      %v2817 = vsel %vm2785, 65537, 0
      %v2818 = vsel %vm2786, 65537, 0
      %v2819 = vsel %vm2787, 65537, 0
      %v2820 = vsel %vm2788, 65537, 0
      %v2821 = vsel %vm2789, 65537, 0
      %v2822 = vsel %vm2790, 65537, 0
      %v2823 = vsel %vm2791, 65537, 0
      %v2824 = vsel %vm2792, 65537, 0
      %v2825 = vsel %vm2793, 65537, 0
      %v2826 = vsel %vm2794, 65537, 0
      %v2827 = vsel %vm2795, 65537, 0
      %v2828 = vsel %vm2796, 65537, 0
      %v2829 = vsel %vm2797, 65537, 0
      %v2830 = vsel %vm2798, 65537, 0
      %v2831 = vsel %vm2799, 65537, 0
      %v2832 = vsel %vm2800, 65537, 0
      %v2833 = vsel %vm2801, 65537, 0
      %v2834 = vsel %vm2802, 65537, 0
      %v2835 = vsel %vm2803, 65537, 0
      %v2836 = vsel %vm2804, 65537, 0
      %v2837 = vsel %vm2805, 65537, 0
      %v2838 = vsel %vm2806, 65537, 0
      %v2839 = vsel %vm2807, 65537, 0
      %v2840 = vsel %vm2808, 65537, 0
      %v2841 = vsel %vm2809, 65537, 0
      %v2842 = vunpack.c.l.b16 %v2810
      %v2843 = vunpack.c.l.b16 %v2811
      %v2844 = vunpack.c.l.b16 %v2812
      %v2845 = vunpack.c.l.b16 %v2813
      %v2846 = vunpack.c.l.b16 %v2814
      %v2847 = vunpack.c.l.b16 %v2815
      %v2848 = vunpack.c.l.b16 %v2816
      %v2849 = vunpack.c.l.b16 %v2817
      %v2850 = vunpack.c.l.b16 %v2818
      %v2851 = vunpack.c.l.b16 %v2819
      %v2852 = vunpack.c.l.b16 %v2820
      %v2853 = vunpack.c.l.b16 %v2821
      %v2854 = vunpack.c.l.b16 %v2822
      %v2855 = vunpack.c.l.b16 %v2823
      %v2856 = vunpack.c.l.b16 %v2824
      %v2857 = vunpack.c.l.b16 %v2825
      %v2858 = vunpack.c.l.b16 %v2826
      %v2859 = vunpack.c.l.b16 %v2827
      %v2860 = vunpack.c.l.b16 %v2828
      %v2861 = vunpack.c.l.b16 %v2829
      %v2862 = vunpack.c.l.b16 %v2830
      %v2863 = vunpack.c.l.b16 %v2831
      %v2864 = vunpack.c.l.b16 %v2832
      %v2865 = vunpack.c.l.b16 %v2833
      %v2866 = vunpack.c.l.b16 %v2834
      %v2867 = vunpack.c.l.b16 %v2835
      %v2868 = vunpack.c.l.b16 %v2836
      %v2869 = vunpack.c.l.b16 %v2837
      %v2870 = vunpack.c.l.b16 %v2838
      %v2871 = vunpack.c.l.b16 %v2839
      %v2872 = vunpack.c.l.b16 %v2840
      %v2873 = vunpack.c.l.b16 %v2841
      %v2874 = vpack.c.b16 %v2843, %v2842
      %v2875 = vpack.c.b16 %v2845, %v2844
      %v2876 = vpack.c.b16 %v2847, %v2846
      %v2877 = vpack.c.b16 %v2849, %v2848
      %v2878 = vpack.c.b16 %v2851, %v2850
      %v2879 = vpack.c.b16 %v2853, %v2852
      %v2880 = vpack.c.b16 %v2855, %v2854
      %v2881 = vpack.c.b16 %v2857, %v2856
      %v2882 = vpack.c.b16 %v2859, %v2858
      %v2883 = vpack.c.b16 %v2861, %v2860
      %v2884 = vpack.c.b16 %v2863, %v2862
      %v2885 = vpack.c.b16 %v2865, %v2864
      %v2886 = vpack.c.b16 %v2867, %v2866
      %v2887 = vpack.c.b16 %v2869, %v2868
      %v2888 = vpack.c.b16 %v2871, %v2870
      %v2889 = vpack.c.b16 %v2873, %v2872
      %vm2890 = vcmp.ne.s16.totalorder %v2874, 0
      %vm2891 = vcmp.ne.s16.totalorder %v2875, 0
      %vm2892 = vcmp.ne.s16.totalorder %v2876, 0
      %vm2893 = vcmp.ne.s16.totalorder %v2877, 0
      %vm2894 = vcmp.ne.s16.totalorder %v2878, 0
      %vm2895 = vcmp.ne.s16.totalorder %v2879, 0
      %vm2896 = vcmp.ne.s16.totalorder %v2880, 0
      %vm2897 = vcmp.ne.s16.totalorder %v2881, 0
      %vm2898 = vcmp.ne.s16.totalorder %v2882, 0
      %vm2899 = vcmp.ne.s16.totalorder %v2883, 0
      %vm2900 = vcmp.ne.s16.totalorder %v2884, 0
      %vm2901 = vcmp.ne.s16.totalorder %v2885, 0
      %vm2902 = vcmp.ne.s16.totalorder %v2886, 0
      %vm2903 = vcmp.ne.s16.totalorder %v2887, 0
      %vm2904 = vcmp.ne.s16.totalorder %v2888, 0
      %vm2905 = vcmp.ne.s16.totalorder %v2889, 0
      %v2906 = vsel %vm2890, %v2666, 0
      %v2907 = vsel %vm2891, %v2667, 0
      %v2908 = vsel %vm2892, %v2668, 0
      %v2909 = vsel %vm2893, %v2669, 0
      %v2910 = vsel %vm2894, %v2670, 0
      %v2911 = vsel %vm2895, %v2671, 0
      %v2912 = vsel %vm2896, %v2672, 0
      %v2913 = vsel %vm2897, %v2673, 0
      %v2914 = vsel %vm2898, %v2674, 0
      %v2915 = vsel %vm2899, %v2675, 0
      %v2916 = vsel %vm2900, %v2676, 0
      %v2917 = vsel %vm2901, %v2677, 0
      %v2918 = vsel %vm2902, %v2678, 0
      %v2919 = vsel %vm2903, %v2679, 0
      %v2920 = vsel %vm2904, %v2680, 0
      %v2921 = vsel %vm2905, %v2681, 0
      %v2922 = vld [vmem:[%s1 + $0x4] sm:$0x3]
      %v2924 = vsel %vm1012, %v2906, 0
      %v2927 = vsel %vm1012, %v2907, 0
      %v2930 = vsel %vm1012, %v2908, 0
      %v2933 = vsel %vm1012, %v2909, 0
      %v2936 = vsel %vm1012, %v2910, 0
      %v2939 = vsel %vm1012, %v2911, 0
      %v2942 = vsel %vm1012, %v2912, 0
      %v2945 = vsel %vm1012, %v2913, 0
      %v2948 = vsel %vm1012, %v2914, 0
      %v2951 = vsel %vm1012, %v2915, 0
      %v2954 = vsel %vm1012, %v2916, 0
      %v2957 = vsel %vm1012, %v2917, 0
      %v2960 = vsel %vm1012, %v2918, 0
      %v2963 = vsel %vm1012, %v2919, 0
      %v2966 = vsel %vm1012, %v2920, 0
      %v2969 = vsel %vm1012, %v2921, 0
      %v2972 = vsel %vm1061, %v2922, 0
      %2974 = vmatprep.subr.bf16.mxu0 0
      %2975 = vmatpush1.bf16.msra.mxu0 %v2972
      %2976 = vmatprep.subr.bf16.mxu0 0
      %2977 = vmatpush1.bf16.msra.mxu0 0
      %2978 = vmatprep.subr.bf16.mxu0 0
      %2979 = vmatpush1.bf16.msra.mxu0 0
      %2980 = vmatprep.subr.bf16.mxu0 0
      %2981 = vmatpush1.bf16.msra.mxu0 0
      %2982 = vmatprep.subr.bf16.mxu0 0
      %2983 = vmatpush1.bf16.msra.mxu0 0
      %2984 = vmatprep.subr.bf16.mxu0 0
      %2985 = vmatpush1.bf16.msra.mxu0 0
      %2986 = vmatprep.subr.bf16.mxu0 0
      %2987 = vmatpush1.bf16.msra.mxu0 0
      %2988 = vmatprep.subr.bf16.mxu0 0
      %2989 = vmatpush1.bf16.msra.mxu0 0
      %2990 = vmatprep.subr.bf16.mxu0 0
      %2991 = vmatpush1.bf16.msra.mxu0 0
      %2992 = vmatprep.subr.bf16.mxu0 0
      %2993 = vmatpush1.bf16.msra.mxu0 0
      %2994 = vmatprep.subr.bf16.mxu0 0
      %2995 = vmatpush1.bf16.msra.mxu0 0
      %2996 = vmatprep.subr.bf16.mxu0 0
      %2997 = vmatpush1.bf16.msra.mxu0 0
      %2998 = vmatprep.subr.bf16.mxu0 0
      %2999 = vmatpush1.bf16.msra.mxu0 0
      %3000 = vmatprep.subr.bf16.mxu0 0
      %3001 = vmatpush1.bf16.msra.mxu0 0
      %3002 = vmatprep.subr.bf16.mxu0 0
      %3003 = vmatpush1.bf16.msra.mxu0 0
      %3004 = vmatprep.subr.bf16.mxu0 0
      %3005 = vmatpush1.bf16.msra.mxu0 0
      %3006 = vmatprep.mubr.bf16.mxu0 0
      %3007 = vmatmul.mubr.bf16.gmra.mrb[0].mxu0 %v2924
      %v3008 = vpop.f32.mrb[0].mxu0
      %v3009 = vadd.f32 0.0, %v3008
      %v3010 = vpop.f32.mrb[0].mxu0
      %v3011 = vpop.f32.mrb[0].mxu0
      %v3012 = vadd.f32 0.0, %v3011
      %v3013 = vpop.f32.mrb[0].mxu0
      %3014 = vmatprep.mubr.bf16.mxu0 0
      %3015 = vmatmul.mubr.bf16.gmra.mrb[0].mxu0 %v2927
      %v3016 = vpop.f32.mrb[0].mxu0
      %v3017 = vadd.f32 0.0, %v3016
      %v3018 = vpop.f32.mrb[0].mxu0
      %v3019 = vpop.f32.mrb[0].mxu0
      %v3020 = vadd.f32 0.0, %v3019
      %v3021 = vpop.f32.mrb[0].mxu0
      %3022 = vmatprep.mubr.bf16.mxu0 0
      %3023 = vmatmul.mubr.bf16.gmra.mrb[0].mxu0 %v2930
      %v3024 = vpop.f32.mrb[0].mxu0
      %v3025 = vadd.f32 0.0, %v3024
      %v3026 = vpop.f32.mrb[0].mxu0
      %v3027 = vpop.f32.mrb[0].mxu0
      %v3028 = vadd.f32 0.0, %v3027
      %v3029 = vpop.f32.mrb[0].mxu0
      %3030 = vmatprep.mubr.bf16.mxu0 0
      %3031 = vmatmul.mubr.bf16.gmra.mrb[0].mxu0 %v2933
      %v3032 = vpop.f32.mrb[0].mxu0
      %v3033 = vadd.f32 0.0, %v3032
      %v3034 = vpop.f32.mrb[0].mxu0
      %v3035 = vpop.f32.mrb[0].mxu0
      %v3036 = vadd.f32 0.0, %v3035
      %v3037 = vpop.f32.mrb[0].mxu0
      %3038 = vmatprep.mubr.bf16.mxu0 0
      %3039 = vmatmul.mubr.bf16.gmra.mrb[0].mxu0 %v2936
      %v3040 = vpop.f32.mrb[0].mxu0
      %v3041 = vadd.f32 0.0, %v3040
      %v3042 = vpop.f32.mrb[0].mxu0
      %v3043 = vpop.f32.mrb[0].mxu0
      %v3044 = vadd.f32 0.0, %v3043
      %v3045 = vpop.f32.mrb[0].mxu0
      %3046 = vmatprep.mubr.bf16.mxu0 0
      %3047 = vmatmul.mubr.bf16.gmra.mrb[0].mxu0 %v2939
      %v3048 = vpop.f32.mrb[0].mxu0
      %v3049 = vadd.f32 0.0, %v3048
      %v3050 = vpop.f32.mrb[0].mxu0
      %v3051 = vpop.f32.mrb[0].mxu0
      %v3052 = vadd.f32 0.0, %v3051
      %v3053 = vpop.f32.mrb[0].mxu0
      %3054 = vmatprep.mubr.bf16.mxu0 0
      %3055 = vmatmul.mubr.bf16.gmra.mrb[0].mxu0 %v2942
      %v3056 = vpop.f32.mrb[0].mxu0
      %v3057 = vadd.f32 0.0, %v3056
      %v3058 = vpop.f32.mrb[0].mxu0
      %v3059 = vpop.f32.mrb[0].mxu0
      %v3060 = vadd.f32 0.0, %v3059
      %v3061 = vpop.f32.mrb[0].mxu0
      %3062 = vmatprep.mubr.bf16.mxu0 0
      %3063 = vmatmul.mubr.bf16.gmra.mrb[0].mxu0 %v2945
      %v3064 = vpop.f32.mrb[0].mxu0
      %v3065 = vadd.f32 0.0, %v3064
      %v3066 = vpop.f32.mrb[0].mxu0
      %v3067 = vpop.f32.mrb[0].mxu0
      %v3068 = vadd.f32 0.0, %v3067
      %v3069 = vpop.f32.mrb[0].mxu0
      %3070 = vmatprep.mubr.bf16.mxu0 0
      %3071 = vmatmul.mubr.bf16.gmra.mrb[0].mxu0 %v2948
      %v3072 = vpop.f32.mrb[0].mxu0
      %v3073 = vadd.f32 0.0, %v3072
      %v3074 = vpop.f32.mrb[0].mxu0
      %v3075 = vpop.f32.mrb[0].mxu0
      %v3076 = vadd.f32 0.0, %v3075
      %v3077 = vpop.f32.mrb[0].mxu0
      %3078 = vmatprep.mubr.bf16.mxu0 0
      %3079 = vmatmul.mubr.bf16.gmra.mrb[0].mxu0 %v2951
      %v3080 = vpop.f32.mrb[0].mxu0
      %v3081 = vadd.f32 0.0, %v3080
      %v3082 = vpop.f32.mrb[0].mxu0
      %v3083 = vpop.f32.mrb[0].mxu0
      %v3084 = vadd.f32 0.0, %v3083
      %v3085 = vpop.f32.mrb[0].mxu0
      %3086 = vmatprep.mubr.bf16.mxu0 0
      %3087 = vmatmul.mubr.bf16.gmra.mrb[0].mxu0 %v2954
      %v3088 = vpop.f32.mrb[0].mxu0
      %v3089 = vadd.f32 0.0, %v3088
      %v3090 = vpop.f32.mrb[0].mxu0
      %v3091 = vpop.f32.mrb[0].mxu0
      %v3092 = vadd.f32 0.0, %v3091
      %v3093 = vpop.f32.mrb[0].mxu0
      %3094 = vmatprep.mubr.bf16.mxu0 0
      %3095 = vmatmul.mubr.bf16.gmra.mrb[0].mxu0 %v2957
      %v3096 = vpop.f32.mrb[0].mxu0
      %v3097 = vadd.f32 0.0, %v3096
      %v3098 = vpop.f32.mrb[0].mxu0
      %v3099 = vpop.f32.mrb[0].mxu0
      %v3100 = vadd.f32 0.0, %v3099
      %v3101 = vpop.f32.mrb[0].mxu0
      %3102 = vmatprep.mubr.bf16.mxu0 0
      %3103 = vmatmul.mubr.bf16.gmra.mrb[0].mxu0 %v2960
      %v3104 = vpop.f32.mrb[0].mxu0
      %v3105 = vadd.f32 0.0, %v3104
      %v3106 = vpop.f32.mrb[0].mxu0
      %v3107 = vpop.f32.mrb[0].mxu0
      %v3108 = vadd.f32 0.0, %v3107
      %v3109 = vpop.f32.mrb[0].mxu0
      %3110 = vmatprep.mubr.bf16.mxu0 0
      %3111 = vmatmul.mubr.bf16.gmra.mrb[0].mxu0 %v2963
      %v3112 = vpop.f32.mrb[0].mxu0
      %v3113 = vadd.f32 0.0, %v3112
      %v3114 = vpop.f32.mrb[0].mxu0
      %v3115 = vpop.f32.mrb[0].mxu0
      %v3116 = vadd.f32 0.0, %v3115
      %v3117 = vpop.f32.mrb[0].mxu0
      %3118 = vmatprep.mubr.bf16.mxu0 0
      %3119 = vmatmul.mubr.bf16.gmra.mrb[0].mxu0 %v2966
      %v3120 = vpop.f32.mrb[0].mxu0
      %v3121 = vadd.f32 0.0, %v3120
      %v3122 = vpop.f32.mrb[0].mxu0
      %v3123 = vpop.f32.mrb[0].mxu0
      %v3124 = vadd.f32 0.0, %v3123
      %v3125 = vpop.f32.mrb[0].mxu0
      %3126 = vmatprep.mubr.bf16.mxu0 0
      %3127 = vmatmul.mubr.bf16.gmra.mrb[0].mxu0 %v2969
      %v3128 = vpop.f32.mrb[0].mxu0
      %v3129 = vadd.f32 0.0, %v3128
      %v3130 = vpop.f32.mrb[0].mxu0
      %v3131 = vpop.f32.mrb[0].mxu0
      %v3132 = vadd.f32 0.0, %v3131
      %v3133 = vpop.f32.mrb[0].mxu0
      %3134 = vdwg.mxu0
      %v3135 = vadd.f32 %v2602, %v3009
      %v3136 = vadd.f32 %v2603, %v3012
      %v3137 = vadd.f32 %v2604, %v3017
      %v3138 = vadd.f32 %v2605, %v3020
      %v3139 = vadd.f32 %v2606, %v3025
      %v3140 = vadd.f32 %v2607, %v3028
      %v3141 = vadd.f32 %v2608, %v3033
      %v3142 = vadd.f32 %v2609, %v3036
      %v3143 = vadd.f32 %v2610, %v3041
      %v3144 = vadd.f32 %v2611, %v3044
      %v3145 = vadd.f32 %v2612, %v3049
      %v3146 = vadd.f32 %v2613, %v3052
      %v3147 = vadd.f32 %v2614, %v3057
      %v3148 = vadd.f32 %v2615, %v3060
      %v3149 = vadd.f32 %v2616, %v3065
      %v3150 = vadd.f32 %v2617, %v3068
      %v3151 = vadd.f32 %v2618, %v3073
      %v3152 = vadd.f32 %v2619, %v3076
      %v3153 = vadd.f32 %v2620, %v3081
      %v3154 = vadd.f32 %v2621, %v3084
      %v3155 = vadd.f32 %v2622, %v3089
      %v3156 = vadd.f32 %v2623, %v3092
      %v3157 = vadd.f32 %v2624, %v3097
      %v3158 = vadd.f32 %v2625, %v3100
      %v3159 = vadd.f32 %v2626, %v3105
      %v3160 = vadd.f32 %v2627, %v3108
      %v3161 = vadd.f32 %v2628, %v3113
      %v3162 = vadd.f32 %v2629, %v3116
      %v3163 = vadd.f32 %v2630, %v3121
      %v3164 = vadd.f32 %v2631, %v3124
      %v3165 = vadd.f32 %v2632, %v3129
      %v3166 = vadd.f32 %v2633, %v3132
      %v3167 = vld [vmem:[%s262 + $0x12] sm:$0xff]
      %v3168 = vld [vmem:[%s262 + $0x1a] sm:$0xff]
      %v3169 = vld [vmem:[%s262 + $0x22] sm:$0xff]
      %v3170 = vld [vmem:[%s262 + $0x2a] sm:$0xff]
      %v3171 = vld [vmem:[%s262 + $0x32] sm:$0xff]
      %v3172 = vld [vmem:[%s262 + $0x3a] sm:$0xff]
      %v3173 = vld [vmem:[%s262 + $0x42] sm:$0xff]
      %v3174 = vld [vmem:[%s262 + $0x4a] sm:$0xff]
      %v3175 = vld [vmem:[%s262 + $0x52] sm:$0xff]
      %v3176 = vld [vmem:[%s262 + $0x5a] sm:$0xff]
      %v3177 = vld [vmem:[%s262 + $0x62] sm:$0xff]
      %v3178 = vld [vmem:[%s262 + $0x6a] sm:$0xff]
      %v3179 = vld [vmem:[%s262 + $0x72] sm:$0xff]
      %v3180 = vld [vmem:[%s262 + $0x7a] sm:$0xff]
      %v3181 = vld [vmem:[%s262 + $0x82] sm:$0xff]
      %v3182 = vld [vmem:[%s262 + $0x8a] sm:$0xff]
      %v3183 = vld [vmem:[%s262 + $0x92] sm:$0xff]
      %v3184 = vld [vmem:[%s262 + $0x9a] sm:$0xff]
      %v3185 = vld [vmem:[%s262 + $0xa2] sm:$0xff]
      %v3186 = vld [vmem:[%s262 + $0xaa] sm:$0xff]
      %v3187 = vld [vmem:[%s262 + $0xb2] sm:$0xff]
      %v3188 = vld [vmem:[%s262 + $0xba] sm:$0xff]
      %v3189 = vld [vmem:[%s262 + $0xc2] sm:$0xff]
      %v3190 = vld [vmem:[%s262 + $0xca] sm:$0xff]
      %v3191 = vld [vmem:[%s262 + $0xd2] sm:$0xff]
      %v3192 = vld [vmem:[%s262 + $0xda] sm:$0xff]
      %v3193 = vld [vmem:[%s262 + $0xe2] sm:$0xff]
      %v3194 = vld [vmem:[%s262 + $0xea] sm:$0xff]
      %v3195 = vld [vmem:[%s262 + $0xf2] sm:$0xff]
      %v3196 = vld [vmem:[%s262 + $0xfa] sm:$0xff]
      %v3197 = vld [vmem:[%s262 + $0x102] sm:$0xff]
      %v3198 = vld [vmem:[%s262 + $0x10a] sm:$0xff]
      %v3199 = vpack.c.bf16 %v3168, %v3167
      %v3200 = vpack.c.bf16 %v3170, %v3169
      %v3201 = vpack.c.bf16 %v3172, %v3171
      %v3202 = vpack.c.bf16 %v3174, %v3173
      %v3203 = vpack.c.bf16 %v3176, %v3175
      %v3204 = vpack.c.bf16 %v3178, %v3177
      %v3205 = vpack.c.bf16 %v3180, %v3179
      %v3206 = vpack.c.bf16 %v3182, %v3181
      %v3207 = vpack.c.bf16 %v3184, %v3183
      %v3208 = vpack.c.bf16 %v3186, %v3185
      %v3209 = vpack.c.bf16 %v3188, %v3187
      %v3210 = vpack.c.bf16 %v3190, %v3189
      %v3211 = vpack.c.bf16 %v3192, %v3191
      %v3212 = vpack.c.bf16 %v3194, %v3193
      %v3213 = vpack.c.bf16 %v3196, %v3195
      %v3214 = vpack.c.bf16 %v3198, %v3197
      %v3215 = vsel %vm2890, %v3199, 0
      %v3216 = vsel %vm2891, %v3200, 0
      %v3217 = vsel %vm2892, %v3201, 0
      %v3218 = vsel %vm2893, %v3202, 0
      %v3219 = vsel %vm2894, %v3203, 0
      %v3220 = vsel %vm2895, %v3204, 0
      %v3221 = vsel %vm2896, %v3205, 0
      %v3222 = vsel %vm2897, %v3206, 0
      %v3223 = vsel %vm2898, %v3207, 0
      %v3224 = vsel %vm2899, %v3208, 0
      %v3225 = vsel %vm2900, %v3209, 0
      %v3226 = vsel %vm2901, %v3210, 0
      %v3227 = vsel %vm2902, %v3211, 0
      %v3228 = vsel %vm2903, %v3212, 0
      %v3229 = vsel %vm2904, %v3213, 0
      %v3230 = vsel %vm2905, %v3214, 0
      %v3231 = vld [vmem:[%s1 + $0x8] sm:$0xc]
      %v3233 = vunpack.c.l.b16 %v3231
      %v3234 = vpack.c.b16 %v3233, %v3233
      %v3235 = vrot.slane %v3234, 2
      %v3237 = vsel %vm1012, %v3215, 0
      %v3240 = vsel %vm1012, %v3216, 0
      %v3243 = vsel %vm1012, %v3217, 0
      %v3246 = vsel %vm1012, %v3218, 0
      %v3249 = vsel %vm1012, %v3219, 0
      %v3252 = vsel %vm1012, %v3220, 0
      %v3255 = vsel %vm1012, %v3221, 0
      %v3258 = vsel %vm1012, %v3222, 0
      %v3261 = vsel %vm1012, %v3223, 0
      %v3264 = vsel %vm1012, %v3224, 0
      %v3267 = vsel %vm1012, %v3225, 0
      %v3270 = vsel %vm1012, %v3226, 0
      %v3273 = vsel %vm1012, %v3227, 0
      %v3276 = vsel %vm1012, %v3228, 0
      %v3279 = vsel %vm1012, %v3229, 0
      %v3282 = vsel %vm1012, %v3230, 0
      %v3285 = vsel %vm1061, %v3235, 0
      %3287 = vmatprep.subr.bf16.mxu0 0
      %3288 = vmatpush1.bf16.msra.mxu0 %v3285
      %3289 = vmatprep.subr.bf16.mxu0 0
      %3290 = vmatpush1.bf16.msra.mxu0 0
      %3291 = vmatprep.subr.bf16.mxu0 0
      %3292 = vmatpush1.bf16.msra.mxu0 0
      %3293 = vmatprep.subr.bf16.mxu0 0
      %3294 = vmatpush1.bf16.msra.mxu0 0
      %3295 = vmatprep.subr.bf16.mxu0 0
      %3296 = vmatpush1.bf16.msra.mxu0 0
      %3297 = vmatprep.subr.bf16.mxu0 0
      %3298 = vmatpush1.bf16.msra.mxu0 0
      %3299 = vmatprep.subr.bf16.mxu0 0
      %3300 = vmatpush1.bf16.msra.mxu0 0
      %3301 = vmatprep.subr.bf16.mxu0 0
      %3302 = vmatpush1.bf16.msra.mxu0 0
      %3303 = vmatprep.subr.bf16.mxu0 0
      %3304 = vmatpush1.bf16.msra.mxu0 0
      %3305 = vmatprep.subr.bf16.mxu0 0
      %3306 = vmatpush1.bf16.msra.mxu0 0
      %3307 = vmatprep.subr.bf16.mxu0 0
      %3308 = vmatpush1.bf16.msra.mxu0 0
      %3309 = vmatprep.subr.bf16.mxu0 0
      %3310 = vmatpush1.bf16.msra.mxu0 0
      %3311 = vmatprep.subr.bf16.mxu0 0
      %3312 = vmatpush1.bf16.msra.mxu0 0
      %3313 = vmatprep.subr.bf16.mxu0 0
      %3314 = vmatpush1.bf16.msra.mxu0 0
      %3315 = vmatprep.subr.bf16.mxu0 0
      %3316 = vmatpush1.bf16.msra.mxu0 0
      %3317 = vmatprep.subr.bf16.mxu0 0
      %3318 = vmatpush1.bf16.msra.mxu0 0
      %3319 = vmatprep.mubr.bf16.mxu0 0
      %3320 = vmatmul.mubr.bf16.gmra.mrb[0].mxu0 %v3237
      %v3321 = vpop.f32.mrb[0].mxu0
      %v3322 = vadd.f32 0.0, %v3321
      %v3323 = vpop.f32.mrb[0].mxu0
      %v3324 = vpop.f32.mrb[0].mxu0
      %v3325 = vadd.f32 0.0, %v3324
      %v3326 = vpop.f32.mrb[0].mxu0
      %3327 = vmatprep.mubr.bf16.mxu0 0
      %3328 = vmatmul.mubr.bf16.gmra.mrb[0].mxu0 %v3240
      %v3329 = vpop.f32.mrb[0].mxu0
      %v3330 = vadd.f32 0.0, %v3329
      %v3331 = vpop.f32.mrb[0].mxu0
      %v3332 = vpop.f32.mrb[0].mxu0
      %v3333 = vadd.f32 0.0, %v3332
      %v3334 = vpop.f32.mrb[0].mxu0
      %3335 = vmatprep.mubr.bf16.mxu0 0
      %3336 = vmatmul.mubr.bf16.gmra.mrb[0].mxu0 %v3243
      %v3337 = vpop.f32.mrb[0].mxu0
      %v3338 = vadd.f32 0.0, %v3337
      %v3339 = vpop.f32.mrb[0].mxu0
      %v3340 = vpop.f32.mrb[0].mxu0
      %v3341 = vadd.f32 0.0, %v3340
      %v3342 = vpop.f32.mrb[0].mxu0
      %3343 = vmatprep.mubr.bf16.mxu0 0
      %3344 = vmatmul.mubr.bf16.gmra.mrb[0].mxu0 %v3246
      %v3345 = vpop.f32.mrb[0].mxu0
      %v3346 = vadd.f32 0.0, %v3345
      %v3347 = vpop.f32.mrb[0].mxu0
      %v3348 = vpop.f32.mrb[0].mxu0
      %v3349 = vadd.f32 0.0, %v3348
      %v3350 = vpop.f32.mrb[0].mxu0
      %3351 = vmatprep.mubr.bf16.mxu0 0
      %3352 = vmatmul.mubr.bf16.gmra.mrb[0].mxu0 %v3249
      %v3353 = vpop.f32.mrb[0].mxu0
      %v3354 = vadd.f32 0.0, %v3353
      %v3355 = vpop.f32.mrb[0].mxu0
      %v3356 = vpop.f32.mrb[0].mxu0
      %v3357 = vadd.f32 0.0, %v3356
      %v3358 = vpop.f32.mrb[0].mxu0
      %3359 = vmatprep.mubr.bf16.mxu0 0
      %3360 = vmatmul.mubr.bf16.gmra.mrb[0].mxu0 %v3252
      %v3361 = vpop.f32.mrb[0].mxu0
      %v3362 = vadd.f32 0.0, %v3361
      %v3363 = vpop.f32.mrb[0].mxu0
      %v3364 = vpop.f32.mrb[0].mxu0
      %v3365 = vadd.f32 0.0, %v3364
      %v3366 = vpop.f32.mrb[0].mxu0
      %3367 = vmatprep.mubr.bf16.mxu0 0
      %3368 = vmatmul.mubr.bf16.gmra.mrb[0].mxu0 %v3255
      %v3369 = vpop.f32.mrb[0].mxu0
      %v3370 = vadd.f32 0.0, %v3369
      %v3371 = vpop.f32.mrb[0].mxu0
      %v3372 = vpop.f32.mrb[0].mxu0
      %v3373 = vadd.f32 0.0, %v3372
      %v3374 = vpop.f32.mrb[0].mxu0
      %3375 = vmatprep.mubr.bf16.mxu0 0
      %3376 = vmatmul.mubr.bf16.gmra.mrb[0].mxu0 %v3258
      %v3377 = vpop.f32.mrb[0].mxu0
      %v3378 = vadd.f32 0.0, %v3377
      %v3379 = vpop.f32.mrb[0].mxu0
      %v3380 = vpop.f32.mrb[0].mxu0
      %v3381 = vadd.f32 0.0, %v3380
      %v3382 = vpop.f32.mrb[0].mxu0
      %3383 = vmatprep.mubr.bf16.mxu0 0
      %3384 = vmatmul.mubr.bf16.gmra.mrb[0].mxu0 %v3261
      %v3385 = vpop.f32.mrb[0].mxu0
      %v3386 = vadd.f32 0.0, %v3385
      %v3387 = vpop.f32.mrb[0].mxu0
      %v3388 = vpop.f32.mrb[0].mxu0
      %v3389 = vadd.f32 0.0, %v3388
      %v3390 = vpop.f32.mrb[0].mxu0
      %3391 = vmatprep.mubr.bf16.mxu0 0
      %3392 = vmatmul.mubr.bf16.gmra.mrb[0].mxu0 %v3264
      %v3393 = vpop.f32.mrb[0].mxu0
      %v3394 = vadd.f32 0.0, %v3393
      %v3395 = vpop.f32.mrb[0].mxu0
      %v3396 = vpop.f32.mrb[0].mxu0
      %v3397 = vadd.f32 0.0, %v3396
      %v3398 = vpop.f32.mrb[0].mxu0
      %3399 = vmatprep.mubr.bf16.mxu0 0
      %3400 = vmatmul.mubr.bf16.gmra.mrb[0].mxu0 %v3267
      %v3401 = vpop.f32.mrb[0].mxu0
      %v3402 = vadd.f32 0.0, %v3401
      %v3403 = vpop.f32.mrb[0].mxu0
      %v3404 = vpop.f32.mrb[0].mxu0
      %v3405 = vadd.f32 0.0, %v3404
      %v3406 = vpop.f32.mrb[0].mxu0
      %3407 = vmatprep.mubr.bf16.mxu0 0
      %3408 = vmatmul.mubr.bf16.gmra.mrb[0].mxu0 %v3270
      %v3409 = vpop.f32.mrb[0].mxu0
      %v3410 = vadd.f32 0.0, %v3409
      %v3411 = vpop.f32.mrb[0].mxu0
      %v3412 = vpop.f32.mrb[0].mxu0
      %v3413 = vadd.f32 0.0, %v3412
      %v3414 = vpop.f32.mrb[0].mxu0
      %3415 = vmatprep.mubr.bf16.mxu0 0
      %3416 = vmatmul.mubr.bf16.gmra.mrb[0].mxu0 %v3273
      %v3417 = vpop.f32.mrb[0].mxu0
      %v3418 = vadd.f32 0.0, %v3417
      %v3419 = vpop.f32.mrb[0].mxu0
      %v3420 = vpop.f32.mrb[0].mxu0
      %v3421 = vadd.f32 0.0, %v3420
      %v3422 = vpop.f32.mrb[0].mxu0
      %3423 = vmatprep.mubr.bf16.mxu0 0
      %3424 = vmatmul.mubr.bf16.gmra.mrb[0].mxu0 %v3276
      %v3425 = vpop.f32.mrb[0].mxu0
      %v3426 = vadd.f32 0.0, %v3425
      %v3427 = vpop.f32.mrb[0].mxu0
      %v3428 = vpop.f32.mrb[0].mxu0
      %v3429 = vadd.f32 0.0, %v3428
      %v3430 = vpop.f32.mrb[0].mxu0
      %3431 = vmatprep.mubr.bf16.mxu0 0
      %3432 = vmatmul.mubr.bf16.gmra.mrb[0].mxu0 %v3279
      %v3433 = vpop.f32.mrb[0].mxu0
      %v3434 = vadd.f32 0.0, %v3433
      %v3435 = vpop.f32.mrb[0].mxu0
      %v3436 = vpop.f32.mrb[0].mxu0
      %v3437 = vadd.f32 0.0, %v3436
      %v3438 = vpop.f32.mrb[0].mxu0
      %3439 = vmatprep.mubr.bf16.mxu0 0
      %3440 = vmatmul.mubr.bf16.gmra.mrb[0].mxu0 %v3282
      %v3441 = vpop.f32.mrb[0].mxu0
      %v3442 = vadd.f32 0.0, %v3441
      %v3443 = vpop.f32.mrb[0].mxu0
      %v3444 = vpop.f32.mrb[0].mxu0
      %v3445 = vadd.f32 0.0, %v3444
      %v3446 = vpop.f32.mrb[0].mxu0
      %3447 = vdwg.mxu0
      %v3448 = vadd.f32 %v3135, %v3322
      %v3449 = vadd.f32 %v3136, %v3325
      %v3450 = vadd.f32 %v3137, %v3330
      %v3451 = vadd.f32 %v3138, %v3333
      %v3452 = vadd.f32 %v3139, %v3338
      %v3453 = vadd.f32 %v3140, %v3341
      %v3454 = vadd.f32 %v3141, %v3346
      %v3455 = vadd.f32 %v3142, %v3349
      %v3456 = vadd.f32 %v3143, %v3354
      %v3457 = vadd.f32 %v3144, %v3357
      %v3458 = vadd.f32 %v3145, %v3362
      %v3459 = vadd.f32 %v3146, %v3365
      %v3460 = vadd.f32 %v3147, %v3370
      %v3461 = vadd.f32 %v3148, %v3373
      %v3462 = vadd.f32 %v3149, %v3378
      %v3463 = vadd.f32 %v3150, %v3381
      %v3464 = vadd.f32 %v3151, %v3386
      %v3465 = vadd.f32 %v3152, %v3389
      %v3466 = vadd.f32 %v3153, %v3394
      %v3467 = vadd.f32 %v3154, %v3397
      %v3468 = vadd.f32 %v3155, %v3402
      %v3469 = vadd.f32 %v3156, %v3405
      %v3470 = vadd.f32 %v3157, %v3410
      %v3471 = vadd.f32 %v3158, %v3413
      %v3472 = vadd.f32 %v3159, %v3418
      %v3473 = vadd.f32 %v3160, %v3421
      %v3474 = vadd.f32 %v3161, %v3426
      %v3475 = vadd.f32 %v3162, %v3429
      %v3476 = vadd.f32 %v3163, %v3434
      %v3477 = vadd.f32 %v3164, %v3437
      %v3478 = vadd.f32 %v3165, %v3442
      %v3479 = vadd.f32 %v3166, %v3445
      %v3480 = vld [vmem:[%s262 + $0x22] sm:$0xff]
      %v3481 = vld [vmem:[%s262 + $0x2a] sm:$0xff]
      %v3482 = vld [vmem:[%s262 + $0x32] sm:$0xff]
      %v3483 = vld [vmem:[%s262 + $0x3a] sm:$0xff]
      %v3484 = vld [vmem:[%s262 + $0x42] sm:$0xff]
      %v3485 = vld [vmem:[%s262 + $0x4a] sm:$0xff]
      %v3486 = vld [vmem:[%s262 + $0x52] sm:$0xff]
      %v3487 = vld [vmem:[%s262 + $0x5a] sm:$0xff]
      %v3488 = vld [vmem:[%s262 + $0x62] sm:$0xff]
      %v3489 = vld [vmem:[%s262 + $0x6a] sm:$0xff]
      %v3490 = vld [vmem:[%s262 + $0x72] sm:$0xff]
      %v3491 = vld [vmem:[%s262 + $0x7a] sm:$0xff]
      %v3492 = vld [vmem:[%s262 + $0x82] sm:$0xff]
      %v3493 = vld [vmem:[%s262 + $0x8a] sm:$0xff]
      %v3494 = vld [vmem:[%s262 + $0x92] sm:$0xff]
      %v3495 = vld [vmem:[%s262 + $0x9a] sm:$0xff]
      %v3496 = vld [vmem:[%s262 + $0xa2] sm:$0xff]
      %v3497 = vld [vmem:[%s262 + $0xaa] sm:$0xff]
      %v3498 = vld [vmem:[%s262 + $0xb2] sm:$0xff]
      %v3499 = vld [vmem:[%s262 + $0xba] sm:$0xff]
      %v3500 = vld [vmem:[%s262 + $0xc2] sm:$0xff]
      %v3501 = vld [vmem:[%s262 + $0xca] sm:$0xff]
      %v3502 = vld [vmem:[%s262 + $0xd2] sm:$0xff]
      %v3503 = vld [vmem:[%s262 + $0xda] sm:$0xff]
      %v3504 = vld [vmem:[%s262 + $0xe2] sm:$0xff]
      %v3505 = vld [vmem:[%s262 + $0xea] sm:$0xff]
      %v3506 = vld [vmem:[%s262 + $0xf2] sm:$0xff]
      %v3507 = vld [vmem:[%s262 + $0xfa] sm:$0xff]
      %v3508 = vld [vmem:[%s262 + $0x102] sm:$0xff]
      %v3509 = vld [vmem:[%s262 + $0x10a] sm:$0xff]
      %v3510 = vld [vmem:[%s262 + $0x112] sm:$0xff]
      %v3511 = vld [vmem:[%s262 + $0x11a] sm:$0xff]
      %v3512 = vpack.c.bf16 %v3481, %v3480
      %v3513 = vpack.c.bf16 %v3483, %v3482
      %v3514 = vpack.c.bf16 %v3485, %v3484
      %v3515 = vpack.c.bf16 %v3487, %v3486
      %v3516 = vpack.c.bf16 %v3489, %v3488
      %v3517 = vpack.c.bf16 %v3491, %v3490
      %v3518 = vpack.c.bf16 %v3493, %v3492
      %v3519 = vpack.c.bf16 %v3495, %v3494
      %v3520 = vpack.c.bf16 %v3497, %v3496
      %v3521 = vpack.c.bf16 %v3499, %v3498
      %v3522 = vpack.c.bf16 %v3501, %v3500
      %v3523 = vpack.c.bf16 %v3503, %v3502
      %v3524 = vpack.c.bf16 %v3505, %v3504
      %v3525 = vpack.c.bf16 %v3507, %v3506
      %v3526 = vpack.c.bf16 %v3509, %v3508
      %v3527 = vpack.c.bf16 %v3511, %v3510
      %v3528 = vsel %vm2890, %v3512, 0
      %v3529 = vsel %vm2891, %v3513, 0
      %v3530 = vsel %vm2892, %v3514, 0
      %v3531 = vsel %vm2893, %v3515, 0
      %v3532 = vsel %vm2894, %v3516, 0
      %v3533 = vsel %vm2895, %v3517, 0
      %v3534 = vsel %vm2896, %v3518, 0
      %v3535 = vsel %vm2897, %v3519, 0
      %v3536 = vsel %vm2898, %v3520, 0
      %v3537 = vsel %vm2899, %v3521, 0
      %v3538 = vsel %vm2900, %v3522, 0
      %v3539 = vsel %vm2901, %v3523, 0
      %v3540 = vsel %vm2902, %v3524, 0
      %v3541 = vsel %vm2903, %v3525, 0
      %v3542 = vsel %vm2904, %v3526, 0
      %v3543 = vsel %vm2905, %v3527, 0
      %v3544 = vld [vmem:[%s1 + $0x10] sm:$0x3]
      %v3546 = vsel %vm1012, %v3528, 0
      %v3549 = vsel %vm1012, %v3529, 0
      %v3552 = vsel %vm1012, %v3530, 0
      %v3555 = vsel %vm1012, %v3531, 0
      %v3558 = vsel %vm1012, %v3532, 0
      %v3561 = vsel %vm1012, %v3533, 0
      %v3564 = vsel %vm1012, %v3534, 0
      %v3567 = vsel %vm1012, %v3535, 0
      %v3570 = vsel %vm1012, %v3536, 0
      %v3573 = vsel %vm1012, %v3537, 0
      %v3576 = vsel %vm1012, %v3538, 0
      %v3579 = vsel %vm1012, %v3539, 0
      %v3582 = vsel %vm1012, %v3540, 0
      %v3585 = vsel %vm1012, %v3541, 0
      %v3588 = vsel %vm1012, %v3542, 0
      %v3591 = vsel %vm1012, %v3543, 0
      %v3594 = vsel %vm1061, %v3544, 0
      %3596 = vmatprep.subr.bf16.mxu0 0
      %3597 = vmatpush1.bf16.msra.mxu0 %v3594
      %3598 = vmatprep.subr.bf16.mxu0 0
      %3599 = vmatpush1.bf16.msra.mxu0 0
      %3600 = vmatprep.subr.bf16.mxu0 0
      %3601 = vmatpush1.bf16.msra.mxu0 0
      %3602 = vmatprep.subr.bf16.mxu0 0
      %3603 = vmatpush1.bf16.msra.mxu0 0
      %3604 = vmatprep.subr.bf16.mxu0 0
      %3605 = vmatpush1.bf16.msra.mxu0 0
      %3606 = vmatprep.subr.bf16.mxu0 0
      %3607 = vmatpush1.bf16.msra.mxu0 0
      %3608 = vmatprep.subr.bf16.mxu0 0
      %3609 = vmatpush1.bf16.msra.mxu0 0
      %3610 = vmatprep.subr.bf16.mxu0 0
      %3611 = vmatpush1.bf16.msra.mxu0 0
      %3612 = vmatprep.subr.bf16.mxu0 0
      %3613 = vmatpush1.bf16.msra.mxu0 0
      %3614 = vmatprep.subr.bf16.mxu0 0
      %3615 = vmatpush1.bf16.msra.mxu0 0
      %3616 = vmatprep.subr.bf16.mxu0 0
      %3617 = vmatpush1.bf16.msra.mxu0 0
      %3618 = vmatprep.subr.bf16.mxu0 0
      %3619 = vmatpush1.bf16.msra.mxu0 0
      %3620 = vmatprep.subr.bf16.mxu0 0
      %3621 = vmatpush1.bf16.msra.mxu0 0
      %3622 = vmatprep.subr.bf16.mxu0 0
      %3623 = vmatpush1.bf16.msra.mxu0 0
      %3624 = vmatprep.subr.bf16.mxu0 0
      %3625 = vmatpush1.bf16.msra.mxu0 0
      %3626 = vmatprep.subr.bf16.mxu0 0
      %3627 = vmatpush1.bf16.msra.mxu0 0
      %3628 = vmatprep.mubr.bf16.mxu0 0
      %3629 = vmatmul.mubr.bf16.gmra.mrb[0].mxu0 %v3546
      %v3630 = vpop.f32.mrb[0].mxu0
      %v3631 = vadd.f32 0.0, %v3630
      %v3632 = vpop.f32.mrb[0].mxu0
      %v3633 = vpop.f32.mrb[0].mxu0
      %v3634 = vadd.f32 0.0, %v3633
      %v3635 = vpop.f32.mrb[0].mxu0
      %3636 = vmatprep.mubr.bf16.mxu0 0
      %3637 = vmatmul.mubr.bf16.gmra.mrb[0].mxu0 %v3549
      %v3638 = vpop.f32.mrb[0].mxu0
      %v3639 = vadd.f32 0.0, %v3638
      %v3640 = vpop.f32.mrb[0].mxu0
      %v3641 = vpop.f32.mrb[0].mxu0
      %v3642 = vadd.f32 0.0, %v3641
      %v3643 = vpop.f32.mrb[0].mxu0
      %3644 = vmatprep.mubr.bf16.mxu0 0
      %3645 = vmatmul.mubr.bf16.gmra.mrb[0].mxu0 %v3552
      %v3646 = vpop.f32.mrb[0].mxu0
      %v3647 = vadd.f32 0.0, %v3646
      %v3648 = vpop.f32.mrb[0].mxu0
      %v3649 = vpop.f32.mrb[0].mxu0
      %v3650 = vadd.f32 0.0, %v3649
      %v3651 = vpop.f32.mrb[0].mxu0
      %3652 = vmatprep.mubr.bf16.mxu0 0
      %3653 = vmatmul.mubr.bf16.gmra.mrb[0].mxu0 %v3555
      %v3654 = vpop.f32.mrb[0].mxu0
      %v3655 = vadd.f32 0.0, %v3654
      %v3656 = vpop.f32.mrb[0].mxu0
      %v3657 = vpop.f32.mrb[0].mxu0
      %v3658 = vadd.f32 0.0, %v3657
      %v3659 = vpop.f32.mrb[0].mxu0
      %3660 = vmatprep.mubr.bf16.mxu0 0
      %3661 = vmatmul.mubr.bf16.gmra.mrb[0].mxu0 %v3558
      %v3662 = vpop.f32.mrb[0].mxu0
      %v3663 = vadd.f32 0.0, %v3662
      %v3664 = vpop.f32.mrb[0].mxu0
      %v3665 = vpop.f32.mrb[0].mxu0
      %v3666 = vadd.f32 0.0, %v3665
      %v3667 = vpop.f32.mrb[0].mxu0
      %3668 = vmatprep.mubr.bf16.mxu0 0
      %3669 = vmatmul.mubr.bf16.gmra.mrb[0].mxu0 %v3561
      %v3670 = vpop.f32.mrb[0].mxu0
      %v3671 = vadd.f32 0.0, %v3670
      %v3672 = vpop.f32.mrb[0].mxu0
      %v3673 = vpop.f32.mrb[0].mxu0
      %v3674 = vadd.f32 0.0, %v3673
      %v3675 = vpop.f32.mrb[0].mxu0
      %3676 = vmatprep.mubr.bf16.mxu0 0
      %3677 = vmatmul.mubr.bf16.gmra.mrb[0].mxu0 %v3564
      %v3678 = vpop.f32.mrb[0].mxu0
      %v3679 = vadd.f32 0.0, %v3678
      %v3680 = vpop.f32.mrb[0].mxu0
      %v3681 = vpop.f32.mrb[0].mxu0
      %v3682 = vadd.f32 0.0, %v3681
      %v3683 = vpop.f32.mrb[0].mxu0
      %3684 = vmatprep.mubr.bf16.mxu0 0
      %3685 = vmatmul.mubr.bf16.gmra.mrb[0].mxu0 %v3567
      %v3686 = vpop.f32.mrb[0].mxu0
      %v3687 = vadd.f32 0.0, %v3686
      %v3688 = vpop.f32.mrb[0].mxu0
      %v3689 = vpop.f32.mrb[0].mxu0
      %v3690 = vadd.f32 0.0, %v3689
      %v3691 = vpop.f32.mrb[0].mxu0
      %3692 = vmatprep.mubr.bf16.mxu0 0
      %3693 = vmatmul.mubr.bf16.gmra.mrb[0].mxu0 %v3570
      %v3694 = vpop.f32.mrb[0].mxu0
      %v3695 = vadd.f32 0.0, %v3694
      %v3696 = vpop.f32.mrb[0].mxu0
      %v3697 = vpop.f32.mrb[0].mxu0
      %v3698 = vadd.f32 0.0, %v3697
      %v3699 = vpop.f32.mrb[0].mxu0
      %3700 = vmatprep.mubr.bf16.mxu0 0
      %3701 = vmatmul.mubr.bf16.gmra.mrb[0].mxu0 %v3573
      %v3702 = vpop.f32.mrb[0].mxu0
      %v3703 = vadd.f32 0.0, %v3702
      %v3704 = vpop.f32.mrb[0].mxu0
      %v3705 = vpop.f32.mrb[0].mxu0
      %v3706 = vadd.f32 0.0, %v3705
      %v3707 = vpop.f32.mrb[0].mxu0
      %3708 = vmatprep.mubr.bf16.mxu0 0
      %3709 = vmatmul.mubr.bf16.gmra.mrb[0].mxu0 %v3576
      %v3710 = vpop.f32.mrb[0].mxu0
      %v3711 = vadd.f32 0.0, %v3710
      %v3712 = vpop.f32.mrb[0].mxu0
      %v3713 = vpop.f32.mrb[0].mxu0
      %v3714 = vadd.f32 0.0, %v3713
      %v3715 = vpop.f32.mrb[0].mxu0
      %3716 = vmatprep.mubr.bf16.mxu0 0
      %3717 = vmatmul.mubr.bf16.gmra.mrb[0].mxu0 %v3579
      %v3718 = vpop.f32.mrb[0].mxu0
      %v3719 = vadd.f32 0.0, %v3718
      %v3720 = vpop.f32.mrb[0].mxu0
      %v3721 = vpop.f32.mrb[0].mxu0
      %v3722 = vadd.f32 0.0, %v3721
      %v3723 = vpop.f32.mrb[0].mxu0
      %3724 = vmatprep.mubr.bf16.mxu0 0
      %3725 = vmatmul.mubr.bf16.gmra.mrb[0].mxu0 %v3582
      %v3726 = vpop.f32.mrb[0].mxu0
      %v3727 = vadd.f32 0.0, %v3726
      %v3728 = vpop.f32.mrb[0].mxu0
      %v3729 = vpop.f32.mrb[0].mxu0
      %v3730 = vadd.f32 0.0, %v3729
      %v3731 = vpop.f32.mrb[0].mxu0
      %3732 = vmatprep.mubr.bf16.mxu0 0
      %3733 = vmatmul.mubr.bf16.gmra.mrb[0].mxu0 %v3585
      %v3734 = vpop.f32.mrb[0].mxu0
      %v3735 = vadd.f32 0.0, %v3734
      %v3736 = vpop.f32.mrb[0].mxu0
      %v3737 = vpop.f32.mrb[0].mxu0
      %v3738 = vadd.f32 0.0, %v3737
      %v3739 = vpop.f32.mrb[0].mxu0
      %3740 = vmatprep.mubr.bf16.mxu0 0
      %3741 = vmatmul.mubr.bf16.gmra.mrb[0].mxu0 %v3588
      %v3742 = vpop.f32.mrb[0].mxu0
      %v3743 = vadd.f32 0.0, %v3742
      %v3744 = vpop.f32.mrb[0].mxu0
      %v3745 = vpop.f32.mrb[0].mxu0
      %v3746 = vadd.f32 0.0, %v3745
      %v3747 = vpop.f32.mrb[0].mxu0
      %3748 = vmatprep.mubr.bf16.mxu0 0
      %3749 = vmatmul.mubr.bf16.gmra.mrb[0].mxu0 %v3591
      %v3750 = vpop.f32.mrb[0].mxu0
      %v3751 = vadd.f32 0.0, %v3750
      %v3752 = vpop.f32.mrb[0].mxu0
      %v3753 = vpop.f32.mrb[0].mxu0
      %v3754 = vadd.f32 0.0, %v3753
      %v3755 = vpop.f32.mrb[0].mxu0
      %3756 = vdwg.mxu0
      %v3757 = vadd.f32 %v3448, %v3631
      %v3758 = vadd.f32 %v3449, %v3634
      %v3759 = vadd.f32 %v3450, %v3639
      %v3760 = vadd.f32 %v3451, %v3642
      %v3761 = vadd.f32 %v3452, %v3647
      %v3762 = vadd.f32 %v3453, %v3650
      %v3763 = vadd.f32 %v3454, %v3655
      %v3764 = vadd.f32 %v3455, %v3658
      %v3765 = vadd.f32 %v3456, %v3663
      %v3766 = vadd.f32 %v3457, %v3666
      %v3767 = vadd.f32 %v3458, %v3671
      %v3768 = vadd.f32 %v3459, %v3674
      %v3769 = vadd.f32 %v3460, %v3679
      %v3770 = vadd.f32 %v3461, %v3682
      %v3771 = vadd.f32 %v3462, %v3687
      %v3772 = vadd.f32 %v3463, %v3690
      %v3773 = vadd.f32 %v3464, %v3695
      %v3774 = vadd.f32 %v3465, %v3698
      %v3775 = vadd.f32 %v3466, %v3703
      %v3776 = vadd.f32 %v3467, %v3706
      %v3777 = vadd.f32 %v3468, %v3711
      %v3778 = vadd.f32 %v3469, %v3714
      %v3779 = vadd.f32 %v3470, %v3719
      %v3780 = vadd.f32 %v3471, %v3722
      %v3781 = vadd.f32 %v3472, %v3727
      %v3782 = vadd.f32 %v3473, %v3730
      %v3783 = vadd.f32 %v3474, %v3735
      %v3784 = vadd.f32 %v3475, %v3738
      %v3785 = vadd.f32 %v3476, %v3743
      %v3786 = vadd.f32 %v3477, %v3746
      %v3787 = vadd.f32 %v3478, %v3751
      %v3788 = vadd.f32 %v3479, %v3754
      %v3789 = vld [vmem:[%s2] sm:$0x1]
      %v3791 = vlaneseq
      %v3792 = vshrl.u32 %v3791, 7
      %v3793 = vsub.s32 0, %v3792
      %v3794 = vrot.slane %v3789, %v3793
      %v3796 = vadd.f32 %v3757, %v3794
      %v3797 = vadd.f32 %v3758, %v3794
      %v3798 = vadd.f32 %v3759, %v3794
      %v3799 = vadd.f32 %v3760, %v3794
      %v3800 = vadd.f32 %v3761, %v3794
      %v3801 = vadd.f32 %v3762, %v3794
      %v3802 = vadd.f32 %v3763, %v3794
      %v3803 = vadd.f32 %v3764, %v3794
      %v3804 = vadd.f32 %v3765, %v3794
      %v3805 = vadd.f32 %v3766, %v3794
      %v3806 = vadd.f32 %v3767, %v3794
      %v3807 = vadd.f32 %v3768, %v3794
      %v3808 = vadd.f32 %v3769, %v3794
      %v3809 = vadd.f32 %v3770, %v3794
      %v3810 = vadd.f32 %v3771, %v3794
      %v3811 = vadd.f32 %v3772, %v3794
      %v3812 = vadd.f32 %v3773, %v3794
      %v3813 = vadd.f32 %v3774, %v3794
      %v3814 = vadd.f32 %v3775, %v3794
      %v3815 = vadd.f32 %v3776, %v3794
      %v3816 = vadd.f32 %v3777, %v3794
      %v3817 = vadd.f32 %v3778, %v3794
      %v3818 = vadd.f32 %v3779, %v3794
      %v3819 = vadd.f32 %v3780, %v3794
      %v3820 = vadd.f32 %v3781, %v3794
      %v3821 = vadd.f32 %v3782, %v3794
      %v3822 = vadd.f32 %v3783, %v3794
      %v3823 = vadd.f32 %v3784, %v3794
      %v3824 = vadd.f32 %v3785, %v3794
      %v3825 = vadd.f32 %v3786, %v3794
      %v3826 = vadd.f32 %v3787, %v3794
      %v3827 = vadd.f32 %v3788, %v3794
      %v3828 = vmax.f32 %v3796, 0.0
      %v3829 = vmax.f32 %v3797, 0.0
      %v3830 = vmax.f32 %v3798, 0.0
      %v3831 = vmax.f32 %v3799, 0.0
      %v3832 = vmax.f32 %v3800, 0.0
      %v3833 = vmax.f32 %v3801, 0.0
      %v3834 = vmax.f32 %v3802, 0.0
      %v3835 = vmax.f32 %v3803, 0.0
      %v3836 = vmax.f32 %v3804, 0.0
      %v3837 = vmax.f32 %v3805, 0.0
      %v3838 = vmax.f32 %v3806, 0.0
      %v3839 = vmax.f32 %v3807, 0.0
      %v3840 = vmax.f32 %v3808, 0.0
      %v3841 = vmax.f32 %v3809, 0.0
      %v3842 = vmax.f32 %v3810, 0.0
      %v3843 = vmax.f32 %v3811, 0.0
      %v3844 = vmax.f32 %v3812, 0.0
      %v3845 = vmax.f32 %v3813, 0.0
      %v3846 = vmax.f32 %v3814, 0.0
      %v3847 = vmax.f32 %v3815, 0.0
      %v3848 = vmax.f32 %v3816, 0.0
      %v3849 = vmax.f32 %v3817, 0.0
      %v3850 = vmax.f32 %v3818, 0.0
      %v3851 = vmax.f32 %v3819, 0.0
      %v3852 = vmax.f32 %v3820, 0.0
      %v3853 = vmax.f32 %v3821, 0.0
      %v3854 = vmax.f32 %v3822, 0.0
      %v3855 = vmax.f32 %v3823, 0.0
      %v3856 = vmax.f32 %v3824, 0.0
      %v3857 = vmax.f32 %v3825, 0.0
      %v3858 = vmax.f32 %v3826, 0.0
      %v3859 = vmax.f32 %v3827, 0.0
      %vm3860 = vcmask 523264
      %3861 = vst.msk [vmem:[#allocation2] sm:$0xff] %vm3860, 0.0
      %3862 = vst.msk [vmem:[#allocation2 + $0x8] sm:$0xff] %vm3860, 0.0
      %vm3863 = vcmask 516096
      %3864 = vst.msk [vmem:[#allocation2 + $0x10] sm:$0x1] %vm3863, 0.0
      %3865 = vst.msk [vmem:[#allocation2 + $0x111] sm:$0xff] %vm3860, 0.0
      %3866 = vst.msk [vmem:[#allocation2 + $0x119] sm:$0xff] %vm3860, 0.0
      %3867 = vst.msk [vmem:[#allocation2 + $0x121] sm:$0x1] %vm3863, 0.0
      %3868 = vst.msk [vmem:[#allocation2 + $0x11] sm:$0xff] %vm3860, %v3828
      %3869 = vst.msk [vmem:[#allocation2 + $0x19] sm:$0xff] %vm3860, %v3829
      %3870 = vst.msk [vmem:[#allocation2 + $0x21] sm:$0xff] %vm3860, %v3830
      %3871 = vst.msk [vmem:[#allocation2 + $0x29] sm:$0xff] %vm3860, %v3831
      %3872 = vst.msk [vmem:[#allocation2 + $0x31] sm:$0xff] %vm3860, %v3832
      %3873 = vst.msk [vmem:[#allocation2 + $0x39] sm:$0xff] %vm3860, %v3833
      %3874 = vst.msk [vmem:[#allocation2 + $0x41] sm:$0xff] %vm3860, %v3834
      %3875 = vst.msk [vmem:[#allocation2 + $0x49] sm:$0xff] %vm3860, %v3835
      %3876 = vst.msk [vmem:[#allocation2 + $0x51] sm:$0xff] %vm3860, %v3836
      %3877 = vst.msk [vmem:[#allocation2 + $0x59] sm:$0xff] %vm3860, %v3837
      %3878 = vst.msk [vmem:[#allocation2 + $0x61] sm:$0xff] %vm3860, %v3838
      %3879 = vst.msk [vmem:[#allocation2 + $0x69] sm:$0xff] %vm3860, %v3839
      %3880 = vst.msk [vmem:[#allocation2 + $0x71] sm:$0xff] %vm3860, %v3840
      %3881 = vst.msk [vmem:[#allocation2 + $0x79] sm:$0xff] %vm3860, %v3841
      %3882 = vst.msk [vmem:[#allocation2 + $0x81] sm:$0xff] %vm3860, %v3842
      %3883 = vst.msk [vmem:[#allocation2 + $0x89] sm:$0xff] %vm3860, %v3843
      %3884 = vst.msk [vmem:[#allocation2 + $0x91] sm:$0xff] %vm3860, %v3844
      %3885 = vst.msk [vmem:[#allocation2 + $0x99] sm:$0xff] %vm3860, %v3845
      %3886 = vst.msk [vmem:[#allocation2 + $0xa1] sm:$0xff] %vm3860, %v3846
      %3887 = vst.msk [vmem:[#allocation2 + $0xa9] sm:$0xff] %vm3860, %v3847
      %3888 = vst.msk [vmem:[#allocation2 + $0xb1] sm:$0xff] %vm3860, %v3848
      %3889 = vst.msk [vmem:[#allocation2 + $0xb9] sm:$0xff] %vm3860, %v3849
      %3890 = vst.msk [vmem:[#allocation2 + $0xc1] sm:$0xff] %vm3860, %v3850
      %3891 = vst.msk [vmem:[#allocation2 + $0xc9] sm:$0xff] %vm3860, %v3851
      %3892 = vst.msk [vmem:[#allocation2 + $0xd1] sm:$0xff] %vm3860, %v3852
      %3893 = vst.msk [vmem:[#allocation2 + $0xd9] sm:$0xff] %vm3860, %v3853
      %3894 = vst.msk [vmem:[#allocation2 + $0xe1] sm:$0xff] %vm3860, %v3854
      %3895 = vst.msk [vmem:[#allocation2 + $0xe9] sm:$0xff] %vm3860, %v3855
      %3896 = vst.msk [vmem:[#allocation2 + $0xf1] sm:$0xff] %vm3860, %v3856
      %3897 = vst.msk [vmem:[#allocation2 + $0xf9] sm:$0xff] %vm3860, %v3857
      %3898 = vst.msk [vmem:[#allocation2 + $0x101] sm:$0xff] %vm3860, %v3858
      %3899 = vst.msk [vmem:[#allocation2 + $0x109] sm:$0xff] %vm3860, %v3859
      %v3900 = vld [vmem:[#allocation2] sm:$0xff]
      %v3901 = vld [vmem:[#allocation2 + $0x8] sm:$0xff]
      %v3902 = vld [vmem:[#allocation2 + $0x10] sm:$0xff]
      %v3903 = vld [vmem:[#allocation2 + $0x18] sm:$0xff]
      %v3904 = vld [vmem:[#allocation2 + $0x20] sm:$0xff]
      %v3905 = vld [vmem:[#allocation2 + $0x28] sm:$0xff]
      %v3906 = vld [vmem:[#allocation2 + $0x30] sm:$0xff]
      %v3907 = vld [vmem:[#allocation2 + $0x38] sm:$0xff]
      %v3908 = vld [vmem:[#allocation2 + $0x40] sm:$0xff]
      %v3909 = vld [vmem:[#allocation2 + $0x48] sm:$0xff]
      %v3910 = vld [vmem:[#allocation2 + $0x50] sm:$0xff]
      %v3911 = vld [vmem:[#allocation2 + $0x58] sm:$0xff]
      %v3912 = vld [vmem:[#allocation2 + $0x60] sm:$0xff]
      %v3913 = vld [vmem:[#allocation2 + $0x68] sm:$0xff]
      %v3914 = vld [vmem:[#allocation2 + $0x70] sm:$0xff]
      %v3915 = vld [vmem:[#allocation2 + $0x78] sm:$0xff]
      %v3916 = vld [vmem:[#allocation2 + $0x80] sm:$0xff]
      %v3917 = vld [vmem:[#allocation2 + $0x88] sm:$0xff]
      %v3918 = vld [vmem:[#allocation2 + $0x90] sm:$0xff]
      %v3919 = vld [vmem:[#allocation2 + $0x98] sm:$0xff]
      %v3920 = vld [vmem:[#allocation2 + $0xa0] sm:$0xff]
      %v3921 = vld [vmem:[#allocation2 + $0xa8] sm:$0xff]
      %v3922 = vld [vmem:[#allocation2 + $0xb0] sm:$0xff]
      %v3923 = vld [vmem:[#allocation2 + $0xb8] sm:$0xff]
      %v3924 = vld [vmem:[#allocation2 + $0xc0] sm:$0xff]
      %v3925 = vld [vmem:[#allocation2 + $0xc8] sm:$0xff]
      %v3926 = vld [vmem:[#allocation2 + $0xd0] sm:$0xff]
      %v3927 = vld [vmem:[#allocation2 + $0xd8] sm:$0xff]
      %v3928 = vld [vmem:[#allocation2 + $0xe0] sm:$0xff]
      %v3929 = vld [vmem:[#allocation2 + $0xe8] sm:$0xff]
      %v3930 = vld [vmem:[#allocation2 + $0xf0] sm:$0xff]
      %v3931 = vld [vmem:[#allocation2 + $0xf8] sm:$0xff]
      %v3932 = vpack.c.bf16 %v3901, %v3900
      %v3933 = vpack.c.bf16 %v3903, %v3902
      %v3934 = vpack.c.bf16 %v3905, %v3904
      %v3935 = vpack.c.bf16 %v3907, %v3906
      %v3936 = vpack.c.bf16 %v3909, %v3908
      %v3937 = vpack.c.bf16 %v3911, %v3910
      %v3938 = vpack.c.bf16 %v3913, %v3912
      %v3939 = vpack.c.bf16 %v3915, %v3914
      %v3940 = vpack.c.bf16 %v3917, %v3916
      %v3941 = vpack.c.bf16 %v3919, %v3918
      %v3942 = vpack.c.bf16 %v3921, %v3920
      %v3943 = vpack.c.bf16 %v3923, %v3922
      %v3944 = vpack.c.bf16 %v3925, %v3924
      %v3945 = vpack.c.bf16 %v3927, %v3926
      %v3946 = vpack.c.bf16 %v3929, %v3928
      %v3947 = vpack.c.bf16 %v3931, %v3930
      %v3948 = vsel %vm955, %v3932, 0
      %v3949 = vsel %vm956, %v3933, 0
      %v3950 = vsel %vm957, %v3934, 0
      %v3951 = vsel %vm958, %v3935, 0
      %v3952 = vsel %vm959, %v3936, 0
      %v3953 = vsel %vm960, %v3937, 0
      %v3954 = vsel %vm961, %v3938, 0
      %v3955 = vsel %vm962, %v3939, 0
      %v3956 = vsel %vm963, %v3940, 0
      %v3957 = vsel %vm964, %v3941, 0
      %v3958 = vsel %vm965, %v3942, 0
      %v3959 = vsel %vm966, %v3943, 0
      %v3960 = vsel %vm967, %v3944, 0
      %v3961 = vsel %vm968, %v3945, 0
      %v3962 = vsel %vm969, %v3946, 0
      %v3963 = vsel %vm970, %v3947, 0
      %v3964 = vld [vmem:[%s267] sm:$0xf]
      %v3965 = vld [vmem:[%s267 + $0x4] sm:$0xf]
      %v3966 = vld [vmem:[%s267 + $0x8] sm:$0xf]
      %v3967 = vld [vmem:[%s267 + $0xc] sm:$0xf]
      %v3968 = vld [vmem:[%s267 + $0x10] sm:$0xf]
      %v3969 = vld [vmem:[%s267 + $0x14] sm:$0xf]
      %v3970 = vld [vmem:[%s267 + $0x18] sm:$0xf]
      %v3971 = vld [vmem:[%s267 + $0x1c] sm:$0xf]
      %v3972 = vld [vmem:[#allocation2 + $0x100] sm:$0xff]
      %v3973 = vld [vmem:[#allocation2 + $0x108] sm:$0xff]
      %v3974 = vpack.c.bf16 %v3973, %v3972
      %v3975 = vsel %vm955, %v3933, 0
      %v3976 = vsel %vm956, %v3934, 0
      %v3977 = vsel %vm957, %v3935, 0
      %v3978 = vsel %vm958, %v3936, 0
      %v3979 = vsel %vm959, %v3937, 0
      %v3980 = vsel %vm960, %v3938, 0
      %v3981 = vsel %vm961, %v3939, 0
      %v3982 = vsel %vm962, %v3940, 0
      %v3983 = vsel %vm963, %v3941, 0
      %v3984 = vsel %vm964, %v3942, 0
      %v3985 = vsel %vm965, %v3943, 0
      %v3986 = vsel %vm966, %v3944, 0
      %v3987 = vsel %vm967, %v3945, 0
      %v3988 = vsel %vm968, %v3946, 0
      %v3989 = vsel %vm969, %v3947, 0
      %v3990 = vsel %vm970, %v3974, 0
      %v3991 = vld [vmem:[%s267 + $0x60] sm:$0xf]
      %v3992 = vld [vmem:[%s267 + $0x64] sm:$0xf]
      %v3993 = vld [vmem:[%s267 + $0x68] sm:$0xf]
      %v3994 = vld [vmem:[%s267 + $0x6c] sm:$0xf]
      %v3995 = vld [vmem:[%s267 + $0x70] sm:$0xf]
      %v3996 = vld [vmem:[%s267 + $0x74] sm:$0xf]
      %v3997 = vld [vmem:[%s267 + $0x78] sm:$0xf]
      %v3998 = vld [vmem:[%s267 + $0x7c] sm:$0xf]
      %v4007 = vunpack.c.l.b16 %v3991
      %v4008 = vunpack.c.l.b16 %v3992
      %v4009 = vunpack.c.l.b16 %v3993
      %v4010 = vunpack.c.l.b16 %v3994
      %v4011 = vunpack.c.l.b16 %v3995
      %v4012 = vunpack.c.l.b16 %v3996
      %v4013 = vunpack.c.l.b16 %v3997
      %v4014 = vunpack.c.l.b16 %v3998
      %v4015 = vpack.c.b16 %v4008, %v4007
      %v4016 = vpack.c.b16 %v4010, %v4009
      %v4017 = vpack.c.b16 %v4012, %v4011
      %v4018 = vpack.c.b16 %v4014, %v4013
      %v4024 = vsel %vm3860, %v3975, 0
      %v4027 = vsel %vm3860, %v3976, 0
      %v4030 = vsel %vm3860, %v3977, 0
      %v4033 = vsel %vm3860, %v3978, 0
      %v4036 = vsel %vm3860, %v3979, 0
      %v4039 = vsel %vm3860, %v3980, 0
      %v4042 = vsel %vm3860, %v3981, 0
      %v4045 = vsel %vm3860, %v3982, 0
      %v4048 = vsel %vm3860, %v3983, 0
      %v4051 = vsel %vm3860, %v3984, 0
      %v4054 = vsel %vm3860, %v3985, 0
      %v4057 = vsel %vm3860, %v3986, 0
      %v4060 = vsel %vm3860, %v3987, 0
      %v4063 = vsel %vm3860, %v3988, 0
      %v4066 = vsel %vm3860, %v3989, 0
      %v4069 = vsel %vm3860, %v3990, 0
      %4071 = vmatprep.subr.bf16.mxu0 0
      %4072 = vmatpush1.bf16.msra.mxu0 %v4015
      %4073 = vmatprep.subr.bf16.mxu0 0
      %4074 = vmatpush1.bf16.msra.mxu0 %v4016
      %4075 = vmatprep.subr.bf16.mxu0 0
      %4076 = vmatpush1.bf16.msra.mxu0 %v4017
      %4077 = vmatprep.subr.bf16.mxu0 0
      %4078 = vmatpush1.bf16.msra.mxu0 %v4018
      %4079 = vmatprep.subr.bf16.mxu0 0
      %4080 = vmatpush1.bf16.msra.mxu0 0
      %4081 = vmatprep.subr.bf16.mxu0 0
      %4082 = vmatpush1.bf16.msra.mxu0 0
      %4083 = vmatprep.subr.bf16.mxu0 0
      %4084 = vmatpush1.bf16.msra.mxu0 0
      %4085 = vmatprep.subr.bf16.mxu0 0
      %4086 = vmatpush1.bf16.msra.mxu0 0
      %4087 = vmatprep.subr.bf16.mxu0 0
      %4088 = vmatpush1.bf16.msra.mxu0 0
      %4089 = vmatprep.subr.bf16.mxu0 0
      %4090 = vmatpush1.bf16.msra.mxu0 0
      %4091 = vmatprep.subr.bf16.mxu0 0
      %4092 = vmatpush1.bf16.msra.mxu0 0
      %4093 = vmatprep.subr.bf16.mxu0 0
      %4094 = vmatpush1.bf16.msra.mxu0 0
      %4095 = vmatprep.subr.bf16.mxu0 0
      %4096 = vmatpush1.bf16.msra.mxu0 0
      %4097 = vmatprep.subr.bf16.mxu0 0
      %4098 = vmatpush1.bf16.msra.mxu0 0
      %4099 = vmatprep.subr.bf16.mxu0 0
      %4100 = vmatpush1.bf16.msra.mxu0 0
      %4101 = vmatprep.subr.bf16.mxu0 0
      %4102 = vmatpush1.bf16.msra.mxu0 0
      %4103 = vmatprep.mubr.bf16.mxu0 0
      %4104 = vmatmul.mubr.bf16.gmra.mrb[0].mxu0 %v4024
      %v4105 = vpop.f32.mrb[0].mxu0
      %v4106 = vadd.f32 0.0, %v4105
      %v4107 = vpop.f32.mrb[0].mxu0
      %v4108 = vpop.f32.mrb[0].mxu0
      %v4109 = vadd.f32 0.0, %v4108
      %v4110 = vpop.f32.mrb[0].mxu0
      %4111 = vmatprep.mubr.bf16.mxu0 0
      %4112 = vmatmul.mubr.bf16.gmra.mrb[0].mxu0 %v4027
      %v4113 = vpop.f32.mrb[0].mxu0
      %v4114 = vadd.f32 0.0, %v4113
      %v4115 = vpop.f32.mrb[0].mxu0
      %v4116 = vpop.f32.mrb[0].mxu0
      %v4117 = vadd.f32 0.0, %v4116
      %v4118 = vpop.f32.mrb[0].mxu0
      %4119 = vmatprep.mubr.bf16.mxu0 0
      %4120 = vmatmul.mubr.bf16.gmra.mrb[0].mxu0 %v4030
      %v4121 = vpop.f32.mrb[0].mxu0
      %v4122 = vadd.f32 0.0, %v4121
      %v4123 = vpop.f32.mrb[0].mxu0
      %v4124 = vpop.f32.mrb[0].mxu0
      %v4125 = vadd.f32 0.0, %v4124
      %v4126 = vpop.f32.mrb[0].mxu0
      %4127 = vmatprep.mubr.bf16.mxu0 0
      %4128 = vmatmul.mubr.bf16.gmra.mrb[0].mxu0 %v4033
      %v4129 = vpop.f32.mrb[0].mxu0
      %v4130 = vadd.f32 0.0, %v4129
      %v4131 = vpop.f32.mrb[0].mxu0
      %v4132 = vpop.f32.mrb[0].mxu0
      %v4133 = vadd.f32 0.0, %v4132
      %v4134 = vpop.f32.mrb[0].mxu0
      %4135 = vmatprep.mubr.bf16.mxu0 0
      %4136 = vmatmul.mubr.bf16.gmra.mrb[0].mxu0 %v4036
      %v4137 = vpop.f32.mrb[0].mxu0
      %v4138 = vadd.f32 0.0, %v4137
      %v4139 = vpop.f32.mrb[0].mxu0
      %v4140 = vpop.f32.mrb[0].mxu0
      %v4141 = vadd.f32 0.0, %v4140
      %v4142 = vpop.f32.mrb[0].mxu0
      %4143 = vmatprep.mubr.bf16.mxu0 0
      %4144 = vmatmul.mubr.bf16.gmra.mrb[0].mxu0 %v4039
      %v4145 = vpop.f32.mrb[0].mxu0
      %v4146 = vadd.f32 0.0, %v4145
      %v4147 = vpop.f32.mrb[0].mxu0
      %v4148 = vpop.f32.mrb[0].mxu0
      %v4149 = vadd.f32 0.0, %v4148
      %v4150 = vpop.f32.mrb[0].mxu0
      %4151 = vmatprep.mubr.bf16.mxu0 0
      %4152 = vmatmul.mubr.bf16.gmra.mrb[0].mxu0 %v4042
      %v4153 = vpop.f32.mrb[0].mxu0
      %v4154 = vadd.f32 0.0, %v4153
      %v4155 = vpop.f32.mrb[0].mxu0
      %v4156 = vpop.f32.mrb[0].mxu0
      %v4157 = vadd.f32 0.0, %v4156
      %v4158 = vpop.f32.mrb[0].mxu0
      %4159 = vmatprep.mubr.bf16.mxu0 0
      %4160 = vmatmul.mubr.bf16.gmra.mrb[0].mxu0 %v4045
      %v4161 = vpop.f32.mrb[0].mxu0
      %v4162 = vadd.f32 0.0, %v4161
      %v4163 = vpop.f32.mrb[0].mxu0
      %v4164 = vpop.f32.mrb[0].mxu0
      %v4165 = vadd.f32 0.0, %v4164
      %v4166 = vpop.f32.mrb[0].mxu0
      %4167 = vmatprep.mubr.bf16.mxu0 0
      %4168 = vmatmul.mubr.bf16.gmra.mrb[0].mxu0 %v4048
      %v4169 = vpop.f32.mrb[0].mxu0
      %v4170 = vadd.f32 0.0, %v4169
      %v4171 = vpop.f32.mrb[0].mxu0
      %v4172 = vpop.f32.mrb[0].mxu0
      %v4173 = vadd.f32 0.0, %v4172
      %v4174 = vpop.f32.mrb[0].mxu0
      %4175 = vmatprep.mubr.bf16.mxu0 0
      %4176 = vmatmul.mubr.bf16.gmra.mrb[0].mxu0 %v4051
      %v4177 = vpop.f32.mrb[0].mxu0
      %v4178 = vadd.f32 0.0, %v4177
      %v4179 = vpop.f32.mrb[0].mxu0
      %v4180 = vpop.f32.mrb[0].mxu0
      %v4181 = vadd.f32 0.0, %v4180
      %v4182 = vpop.f32.mrb[0].mxu0
      %4183 = vmatprep.mubr.bf16.mxu0 0
      %4184 = vmatmul.mubr.bf16.gmra.mrb[0].mxu0 %v4054
      %v4185 = vpop.f32.mrb[0].mxu0
      %v4186 = vadd.f32 0.0, %v4185
      %v4187 = vpop.f32.mrb[0].mxu0
      %v4188 = vpop.f32.mrb[0].mxu0
      %v4189 = vadd.f32 0.0, %v4188
      %v4190 = vpop.f32.mrb[0].mxu0
      %4191 = vmatprep.mubr.bf16.mxu0 0
      %4192 = vmatmul.mubr.bf16.gmra.mrb[0].mxu0 %v4057
      %v4193 = vpop.f32.mrb[0].mxu0
      %v4194 = vadd.f32 0.0, %v4193
      %v4195 = vpop.f32.mrb[0].mxu0
      %v4196 = vpop.f32.mrb[0].mxu0
      %v4197 = vadd.f32 0.0, %v4196
      %v4198 = vpop.f32.mrb[0].mxu0
      %4199 = vmatprep.mubr.bf16.mxu0 0
      %4200 = vmatmul.mubr.bf16.gmra.mrb[0].mxu0 %v4060
      %v4201 = vpop.f32.mrb[0].mxu0
      %v4202 = vadd.f32 0.0, %v4201
      %v4203 = vpop.f32.mrb[0].mxu0
      %v4204 = vpop.f32.mrb[0].mxu0
      %v4205 = vadd.f32 0.0, %v4204
      %v4206 = vpop.f32.mrb[0].mxu0
      %4207 = vmatprep.mubr.bf16.mxu0 0
      %4208 = vmatmul.mubr.bf16.gmra.mrb[0].mxu0 %v4063
      %v4209 = vpop.f32.mrb[0].mxu0
      %v4210 = vadd.f32 0.0, %v4209
      %v4211 = vpop.f32.mrb[0].mxu0
      %v4212 = vpop.f32.mrb[0].mxu0
      %v4213 = vadd.f32 0.0, %v4212
      %v4214 = vpop.f32.mrb[0].mxu0
      %4215 = vmatprep.mubr.bf16.mxu0 0
      %4216 = vmatmul.mubr.bf16.gmra.mrb[0].mxu0 %v4066
      %v4217 = vpop.f32.mrb[0].mxu0
      %v4218 = vadd.f32 0.0, %v4217
      %v4219 = vpop.f32.mrb[0].mxu0
      %v4220 = vpop.f32.mrb[0].mxu0
      %v4221 = vadd.f32 0.0, %v4220
      %v4222 = vpop.f32.mrb[0].mxu0
      %4223 = vmatprep.mubr.bf16.mxu0 0
      %4224 = vmatmul.mubr.bf16.gmra.mrb[0].mxu0 %v4069
      %v4225 = vpop.f32.mrb[0].mxu0
      %v4226 = vadd.f32 0.0, %v4225
      %v4227 = vpop.f32.mrb[0].mxu0
      %v4228 = vpop.f32.mrb[0].mxu0
      %v4229 = vadd.f32 0.0, %v4228
      %v4230 = vpop.f32.mrb[0].mxu0
      %4231 = vdwg.mxu0
      %v4240 = vunpack.c.l.b16 %v3964
      %v4241 = vunpack.c.l.b16 %v3965
      %v4242 = vunpack.c.l.b16 %v3966
      %v4243 = vunpack.c.l.b16 %v3967
      %v4244 = vunpack.c.l.b16 %v3968
      %v4245 = vunpack.c.l.b16 %v3969
      %v4246 = vunpack.c.l.b16 %v3970
      %v4247 = vunpack.c.l.b16 %v3971
      %v4248 = vpack.c.b16 %v4241, %v4240
      %v4249 = vpack.c.b16 %v4243, %v4242
      %v4250 = vpack.c.b16 %v4245, %v4244
      %v4251 = vpack.c.b16 %v4247, %v4246
      %v4257 = vsel %vm3860, %v3948, 0
      %v4260 = vsel %vm3860, %v3949, 0
      %v4263 = vsel %vm3860, %v3950, 0
      %v4266 = vsel %vm3860, %v3951, 0
      %v4269 = vsel %vm3860, %v3952, 0
      %v4272 = vsel %vm3860, %v3953, 0
      %v4275 = vsel %vm3860, %v3954, 0
      %v4278 = vsel %vm3860, %v3955, 0
      %v4281 = vsel %vm3860, %v3956, 0
      %v4284 = vsel %vm3860, %v3957, 0
      %v4287 = vsel %vm3860, %v3958, 0
      %v4290 = vsel %vm3860, %v3959, 0
      %v4293 = vsel %vm3860, %v3960, 0
      %v4296 = vsel %vm3860, %v3961, 0
      %v4299 = vsel %vm3860, %v3962, 0
      %v4302 = vsel %vm3860, %v3963, 0
      %4304 = vmatprep.subr.bf16.mxu0 0
      %4305 = vmatpush1.bf16.msra.mxu0 %v4248
      %4306 = vmatprep.subr.bf16.mxu0 0
      %4307 = vmatpush1.bf16.msra.mxu0 %v4249
      %4308 = vmatprep.subr.bf16.mxu0 0
      %4309 = vmatpush1.bf16.msra.mxu0 %v4250
      %4310 = vmatprep.subr.bf16.mxu0 0
      %4311 = vmatpush1.bf16.msra.mxu0 %v4251
      %4312 = vmatprep.subr.bf16.mxu0 0
      %4313 = vmatpush1.bf16.msra.mxu0 0
      %4314 = vmatprep.subr.bf16.mxu0 0
      %4315 = vmatpush1.bf16.msra.mxu0 0
      %4316 = vmatprep.subr.bf16.mxu0 0
      %4317 = vmatpush1.bf16.msra.mxu0 0
      %4318 = vmatprep.subr.bf16.mxu0 0
      %4319 = vmatpush1.bf16.msra.mxu0 0
      %4320 = vmatprep.subr.bf16.mxu0 0
      %4321 = vmatpush1.bf16.msra.mxu0 0
      %4322 = vmatprep.subr.bf16.mxu0 0
      %4323 = vmatpush1.bf16.msra.mxu0 0
      %4324 = vmatprep.subr.bf16.mxu0 0
      %4325 = vmatpush1.bf16.msra.mxu0 0
      %4326 = vmatprep.subr.bf16.mxu0 0
      %4327 = vmatpush1.bf16.msra.mxu0 0
      %4328 = vmatprep.subr.bf16.mxu0 0
      %4329 = vmatpush1.bf16.msra.mxu0 0
      %4330 = vmatprep.subr.bf16.mxu0 0
      %4331 = vmatpush1.bf16.msra.mxu0 0
      %4332 = vmatprep.subr.bf16.mxu0 0
      %4333 = vmatpush1.bf16.msra.mxu0 0
      %4334 = vmatprep.subr.bf16.mxu0 0
      %4335 = vmatpush1.bf16.msra.mxu0 0
      %4336 = vmatprep.mubr.bf16.mxu0 0
      %4337 = vmatmul.mubr.bf16.gmra.mrb[0].mxu0 %v4257
      %v4338 = vpop.f32.mrb[0].mxu0
      %v4339 = vadd.f32 %v4106, %v4338
      %v4340 = vpop.f32.mrb[0].mxu0
      %v4341 = vpop.f32.mrb[0].mxu0
      %v4342 = vadd.f32 %v4109, %v4341
      %v4343 = vpop.f32.mrb[0].mxu0
      %4344 = vmatprep.mubr.bf16.mxu0 0
      %4345 = vmatmul.mubr.bf16.gmra.mrb[0].mxu0 %v4260
      %v4346 = vpop.f32.mrb[0].mxu0
      %v4347 = vadd.f32 %v4114, %v4346
      %v4348 = vpop.f32.mrb[0].mxu0
      %v4349 = vpop.f32.mrb[0].mxu0
      %v4350 = vadd.f32 %v4117, %v4349
      %v4351 = vpop.f32.mrb[0].mxu0
      %4352 = vmatprep.mubr.bf16.mxu0 0
      %4353 = vmatmul.mubr.bf16.gmra.mrb[0].mxu0 %v4263
      %v4354 = vpop.f32.mrb[0].mxu0
      %v4355 = vadd.f32 %v4122, %v4354
      %v4356 = vpop.f32.mrb[0].mxu0
      %v4357 = vpop.f32.mrb[0].mxu0
      %v4358 = vadd.f32 %v4125, %v4357
      %v4359 = vpop.f32.mrb[0].mxu0
      %4360 = vmatprep.mubr.bf16.mxu0 0
      %4361 = vmatmul.mubr.bf16.gmra.mrb[0].mxu0 %v4266
      %v4362 = vpop.f32.mrb[0].mxu0
      %v4363 = vadd.f32 %v4130, %v4362
      %v4364 = vpop.f32.mrb[0].mxu0
      %v4365 = vpop.f32.mrb[0].mxu0
      %v4366 = vadd.f32 %v4133, %v4365
      %v4367 = vpop.f32.mrb[0].mxu0
      %4368 = vmatprep.mubr.bf16.mxu0 0
      %4369 = vmatmul.mubr.bf16.gmra.mrb[0].mxu0 %v4269
      %v4370 = vpop.f32.mrb[0].mxu0
      %v4371 = vadd.f32 %v4138, %v4370
      %v4372 = vpop.f32.mrb[0].mxu0
      %v4373 = vpop.f32.mrb[0].mxu0
      %v4374 = vadd.f32 %v4141, %v4373
      %v4375 = vpop.f32.mrb[0].mxu0
      %4376 = vmatprep.mubr.bf16.mxu0 0
      %4377 = vmatmul.mubr.bf16.gmra.mrb[0].mxu0 %v4272
      %v4378 = vpop.f32.mrb[0].mxu0
      %v4379 = vadd.f32 %v4146, %v4378
      %v4380 = vpop.f32.mrb[0].mxu0
      %v4381 = vpop.f32.mrb[0].mxu0
      %v4382 = vadd.f32 %v4149, %v4381
      %v4383 = vpop.f32.mrb[0].mxu0
      %4384 = vmatprep.mubr.bf16.mxu0 0
      %4385 = vmatmul.mubr.bf16.gmra.mrb[0].mxu0 %v4275
      %v4386 = vpop.f32.mrb[0].mxu0
      %v4387 = vadd.f32 %v4154, %v4386
      %v4388 = vpop.f32.mrb[0].mxu0
      %v4389 = vpop.f32.mrb[0].mxu0
      %v4390 = vadd.f32 %v4157, %v4389
      %v4391 = vpop.f32.mrb[0].mxu0
      %4392 = vmatprep.mubr.bf16.mxu0 0
      %4393 = vmatmul.mubr.bf16.gmra.mrb[0].mxu0 %v4278
      %v4394 = vpop.f32.mrb[0].mxu0
      %v4395 = vadd.f32 %v4162, %v4394
      %v4396 = vpop.f32.mrb[0].mxu0
      %v4397 = vpop.f32.mrb[0].mxu0
      %v4398 = vadd.f32 %v4165, %v4397
      %v4399 = vpop.f32.mrb[0].mxu0
      %4400 = vmatprep.mubr.bf16.mxu0 0
      %4401 = vmatmul.mubr.bf16.gmra.mrb[0].mxu0 %v4281
      %v4402 = vpop.f32.mrb[0].mxu0
      %v4403 = vadd.f32 %v4170, %v4402
      %v4404 = vpop.f32.mrb[0].mxu0
      %v4405 = vpop.f32.mrb[0].mxu0
      %v4406 = vadd.f32 %v4173, %v4405
      %v4407 = vpop.f32.mrb[0].mxu0
      %4408 = vmatprep.mubr.bf16.mxu0 0
      %4409 = vmatmul.mubr.bf16.gmra.mrb[0].mxu0 %v4284
      %v4410 = vpop.f32.mrb[0].mxu0
      %v4411 = vadd.f32 %v4178, %v4410
      %v4412 = vpop.f32.mrb[0].mxu0
      %v4413 = vpop.f32.mrb[0].mxu0
      %v4414 = vadd.f32 %v4181, %v4413
      %v4415 = vpop.f32.mrb[0].mxu0
      %4416 = vmatprep.mubr.bf16.mxu0 0
      %4417 = vmatmul.mubr.bf16.gmra.mrb[0].mxu0 %v4287
      %v4418 = vpop.f32.mrb[0].mxu0
      %v4419 = vadd.f32 %v4186, %v4418
      %v4420 = vpop.f32.mrb[0].mxu0
      %v4421 = vpop.f32.mrb[0].mxu0
      %v4422 = vadd.f32 %v4189, %v4421
      %v4423 = vpop.f32.mrb[0].mxu0
      %4424 = vmatprep.mubr.bf16.mxu0 0
      %4425 = vmatmul.mubr.bf16.gmra.mrb[0].mxu0 %v4290
      %v4426 = vpop.f32.mrb[0].mxu0
      %v4427 = vadd.f32 %v4194, %v4426
      %v4428 = vpop.f32.mrb[0].mxu0
      %v4429 = vpop.f32.mrb[0].mxu0
      %v4430 = vadd.f32 %v4197, %v4429
      %v4431 = vpop.f32.mrb[0].mxu0
      %4432 = vmatprep.mubr.bf16.mxu0 0
      %4433 = vmatmul.mubr.bf16.gmra.mrb[0].mxu0 %v4293
      %v4434 = vpop.f32.mrb[0].mxu0
      %v4435 = vadd.f32 %v4202, %v4434
      %v4436 = vpop.f32.mrb[0].mxu0
      %v4437 = vpop.f32.mrb[0].mxu0
      %v4438 = vadd.f32 %v4205, %v4437
      %v4439 = vpop.f32.mrb[0].mxu0
      %4440 = vmatprep.mubr.bf16.mxu0 0
      %4441 = vmatmul.mubr.bf16.gmra.mrb[0].mxu0 %v4296
      %v4442 = vpop.f32.mrb[0].mxu0
      %v4443 = vadd.f32 %v4210, %v4442
      %v4444 = vpop.f32.mrb[0].mxu0
      %v4445 = vpop.f32.mrb[0].mxu0
      %v4446 = vadd.f32 %v4213, %v4445
      %v4447 = vpop.f32.mrb[0].mxu0
      %4448 = vmatprep.mubr.bf16.mxu0 0
      %4449 = vmatmul.mubr.bf16.gmra.mrb[0].mxu0 %v4299
      %v4450 = vpop.f32.mrb[0].mxu0
      %v4451 = vadd.f32 %v4218, %v4450
      %v4452 = vpop.f32.mrb[0].mxu0
      %v4453 = vpop.f32.mrb[0].mxu0
      %v4454 = vadd.f32 %v4221, %v4453
      %v4455 = vpop.f32.mrb[0].mxu0
      %4456 = vmatprep.mubr.bf16.mxu0 0
      %4457 = vmatmul.mubr.bf16.gmra.mrb[0].mxu0 %v4302
      %v4458 = vpop.f32.mrb[0].mxu0
      %v4459 = vadd.f32 %v4226, %v4458
      %v4460 = vpop.f32.mrb[0].mxu0
      %v4461 = vpop.f32.mrb[0].mxu0
      %v4462 = vadd.f32 %v4229, %v4461
      %v4463 = vpop.f32.mrb[0].mxu0
      %4464 = vdwg.mxu0
      %v4465 = vld [vmem:[#allocation2 + $0x20] sm:$0xff]
      %v4466 = vld [vmem:[#allocation2 + $0x28] sm:$0xff]
      %v4467 = vld [vmem:[#allocation2 + $0x30] sm:$0xff]
      %v4468 = vld [vmem:[#allocation2 + $0x38] sm:$0xff]
      %v4469 = vld [vmem:[#allocation2 + $0x40] sm:$0xff]
      %v4470 = vld [vmem:[#allocation2 + $0x48] sm:$0xff]
      %v4471 = vld [vmem:[#allocation2 + $0x50] sm:$0xff]
      %v4472 = vld [vmem:[#allocation2 + $0x58] sm:$0xff]
      %v4473 = vld [vmem:[#allocation2 + $0x60] sm:$0xff]
      %v4474 = vld [vmem:[#allocation2 + $0x68] sm:$0xff]
      %v4475 = vld [vmem:[#allocation2 + $0x70] sm:$0xff]
      %v4476 = vld [vmem:[#allocation2 + $0x78] sm:$0xff]
      %v4477 = vld [vmem:[#allocation2 + $0x80] sm:$0xff]
      %v4478 = vld [vmem:[#allocation2 + $0x88] sm:$0xff]
      %v4479 = vld [vmem:[#allocation2 + $0x90] sm:$0xff]
      %v4480 = vld [vmem:[#allocation2 + $0x98] sm:$0xff]
      %v4481 = vld [vmem:[#allocation2 + $0xa0] sm:$0xff]
      %v4482 = vld [vmem:[#allocation2 + $0xa8] sm:$0xff]
      %v4483 = vld [vmem:[#allocation2 + $0xb0] sm:$0xff]
      %v4484 = vld [vmem:[#allocation2 + $0xb8] sm:$0xff]
      %v4485 = vld [vmem:[#allocation2 + $0xc0] sm:$0xff]
      %v4486 = vld [vmem:[#allocation2 + $0xc8] sm:$0xff]
      %v4487 = vld [vmem:[#allocation2 + $0xd0] sm:$0xff]
      %v4488 = vld [vmem:[#allocation2 + $0xd8] sm:$0xff]
      %v4489 = vld [vmem:[#allocation2 + $0xe0] sm:$0xff]
      %v4490 = vld [vmem:[#allocation2 + $0xe8] sm:$0xff]
      %v4491 = vld [vmem:[#allocation2 + $0xf0] sm:$0xff]
      %v4492 = vld [vmem:[#allocation2 + $0xf8] sm:$0xff]
      %v4493 = vld [vmem:[#allocation2 + $0x100] sm:$0xff]
      %v4494 = vld [vmem:[#allocation2 + $0x108] sm:$0xff]
      %v4495 = vld [vmem:[#allocation2 + $0x110] sm:$0xff]
      %v4496 = vld [vmem:[#allocation2 + $0x118] sm:$0xff]
      %v4497 = vpack.c.bf16 %v4466, %v4465
      %v4498 = vpack.c.bf16 %v4468, %v4467
      %v4499 = vpack.c.bf16 %v4470, %v4469
      %v4500 = vpack.c.bf16 %v4472, %v4471
      %v4501 = vpack.c.bf16 %v4474, %v4473
      %v4502 = vpack.c.bf16 %v4476, %v4475
      %v4503 = vpack.c.bf16 %v4478, %v4477
      %v4504 = vpack.c.bf16 %v4480, %v4479
      %v4505 = vpack.c.bf16 %v4482, %v4481
      %v4506 = vpack.c.bf16 %v4484, %v4483
      %v4507 = vpack.c.bf16 %v4486, %v4485
      %v4508 = vpack.c.bf16 %v4488, %v4487
      %v4509 = vpack.c.bf16 %v4490, %v4489
      %v4510 = vpack.c.bf16 %v4492, %v4491
      %v4511 = vpack.c.bf16 %v4494, %v4493
      %v4512 = vpack.c.bf16 %v4496, %v4495
      %v4513 = vsel %vm955, %v4497, 0
      %v4514 = vsel %vm956, %v4498, 0
      %v4515 = vsel %vm957, %v4499, 0
      %v4516 = vsel %vm958, %v4500, 0
      %v4517 = vsel %vm959, %v4501, 0
      %v4518 = vsel %vm960, %v4502, 0
      %v4519 = vsel %vm961, %v4503, 0
      %v4520 = vsel %vm962, %v4504, 0
      %v4521 = vsel %vm963, %v4505, 0
      %v4522 = vsel %vm964, %v4506, 0
      %v4523 = vsel %vm965, %v4507, 0
      %v4524 = vsel %vm966, %v4508, 0
      %v4525 = vsel %vm967, %v4509, 0
      %v4526 = vsel %vm968, %v4510, 0
      %v4527 = vsel %vm969, %v4511, 0
      %v4528 = vsel %vm970, %v4512, 0
      %v4529 = vld [vmem:[%s267 + $0xc0] sm:$0xf]
      %v4530 = vld [vmem:[%s267 + $0xc4] sm:$0xf]
      %v4531 = vld [vmem:[%s267 + $0xc8] sm:$0xf]
      %v4532 = vld [vmem:[%s267 + $0xcc] sm:$0xf]
      %v4533 = vld [vmem:[%s267 + $0xd0] sm:$0xf]
      %v4534 = vld [vmem:[%s267 + $0xd4] sm:$0xf]
      %v4535 = vld [vmem:[%s267 + $0xd8] sm:$0xf]
      %v4536 = vld [vmem:[%s267 + $0xdc] sm:$0xf]
      %v4545 = vunpack.c.l.b16 %v4529
      %v4546 = vunpack.c.l.b16 %v4530
      %v4547 = vunpack.c.l.b16 %v4531
      %v4548 = vunpack.c.l.b16 %v4532
      %v4549 = vunpack.c.l.b16 %v4533
      %v4550 = vunpack.c.l.b16 %v4534
      %v4551 = vunpack.c.l.b16 %v4535
      %v4552 = vunpack.c.l.b16 %v4536
      %v4553 = vpack.c.b16 %v4546, %v4545
      %v4554 = vpack.c.b16 %v4548, %v4547
      %v4555 = vpack.c.b16 %v4550, %v4549
      %v4556 = vpack.c.b16 %v4552, %v4551
      %v4562 = vsel %vm3860, %v4513, 0
      %v4565 = vsel %vm3860, %v4514, 0
      %v4568 = vsel %vm3860, %v4515, 0
      %v4571 = vsel %vm3860, %v4516, 0
      %v4574 = vsel %vm3860, %v4517, 0
      %v4577 = vsel %vm3860, %v4518, 0
      %v4580 = vsel %vm3860, %v4519, 0
      %v4583 = vsel %vm3860, %v4520, 0
      %v4586 = vsel %vm3860, %v4521, 0
      %v4589 = vsel %vm3860, %v4522, 0
      %v4592 = vsel %vm3860, %v4523, 0
      %v4595 = vsel %vm3860, %v4524, 0
      %v4598 = vsel %vm3860, %v4525, 0
      %v4601 = vsel %vm3860, %v4526, 0
      %v4604 = vsel %vm3860, %v4527, 0
      %v4607 = vsel %vm3860, %v4528, 0
      %4609 = vmatprep.subr.bf16.mxu0 0
      %4610 = vmatpush1.bf16.msra.mxu0 %v4553
      %4611 = vmatprep.subr.bf16.mxu0 0
      %4612 = vmatpush1.bf16.msra.mxu0 %v4554
      %4613 = vmatprep.subr.bf16.mxu0 0
      %4614 = vmatpush1.bf16.msra.mxu0 %v4555
      %4615 = vmatprep.subr.bf16.mxu0 0
      %4616 = vmatpush1.bf16.msra.mxu0 %v4556
      %4617 = vmatprep.subr.bf16.mxu0 0
      %4618 = vmatpush1.bf16.msra.mxu0 0
      %4619 = vmatprep.subr.bf16.mxu0 0
      %4620 = vmatpush1.bf16.msra.mxu0 0
      %4621 = vmatprep.subr.bf16.mxu0 0
      %4622 = vmatpush1.bf16.msra.mxu0 0
      %4623 = vmatprep.subr.bf16.mxu0 0
      %4624 = vmatpush1.bf16.msra.mxu0 0
      %4625 = vmatprep.subr.bf16.mxu0 0
      %4626 = vmatpush1.bf16.msra.mxu0 0
      %4627 = vmatprep.subr.bf16.mxu0 0
      %4628 = vmatpush1.bf16.msra.mxu0 0
      %4629 = vmatprep.subr.bf16.mxu0 0
      %4630 = vmatpush1.bf16.msra.mxu0 0
      %4631 = vmatprep.subr.bf16.mxu0 0
      %4632 = vmatpush1.bf16.msra.mxu0 0
      %4633 = vmatprep.subr.bf16.mxu0 0
      %4634 = vmatpush1.bf16.msra.mxu0 0
      %4635 = vmatprep.subr.bf16.mxu0 0
      %4636 = vmatpush1.bf16.msra.mxu0 0
      %4637 = vmatprep.subr.bf16.mxu0 0
      %4638 = vmatpush1.bf16.msra.mxu0 0
      %4639 = vmatprep.subr.bf16.mxu0 0
      %4640 = vmatpush1.bf16.msra.mxu0 0
      %4641 = vmatprep.mubr.bf16.mxu0 0
      %4642 = vmatmul.mubr.bf16.gmra.mrb[0].mxu0 %v4562
      %v4643 = vpop.f32.mrb[0].mxu0
      %v4644 = vadd.f32 0.0, %v4643
      %v4645 = vpop.f32.mrb[0].mxu0
      %v4646 = vpop.f32.mrb[0].mxu0
      %v4647 = vadd.f32 0.0, %v4646
      %v4648 = vpop.f32.mrb[0].mxu0
      %4649 = vmatprep.mubr.bf16.mxu0 0
      %4650 = vmatmul.mubr.bf16.gmra.mrb[0].mxu0 %v4565
      %v4651 = vpop.f32.mrb[0].mxu0
      %v4652 = vadd.f32 0.0, %v4651
      %v4653 = vpop.f32.mrb[0].mxu0
      %v4654 = vpop.f32.mrb[0].mxu0
      %v4655 = vadd.f32 0.0, %v4654
      %v4656 = vpop.f32.mrb[0].mxu0
      %4657 = vmatprep.mubr.bf16.mxu0 0
      %4658 = vmatmul.mubr.bf16.gmra.mrb[0].mxu0 %v4568
      %v4659 = vpop.f32.mrb[0].mxu0
      %v4660 = vadd.f32 0.0, %v4659
      %v4661 = vpop.f32.mrb[0].mxu0
      %v4662 = vpop.f32.mrb[0].mxu0
      %v4663 = vadd.f32 0.0, %v4662
      %v4664 = vpop.f32.mrb[0].mxu0
      %4665 = vmatprep.mubr.bf16.mxu0 0
      %4666 = vmatmul.mubr.bf16.gmra.mrb[0].mxu0 %v4571
      %v4667 = vpop.f32.mrb[0].mxu0
      %v4668 = vadd.f32 0.0, %v4667
      %v4669 = vpop.f32.mrb[0].mxu0
      %v4670 = vpop.f32.mrb[0].mxu0
      %v4671 = vadd.f32 0.0, %v4670
      %v4672 = vpop.f32.mrb[0].mxu0
      %4673 = vmatprep.mubr.bf16.mxu0 0
      %4674 = vmatmul.mubr.bf16.gmra.mrb[0].mxu0 %v4574
      %v4675 = vpop.f32.mrb[0].mxu0
      %v4676 = vadd.f32 0.0, %v4675
      %v4677 = vpop.f32.mrb[0].mxu0
      %v4678 = vpop.f32.mrb[0].mxu0
      %v4679 = vadd.f32 0.0, %v4678
      %v4680 = vpop.f32.mrb[0].mxu0
      %4681 = vmatprep.mubr.bf16.mxu0 0
      %4682 = vmatmul.mubr.bf16.gmra.mrb[0].mxu0 %v4577
      %v4683 = vpop.f32.mrb[0].mxu0
      %v4684 = vadd.f32 0.0, %v4683
      %v4685 = vpop.f32.mrb[0].mxu0
      %v4686 = vpop.f32.mrb[0].mxu0
      %v4687 = vadd.f32 0.0, %v4686
      %v4688 = vpop.f32.mrb[0].mxu0
      %4689 = vmatprep.mubr.bf16.mxu0 0
      %4690 = vmatmul.mubr.bf16.gmra.mrb[0].mxu0 %v4580
      %v4691 = vpop.f32.mrb[0].mxu0
      %v4692 = vadd.f32 0.0, %v4691
      %v4693 = vpop.f32.mrb[0].mxu0
      %v4694 = vpop.f32.mrb[0].mxu0
      %v4695 = vadd.f32 0.0, %v4694
      %v4696 = vpop.f32.mrb[0].mxu0
      %4697 = vmatprep.mubr.bf16.mxu0 0
      %4698 = vmatmul.mubr.bf16.gmra.mrb[0].mxu0 %v4583
      %v4699 = vpop.f32.mrb[0].mxu0
      %v4700 = vadd.f32 0.0, %v4699
      %v4701 = vpop.f32.mrb[0].mxu0
      %v4702 = vpop.f32.mrb[0].mxu0
      %v4703 = vadd.f32 0.0, %v4702
      %v4704 = vpop.f32.mrb[0].mxu0
      %4705 = vmatprep.mubr.bf16.mxu0 0
      %4706 = vmatmul.mubr.bf16.gmra.mrb[0].mxu0 %v4586
      %v4707 = vpop.f32.mrb[0].mxu0
      %v4708 = vadd.f32 0.0, %v4707
      %v4709 = vpop.f32.mrb[0].mxu0
      %v4710 = vpop.f32.mrb[0].mxu0
      %v4711 = vadd.f32 0.0, %v4710
      %v4712 = vpop.f32.mrb[0].mxu0
      %4713 = vmatprep.mubr.bf16.mxu0 0
      %4714 = vmatmul.mubr.bf16.gmra.mrb[0].mxu0 %v4589
      %v4715 = vpop.f32.mrb[0].mxu0
      %v4716 = vadd.f32 0.0, %v4715
      %v4717 = vpop.f32.mrb[0].mxu0
      %v4718 = vpop.f32.mrb[0].mxu0
      %v4719 = vadd.f32 0.0, %v4718
      %v4720 = vpop.f32.mrb[0].mxu0
      %4721 = vmatprep.mubr.bf16.mxu0 0
      %4722 = vmatmul.mubr.bf16.gmra.mrb[0].mxu0 %v4592
      %v4723 = vpop.f32.mrb[0].mxu0
      %v4724 = vadd.f32 0.0, %v4723
      %v4725 = vpop.f32.mrb[0].mxu0
      %v4726 = vpop.f32.mrb[0].mxu0
      %v4727 = vadd.f32 0.0, %v4726
      %v4728 = vpop.f32.mrb[0].mxu0
      %4729 = vmatprep.mubr.bf16.mxu0 0
      %4730 = vmatmul.mubr.bf16.gmra.mrb[0].mxu0 %v4595
      %v4731 = vpop.f32.mrb[0].mxu0
      %v4732 = vadd.f32 0.0, %v4731
      %v4733 = vpop.f32.mrb[0].mxu0
      %v4734 = vpop.f32.mrb[0].mxu0
      %v4735 = vadd.f32 0.0, %v4734
      %v4736 = vpop.f32.mrb[0].mxu0
      %4737 = vmatprep.mubr.bf16.mxu0 0
      %4738 = vmatmul.mubr.bf16.gmra.mrb[0].mxu0 %v4598
      %v4739 = vpop.f32.mrb[0].mxu0
      %v4740 = vadd.f32 0.0, %v4739
      %v4741 = vpop.f32.mrb[0].mxu0
      %v4742 = vpop.f32.mrb[0].mxu0
      %v4743 = vadd.f32 0.0, %v4742
      %v4744 = vpop.f32.mrb[0].mxu0
      %4745 = vmatprep.mubr.bf16.mxu0 0
      %4746 = vmatmul.mubr.bf16.gmra.mrb[0].mxu0 %v4601
      %v4747 = vpop.f32.mrb[0].mxu0
      %v4748 = vadd.f32 0.0, %v4747
      %v4749 = vpop.f32.mrb[0].mxu0
      %v4750 = vpop.f32.mrb[0].mxu0
      %v4751 = vadd.f32 0.0, %v4750
      %v4752 = vpop.f32.mrb[0].mxu0
      %4753 = vmatprep.mubr.bf16.mxu0 0
      %4754 = vmatmul.mubr.bf16.gmra.mrb[0].mxu0 %v4604
      %v4755 = vpop.f32.mrb[0].mxu0
      %v4756 = vadd.f32 0.0, %v4755
      %v4757 = vpop.f32.mrb[0].mxu0
      %v4758 = vpop.f32.mrb[0].mxu0
      %v4759 = vadd.f32 0.0, %v4758
      %v4760 = vpop.f32.mrb[0].mxu0
      %4761 = vmatprep.mubr.bf16.mxu0 0
      %4762 = vmatmul.mubr.bf16.gmra.mrb[0].mxu0 %v4607
      %v4763 = vpop.f32.mrb[0].mxu0
      %v4764 = vadd.f32 0.0, %v4763
      %v4765 = vpop.f32.mrb[0].mxu0
      %v4766 = vpop.f32.mrb[0].mxu0
      %v4767 = vadd.f32 0.0, %v4766
      %v4768 = vpop.f32.mrb[0].mxu0
      %4769 = vdwg.mxu0
      %v4770 = vadd.f32 %v4339, %v4644
      %v4771 = vadd.f32 %v4342, %v4647
      %v4772 = vadd.f32 %v4347, %v4652
      %v4773 = vadd.f32 %v4350, %v4655
      %v4774 = vadd.f32 %v4355, %v4660
      %v4775 = vadd.f32 %v4358, %v4663
      %v4776 = vadd.f32 %v4363, %v4668
      %v4777 = vadd.f32 %v4366, %v4671
      %v4778 = vadd.f32 %v4371, %v4676
      %v4779 = vadd.f32 %v4374, %v4679
      %v4780 = vadd.f32 %v4379, %v4684
      %v4781 = vadd.f32 %v4382, %v4687
      %v4782 = vadd.f32 %v4387, %v4692
      %v4783 = vadd.f32 %v4390, %v4695
      %v4784 = vadd.f32 %v4395, %v4700
      %v4785 = vadd.f32 %v4398, %v4703
      %v4786 = vadd.f32 %v4403, %v4708
      %v4787 = vadd.f32 %v4406, %v4711
      %v4788 = vadd.f32 %v4411, %v4716
      %v4789 = vadd.f32 %v4414, %v4719
      %v4790 = vadd.f32 %v4419, %v4724
      %v4791 = vadd.f32 %v4422, %v4727
      %v4792 = vadd.f32 %v4427, %v4732
      %v4793 = vadd.f32 %v4430, %v4735
      %v4794 = vadd.f32 %v4435, %v4740
      %v4795 = vadd.f32 %v4438, %v4743
      %v4796 = vadd.f32 %v4443, %v4748
      %v4797 = vadd.f32 %v4446, %v4751
      %v4798 = vadd.f32 %v4451, %v4756
      %v4799 = vadd.f32 %v4454, %v4759
      %v4800 = vadd.f32 %v4459, %v4764
      %v4801 = vadd.f32 %v4462, %v4767
      %v4802 = vld [vmem:[#allocation2 + $0x1] sm:$0xff]
      %v4803 = vld [vmem:[#allocation2 + $0x9] sm:$0xff]
      %v4804 = vld [vmem:[#allocation2 + $0x11] sm:$0xff]
      %v4805 = vld [vmem:[#allocation2 + $0x19] sm:$0xff]
      %v4806 = vld [vmem:[#allocation2 + $0x21] sm:$0xff]
      %v4807 = vld [vmem:[#allocation2 + $0x29] sm:$0xff]
      %v4808 = vld [vmem:[#allocation2 + $0x31] sm:$0xff]
      %v4809 = vld [vmem:[#allocation2 + $0x39] sm:$0xff]
      %v4810 = vld [vmem:[#allocation2 + $0x41] sm:$0xff]
      %v4811 = vld [vmem:[#allocation2 + $0x49] sm:$0xff]
      %v4812 = vld [vmem:[#allocation2 + $0x51] sm:$0xff]
      %v4813 = vld [vmem:[#allocation2 + $0x59] sm:$0xff]
      %v4814 = vld [vmem:[#allocation2 + $0x61] sm:$0xff]
      %v4815 = vld [vmem:[#allocation2 + $0x69] sm:$0xff]
      %v4816 = vld [vmem:[#allocation2 + $0x71] sm:$0xff]
      %v4817 = vld [vmem:[#allocation2 + $0x79] sm:$0xff]
      %v4818 = vld [vmem:[#allocation2 + $0x81] sm:$0xff]
      %v4819 = vld [vmem:[#allocation2 + $0x89] sm:$0xff]
      %v4820 = vld [vmem:[#allocation2 + $0x91] sm:$0xff]
      %v4821 = vld [vmem:[#allocation2 + $0x99] sm:$0xff]
      %v4822 = vld [vmem:[#allocation2 + $0xa1] sm:$0xff]
      %v4823 = vld [vmem:[#allocation2 + $0xa9] sm:$0xff]
      %v4824 = vld [vmem:[#allocation2 + $0xb1] sm:$0xff]
      %v4825 = vld [vmem:[#allocation2 + $0xb9] sm:$0xff]
      %v4826 = vld [vmem:[#allocation2 + $0xc1] sm:$0xff]
      %v4827 = vld [vmem:[#allocation2 + $0xc9] sm:$0xff]
      %v4828 = vld [vmem:[#allocation2 + $0xd1] sm:$0xff]
      %v4829 = vld [vmem:[#allocation2 + $0xd9] sm:$0xff]
      %v4830 = vld [vmem:[#allocation2 + $0xe1] sm:$0xff]
      %v4831 = vld [vmem:[#allocation2 + $0xe9] sm:$0xff]
      %v4832 = vld [vmem:[#allocation2 + $0xf1] sm:$0xff]
      %v4833 = vld [vmem:[#allocation2 + $0xf9] sm:$0xff]
      %v4834 = vpack.c.bf16 %v4803, %v4802
      %v4835 = vpack.c.bf16 %v4805, %v4804
      %v4836 = vpack.c.bf16 %v4807, %v4806
      %v4837 = vpack.c.bf16 %v4809, %v4808
      %v4838 = vpack.c.bf16 %v4811, %v4810
      %v4839 = vpack.c.bf16 %v4813, %v4812
      %v4840 = vpack.c.bf16 %v4815, %v4814
      %v4841 = vpack.c.bf16 %v4817, %v4816
      %v4842 = vpack.c.bf16 %v4819, %v4818
      %v4843 = vpack.c.bf16 %v4821, %v4820
      %v4844 = vpack.c.bf16 %v4823, %v4822
      %v4845 = vpack.c.bf16 %v4825, %v4824
      %v4846 = vpack.c.bf16 %v4827, %v4826
      %v4847 = vpack.c.bf16 %v4829, %v4828
      %v4848 = vpack.c.bf16 %v4831, %v4830
      %v4849 = vpack.c.bf16 %v4833, %v4832
      %v4850 = vld [vmem:[%s267 + $0x20] sm:$0xf]
      %v4851 = vld [vmem:[%s267 + $0x24] sm:$0xf]
      %v4852 = vld [vmem:[%s267 + $0x28] sm:$0xf]
      %v4853 = vld [vmem:[%s267 + $0x2c] sm:$0xf]
      %v4854 = vld [vmem:[%s267 + $0x30] sm:$0xf]
      %v4855 = vld [vmem:[%s267 + $0x34] sm:$0xf]
      %v4856 = vld [vmem:[%s267 + $0x38] sm:$0xf]
      %v4857 = vld [vmem:[%s267 + $0x3c] sm:$0xf]
      %v4866 = vunpack.c.l.b16 %v4850
      %v4867 = vunpack.c.l.b16 %v4851
      %v4868 = vunpack.c.l.b16 %v4852
      %v4869 = vunpack.c.l.b16 %v4853
      %v4870 = vunpack.c.l.b16 %v4854
      %v4871 = vunpack.c.l.b16 %v4855
      %v4872 = vunpack.c.l.b16 %v4856
      %v4873 = vunpack.c.l.b16 %v4857
      %v4874 = vpack.c.b16 %v4867, %v4866
      %v4875 = vpack.c.b16 %v4869, %v4868
      %v4876 = vpack.c.b16 %v4871, %v4870
      %v4877 = vpack.c.b16 %v4873, %v4872
      %v4883 = vsel %vm3860, %v4834, 0
      %v4886 = vsel %vm3860, %v4835, 0
      %v4889 = vsel %vm3860, %v4836, 0
      %v4892 = vsel %vm3860, %v4837, 0
      %v4895 = vsel %vm3860, %v4838, 0
      %v4898 = vsel %vm3860, %v4839, 0
      %v4901 = vsel %vm3860, %v4840, 0
      %v4904 = vsel %vm3860, %v4841, 0
      %v4907 = vsel %vm3860, %v4842, 0
      %v4910 = vsel %vm3860, %v4843, 0
      %v4913 = vsel %vm3860, %v4844, 0
      %v4916 = vsel %vm3860, %v4845, 0
      %v4919 = vsel %vm3860, %v4846, 0
      %v4922 = vsel %vm3860, %v4847, 0
      %v4925 = vsel %vm3860, %v4848, 0
      %v4928 = vsel %vm3860, %v4849, 0
      %4930 = vmatprep.subr.bf16.mxu0 0
      %4931 = vmatpush1.bf16.msra.mxu0 %v4874
      %4932 = vmatprep.subr.bf16.mxu0 0
      %4933 = vmatpush1.bf16.msra.mxu0 %v4875
      %4934 = vmatprep.subr.bf16.mxu0 0
      %4935 = vmatpush1.bf16.msra.mxu0 %v4876
      %4936 = vmatprep.subr.bf16.mxu0 0
      %4937 = vmatpush1.bf16.msra.mxu0 %v4877
      %4938 = vmatprep.subr.bf16.mxu0 0
      %4939 = vmatpush1.bf16.msra.mxu0 0
      %4940 = vmatprep.subr.bf16.mxu0 0
      %4941 = vmatpush1.bf16.msra.mxu0 0
      %4942 = vmatprep.subr.bf16.mxu0 0
      %4943 = vmatpush1.bf16.msra.mxu0 0
      %4944 = vmatprep.subr.bf16.mxu0 0
      %4945 = vmatpush1.bf16.msra.mxu0 0
      %4946 = vmatprep.subr.bf16.mxu0 0
      %4947 = vmatpush1.bf16.msra.mxu0 0
      %4948 = vmatprep.subr.bf16.mxu0 0
      %4949 = vmatpush1.bf16.msra.mxu0 0
      %4950 = vmatprep.subr.bf16.mxu0 0
      %4951 = vmatpush1.bf16.msra.mxu0 0
      %4952 = vmatprep.subr.bf16.mxu0 0
      %4953 = vmatpush1.bf16.msra.mxu0 0
      %4954 = vmatprep.subr.bf16.mxu0 0
      %4955 = vmatpush1.bf16.msra.mxu0 0
      %4956 = vmatprep.subr.bf16.mxu0 0
      %4957 = vmatpush1.bf16.msra.mxu0 0
      %4958 = vmatprep.subr.bf16.mxu0 0
      %4959 = vmatpush1.bf16.msra.mxu0 0
      %4960 = vmatprep.subr.bf16.mxu0 0
      %4961 = vmatpush1.bf16.msra.mxu0 0
      %4962 = vmatprep.mubr.bf16.mxu0 0
      %4963 = vmatmul.mubr.bf16.gmra.mrb[0].mxu0 %v4883
      %v4964 = vpop.f32.mrb[0].mxu0
      %v4965 = vadd.f32 0.0, %v4964
      %v4966 = vpop.f32.mrb[0].mxu0
      %v4967 = vpop.f32.mrb[0].mxu0
      %v4968 = vadd.f32 0.0, %v4967
      %v4969 = vpop.f32.mrb[0].mxu0
      %4970 = vmatprep.mubr.bf16.mxu0 0
      %4971 = vmatmul.mubr.bf16.gmra.mrb[0].mxu0 %v4886
      %v4972 = vpop.f32.mrb[0].mxu0
      %v4973 = vadd.f32 0.0, %v4972
      %v4974 = vpop.f32.mrb[0].mxu0
      %v4975 = vpop.f32.mrb[0].mxu0
      %v4976 = vadd.f32 0.0, %v4975
      %v4977 = vpop.f32.mrb[0].mxu0
      %4978 = vmatprep.mubr.bf16.mxu0 0
      %4979 = vmatmul.mubr.bf16.gmra.mrb[0].mxu0 %v4889
      %v4980 = vpop.f32.mrb[0].mxu0
      %v4981 = vadd.f32 0.0, %v4980
      %v4982 = vpop.f32.mrb[0].mxu0
      %v4983 = vpop.f32.mrb[0].mxu0
      %v4984 = vadd.f32 0.0, %v4983
      %v4985 = vpop.f32.mrb[0].mxu0
      %4986 = vmatprep.mubr.bf16.mxu0 0
      %4987 = vmatmul.mubr.bf16.gmra.mrb[0].mxu0 %v4892
      %v4988 = vpop.f32.mrb[0].mxu0
      %v4989 = vadd.f32 0.0, %v4988
      %v4990 = vpop.f32.mrb[0].mxu0
      %v4991 = vpop.f32.mrb[0].mxu0
      %v4992 = vadd.f32 0.0, %v4991
      %v4993 = vpop.f32.mrb[0].mxu0
      %4994 = vmatprep.mubr.bf16.mxu0 0
      %4995 = vmatmul.mubr.bf16.gmra.mrb[0].mxu0 %v4895
      %v4996 = vpop.f32.mrb[0].mxu0
      %v4997 = vadd.f32 0.0, %v4996
      %v4998 = vpop.f32.mrb[0].mxu0
      %v4999 = vpop.f32.mrb[0].mxu0
      %v5000 = vadd.f32 0.0, %v4999
      %v5001 = vpop.f32.mrb[0].mxu0
      %5002 = vmatprep.mubr.bf16.mxu0 0
      %5003 = vmatmul.mubr.bf16.gmra.mrb[0].mxu0 %v4898
      %v5004 = vpop.f32.mrb[0].mxu0
      %v5005 = vadd.f32 0.0, %v5004
      %v5006 = vpop.f32.mrb[0].mxu0
      %v5007 = vpop.f32.mrb[0].mxu0
      %v5008 = vadd.f32 0.0, %v5007
      %v5009 = vpop.f32.mrb[0].mxu0
      %5010 = vmatprep.mubr.bf16.mxu0 0
      %5011 = vmatmul.mubr.bf16.gmra.mrb[0].mxu0 %v4901
      %v5012 = vpop.f32.mrb[0].mxu0
      %v5013 = vadd.f32 0.0, %v5012
      %v5014 = vpop.f32.mrb[0].mxu0
      %v5015 = vpop.f32.mrb[0].mxu0
      %v5016 = vadd.f32 0.0, %v5015
      %v5017 = vpop.f32.mrb[0].mxu0
      %5018 = vmatprep.mubr.bf16.mxu0 0
      %5019 = vmatmul.mubr.bf16.gmra.mrb[0].mxu0 %v4904
      %v5020 = vpop.f32.mrb[0].mxu0
      %v5021 = vadd.f32 0.0, %v5020
      %v5022 = vpop.f32.mrb[0].mxu0
      %v5023 = vpop.f32.mrb[0].mxu0
      %v5024 = vadd.f32 0.0, %v5023
      %v5025 = vpop.f32.mrb[0].mxu0
      %5026 = vmatprep.mubr.bf16.mxu0 0
      %5027 = vmatmul.mubr.bf16.gmra.mrb[0].mxu0 %v4907
      %v5028 = vpop.f32.mrb[0].mxu0
      %v5029 = vadd.f32 0.0, %v5028
      %v5030 = vpop.f32.mrb[0].mxu0
      %v5031 = vpop.f32.mrb[0].mxu0
      %v5032 = vadd.f32 0.0, %v5031
      %v5033 = vpop.f32.mrb[0].mxu0
      %5034 = vmatprep.mubr.bf16.mxu0 0
      %5035 = vmatmul.mubr.bf16.gmra.mrb[0].mxu0 %v4910
      %v5036 = vpop.f32.mrb[0].mxu0
      %v5037 = vadd.f32 0.0, %v5036
      %v5038 = vpop.f32.mrb[0].mxu0
      %v5039 = vpop.f32.mrb[0].mxu0
      %v5040 = vadd.f32 0.0, %v5039
      %v5041 = vpop.f32.mrb[0].mxu0
      %5042 = vmatprep.mubr.bf16.mxu0 0
      %5043 = vmatmul.mubr.bf16.gmra.mrb[0].mxu0 %v4913
      %v5044 = vpop.f32.mrb[0].mxu0
      %v5045 = vadd.f32 0.0, %v5044
      %v5046 = vpop.f32.mrb[0].mxu0
      %v5047 = vpop.f32.mrb[0].mxu0
      %v5048 = vadd.f32 0.0, %v5047
      %v5049 = vpop.f32.mrb[0].mxu0
      %5050 = vmatprep.mubr.bf16.mxu0 0
      %5051 = vmatmul.mubr.bf16.gmra.mrb[0].mxu0 %v4916
      %v5052 = vpop.f32.mrb[0].mxu0
      %v5053 = vadd.f32 0.0, %v5052
      %v5054 = vpop.f32.mrb[0].mxu0
      %v5055 = vpop.f32.mrb[0].mxu0
      %v5056 = vadd.f32 0.0, %v5055
      %v5057 = vpop.f32.mrb[0].mxu0
      %5058 = vmatprep.mubr.bf16.mxu0 0
      %5059 = vmatmul.mubr.bf16.gmra.mrb[0].mxu0 %v4919
      %v5060 = vpop.f32.mrb[0].mxu0
      %v5061 = vadd.f32 0.0, %v5060
      %v5062 = vpop.f32.mrb[0].mxu0
      %v5063 = vpop.f32.mrb[0].mxu0
      %v5064 = vadd.f32 0.0, %v5063
      %v5065 = vpop.f32.mrb[0].mxu0
      %5066 = vmatprep.mubr.bf16.mxu0 0
      %5067 = vmatmul.mubr.bf16.gmra.mrb[0].mxu0 %v4922
      %v5068 = vpop.f32.mrb[0].mxu0
      %v5069 = vadd.f32 0.0, %v5068
      %v5070 = vpop.f32.mrb[0].mxu0
      %v5071 = vpop.f32.mrb[0].mxu0
      %v5072 = vadd.f32 0.0, %v5071
      %v5073 = vpop.f32.mrb[0].mxu0
      %5074 = vmatprep.mubr.bf16.mxu0 0
      %5075 = vmatmul.mubr.bf16.gmra.mrb[0].mxu0 %v4925
      %v5076 = vpop.f32.mrb[0].mxu0
      %v5077 = vadd.f32 0.0, %v5076
      %v5078 = vpop.f32.mrb[0].mxu0
      %v5079 = vpop.f32.mrb[0].mxu0
      %v5080 = vadd.f32 0.0, %v5079
      %v5081 = vpop.f32.mrb[0].mxu0
      %5082 = vmatprep.mubr.bf16.mxu0 0
      %5083 = vmatmul.mubr.bf16.gmra.mrb[0].mxu0 %v4928
      %v5084 = vpop.f32.mrb[0].mxu0
      %v5085 = vadd.f32 0.0, %v5084
      %v5086 = vpop.f32.mrb[0].mxu0
      %v5087 = vpop.f32.mrb[0].mxu0
      %v5088 = vadd.f32 0.0, %v5087
      %v5089 = vpop.f32.mrb[0].mxu0
      %5090 = vdwg.mxu0
      %v5091 = vadd.f32 %v4770, %v4965
      %v5092 = vadd.f32 %v4771, %v4968
      %v5093 = vadd.f32 %v4772, %v4973
      %v5094 = vadd.f32 %v4773, %v4976
      %v5095 = vadd.f32 %v4774, %v4981
      %v5096 = vadd.f32 %v4775, %v4984
      %v5097 = vadd.f32 %v4776, %v4989
      %v5098 = vadd.f32 %v4777, %v4992
      %v5099 = vadd.f32 %v4778, %v4997
      %v5100 = vadd.f32 %v4779, %v5000
      %v5101 = vadd.f32 %v4780, %v5005
      %v5102 = vadd.f32 %v4781, %v5008
      %v5103 = vadd.f32 %v4782, %v5013
      %v5104 = vadd.f32 %v4783, %v5016
      %v5105 = vadd.f32 %v4784, %v5021
      %v5106 = vadd.f32 %v4785, %v5024
      %v5107 = vadd.f32 %v4786, %v5029
      %v5108 = vadd.f32 %v4787, %v5032
      %v5109 = vadd.f32 %v4788, %v5037
      %v5110 = vadd.f32 %v4789, %v5040
      %v5111 = vadd.f32 %v4790, %v5045
      %v5112 = vadd.f32 %v4791, %v5048
      %v5113 = vadd.f32 %v4792, %v5053
      %v5114 = vadd.f32 %v4793, %v5056
      %v5115 = vadd.f32 %v4794, %v5061
      %v5116 = vadd.f32 %v4795, %v5064
      %v5117 = vadd.f32 %v4796, %v5069
      %v5118 = vadd.f32 %v4797, %v5072
      %v5119 = vadd.f32 %v4798, %v5077
      %v5120 = vadd.f32 %v4799, %v5080
      %v5121 = vadd.f32 %v4800, %v5085
      %v5122 = vadd.f32 %v4801, %v5088
      %v5123 = vld [vmem:[#allocation2 + $0x11] sm:$0xff]
      %v5124 = vld [vmem:[#allocation2 + $0x19] sm:$0xff]
      %v5125 = vld [vmem:[#allocation2 + $0x21] sm:$0xff]
      %v5126 = vld [vmem:[#allocation2 + $0x29] sm:$0xff]
      %v5127 = vld [vmem:[#allocation2 + $0x31] sm:$0xff]
      %v5128 = vld [vmem:[#allocation2 + $0x39] sm:$0xff]
      %v5129 = vld [vmem:[#allocation2 + $0x41] sm:$0xff]
      %v5130 = vld [vmem:[#allocation2 + $0x49] sm:$0xff]
      %v5131 = vld [vmem:[#allocation2 + $0x51] sm:$0xff]
      %v5132 = vld [vmem:[#allocation2 + $0x59] sm:$0xff]
      %v5133 = vld [vmem:[#allocation2 + $0x61] sm:$0xff]
      %v5134 = vld [vmem:[#allocation2 + $0x69] sm:$0xff]
      %v5135 = vld [vmem:[#allocation2 + $0x71] sm:$0xff]
      %v5136 = vld [vmem:[#allocation2 + $0x79] sm:$0xff]
      %v5137 = vld [vmem:[#allocation2 + $0x81] sm:$0xff]
      %v5138 = vld [vmem:[#allocation2 + $0x89] sm:$0xff]
      %v5139 = vld [vmem:[#allocation2 + $0x91] sm:$0xff]
      %v5140 = vld [vmem:[#allocation2 + $0x99] sm:$0xff]
      %v5141 = vld [vmem:[#allocation2 + $0xa1] sm:$0xff]
      %v5142 = vld [vmem:[#allocation2 + $0xa9] sm:$0xff]
      %v5143 = vld [vmem:[#allocation2 + $0xb1] sm:$0xff]
      %v5144 = vld [vmem:[#allocation2 + $0xb9] sm:$0xff]
      %v5145 = vld [vmem:[#allocation2 + $0xc1] sm:$0xff]
      %v5146 = vld [vmem:[#allocation2 + $0xc9] sm:$0xff]
      %v5147 = vld [vmem:[#allocation2 + $0xd1] sm:$0xff]
      %v5148 = vld [vmem:[#allocation2 + $0xd9] sm:$0xff]
      %v5149 = vld [vmem:[#allocation2 + $0xe1] sm:$0xff]
      %v5150 = vld [vmem:[#allocation2 + $0xe9] sm:$0xff]
      %v5151 = vld [vmem:[#allocation2 + $0xf1] sm:$0xff]
      %v5152 = vld [vmem:[#allocation2 + $0xf9] sm:$0xff]
      %v5153 = vld [vmem:[#allocation2 + $0x101] sm:$0xff]
      %v5154 = vld [vmem:[#allocation2 + $0x109] sm:$0xff]
      %v5155 = vpack.c.bf16 %v5124, %v5123
      %v5156 = vpack.c.bf16 %v5126, %v5125
      %v5157 = vpack.c.bf16 %v5128, %v5127
      %v5158 = vpack.c.bf16 %v5130, %v5129
      %v5159 = vpack.c.bf16 %v5132, %v5131
      %v5160 = vpack.c.bf16 %v5134, %v5133
      %v5161 = vpack.c.bf16 %v5136, %v5135
      %v5162 = vpack.c.bf16 %v5138, %v5137
      %v5163 = vpack.c.bf16 %v5140, %v5139
      %v5164 = vpack.c.bf16 %v5142, %v5141
      %v5165 = vpack.c.bf16 %v5144, %v5143
      %v5166 = vpack.c.bf16 %v5146, %v5145
      %v5167 = vpack.c.bf16 %v5148, %v5147
      %v5168 = vpack.c.bf16 %v5150, %v5149
      %v5169 = vpack.c.bf16 %v5152, %v5151
      %v5170 = vpack.c.bf16 %v5154, %v5153
      %v5171 = vld [vmem:[%s267 + $0x80] sm:$0xf]
      %v5172 = vld [vmem:[%s267 + $0x84] sm:$0xf]
      %v5173 = vld [vmem:[%s267 + $0x88] sm:$0xf]
      %v5174 = vld [vmem:[%s267 + $0x8c] sm:$0xf]
      %v5175 = vld [vmem:[%s267 + $0x90] sm:$0xf]
      %v5176 = vld [vmem:[%s267 + $0x94] sm:$0xf]
      %v5177 = vld [vmem:[%s267 + $0x98] sm:$0xf]
      %v5178 = vld [vmem:[%s267 + $0x9c] sm:$0xf]
      %v5187 = vunpack.c.l.b16 %v5171
      %v5188 = vunpack.c.l.b16 %v5172
      %v5189 = vunpack.c.l.b16 %v5173
      %v5190 = vunpack.c.l.b16 %v5174
      %v5191 = vunpack.c.l.b16 %v5175
      %v5192 = vunpack.c.l.b16 %v5176
      %v5193 = vunpack.c.l.b16 %v5177
      %v5194 = vunpack.c.l.b16 %v5178
      %v5195 = vpack.c.b16 %v5188, %v5187
      %v5196 = vpack.c.b16 %v5190, %v5189
      %v5197 = vpack.c.b16 %v5192, %v5191
      %v5198 = vpack.c.b16 %v5194, %v5193
      %v5204 = vsel %vm3860, %v5155, 0
      %v5207 = vsel %vm3860, %v5156, 0
      %v5210 = vsel %vm3860, %v5157, 0
      %v5213 = vsel %vm3860, %v5158, 0
      %v5216 = vsel %vm3860, %v5159, 0
      %v5219 = vsel %vm3860, %v5160, 0
      %v5222 = vsel %vm3860, %v5161, 0
      %v5225 = vsel %vm3860, %v5162, 0
      %v5228 = vsel %vm3860, %v5163, 0
      %v5231 = vsel %vm3860, %v5164, 0
      %v5234 = vsel %vm3860, %v5165, 0
      %v5237 = vsel %vm3860, %v5166, 0
      %v5240 = vsel %vm3860, %v5167, 0
      %v5243 = vsel %vm3860, %v5168, 0
      %v5246 = vsel %vm3860, %v5169, 0
      %v5249 = vsel %vm3860, %v5170, 0
      %5251 = vmatprep.subr.bf16.mxu0 0
      %5252 = vmatpush1.bf16.msra.mxu0 %v5195
      %5253 = vmatprep.subr.bf16.mxu0 0
      %5254 = vmatpush1.bf16.msra.mxu0 %v5196
      %5255 = vmatprep.subr.bf16.mxu0 0
      %5256 = vmatpush1.bf16.msra.mxu0 %v5197
      %5257 = vmatprep.subr.bf16.mxu0 0
      %5258 = vmatpush1.bf16.msra.mxu0 %v5198
      %5259 = vmatprep.subr.bf16.mxu0 0
      %5260 = vmatpush1.bf16.msra.mxu0 0
      %5261 = vmatprep.subr.bf16.mxu0 0
      %5262 = vmatpush1.bf16.msra.mxu0 0
      %5263 = vmatprep.subr.bf16.mxu0 0
      %5264 = vmatpush1.bf16.msra.mxu0 0
      %5265 = vmatprep.subr.bf16.mxu0 0
      %5266 = vmatpush1.bf16.msra.mxu0 0
      %5267 = vmatprep.subr.bf16.mxu0 0
      %5268 = vmatpush1.bf16.msra.mxu0 0
      %5269 = vmatprep.subr.bf16.mxu0 0
      %5270 = vmatpush1.bf16.msra.mxu0 0
      %5271 = vmatprep.subr.bf16.mxu0 0
      %5272 = vmatpush1.bf16.msra.mxu0 0
      %5273 = vmatprep.subr.bf16.mxu0 0
      %5274 = vmatpush1.bf16.msra.mxu0 0
      %5275 = vmatprep.subr.bf16.mxu0 0
      %5276 = vmatpush1.bf16.msra.mxu0 0
      %5277 = vmatprep.subr.bf16.mxu0 0
      %5278 = vmatpush1.bf16.msra.mxu0 0
      %5279 = vmatprep.subr.bf16.mxu0 0
      %5280 = vmatpush1.bf16.msra.mxu0 0
      %5281 = vmatprep.subr.bf16.mxu0 0
      %5282 = vmatpush1.bf16.msra.mxu0 0
      %5283 = vmatprep.mubr.bf16.mxu0 0
      %5284 = vmatmul.mubr.bf16.gmra.mrb[0].mxu0 %v5204
      %v5285 = vpop.f32.mrb[0].mxu0
      %v5286 = vadd.f32 0.0, %v5285
      %v5287 = vpop.f32.mrb[0].mxu0
      %v5288 = vpop.f32.mrb[0].mxu0
      %v5289 = vadd.f32 0.0, %v5288
      %v5290 = vpop.f32.mrb[0].mxu0
      %5291 = vmatprep.mubr.bf16.mxu0 0
      %5292 = vmatmul.mubr.bf16.gmra.mrb[0].mxu0 %v5207
      %v5293 = vpop.f32.mrb[0].mxu0
      %v5294 = vadd.f32 0.0, %v5293
      %v5295 = vpop.f32.mrb[0].mxu0
      %v5296 = vpop.f32.mrb[0].mxu0
      %v5297 = vadd.f32 0.0, %v5296
      %v5298 = vpop.f32.mrb[0].mxu0
      %5299 = vmatprep.mubr.bf16.mxu0 0
      %5300 = vmatmul.mubr.bf16.gmra.mrb[0].mxu0 %v5210
      %v5301 = vpop.f32.mrb[0].mxu0
      %v5302 = vadd.f32 0.0, %v5301
      %v5303 = vpop.f32.mrb[0].mxu0
      %v5304 = vpop.f32.mrb[0].mxu0
      %v5305 = vadd.f32 0.0, %v5304
      %v5306 = vpop.f32.mrb[0].mxu0
      %5307 = vmatprep.mubr.bf16.mxu0 0
      %5308 = vmatmul.mubr.bf16.gmra.mrb[0].mxu0 %v5213
      %v5309 = vpop.f32.mrb[0].mxu0
      %v5310 = vadd.f32 0.0, %v5309
      %v5311 = vpop.f32.mrb[0].mxu0
      %v5312 = vpop.f32.mrb[0].mxu0
      %v5313 = vadd.f32 0.0, %v5312
      %v5314 = vpop.f32.mrb[0].mxu0
      %5315 = vmatprep.mubr.bf16.mxu0 0
      %5316 = vmatmul.mubr.bf16.gmra.mrb[0].mxu0 %v5216
      %v5317 = vpop.f32.mrb[0].mxu0
      %v5318 = vadd.f32 0.0, %v5317
      %v5319 = vpop.f32.mrb[0].mxu0
      %v5320 = vpop.f32.mrb[0].mxu0
      %v5321 = vadd.f32 0.0, %v5320
      %v5322 = vpop.f32.mrb[0].mxu0
      %5323 = vmatprep.mubr.bf16.mxu0 0
      %5324 = vmatmul.mubr.bf16.gmra.mrb[0].mxu0 %v5219
      %v5325 = vpop.f32.mrb[0].mxu0
      %v5326 = vadd.f32 0.0, %v5325
      %v5327 = vpop.f32.mrb[0].mxu0
      %v5328 = vpop.f32.mrb[0].mxu0
      %v5329 = vadd.f32 0.0, %v5328
      %v5330 = vpop.f32.mrb[0].mxu0
      %5331 = vmatprep.mubr.bf16.mxu0 0
      %5332 = vmatmul.mubr.bf16.gmra.mrb[0].mxu0 %v5222
      %v5333 = vpop.f32.mrb[0].mxu0
      %v5334 = vadd.f32 0.0, %v5333
      %v5335 = vpop.f32.mrb[0].mxu0
      %v5336 = vpop.f32.mrb[0].mxu0
      %v5337 = vadd.f32 0.0, %v5336
      %v5338 = vpop.f32.mrb[0].mxu0
      %5339 = vmatprep.mubr.bf16.mxu0 0
      %5340 = vmatmul.mubr.bf16.gmra.mrb[0].mxu0 %v5225
      %v5341 = vpop.f32.mrb[0].mxu0
      %v5342 = vadd.f32 0.0, %v5341
      %v5343 = vpop.f32.mrb[0].mxu0
      %v5344 = vpop.f32.mrb[0].mxu0
      %v5345 = vadd.f32 0.0, %v5344
      %v5346 = vpop.f32.mrb[0].mxu0
      %5347 = vmatprep.mubr.bf16.mxu0 0
      %5348 = vmatmul.mubr.bf16.gmra.mrb[0].mxu0 %v5228
      %v5349 = vpop.f32.mrb[0].mxu0
      %v5350 = vadd.f32 0.0, %v5349
      %v5351 = vpop.f32.mrb[0].mxu0
      %v5352 = vpop.f32.mrb[0].mxu0
      %v5353 = vadd.f32 0.0, %v5352
      %v5354 = vpop.f32.mrb[0].mxu0
      %5355 = vmatprep.mubr.bf16.mxu0 0
      %5356 = vmatmul.mubr.bf16.gmra.mrb[0].mxu0 %v5231
      %v5357 = vpop.f32.mrb[0].mxu0
      %v5358 = vadd.f32 0.0, %v5357
      %v5359 = vpop.f32.mrb[0].mxu0
      %v5360 = vpop.f32.mrb[0].mxu0
      %v5361 = vadd.f32 0.0, %v5360
      %v5362 = vpop.f32.mrb[0].mxu0
      %5363 = vmatprep.mubr.bf16.mxu0 0
      %5364 = vmatmul.mubr.bf16.gmra.mrb[0].mxu0 %v5234
      %v5365 = vpop.f32.mrb[0].mxu0
      %v5366 = vadd.f32 0.0, %v5365
      %v5367 = vpop.f32.mrb[0].mxu0
      %v5368 = vpop.f32.mrb[0].mxu0
      %v5369 = vadd.f32 0.0, %v5368
      %v5370 = vpop.f32.mrb[0].mxu0
      %5371 = vmatprep.mubr.bf16.mxu0 0
      %5372 = vmatmul.mubr.bf16.gmra.mrb[0].mxu0 %v5237
      %v5373 = vpop.f32.mrb[0].mxu0
      %v5374 = vadd.f32 0.0, %v5373
      %v5375 = vpop.f32.mrb[0].mxu0
      %v5376 = vpop.f32.mrb[0].mxu0
      %v5377 = vadd.f32 0.0, %v5376
      %v5378 = vpop.f32.mrb[0].mxu0
      %5379 = vmatprep.mubr.bf16.mxu0 0
      %5380 = vmatmul.mubr.bf16.gmra.mrb[0].mxu0 %v5240
      %v5381 = vpop.f32.mrb[0].mxu0
      %v5382 = vadd.f32 0.0, %v5381
      %v5383 = vpop.f32.mrb[0].mxu0
      %v5384 = vpop.f32.mrb[0].mxu0
      %v5385 = vadd.f32 0.0, %v5384
      %v5386 = vpop.f32.mrb[0].mxu0
      %5387 = vmatprep.mubr.bf16.mxu0 0
      %5388 = vmatmul.mubr.bf16.gmra.mrb[0].mxu0 %v5243
      %v5389 = vpop.f32.mrb[0].mxu0
      %v5390 = vadd.f32 0.0, %v5389
      %v5391 = vpop.f32.mrb[0].mxu0
      %v5392 = vpop.f32.mrb[0].mxu0
      %v5393 = vadd.f32 0.0, %v5392
      %v5394 = vpop.f32.mrb[0].mxu0
      %5395 = vmatprep.mubr.bf16.mxu0 0
      %5396 = vmatmul.mubr.bf16.gmra.mrb[0].mxu0 %v5246
      %v5397 = vpop.f32.mrb[0].mxu0
      %v5398 = vadd.f32 0.0, %v5397
      %v5399 = vpop.f32.mrb[0].mxu0
      %v5400 = vpop.f32.mrb[0].mxu0
      %v5401 = vadd.f32 0.0, %v5400
      %v5402 = vpop.f32.mrb[0].mxu0
      %5403 = vmatprep.mubr.bf16.mxu0 0
      %5404 = vmatmul.mubr.bf16.gmra.mrb[0].mxu0 %v5249
      %v5405 = vpop.f32.mrb[0].mxu0
      %v5406 = vadd.f32 0.0, %v5405
      %v5407 = vpop.f32.mrb[0].mxu0
      %v5408 = vpop.f32.mrb[0].mxu0
      %v5409 = vadd.f32 0.0, %v5408
      %v5410 = vpop.f32.mrb[0].mxu0
      %5411 = vdwg.mxu0
      %v5412 = vadd.f32 %v5091, %v5286
      %v5413 = vadd.f32 %v5092, %v5289
      %v5414 = vadd.f32 %v5093, %v5294
      %v5415 = vadd.f32 %v5094, %v5297
      %v5416 = vadd.f32 %v5095, %v5302
      %v5417 = vadd.f32 %v5096, %v5305
      %v5418 = vadd.f32 %v5097, %v5310
      %v5419 = vadd.f32 %v5098, %v5313
      %v5420 = vadd.f32 %v5099, %v5318
      %v5421 = vadd.f32 %v5100, %v5321
      %v5422 = vadd.f32 %v5101, %v5326
      %v5423 = vadd.f32 %v5102, %v5329
      %v5424 = vadd.f32 %v5103, %v5334
      %v5425 = vadd.f32 %v5104, %v5337
      %v5426 = vadd.f32 %v5105, %v5342
      %v5427 = vadd.f32 %v5106, %v5345
      %v5428 = vadd.f32 %v5107, %v5350
      %v5429 = vadd.f32 %v5108, %v5353
      %v5430 = vadd.f32 %v5109, %v5358
      %v5431 = vadd.f32 %v5110, %v5361
      %v5432 = vadd.f32 %v5111, %v5366
      %v5433 = vadd.f32 %v5112, %v5369
      %v5434 = vadd.f32 %v5113, %v5374
      %v5435 = vadd.f32 %v5114, %v5377
      %v5436 = vadd.f32 %v5115, %v5382
      %v5437 = vadd.f32 %v5116, %v5385
      %v5438 = vadd.f32 %v5117, %v5390
      %v5439 = vadd.f32 %v5118, %v5393
      %v5440 = vadd.f32 %v5119, %v5398
      %v5441 = vadd.f32 %v5120, %v5401
      %v5442 = vadd.f32 %v5121, %v5406
      %v5443 = vadd.f32 %v5122, %v5409
      %v5444 = vld [vmem:[#allocation2 + $0x21] sm:$0xff]
      %v5445 = vld [vmem:[#allocation2 + $0x29] sm:$0xff]
      %v5446 = vld [vmem:[#allocation2 + $0x31] sm:$0xff]
      %v5447 = vld [vmem:[#allocation2 + $0x39] sm:$0xff]
      %v5448 = vld [vmem:[#allocation2 + $0x41] sm:$0xff]
      %v5449 = vld [vmem:[#allocation2 + $0x49] sm:$0xff]
      %v5450 = vld [vmem:[#allocation2 + $0x51] sm:$0xff]
      %v5451 = vld [vmem:[#allocation2 + $0x59] sm:$0xff]
      %v5452 = vld [vmem:[#allocation2 + $0x61] sm:$0xff]
      %v5453 = vld [vmem:[#allocation2 + $0x69] sm:$0xff]
      %v5454 = vld [vmem:[#allocation2 + $0x71] sm:$0xff]
      %v5455 = vld [vmem:[#allocation2 + $0x79] sm:$0xff]
      %v5456 = vld [vmem:[#allocation2 + $0x81] sm:$0xff]
      %v5457 = vld [vmem:[#allocation2 + $0x89] sm:$0xff]
      %v5458 = vld [vmem:[#allocation2 + $0x91] sm:$0xff]
      %v5459 = vld [vmem:[#allocation2 + $0x99] sm:$0xff]
      %v5460 = vld [vmem:[#allocation2 + $0xa1] sm:$0xff]
      %v5461 = vld [vmem:[#allocation2 + $0xa9] sm:$0xff]
      %v5462 = vld [vmem:[#allocation2 + $0xb1] sm:$0xff]
      %v5463 = vld [vmem:[#allocation2 + $0xb9] sm:$0xff]
      %v5464 = vld [vmem:[#allocation2 + $0xc1] sm:$0xff]
      %v5465 = vld [vmem:[#allocation2 + $0xc9] sm:$0xff]
      %v5466 = vld [vmem:[#allocation2 + $0xd1] sm:$0xff]
      %v5467 = vld [vmem:[#allocation2 + $0xd9] sm:$0xff]
      %v5468 = vld [vmem:[#allocation2 + $0xe1] sm:$0xff]
      %v5469 = vld [vmem:[#allocation2 + $0xe9] sm:$0xff]
      %v5470 = vld [vmem:[#allocation2 + $0xf1] sm:$0xff]
      %v5471 = vld [vmem:[#allocation2 + $0xf9] sm:$0xff]
      %v5472 = vld [vmem:[#allocation2 + $0x101] sm:$0xff]
      %v5473 = vld [vmem:[#allocation2 + $0x109] sm:$0xff]
      %v5474 = vld [vmem:[#allocation2 + $0x111] sm:$0xff]
      %v5475 = vld [vmem:[#allocation2 + $0x119] sm:$0xff]
      %v5476 = vpack.c.bf16 %v5445, %v5444
      %v5477 = vpack.c.bf16 %v5447, %v5446
      %v5478 = vpack.c.bf16 %v5449, %v5448
      %v5479 = vpack.c.bf16 %v5451, %v5450
      %v5480 = vpack.c.bf16 %v5453, %v5452
      %v5481 = vpack.c.bf16 %v5455, %v5454
      %v5482 = vpack.c.bf16 %v5457, %v5456
      %v5483 = vpack.c.bf16 %v5459, %v5458
      %v5484 = vpack.c.bf16 %v5461, %v5460
      %v5485 = vpack.c.bf16 %v5463, %v5462
      %v5486 = vpack.c.bf16 %v5465, %v5464
      %v5487 = vpack.c.bf16 %v5467, %v5466
      %v5488 = vpack.c.bf16 %v5469, %v5468
      %v5489 = vpack.c.bf16 %v5471, %v5470
      %v5490 = vpack.c.bf16 %v5473, %v5472
      %v5491 = vpack.c.bf16 %v5475, %v5474
      %v5492 = vld [vmem:[%s267 + $0xe0] sm:$0xf]
      %v5493 = vld [vmem:[%s267 + $0xe4] sm:$0xf]
      %v5494 = vld [vmem:[%s267 + $0xe8] sm:$0xf]
      %v5495 = vld [vmem:[%s267 + $0xec] sm:$0xf]
      %v5496 = vld [vmem:[%s267 + $0xf0] sm:$0xf]
      %v5497 = vld [vmem:[%s267 + $0xf4] sm:$0xf]
      %v5498 = vld [vmem:[%s267 + $0xf8] sm:$0xf]
      %v5499 = vld [vmem:[%s267 + $0xfc] sm:$0xf]
      %v5508 = vunpack.c.l.b16 %v5492
      %v5509 = vunpack.c.l.b16 %v5493
      %v5510 = vunpack.c.l.b16 %v5494
      %v5511 = vunpack.c.l.b16 %v5495
      %v5512 = vunpack.c.l.b16 %v5496
      %v5513 = vunpack.c.l.b16 %v5497
      %v5514 = vunpack.c.l.b16 %v5498
      %v5515 = vunpack.c.l.b16 %v5499
      %v5516 = vpack.c.b16 %v5509, %v5508
      %v5517 = vpack.c.b16 %v5511, %v5510
      %v5518 = vpack.c.b16 %v5513, %v5512
      %v5519 = vpack.c.b16 %v5515, %v5514
      %v5525 = vsel %vm3860, %v5476, 0
      %v5528 = vsel %vm3860, %v5477, 0
      %v5531 = vsel %vm3860, %v5478, 0
      %v5534 = vsel %vm3860, %v5479, 0
      %v5537 = vsel %vm3860, %v5480, 0
      %v5540 = vsel %vm3860, %v5481, 0
      %v5543 = vsel %vm3860, %v5482, 0
      %v5546 = vsel %vm3860, %v5483, 0
      %v5549 = vsel %vm3860, %v5484, 0
      %v5552 = vsel %vm3860, %v5485, 0
      %v5555 = vsel %vm3860, %v5486, 0
      %v5558 = vsel %vm3860, %v5487, 0
      %v5561 = vsel %vm3860, %v5488, 0
      %v5564 = vsel %vm3860, %v5489, 0
      %v5567 = vsel %vm3860, %v5490, 0
      %v5570 = vsel %vm3860, %v5491, 0
      %5572 = vmatprep.subr.bf16.mxu0 0
      %5573 = vmatpush1.bf16.msra.mxu0 %v5516
      %5574 = vmatprep.subr.bf16.mxu0 0
      %5575 = vmatpush1.bf16.msra.mxu0 %v5517
      %5576 = vmatprep.subr.bf16.mxu0 0
      %5577 = vmatpush1.bf16.msra.mxu0 %v5518
      %5578 = vmatprep.subr.bf16.mxu0 0
      %5579 = vmatpush1.bf16.msra.mxu0 %v5519
      %5580 = vmatprep.subr.bf16.mxu0 0
      %5581 = vmatpush1.bf16.msra.mxu0 0
      %5582 = vmatprep.subr.bf16.mxu0 0
      %5583 = vmatpush1.bf16.msra.mxu0 0
      %5584 = vmatprep.subr.bf16.mxu0 0
      %5585 = vmatpush1.bf16.msra.mxu0 0
      %5586 = vmatprep.subr.bf16.mxu0 0
      %5587 = vmatpush1.bf16.msra.mxu0 0
      %5588 = vmatprep.subr.bf16.mxu0 0
      %5589 = vmatpush1.bf16.msra.mxu0 0
      %5590 = vmatprep.subr.bf16.mxu0 0
      %5591 = vmatpush1.bf16.msra.mxu0 0
      %5592 = vmatprep.subr.bf16.mxu0 0
      %5593 = vmatpush1.bf16.msra.mxu0 0
      %5594 = vmatprep.subr.bf16.mxu0 0
      %5595 = vmatpush1.bf16.msra.mxu0 0
      %5596 = vmatprep.subr.bf16.mxu0 0
      %5597 = vmatpush1.bf16.msra.mxu0 0
      %5598 = vmatprep.subr.bf16.mxu0 0
      %5599 = vmatpush1.bf16.msra.mxu0 0
      %5600 = vmatprep.subr.bf16.mxu0 0
      %5601 = vmatpush1.bf16.msra.mxu0 0
      %5602 = vmatprep.subr.bf16.mxu0 0
      %5603 = vmatpush1.bf16.msra.mxu0 0
      %5604 = vmatprep.mubr.bf16.mxu0 0
      %5605 = vmatmul.mubr.bf16.gmra.mrb[0].mxu0 %v5525
      %v5606 = vpop.f32.mrb[0].mxu0
      %v5607 = vadd.f32 0.0, %v5606
      %v5608 = vpop.f32.mrb[0].mxu0
      %v5609 = vpop.f32.mrb[0].mxu0
      %v5610 = vadd.f32 0.0, %v5609
      %v5611 = vpop.f32.mrb[0].mxu0
      %5612 = vmatprep.mubr.bf16.mxu0 0
      %5613 = vmatmul.mubr.bf16.gmra.mrb[0].mxu0 %v5528
      %v5614 = vpop.f32.mrb[0].mxu0
      %v5615 = vadd.f32 0.0, %v5614
      %v5616 = vpop.f32.mrb[0].mxu0
      %v5617 = vpop.f32.mrb[0].mxu0
      %v5618 = vadd.f32 0.0, %v5617
      %v5619 = vpop.f32.mrb[0].mxu0
      %5620 = vmatprep.mubr.bf16.mxu0 0
      %5621 = vmatmul.mubr.bf16.gmra.mrb[0].mxu0 %v5531
      %v5622 = vpop.f32.mrb[0].mxu0
      %v5623 = vadd.f32 0.0, %v5622
      %v5624 = vpop.f32.mrb[0].mxu0
      %v5625 = vpop.f32.mrb[0].mxu0
      %v5626 = vadd.f32 0.0, %v5625
      %v5627 = vpop.f32.mrb[0].mxu0
      %5628 = vmatprep.mubr.bf16.mxu0 0
      %5629 = vmatmul.mubr.bf16.gmra.mrb[0].mxu0 %v5534
      %v5630 = vpop.f32.mrb[0].mxu0
      %v5631 = vadd.f32 0.0, %v5630
      %v5632 = vpop.f32.mrb[0].mxu0
      %v5633 = vpop.f32.mrb[0].mxu0
      %v5634 = vadd.f32 0.0, %v5633
      %v5635 = vpop.f32.mrb[0].mxu0
      %5636 = vmatprep.mubr.bf16.mxu0 0
      %5637 = vmatmul.mubr.bf16.gmra.mrb[0].mxu0 %v5537
      %v5638 = vpop.f32.mrb[0].mxu0
      %v5639 = vadd.f32 0.0, %v5638
      %v5640 = vpop.f32.mrb[0].mxu0
      %v5641 = vpop.f32.mrb[0].mxu0
      %v5642 = vadd.f32 0.0, %v5641
      %v5643 = vpop.f32.mrb[0].mxu0
      %5644 = vmatprep.mubr.bf16.mxu0 0
      %5645 = vmatmul.mubr.bf16.gmra.mrb[0].mxu0 %v5540
      %v5646 = vpop.f32.mrb[0].mxu0
      %v5647 = vadd.f32 0.0, %v5646
      %v5648 = vpop.f32.mrb[0].mxu0
      %v5649 = vpop.f32.mrb[0].mxu0
      %v5650 = vadd.f32 0.0, %v5649
      %v5651 = vpop.f32.mrb[0].mxu0
      %5652 = vmatprep.mubr.bf16.mxu0 0
      %5653 = vmatmul.mubr.bf16.gmra.mrb[0].mxu0 %v5543
      %v5654 = vpop.f32.mrb[0].mxu0
      %v5655 = vadd.f32 0.0, %v5654
      %v5656 = vpop.f32.mrb[0].mxu0
      %v5657 = vpop.f32.mrb[0].mxu0
      %v5658 = vadd.f32 0.0, %v5657
      %v5659 = vpop.f32.mrb[0].mxu0
      %5660 = vmatprep.mubr.bf16.mxu0 0
      %5661 = vmatmul.mubr.bf16.gmra.mrb[0].mxu0 %v5546
      %v5662 = vpop.f32.mrb[0].mxu0
      %v5663 = vadd.f32 0.0, %v5662
      %v5664 = vpop.f32.mrb[0].mxu0
      %v5665 = vpop.f32.mrb[0].mxu0
      %v5666 = vadd.f32 0.0, %v5665
      %v5667 = vpop.f32.mrb[0].mxu0
      %5668 = vmatprep.mubr.bf16.mxu0 0
      %5669 = vmatmul.mubr.bf16.gmra.mrb[0].mxu0 %v5549
      %v5670 = vpop.f32.mrb[0].mxu0
      %v5671 = vadd.f32 0.0, %v5670
      %v5672 = vpop.f32.mrb[0].mxu0
      %v5673 = vpop.f32.mrb[0].mxu0
      %v5674 = vadd.f32 0.0, %v5673
      %v5675 = vpop.f32.mrb[0].mxu0
      %5676 = vmatprep.mubr.bf16.mxu0 0
      %5677 = vmatmul.mubr.bf16.gmra.mrb[0].mxu0 %v5552
      %v5678 = vpop.f32.mrb[0].mxu0
      %v5679 = vadd.f32 0.0, %v5678
      %v5680 = vpop.f32.mrb[0].mxu0
      %v5681 = vpop.f32.mrb[0].mxu0
      %v5682 = vadd.f32 0.0, %v5681
      %v5683 = vpop.f32.mrb[0].mxu0
      %5684 = vmatprep.mubr.bf16.mxu0 0
      %5685 = vmatmul.mubr.bf16.gmra.mrb[0].mxu0 %v5555
      %v5686 = vpop.f32.mrb[0].mxu0
      %v5687 = vadd.f32 0.0, %v5686
      %v5688 = vpop.f32.mrb[0].mxu0
      %v5689 = vpop.f32.mrb[0].mxu0
      %v5690 = vadd.f32 0.0, %v5689
      %v5691 = vpop.f32.mrb[0].mxu0
      %5692 = vmatprep.mubr.bf16.mxu0 0
      %5693 = vmatmul.mubr.bf16.gmra.mrb[0].mxu0 %v5558
      %v5694 = vpop.f32.mrb[0].mxu0
      %v5695 = vadd.f32 0.0, %v5694
      %v5696 = vpop.f32.mrb[0].mxu0
      %v5697 = vpop.f32.mrb[0].mxu0
      %v5698 = vadd.f32 0.0, %v5697
      %v5699 = vpop.f32.mrb[0].mxu0
      %5700 = vmatprep.mubr.bf16.mxu0 0
      %5701 = vmatmul.mubr.bf16.gmra.mrb[0].mxu0 %v5561
      %v5702 = vpop.f32.mrb[0].mxu0
      %v5703 = vadd.f32 0.0, %v5702
      %v5704 = vpop.f32.mrb[0].mxu0
      %v5705 = vpop.f32.mrb[0].mxu0
      %v5706 = vadd.f32 0.0, %v5705
      %v5707 = vpop.f32.mrb[0].mxu0
      %5708 = vmatprep.mubr.bf16.mxu0 0
      %5709 = vmatmul.mubr.bf16.gmra.mrb[0].mxu0 %v5564
      %v5710 = vpop.f32.mrb[0].mxu0
      %v5711 = vadd.f32 0.0, %v5710
      %v5712 = vpop.f32.mrb[0].mxu0
      %v5713 = vpop.f32.mrb[0].mxu0
      %v5714 = vadd.f32 0.0, %v5713
      %v5715 = vpop.f32.mrb[0].mxu0
      %5716 = vmatprep.mubr.bf16.mxu0 0
      %5717 = vmatmul.mubr.bf16.gmra.mrb[0].mxu0 %v5567
      %v5718 = vpop.f32.mrb[0].mxu0
      %v5719 = vadd.f32 0.0, %v5718
      %v5720 = vpop.f32.mrb[0].mxu0
      %v5721 = vpop.f32.mrb[0].mxu0
      %v5722 = vadd.f32 0.0, %v5721
      %v5723 = vpop.f32.mrb[0].mxu0
      %5724 = vmatprep.mubr.bf16.mxu0 0
      %5725 = vmatmul.mubr.bf16.gmra.mrb[0].mxu0 %v5570
      %v5726 = vpop.f32.mrb[0].mxu0
      %v5727 = vadd.f32 0.0, %v5726
      %v5728 = vpop.f32.mrb[0].mxu0
      %v5729 = vpop.f32.mrb[0].mxu0
      %v5730 = vadd.f32 0.0, %v5729
      %v5731 = vpop.f32.mrb[0].mxu0
      %5732 = vdwg.mxu0
      %v5733 = vadd.f32 %v5412, %v5607
      %v5734 = vadd.f32 %v5413, %v5610
      %v5735 = vadd.f32 %v5414, %v5615
      %v5736 = vadd.f32 %v5415, %v5618
      %v5737 = vadd.f32 %v5416, %v5623
      %v5738 = vadd.f32 %v5417, %v5626
      %v5739 = vadd.f32 %v5418, %v5631
      %v5740 = vadd.f32 %v5419, %v5634
      %v5741 = vadd.f32 %v5420, %v5639
      %v5742 = vadd.f32 %v5421, %v5642
      %v5743 = vadd.f32 %v5422, %v5647
      %v5744 = vadd.f32 %v5423, %v5650
      %v5745 = vadd.f32 %v5424, %v5655
      %v5746 = vadd.f32 %v5425, %v5658
      %v5747 = vadd.f32 %v5426, %v5663
      %v5748 = vadd.f32 %v5427, %v5666
      %v5749 = vadd.f32 %v5428, %v5671
      %v5750 = vadd.f32 %v5429, %v5674
      %v5751 = vadd.f32 %v5430, %v5679
      %v5752 = vadd.f32 %v5431, %v5682
      %v5753 = vadd.f32 %v5432, %v5687
      %v5754 = vadd.f32 %v5433, %v5690
      %v5755 = vadd.f32 %v5434, %v5695
      %v5756 = vadd.f32 %v5435, %v5698
      %v5757 = vadd.f32 %v5436, %v5703
      %v5758 = vadd.f32 %v5437, %v5706
      %v5759 = vadd.f32 %v5438, %v5711
      %v5760 = vadd.f32 %v5439, %v5714
      %v5761 = vadd.f32 %v5440, %v5719
      %v5762 = vadd.f32 %v5441, %v5722
      %v5763 = vadd.f32 %v5442, %v5727
      %v5764 = vadd.f32 %v5443, %v5730
      %v5765 = vld [vmem:[#allocation2 + $0x2] sm:$0xff]
      %v5766 = vld [vmem:[#allocation2 + $0xa] sm:$0xff]
      %v5767 = vld [vmem:[#allocation2 + $0x12] sm:$0xff]
      %v5768 = vld [vmem:[#allocation2 + $0x1a] sm:$0xff]
      %v5769 = vld [vmem:[#allocation2 + $0x22] sm:$0xff]
      %v5770 = vld [vmem:[#allocation2 + $0x2a] sm:$0xff]
      %v5771 = vld [vmem:[#allocation2 + $0x32] sm:$0xff]
      %v5772 = vld [vmem:[#allocation2 + $0x3a] sm:$0xff]
      %v5773 = vld [vmem:[#allocation2 + $0x42] sm:$0xff]
      %v5774 = vld [vmem:[#allocation2 + $0x4a] sm:$0xff]
      %v5775 = vld [vmem:[#allocation2 + $0x52] sm:$0xff]
      %v5776 = vld [vmem:[#allocation2 + $0x5a] sm:$0xff]
      %v5777 = vld [vmem:[#allocation2 + $0x62] sm:$0xff]
      %v5778 = vld [vmem:[#allocation2 + $0x6a] sm:$0xff]
      %v5779 = vld [vmem:[#allocation2 + $0x72] sm:$0xff]
      %v5780 = vld [vmem:[#allocation2 + $0x7a] sm:$0xff]
      %v5781 = vld [vmem:[#allocation2 + $0x82] sm:$0xff]
      %v5782 = vld [vmem:[#allocation2 + $0x8a] sm:$0xff]
      %v5783 = vld [vmem:[#allocation2 + $0x92] sm:$0xff]
      %v5784 = vld [vmem:[#allocation2 + $0x9a] sm:$0xff]
      %v5785 = vld [vmem:[#allocation2 + $0xa2] sm:$0xff]
      %v5786 = vld [vmem:[#allocation2 + $0xaa] sm:$0xff]
      %v5787 = vld [vmem:[#allocation2 + $0xb2] sm:$0xff]
      %v5788 = vld [vmem:[#allocation2 + $0xba] sm:$0xff]
      %v5789 = vld [vmem:[#allocation2 + $0xc2] sm:$0xff]
      %v5790 = vld [vmem:[#allocation2 + $0xca] sm:$0xff]
      %v5791 = vld [vmem:[#allocation2 + $0xd2] sm:$0xff]
      %v5792 = vld [vmem:[#allocation2 + $0xda] sm:$0xff]
      %v5793 = vld [vmem:[#allocation2 + $0xe2] sm:$0xff]
      %v5794 = vld [vmem:[#allocation2 + $0xea] sm:$0xff]
      %v5795 = vld [vmem:[#allocation2 + $0xf2] sm:$0xff]
      %v5796 = vld [vmem:[#allocation2 + $0xfa] sm:$0xff]
      %v5797 = vpack.c.bf16 %v5766, %v5765
      %v5798 = vpack.c.bf16 %v5768, %v5767
      %v5799 = vpack.c.bf16 %v5770, %v5769
      %v5800 = vpack.c.bf16 %v5772, %v5771
      %v5801 = vpack.c.bf16 %v5774, %v5773
      %v5802 = vpack.c.bf16 %v5776, %v5775
      %v5803 = vpack.c.bf16 %v5778, %v5777
      %v5804 = vpack.c.bf16 %v5780, %v5779
      %v5805 = vpack.c.bf16 %v5782, %v5781
      %v5806 = vpack.c.bf16 %v5784, %v5783
      %v5807 = vpack.c.bf16 %v5786, %v5785
      %v5808 = vpack.c.bf16 %v5788, %v5787
      %v5809 = vpack.c.bf16 %v5790, %v5789
      %v5810 = vpack.c.bf16 %v5792, %v5791
      %v5811 = vpack.c.bf16 %v5794, %v5793
      %v5812 = vpack.c.bf16 %v5796, %v5795
      %v5813 = vsel %vm2890, %v5797, 0
      %v5814 = vsel %vm2891, %v5798, 0
      %v5815 = vsel %vm2892, %v5799, 0
      %v5816 = vsel %vm2893, %v5800, 0
      %v5817 = vsel %vm2894, %v5801, 0
      %v5818 = vsel %vm2895, %v5802, 0
      %v5819 = vsel %vm2896, %v5803, 0
      %v5820 = vsel %vm2897, %v5804, 0
      %v5821 = vsel %vm2898, %v5805, 0
      %v5822 = vsel %vm2899, %v5806, 0
      %v5823 = vsel %vm2900, %v5807, 0
      %v5824 = vsel %vm2901, %v5808, 0
      %v5825 = vsel %vm2902, %v5809, 0
      %v5826 = vsel %vm2903, %v5810, 0
      %v5827 = vsel %vm2904, %v5811, 0
      %v5828 = vsel %vm2905, %v5812, 0
      %v5829 = vld [vmem:[%s267 + $0x40] sm:$0xf]
      %v5830 = vld [vmem:[%s267 + $0x44] sm:$0xf]
      %v5831 = vld [vmem:[%s267 + $0x48] sm:$0xf]
      %v5832 = vld [vmem:[%s267 + $0x4c] sm:$0xf]
      %v5833 = vld [vmem:[%s267 + $0x50] sm:$0xf]
      %v5834 = vld [vmem:[%s267 + $0x54] sm:$0xf]
      %v5835 = vld [vmem:[%s267 + $0x58] sm:$0xf]
      %v5836 = vld [vmem:[%s267 + $0x5c] sm:$0xf]
      %v5845 = vunpack.c.l.b16 %v5829
      %v5846 = vunpack.c.l.b16 %v5830
      %v5847 = vunpack.c.l.b16 %v5831
      %v5848 = vunpack.c.l.b16 %v5832
      %v5849 = vunpack.c.l.b16 %v5833
      %v5850 = vunpack.c.l.b16 %v5834
      %v5851 = vunpack.c.l.b16 %v5835
      %v5852 = vunpack.c.l.b16 %v5836
      %v5853 = vpack.c.b16 %v5846, %v5845
      %v5854 = vpack.c.b16 %v5848, %v5847
      %v5855 = vpack.c.b16 %v5850, %v5849
      %v5856 = vpack.c.b16 %v5852, %v5851
      %v5862 = vsel %vm3860, %v5813, 0
      %v5865 = vsel %vm3860, %v5814, 0
      %v5868 = vsel %vm3860, %v5815, 0
      %v5871 = vsel %vm3860, %v5816, 0
      %v5874 = vsel %vm3860, %v5817, 0
      %v5877 = vsel %vm3860, %v5818, 0
      %v5880 = vsel %vm3860, %v5819, 0
      %v5883 = vsel %vm3860, %v5820, 0
      %v5886 = vsel %vm3860, %v5821, 0
      %v5889 = vsel %vm3860, %v5822, 0
      %v5892 = vsel %vm3860, %v5823, 0
      %v5895 = vsel %vm3860, %v5824, 0
      %v5898 = vsel %vm3860, %v5825, 0
      %v5901 = vsel %vm3860, %v5826, 0
      %v5904 = vsel %vm3860, %v5827, 0
      %v5907 = vsel %vm3860, %v5828, 0
      %5909 = vmatprep.subr.bf16.mxu0 0
      %5910 = vmatpush1.bf16.msra.mxu0 %v5853
      %5911 = vmatprep.subr.bf16.mxu0 0
      %5912 = vmatpush1.bf16.msra.mxu0 %v5854
      %5913 = vmatprep.subr.bf16.mxu0 0
      %5914 = vmatpush1.bf16.msra.mxu0 %v5855
      %5915 = vmatprep.subr.bf16.mxu0 0
      %5916 = vmatpush1.bf16.msra.mxu0 %v5856
      %5917 = vmatprep.subr.bf16.mxu0 0
      %5918 = vmatpush1.bf16.msra.mxu0 0
      %5919 = vmatprep.subr.bf16.mxu0 0
      %5920 = vmatpush1.bf16.msra.mxu0 0
      %5921 = vmatprep.subr.bf16.mxu0 0
      %5922 = vmatpush1.bf16.msra.mxu0 0
      %5923 = vmatprep.subr.bf16.mxu0 0
      %5924 = vmatpush1.bf16.msra.mxu0 0
      %5925 = vmatprep.subr.bf16.mxu0 0
      %5926 = vmatpush1.bf16.msra.mxu0 0
      %5927 = vmatprep.subr.bf16.mxu0 0
      %5928 = vmatpush1.bf16.msra.mxu0 0
      %5929 = vmatprep.subr.bf16.mxu0 0
      %5930 = vmatpush1.bf16.msra.mxu0 0
      %5931 = vmatprep.subr.bf16.mxu0 0
      %5932 = vmatpush1.bf16.msra.mxu0 0
      %5933 = vmatprep.subr.bf16.mxu0 0
      %5934 = vmatpush1.bf16.msra.mxu0 0
      %5935 = vmatprep.subr.bf16.mxu0 0
      %5936 = vmatpush1.bf16.msra.mxu0 0
      %5937 = vmatprep.subr.bf16.mxu0 0
      %5938 = vmatpush1.bf16.msra.mxu0 0
      %5939 = vmatprep.subr.bf16.mxu0 0
      %5940 = vmatpush1.bf16.msra.mxu0 0
      %5941 = vmatprep.mubr.bf16.mxu0 0
      %5942 = vmatmul.mubr.bf16.gmra.mrb[0].mxu0 %v5862
      %v5943 = vpop.f32.mrb[0].mxu0
      %v5944 = vadd.f32 0.0, %v5943
      %v5945 = vpop.f32.mrb[0].mxu0
      %v5946 = vpop.f32.mrb[0].mxu0
      %v5947 = vadd.f32 0.0, %v5946
      %v5948 = vpop.f32.mrb[0].mxu0
      %5949 = vmatprep.mubr.bf16.mxu0 0
      %5950 = vmatmul.mubr.bf16.gmra.mrb[0].mxu0 %v5865
      %v5951 = vpop.f32.mrb[0].mxu0
      %v5952 = vadd.f32 0.0, %v5951
      %v5953 = vpop.f32.mrb[0].mxu0
      %v5954 = vpop.f32.mrb[0].mxu0
      %v5955 = vadd.f32 0.0, %v5954
      %v5956 = vpop.f32.mrb[0].mxu0
      %5957 = vmatprep.mubr.bf16.mxu0 0
      %5958 = vmatmul.mubr.bf16.gmra.mrb[0].mxu0 %v5868
      %v5959 = vpop.f32.mrb[0].mxu0
      %v5960 = vadd.f32 0.0, %v5959
      %v5961 = vpop.f32.mrb[0].mxu0
      %v5962 = vpop.f32.mrb[0].mxu0
      %v5963 = vadd.f32 0.0, %v5962
      %v5964 = vpop.f32.mrb[0].mxu0
      %5965 = vmatprep.mubr.bf16.mxu0 0
      %5966 = vmatmul.mubr.bf16.gmra.mrb[0].mxu0 %v5871
      %v5967 = vpop.f32.mrb[0].mxu0
      %v5968 = vadd.f32 0.0, %v5967
      %v5969 = vpop.f32.mrb[0].mxu0
      %v5970 = vpop.f32.mrb[0].mxu0
      %v5971 = vadd.f32 0.0, %v5970
      %v5972 = vpop.f32.mrb[0].mxu0
      %5973 = vmatprep.mubr.bf16.mxu0 0
      %5974 = vmatmul.mubr.bf16.gmra.mrb[0].mxu0 %v5874
      %v5975 = vpop.f32.mrb[0].mxu0
      %v5976 = vadd.f32 0.0, %v5975
      %v5977 = vpop.f32.mrb[0].mxu0
      %v5978 = vpop.f32.mrb[0].mxu0
      %v5979 = vadd.f32 0.0, %v5978
      %v5980 = vpop.f32.mrb[0].mxu0
      %5981 = vmatprep.mubr.bf16.mxu0 0
      %5982 = vmatmul.mubr.bf16.gmra.mrb[0].mxu0 %v5877
      %v5983 = vpop.f32.mrb[0].mxu0
      %v5984 = vadd.f32 0.0, %v5983
      %v5985 = vpop.f32.mrb[0].mxu0
      %v5986 = vpop.f32.mrb[0].mxu0
      %v5987 = vadd.f32 0.0, %v5986
      %v5988 = vpop.f32.mrb[0].mxu0
      %5989 = vmatprep.mubr.bf16.mxu0 0
      %5990 = vmatmul.mubr.bf16.gmra.mrb[0].mxu0 %v5880
      %v5991 = vpop.f32.mrb[0].mxu0
      %v5992 = vadd.f32 0.0, %v5991
      %v5993 = vpop.f32.mrb[0].mxu0
      %v5994 = vpop.f32.mrb[0].mxu0
      %v5995 = vadd.f32 0.0, %v5994
      %v5996 = vpop.f32.mrb[0].mxu0
      %5997 = vmatprep.mubr.bf16.mxu0 0
      %5998 = vmatmul.mubr.bf16.gmra.mrb[0].mxu0 %v5883
      %v5999 = vpop.f32.mrb[0].mxu0
      %v6000 = vadd.f32 0.0, %v5999
      %v6001 = vpop.f32.mrb[0].mxu0
      %v6002 = vpop.f32.mrb[0].mxu0
      %v6003 = vadd.f32 0.0, %v6002
      %v6004 = vpop.f32.mrb[0].mxu0
      %6005 = vmatprep.mubr.bf16.mxu0 0
      %6006 = vmatmul.mubr.bf16.gmra.mrb[0].mxu0 %v5886
      %v6007 = vpop.f32.mrb[0].mxu0
      %v6008 = vadd.f32 0.0, %v6007
      %v6009 = vpop.f32.mrb[0].mxu0
      %v6010 = vpop.f32.mrb[0].mxu0
      %v6011 = vadd.f32 0.0, %v6010
      %v6012 = vpop.f32.mrb[0].mxu0
      %6013 = vmatprep.mubr.bf16.mxu0 0
      %6014 = vmatmul.mubr.bf16.gmra.mrb[0].mxu0 %v5889
      %v6015 = vpop.f32.mrb[0].mxu0
      %v6016 = vadd.f32 0.0, %v6015
      %v6017 = vpop.f32.mrb[0].mxu0
      %v6018 = vpop.f32.mrb[0].mxu0
      %v6019 = vadd.f32 0.0, %v6018
      %v6020 = vpop.f32.mrb[0].mxu0
      %6021 = vmatprep.mubr.bf16.mxu0 0
      %6022 = vmatmul.mubr.bf16.gmra.mrb[0].mxu0 %v5892
      %v6023 = vpop.f32.mrb[0].mxu0
      %v6024 = vadd.f32 0.0, %v6023
      %v6025 = vpop.f32.mrb[0].mxu0
      %v6026 = vpop.f32.mrb[0].mxu0
      %v6027 = vadd.f32 0.0, %v6026
      %v6028 = vpop.f32.mrb[0].mxu0
      %6029 = vmatprep.mubr.bf16.mxu0 0
      %6030 = vmatmul.mubr.bf16.gmra.mrb[0].mxu0 %v5895
      %v6031 = vpop.f32.mrb[0].mxu0
      %v6032 = vadd.f32 0.0, %v6031
      %v6033 = vpop.f32.mrb[0].mxu0
      %v6034 = vpop.f32.mrb[0].mxu0
      %v6035 = vadd.f32 0.0, %v6034
      %v6036 = vpop.f32.mrb[0].mxu0
      %6037 = vmatprep.mubr.bf16.mxu0 0
      %6038 = vmatmul.mubr.bf16.gmra.mrb[0].mxu0 %v5898
      %v6039 = vpop.f32.mrb[0].mxu0
      %v6040 = vadd.f32 0.0, %v6039
      %v6041 = vpop.f32.mrb[0].mxu0
      %v6042 = vpop.f32.mrb[0].mxu0
      %v6043 = vadd.f32 0.0, %v6042
      %v6044 = vpop.f32.mrb[0].mxu0
      %6045 = vmatprep.mubr.bf16.mxu0 0
      %6046 = vmatmul.mubr.bf16.gmra.mrb[0].mxu0 %v5901
      %v6047 = vpop.f32.mrb[0].mxu0
      %v6048 = vadd.f32 0.0, %v6047
      %v6049 = vpop.f32.mrb[0].mxu0
      %v6050 = vpop.f32.mrb[0].mxu0
      %v6051 = vadd.f32 0.0, %v6050
      %v6052 = vpop.f32.mrb[0].mxu0
      %6053 = vmatprep.mubr.bf16.mxu0 0
      %6054 = vmatmul.mubr.bf16.gmra.mrb[0].mxu0 %v5904
      %v6055 = vpop.f32.mrb[0].mxu0
      %v6056 = vadd.f32 0.0, %v6055
      %v6057 = vpop.f32.mrb[0].mxu0
      %v6058 = vpop.f32.mrb[0].mxu0
      %v6059 = vadd.f32 0.0, %v6058
      %v6060 = vpop.f32.mrb[0].mxu0
      %6061 = vmatprep.mubr.bf16.mxu0 0
      %6062 = vmatmul.mubr.bf16.gmra.mrb[0].mxu0 %v5907
      %v6063 = vpop.f32.mrb[0].mxu0
      %v6064 = vadd.f32 0.0, %v6063
      %v6065 = vpop.f32.mrb[0].mxu0
      %v6066 = vpop.f32.mrb[0].mxu0
      %v6067 = vadd.f32 0.0, %v6066
      %v6068 = vpop.f32.mrb[0].mxu0
      %6069 = vdwg.mxu0
      %v6070 = vadd.f32 %v5733, %v5944
      %v6071 = vadd.f32 %v5734, %v5947
      %v6072 = vadd.f32 %v5735, %v5952
      %v6073 = vadd.f32 %v5736, %v5955
      %v6074 = vadd.f32 %v5737, %v5960
      %v6075 = vadd.f32 %v5738, %v5963
      %v6076 = vadd.f32 %v5739, %v5968
      %v6077 = vadd.f32 %v5740, %v5971
      %v6078 = vadd.f32 %v5741, %v5976
      %v6079 = vadd.f32 %v5742, %v5979
      %v6080 = vadd.f32 %v5743, %v5984
      %v6081 = vadd.f32 %v5744, %v5987
      %v6082 = vadd.f32 %v5745, %v5992
      %v6083 = vadd.f32 %v5746, %v5995
      %v6084 = vadd.f32 %v5747, %v6000
      %v6085 = vadd.f32 %v5748, %v6003
      %v6086 = vadd.f32 %v5749, %v6008
      %v6087 = vadd.f32 %v5750, %v6011
      %v6088 = vadd.f32 %v5751, %v6016
      %v6089 = vadd.f32 %v5752, %v6019
      %v6090 = vadd.f32 %v5753, %v6024
      %v6091 = vadd.f32 %v5754, %v6027
      %v6092 = vadd.f32 %v5755, %v6032
      %v6093 = vadd.f32 %v5756, %v6035
      %v6094 = vadd.f32 %v5757, %v6040
      %v6095 = vadd.f32 %v5758, %v6043
      %v6096 = vadd.f32 %v5759, %v6048
      %v6097 = vadd.f32 %v5760, %v6051
      %v6098 = vadd.f32 %v5761, %v6056
      %v6099 = vadd.f32 %v5762, %v6059
      %v6100 = vadd.f32 %v5763, %v6064
      %v6101 = vadd.f32 %v5764, %v6067
      %v6102 = vld [vmem:[#allocation2 + $0x12] sm:$0xff]
      %v6103 = vld [vmem:[#allocation2 + $0x1a] sm:$0xff]
      %v6104 = vld [vmem:[#allocation2 + $0x22] sm:$0xff]
      %v6105 = vld [vmem:[#allocation2 + $0x2a] sm:$0xff]
      %v6106 = vld [vmem:[#allocation2 + $0x32] sm:$0xff]
      %v6107 = vld [vmem:[#allocation2 + $0x3a] sm:$0xff]
      %v6108 = vld [vmem:[#allocation2 + $0x42] sm:$0xff]
      %v6109 = vld [vmem:[#allocation2 + $0x4a] sm:$0xff]
      %v6110 = vld [vmem:[#allocation2 + $0x52] sm:$0xff]
      %v6111 = vld [vmem:[#allocation2 + $0x5a] sm:$0xff]
      %v6112 = vld [vmem:[#allocation2 + $0x62] sm:$0xff]
      %v6113 = vld [vmem:[#allocation2 + $0x6a] sm:$0xff]
      %v6114 = vld [vmem:[#allocation2 + $0x72] sm:$0xff]
      %v6115 = vld [vmem:[#allocation2 + $0x7a] sm:$0xff]
      %v6116 = vld [vmem:[#allocation2 + $0x82] sm:$0xff]
      %v6117 = vld [vmem:[#allocation2 + $0x8a] sm:$0xff]
      %v6118 = vld [vmem:[#allocation2 + $0x92] sm:$0xff]
      %v6119 = vld [vmem:[#allocation2 + $0x9a] sm:$0xff]
      %v6120 = vld [vmem:[#allocation2 + $0xa2] sm:$0xff]
      %v6121 = vld [vmem:[#allocation2 + $0xaa] sm:$0xff]
      %v6122 = vld [vmem:[#allocation2 + $0xb2] sm:$0xff]
      %v6123 = vld [vmem:[#allocation2 + $0xba] sm:$0xff]
      %v6124 = vld [vmem:[#allocation2 + $0xc2] sm:$0xff]
      %v6125 = vld [vmem:[#allocation2 + $0xca] sm:$0xff]
      %v6126 = vld [vmem:[#allocation2 + $0xd2] sm:$0xff]
      %v6127 = vld [vmem:[#allocation2 + $0xda] sm:$0xff]
      %v6128 = vld [vmem:[#allocation2 + $0xe2] sm:$0xff]
      %v6129 = vld [vmem:[#allocation2 + $0xea] sm:$0xff]
      %v6130 = vld [vmem:[#allocation2 + $0xf2] sm:$0xff]
      %v6131 = vld [vmem:[#allocation2 + $0xfa] sm:$0xff]
      %v6132 = vld [vmem:[#allocation2 + $0x102] sm:$0xff]
      %v6133 = vld [vmem:[#allocation2 + $0x10a] sm:$0xff]
      %v6134 = vpack.c.bf16 %v6103, %v6102
      %v6135 = vpack.c.bf16 %v6105, %v6104
      %v6136 = vpack.c.bf16 %v6107, %v6106
      %v6137 = vpack.c.bf16 %v6109, %v6108
      %v6138 = vpack.c.bf16 %v6111, %v6110
      %v6139 = vpack.c.bf16 %v6113, %v6112
      %v6140 = vpack.c.bf16 %v6115, %v6114
      %v6141 = vpack.c.bf16 %v6117, %v6116
      %v6142 = vpack.c.bf16 %v6119, %v6118
      %v6143 = vpack.c.bf16 %v6121, %v6120
      %v6144 = vpack.c.bf16 %v6123, %v6122
      %v6145 = vpack.c.bf16 %v6125, %v6124
      %v6146 = vpack.c.bf16 %v6127, %v6126
      %v6147 = vpack.c.bf16 %v6129, %v6128
      %v6148 = vpack.c.bf16 %v6131, %v6130
      %v6149 = vpack.c.bf16 %v6133, %v6132
      %v6150 = vsel %vm2890, %v6134, 0
      %v6151 = vsel %vm2891, %v6135, 0
      %v6152 = vsel %vm2892, %v6136, 0
      %v6153 = vsel %vm2893, %v6137, 0
      %v6154 = vsel %vm2894, %v6138, 0
      %v6155 = vsel %vm2895, %v6139, 0
      %v6156 = vsel %vm2896, %v6140, 0
      %v6157 = vsel %vm2897, %v6141, 0
      %v6158 = vsel %vm2898, %v6142, 0
      %v6159 = vsel %vm2899, %v6143, 0
      %v6160 = vsel %vm2900, %v6144, 0
      %v6161 = vsel %vm2901, %v6145, 0
      %v6162 = vsel %vm2902, %v6146, 0
      %v6163 = vsel %vm2903, %v6147, 0
      %v6164 = vsel %vm2904, %v6148, 0
      %v6165 = vsel %vm2905, %v6149, 0
      %v6166 = vld [vmem:[%s267 + $0xa0] sm:$0xf]
      %v6167 = vld [vmem:[%s267 + $0xa4] sm:$0xf]
      %v6168 = vld [vmem:[%s267 + $0xa8] sm:$0xf]
      %v6169 = vld [vmem:[%s267 + $0xac] sm:$0xf]
      %v6170 = vld [vmem:[%s267 + $0xb0] sm:$0xf]
      %v6171 = vld [vmem:[%s267 + $0xb4] sm:$0xf]
      %v6172 = vld [vmem:[%s267 + $0xb8] sm:$0xf]
      %v6173 = vld [vmem:[%s267 + $0xbc] sm:$0xf]
      %v6182 = vunpack.c.l.b16 %v6166
      %v6183 = vunpack.c.l.b16 %v6167
      %v6184 = vunpack.c.l.b16 %v6168
      %v6185 = vunpack.c.l.b16 %v6169
      %v6186 = vunpack.c.l.b16 %v6170
      %v6187 = vunpack.c.l.b16 %v6171
      %v6188 = vunpack.c.l.b16 %v6172
      %v6189 = vunpack.c.l.b16 %v6173
      %v6190 = vpack.c.b16 %v6183, %v6182
      %v6191 = vpack.c.b16 %v6185, %v6184
      %v6192 = vpack.c.b16 %v6187, %v6186
      %v6193 = vpack.c.b16 %v6189, %v6188
      %v6199 = vsel %vm3860, %v6150, 0
      %v6202 = vsel %vm3860, %v6151, 0
      %v6205 = vsel %vm3860, %v6152, 0
      %v6208 = vsel %vm3860, %v6153, 0
      %v6211 = vsel %vm3860, %v6154, 0
      %v6214 = vsel %vm3860, %v6155, 0
      %v6217 = vsel %vm3860, %v6156, 0
      %v6220 = vsel %vm3860, %v6157, 0
      %v6223 = vsel %vm3860, %v6158, 0
      %v6226 = vsel %vm3860, %v6159, 0
      %v6229 = vsel %vm3860, %v6160, 0
      %v6232 = vsel %vm3860, %v6161, 0
      %v6235 = vsel %vm3860, %v6162, 0
      %v6238 = vsel %vm3860, %v6163, 0
      %v6241 = vsel %vm3860, %v6164, 0
      %v6244 = vsel %vm3860, %v6165, 0
      %6246 = vmatprep.subr.bf16.mxu0 0
      %6247 = vmatpush1.bf16.msra.mxu0 %v6190
      %6248 = vmatprep.subr.bf16.mxu0 0
      %6249 = vmatpush1.bf16.msra.mxu0 %v6191
      %6250 = vmatprep.subr.bf16.mxu0 0
      %6251 = vmatpush1.bf16.msra.mxu0 %v6192
      %6252 = vmatprep.subr.bf16.mxu0 0
      %6253 = vmatpush1.bf16.msra.mxu0 %v6193
      %6254 = vmatprep.subr.bf16.mxu0 0
      %6255 = vmatpush1.bf16.msra.mxu0 0
      %6256 = vmatprep.subr.bf16.mxu0 0
      %6257 = vmatpush1.bf16.msra.mxu0 0
      %6258 = vmatprep.subr.bf16.mxu0 0
      %6259 = vmatpush1.bf16.msra.mxu0 0
      %6260 = vmatprep.subr.bf16.mxu0 0
      %6261 = vmatpush1.bf16.msra.mxu0 0
      %6262 = vmatprep.subr.bf16.mxu0 0
      %6263 = vmatpush1.bf16.msra.mxu0 0
      %6264 = vmatprep.subr.bf16.mxu0 0
      %6265 = vmatpush1.bf16.msra.mxu0 0
      %6266 = vmatprep.subr.bf16.mxu0 0
      %6267 = vmatpush1.bf16.msra.mxu0 0
      %6268 = vmatprep.subr.bf16.mxu0 0
      %6269 = vmatpush1.bf16.msra.mxu0 0
      %6270 = vmatprep.subr.bf16.mxu0 0
      %6271 = vmatpush1.bf16.msra.mxu0 0
      %6272 = vmatprep.subr.bf16.mxu0 0
      %6273 = vmatpush1.bf16.msra.mxu0 0
      %6274 = vmatprep.subr.bf16.mxu0 0
      %6275 = vmatpush1.bf16.msra.mxu0 0
      %6276 = vmatprep.subr.bf16.mxu0 0
      %6277 = vmatpush1.bf16.msra.mxu0 0
      %6278 = vmatprep.mubr.bf16.mxu0 0
      %6279 = vmatmul.mubr.bf16.gmra.mrb[0].mxu0 %v6199
      %v6280 = vpop.f32.mrb[0].mxu0
      %v6281 = vadd.f32 0.0, %v6280
      %v6282 = vpop.f32.mrb[0].mxu0
      %v6283 = vpop.f32.mrb[0].mxu0
      %v6284 = vadd.f32 0.0, %v6283
      %v6285 = vpop.f32.mrb[0].mxu0
      %6286 = vmatprep.mubr.bf16.mxu0 0
      %6287 = vmatmul.mubr.bf16.gmra.mrb[0].mxu0 %v6202
      %v6288 = vpop.f32.mrb[0].mxu0
      %v6289 = vadd.f32 0.0, %v6288
      %v6290 = vpop.f32.mrb[0].mxu0
      %v6291 = vpop.f32.mrb[0].mxu0
      %v6292 = vadd.f32 0.0, %v6291
      %v6293 = vpop.f32.mrb[0].mxu0
      %6294 = vmatprep.mubr.bf16.mxu0 0
      %6295 = vmatmul.mubr.bf16.gmra.mrb[0].mxu0 %v6205
      %v6296 = vpop.f32.mrb[0].mxu0
      %v6297 = vadd.f32 0.0, %v6296
      %v6298 = vpop.f32.mrb[0].mxu0
      %v6299 = vpop.f32.mrb[0].mxu0
      %v6300 = vadd.f32 0.0, %v6299
      %v6301 = vpop.f32.mrb[0].mxu0
      %6302 = vmatprep.mubr.bf16.mxu0 0
      %6303 = vmatmul.mubr.bf16.gmra.mrb[0].mxu0 %v6208
      %v6304 = vpop.f32.mrb[0].mxu0
      %v6305 = vadd.f32 0.0, %v6304
      %v6306 = vpop.f32.mrb[0].mxu0
      %v6307 = vpop.f32.mrb[0].mxu0
      %v6308 = vadd.f32 0.0, %v6307
      %v6309 = vpop.f32.mrb[0].mxu0
      %6310 = vmatprep.mubr.bf16.mxu0 0
      %6311 = vmatmul.mubr.bf16.gmra.mrb[0].mxu0 %v6211
      %v6312 = vpop.f32.mrb[0].mxu0
      %v6313 = vadd.f32 0.0, %v6312
      %v6314 = vpop.f32.mrb[0].mxu0
      %v6315 = vpop.f32.mrb[0].mxu0
      %v6316 = vadd.f32 0.0, %v6315
      %v6317 = vpop.f32.mrb[0].mxu0
      %6318 = vmatprep.mubr.bf16.mxu0 0
      %6319 = vmatmul.mubr.bf16.gmra.mrb[0].mxu0 %v6214
      %v6320 = vpop.f32.mrb[0].mxu0
      %v6321 = vadd.f32 0.0, %v6320
      %v6322 = vpop.f32.mrb[0].mxu0
      %v6323 = vpop.f32.mrb[0].mxu0
      %v6324 = vadd.f32 0.0, %v6323
      %v6325 = vpop.f32.mrb[0].mxu0
      %6326 = vmatprep.mubr.bf16.mxu0 0
      %6327 = vmatmul.mubr.bf16.gmra.mrb[0].mxu0 %v6217
      %v6328 = vpop.f32.mrb[0].mxu0
      %v6329 = vadd.f32 0.0, %v6328
      %v6330 = vpop.f32.mrb[0].mxu0
      %v6331 = vpop.f32.mrb[0].mxu0
      %v6332 = vadd.f32 0.0, %v6331
      %v6333 = vpop.f32.mrb[0].mxu0
      %6334 = vmatprep.mubr.bf16.mxu0 0
      %6335 = vmatmul.mubr.bf16.gmra.mrb[0].mxu0 %v6220
      %v6336 = vpop.f32.mrb[0].mxu0
      %v6337 = vadd.f32 0.0, %v6336
      %v6338 = vpop.f32.mrb[0].mxu0
      %v6339 = vpop.f32.mrb[0].mxu0
      %v6340 = vadd.f32 0.0, %v6339
      %v6341 = vpop.f32.mrb[0].mxu0
      %6342 = vmatprep.mubr.bf16.mxu0 0
      %6343 = vmatmul.mubr.bf16.gmra.mrb[0].mxu0 %v6223
      %v6344 = vpop.f32.mrb[0].mxu0
      %v6345 = vadd.f32 0.0, %v6344
      %v6346 = vpop.f32.mrb[0].mxu0
      %v6347 = vpop.f32.mrb[0].mxu0
      %v6348 = vadd.f32 0.0, %v6347
      %v6349 = vpop.f32.mrb[0].mxu0
      %6350 = vmatprep.mubr.bf16.mxu0 0
      %6351 = vmatmul.mubr.bf16.gmra.mrb[0].mxu0 %v6226
      %v6352 = vpop.f32.mrb[0].mxu0
      %v6353 = vadd.f32 0.0, %v6352
      %v6354 = vpop.f32.mrb[0].mxu0
      %v6355 = vpop.f32.mrb[0].mxu0
      %v6356 = vadd.f32 0.0, %v6355
      %v6357 = vpop.f32.mrb[0].mxu0
      %6358 = vmatprep.mubr.bf16.mxu0 0
      %6359 = vmatmul.mubr.bf16.gmra.mrb[0].mxu0 %v6229
      %v6360 = vpop.f32.mrb[0].mxu0
      %v6361 = vadd.f32 0.0, %v6360
      %v6362 = vpop.f32.mrb[0].mxu0
      %v6363 = vpop.f32.mrb[0].mxu0
      %v6364 = vadd.f32 0.0, %v6363
      %v6365 = vpop.f32.mrb[0].mxu0
      %6366 = vmatprep.mubr.bf16.mxu0 0
      %6367 = vmatmul.mubr.bf16.gmra.mrb[0].mxu0 %v6232
      %v6368 = vpop.f32.mrb[0].mxu0
      %v6369 = vadd.f32 0.0, %v6368
      %v6370 = vpop.f32.mrb[0].mxu0
      %v6371 = vpop.f32.mrb[0].mxu0
      %v6372 = vadd.f32 0.0, %v6371
      %v6373 = vpop.f32.mrb[0].mxu0
      %6374 = vmatprep.mubr.bf16.mxu0 0
      %6375 = vmatmul.mubr.bf16.gmra.mrb[0].mxu0 %v6235
      %v6376 = vpop.f32.mrb[0].mxu0
      %v6377 = vadd.f32 0.0, %v6376
      %v6378 = vpop.f32.mrb[0].mxu0
      %v6379 = vpop.f32.mrb[0].mxu0
      %v6380 = vadd.f32 0.0, %v6379
      %v6381 = vpop.f32.mrb[0].mxu0
      %6382 = vmatprep.mubr.bf16.mxu0 0
      %6383 = vmatmul.mubr.bf16.gmra.mrb[0].mxu0 %v6238
      %v6384 = vpop.f32.mrb[0].mxu0
      %v6385 = vadd.f32 0.0, %v6384
      %v6386 = vpop.f32.mrb[0].mxu0
      %v6387 = vpop.f32.mrb[0].mxu0
      %v6388 = vadd.f32 0.0, %v6387
      %v6389 = vpop.f32.mrb[0].mxu0
      %6390 = vmatprep.mubr.bf16.mxu0 0
      %6391 = vmatmul.mubr.bf16.gmra.mrb[0].mxu0 %v6241
      %v6392 = vpop.f32.mrb[0].mxu0
      %v6393 = vadd.f32 0.0, %v6392
      %v6394 = vpop.f32.mrb[0].mxu0
      %v6395 = vpop.f32.mrb[0].mxu0
      %v6396 = vadd.f32 0.0, %v6395
      %v6397 = vpop.f32.mrb[0].mxu0
      %6398 = vmatprep.mubr.bf16.mxu0 0
      %6399 = vmatmul.mubr.bf16.gmra.mrb[0].mxu0 %v6244
      %v6400 = vpop.f32.mrb[0].mxu0
      %v6401 = vadd.f32 0.0, %v6400
      %v6402 = vpop.f32.mrb[0].mxu0
      %v6403 = vpop.f32.mrb[0].mxu0
      %v6404 = vadd.f32 0.0, %v6403
      %v6405 = vpop.f32.mrb[0].mxu0
      %6406 = vdwg.mxu0
      %v6407 = vadd.f32 %v6070, %v6281
      %v6408 = vadd.f32 %v6071, %v6284
      %v6409 = vadd.f32 %v6072, %v6289
      %v6410 = vadd.f32 %v6073, %v6292
      %v6411 = vadd.f32 %v6074, %v6297
      %v6412 = vadd.f32 %v6075, %v6300
      %v6413 = vadd.f32 %v6076, %v6305
      %v6414 = vadd.f32 %v6077, %v6308
      %v6415 = vadd.f32 %v6078, %v6313
      %v6416 = vadd.f32 %v6079, %v6316
      %v6417 = vadd.f32 %v6080, %v6321
      %v6418 = vadd.f32 %v6081, %v6324
      %v6419 = vadd.f32 %v6082, %v6329
      %v6420 = vadd.f32 %v6083, %v6332
      %v6421 = vadd.f32 %v6084, %v6337
      %v6422 = vadd.f32 %v6085, %v6340
      %v6423 = vadd.f32 %v6086, %v6345
      %v6424 = vadd.f32 %v6087, %v6348
      %v6425 = vadd.f32 %v6088, %v6353
      %v6426 = vadd.f32 %v6089, %v6356
      %v6427 = vadd.f32 %v6090, %v6361
      %v6428 = vadd.f32 %v6091, %v6364
      %v6429 = vadd.f32 %v6092, %v6369
      %v6430 = vadd.f32 %v6093, %v6372
      %v6431 = vadd.f32 %v6094, %v6377
      %v6432 = vadd.f32 %v6095, %v6380
      %v6433 = vadd.f32 %v6096, %v6385
      %v6434 = vadd.f32 %v6097, %v6388
      %v6435 = vadd.f32 %v6098, %v6393
      %v6436 = vadd.f32 %v6099, %v6396
      %v6437 = vadd.f32 %v6100, %v6401
      %v6438 = vadd.f32 %v6101, %v6404
      %v6439 = vld [vmem:[#allocation2 + $0x22] sm:$0xff]
      %v6440 = vld [vmem:[#allocation2 + $0x2a] sm:$0xff]
      %v6441 = vld [vmem:[#allocation2 + $0x32] sm:$0xff]
      %v6442 = vld [vmem:[#allocation2 + $0x3a] sm:$0xff]
      %v6443 = vld [vmem:[#allocation2 + $0x42] sm:$0xff]
      %v6444 = vld [vmem:[#allocation2 + $0x4a] sm:$0xff]
      %v6445 = vld [vmem:[#allocation2 + $0x52] sm:$0xff]
      %v6446 = vld [vmem:[#allocation2 + $0x5a] sm:$0xff]
      %v6447 = vld [vmem:[#allocation2 + $0x62] sm:$0xff]
      %v6448 = vld [vmem:[#allocation2 + $0x6a] sm:$0xff]
      %v6449 = vld [vmem:[#allocation2 + $0x72] sm:$0xff]
      %v6450 = vld [vmem:[#allocation2 + $0x7a] sm:$0xff]
      %v6451 = vld [vmem:[#allocation2 + $0x82] sm:$0xff]
      %v6452 = vld [vmem:[#allocation2 + $0x8a] sm:$0xff]
      %v6453 = vld [vmem:[#allocation2 + $0x92] sm:$0xff]
      %v6454 = vld [vmem:[#allocation2 + $0x9a] sm:$0xff]
      %v6455 = vld [vmem:[#allocation2 + $0xa2] sm:$0xff]
      %v6456 = vld [vmem:[#allocation2 + $0xaa] sm:$0xff]
      %v6457 = vld [vmem:[#allocation2 + $0xb2] sm:$0xff]
      %v6458 = vld [vmem:[#allocation2 + $0xba] sm:$0xff]
      %v6459 = vld [vmem:[#allocation2 + $0xc2] sm:$0xff]
      %v6460 = vld [vmem:[#allocation2 + $0xca] sm:$0xff]
      %v6461 = vld [vmem:[#allocation2 + $0xd2] sm:$0xff]
      %v6462 = vld [vmem:[#allocation2 + $0xda] sm:$0xff]
      %v6463 = vld [vmem:[#allocation2 + $0xe2] sm:$0xff]
      %v6464 = vld [vmem:[#allocation2 + $0xea] sm:$0xff]
      %v6465 = vld [vmem:[#allocation2 + $0xf2] sm:$0xff]
      %v6466 = vld [vmem:[#allocation2 + $0xfa] sm:$0xff]
      %v6467 = vld [vmem:[#allocation2 + $0x102] sm:$0xff]
      %v6468 = vld [vmem:[#allocation2 + $0x10a] sm:$0xff]
      %v6469 = vld [vmem:[#allocation2 + $0x112] sm:$0xff]
      %v6470 = vld [vmem:[#allocation2 + $0x11a] sm:$0xff]
      %v6471 = vpack.c.bf16 %v6440, %v6439
      %v6472 = vpack.c.bf16 %v6442, %v6441
      %v6473 = vpack.c.bf16 %v6444, %v6443
      %v6474 = vpack.c.bf16 %v6446, %v6445
      %v6475 = vpack.c.bf16 %v6448, %v6447
      %v6476 = vpack.c.bf16 %v6450, %v6449
      %v6477 = vpack.c.bf16 %v6452, %v6451
      %v6478 = vpack.c.bf16 %v6454, %v6453
      %v6479 = vpack.c.bf16 %v6456, %v6455
      %v6480 = vpack.c.bf16 %v6458, %v6457
      %v6481 = vpack.c.bf16 %v6460, %v6459
      %v6482 = vpack.c.bf16 %v6462, %v6461
      %v6483 = vpack.c.bf16 %v6464, %v6463
      %v6484 = vpack.c.bf16 %v6466, %v6465
      %v6485 = vpack.c.bf16 %v6468, %v6467
      %v6486 = vpack.c.bf16 %v6470, %v6469
      %v6487 = vsel %vm2890, %v6471, 0
      %v6488 = vsel %vm2891, %v6472, 0
      %v6489 = vsel %vm2892, %v6473, 0
      %v6490 = vsel %vm2893, %v6474, 0
      %v6491 = vsel %vm2894, %v6475, 0
      %v6492 = vsel %vm2895, %v6476, 0
      %v6493 = vsel %vm2896, %v6477, 0
      %v6494 = vsel %vm2897, %v6478, 0
      %v6495 = vsel %vm2898, %v6479, 0
      %v6496 = vsel %vm2899, %v6480, 0
      %v6497 = vsel %vm2900, %v6481, 0
      %v6498 = vsel %vm2901, %v6482, 0
      %v6499 = vsel %vm2902, %v6483, 0
      %v6500 = vsel %vm2903, %v6484, 0
      %v6501 = vsel %vm2904, %v6485, 0
      %v6502 = vsel %vm2905, %v6486, 0
      %v6503 = vld [vmem:[%s267 + $0x100] sm:$0xf]
      %v6504 = vld [vmem:[%s267 + $0x104] sm:$0xf]
      %v6505 = vld [vmem:[%s267 + $0x108] sm:$0xf]
      %v6506 = vld [vmem:[%s267 + $0x10c] sm:$0xf]
      %v6507 = vld [vmem:[%s267 + $0x110] sm:$0xf]
      %v6508 = vld [vmem:[%s267 + $0x114] sm:$0xf]
      %v6509 = vld [vmem:[%s267 + $0x118] sm:$0xf]
      %v6510 = vld [vmem:[%s267 + $0x11c] sm:$0xf]
      %v6519 = vunpack.c.l.b16 %v6503
      %v6520 = vunpack.c.l.b16 %v6504
      %v6521 = vunpack.c.l.b16 %v6505
      %v6522 = vunpack.c.l.b16 %v6506
      %v6523 = vunpack.c.l.b16 %v6507
      %v6524 = vunpack.c.l.b16 %v6508
      %v6525 = vunpack.c.l.b16 %v6509
      %v6526 = vunpack.c.l.b16 %v6510
      %v6527 = vpack.c.b16 %v6520, %v6519
      %v6528 = vpack.c.b16 %v6522, %v6521
      %v6529 = vpack.c.b16 %v6524, %v6523
      %v6530 = vpack.c.b16 %v6526, %v6525
      %v6536 = vsel %vm3860, %v6487, 0
      %v6539 = vsel %vm3860, %v6488, 0
      %v6542 = vsel %vm3860, %v6489, 0
      %v6545 = vsel %vm3860, %v6490, 0
      %v6548 = vsel %vm3860, %v6491, 0
      %v6551 = vsel %vm3860, %v6492, 0
      %v6554 = vsel %vm3860, %v6493, 0
      %v6557 = vsel %vm3860, %v6494, 0
      %v6560 = vsel %vm3860, %v6495, 0
      %v6563 = vsel %vm3860, %v6496, 0
      %v6566 = vsel %vm3860, %v6497, 0
      %v6569 = vsel %vm3860, %v6498, 0
      %v6572 = vsel %vm3860, %v6499, 0
      %v6575 = vsel %vm3860, %v6500, 0
      %v6578 = vsel %vm3860, %v6501, 0
      %v6581 = vsel %vm3860, %v6502, 0
      %6583 = vmatprep.subr.bf16.mxu0 0
      %6584 = vmatpush1.bf16.msra.mxu0 %v6527
      %6585 = vmatprep.subr.bf16.mxu0 0
      %6586 = vmatpush1.bf16.msra.mxu0 %v6528
      %6587 = vmatprep.subr.bf16.mxu0 0
      %6588 = vmatpush1.bf16.msra.mxu0 %v6529
      %6589 = vmatprep.subr.bf16.mxu0 0
      %6590 = vmatpush1.bf16.msra.mxu0 %v6530
      %6591 = vmatprep.subr.bf16.mxu0 0
      %6592 = vmatpush1.bf16.msra.mxu0 0
      %6593 = vmatprep.subr.bf16.mxu0 0
      %6594 = vmatpush1.bf16.msra.mxu0 0
      %6595 = vmatprep.subr.bf16.mxu0 0
      %6596 = vmatpush1.bf16.msra.mxu0 0
      %6597 = vmatprep.subr.bf16.mxu0 0
      %6598 = vmatpush1.bf16.msra.mxu0 0
      %6599 = vmatprep.subr.bf16.mxu0 0
      %6600 = vmatpush1.bf16.msra.mxu0 0
      %6601 = vmatprep.subr.bf16.mxu0 0
      %6602 = vmatpush1.bf16.msra.mxu0 0
      %6603 = vmatprep.subr.bf16.mxu0 0
      %6604 = vmatpush1.bf16.msra.mxu0 0
      %6605 = vmatprep.subr.bf16.mxu0 0
      %6606 = vmatpush1.bf16.msra.mxu0 0
      %6607 = vmatprep.subr.bf16.mxu0 0
      %6608 = vmatpush1.bf16.msra.mxu0 0
      %6609 = vmatprep.subr.bf16.mxu0 0
      %6610 = vmatpush1.bf16.msra.mxu0 0
      %6611 = vmatprep.subr.bf16.mxu0 0
      %6612 = vmatpush1.bf16.msra.mxu0 0
      %6613 = vmatprep.subr.bf16.mxu0 0
      %6614 = vmatpush1.bf16.msra.mxu0 0
      %6615 = vmatprep.mubr.bf16.mxu0 0
      %6616 = vmatmul.mubr.bf16.gmra.mrb[0].mxu0 %v6536
      %v6617 = vpop.f32.mrb[0].mxu0
      %v6618 = vadd.f32 0.0, %v6617
      %v6619 = vpop.f32.mrb[0].mxu0
      %v6620 = vpop.f32.mrb[0].mxu0
      %v6621 = vadd.f32 0.0, %v6620
      %v6622 = vpop.f32.mrb[0].mxu0
      %6623 = vmatprep.mubr.bf16.mxu0 0
      %6624 = vmatmul.mubr.bf16.gmra.mrb[0].mxu0 %v6539
      %v6625 = vpop.f32.mrb[0].mxu0
      %v6626 = vadd.f32 0.0, %v6625
      %v6627 = vpop.f32.mrb[0].mxu0
      %v6628 = vpop.f32.mrb[0].mxu0
      %v6629 = vadd.f32 0.0, %v6628
      %v6630 = vpop.f32.mrb[0].mxu0
      %6631 = vmatprep.mubr.bf16.mxu0 0
      %6632 = vmatmul.mubr.bf16.gmra.mrb[0].mxu0 %v6542
      %v6633 = vpop.f32.mrb[0].mxu0
      %v6634 = vadd.f32 0.0, %v6633
      %v6635 = vpop.f32.mrb[0].mxu0
      %v6636 = vpop.f32.mrb[0].mxu0
      %v6637 = vadd.f32 0.0, %v6636
      %v6638 = vpop.f32.mrb[0].mxu0
      %6639 = vmatprep.mubr.bf16.mxu0 0
      %6640 = vmatmul.mubr.bf16.gmra.mrb[0].mxu0 %v6545
      %v6641 = vpop.f32.mrb[0].mxu0
      %v6642 = vadd.f32 0.0, %v6641
      %v6643 = vpop.f32.mrb[0].mxu0
      %v6644 = vpop.f32.mrb[0].mxu0
      %v6645 = vadd.f32 0.0, %v6644
      %v6646 = vpop.f32.mrb[0].mxu0
      %6647 = vmatprep.mubr.bf16.mxu0 0
      %6648 = vmatmul.mubr.bf16.gmra.mrb[0].mxu0 %v6548
      %v6649 = vpop.f32.mrb[0].mxu0
      %v6650 = vadd.f32 0.0, %v6649
      %v6651 = vpop.f32.mrb[0].mxu0
      %v6652 = vpop.f32.mrb[0].mxu0
      %v6653 = vadd.f32 0.0, %v6652
      %v6654 = vpop.f32.mrb[0].mxu0
      %6655 = vmatprep.mubr.bf16.mxu0 0
      %6656 = vmatmul.mubr.bf16.gmra.mrb[0].mxu0 %v6551
      %v6657 = vpop.f32.mrb[0].mxu0
      %v6658 = vadd.f32 0.0, %v6657
      %v6659 = vpop.f32.mrb[0].mxu0
      %v6660 = vpop.f32.mrb[0].mxu0
      %v6661 = vadd.f32 0.0, %v6660
      %v6662 = vpop.f32.mrb[0].mxu0
      %6663 = vmatprep.mubr.bf16.mxu0 0
      %6664 = vmatmul.mubr.bf16.gmra.mrb[0].mxu0 %v6554
      %v6665 = vpop.f32.mrb[0].mxu0
      %v6666 = vadd.f32 0.0, %v6665
      %v6667 = vpop.f32.mrb[0].mxu0
      %v6668 = vpop.f32.mrb[0].mxu0
      %v6669 = vadd.f32 0.0, %v6668
      %v6670 = vpop.f32.mrb[0].mxu0
      %6671 = vmatprep.mubr.bf16.mxu0 0
      %6672 = vmatmul.mubr.bf16.gmra.mrb[0].mxu0 %v6557
      %v6673 = vpop.f32.mrb[0].mxu0
      %v6674 = vadd.f32 0.0, %v6673
      %v6675 = vpop.f32.mrb[0].mxu0
      %v6676 = vpop.f32.mrb[0].mxu0
      %v6677 = vadd.f32 0.0, %v6676
      %v6678 = vpop.f32.mrb[0].mxu0
      %6679 = vmatprep.mubr.bf16.mxu0 0
      %6680 = vmatmul.mubr.bf16.gmra.mrb[0].mxu0 %v6560
      %v6681 = vpop.f32.mrb[0].mxu0
      %v6682 = vadd.f32 0.0, %v6681
      %v6683 = vpop.f32.mrb[0].mxu0
      %v6684 = vpop.f32.mrb[0].mxu0
      %v6685 = vadd.f32 0.0, %v6684
      %v6686 = vpop.f32.mrb[0].mxu0
      %6687 = vmatprep.mubr.bf16.mxu0 0
      %6688 = vmatmul.mubr.bf16.gmra.mrb[0].mxu0 %v6563
      %v6689 = vpop.f32.mrb[0].mxu0
      %v6690 = vadd.f32 0.0, %v6689
      %v6691 = vpop.f32.mrb[0].mxu0
      %v6692 = vpop.f32.mrb[0].mxu0
      %v6693 = vadd.f32 0.0, %v6692
      %v6694 = vpop.f32.mrb[0].mxu0
      %6695 = vmatprep.mubr.bf16.mxu0 0
      %6696 = vmatmul.mubr.bf16.gmra.mrb[0].mxu0 %v6566
      %v6697 = vpop.f32.mrb[0].mxu0
      %v6698 = vadd.f32 0.0, %v6697
      %v6699 = vpop.f32.mrb[0].mxu0
      %v6700 = vpop.f32.mrb[0].mxu0
      %v6701 = vadd.f32 0.0, %v6700
      %v6702 = vpop.f32.mrb[0].mxu0
      %6703 = vmatprep.mubr.bf16.mxu0 0
      %6704 = vmatmul.mubr.bf16.gmra.mrb[0].mxu0 %v6569
      %v6705 = vpop.f32.mrb[0].mxu0
      %v6706 = vadd.f32 0.0, %v6705
      %v6707 = vpop.f32.mrb[0].mxu0
      %v6708 = vpop.f32.mrb[0].mxu0
      %v6709 = vadd.f32 0.0, %v6708
      %v6710 = vpop.f32.mrb[0].mxu0
      %6711 = vmatprep.mubr.bf16.mxu0 0
      %6712 = vmatmul.mubr.bf16.gmra.mrb[0].mxu0 %v6572
      %v6713 = vpop.f32.mrb[0].mxu0
      %v6714 = vadd.f32 0.0, %v6713
      %v6715 = vpop.f32.mrb[0].mxu0
      %v6716 = vpop.f32.mrb[0].mxu0
      %v6717 = vadd.f32 0.0, %v6716
      %v6718 = vpop.f32.mrb[0].mxu0
      %6719 = vmatprep.mubr.bf16.mxu0 0
      %6720 = vmatmul.mubr.bf16.gmra.mrb[0].mxu0 %v6575
      %v6721 = vpop.f32.mrb[0].mxu0
      %v6722 = vadd.f32 0.0, %v6721
      %v6723 = vpop.f32.mrb[0].mxu0
      %v6724 = vpop.f32.mrb[0].mxu0
      %v6725 = vadd.f32 0.0, %v6724
      %v6726 = vpop.f32.mrb[0].mxu0
      %6727 = vmatprep.mubr.bf16.mxu0 0
      %6728 = vmatmul.mubr.bf16.gmra.mrb[0].mxu0 %v6578
      %v6729 = vpop.f32.mrb[0].mxu0
      %v6730 = vadd.f32 0.0, %v6729
      %v6731 = vpop.f32.mrb[0].mxu0
      %v6732 = vpop.f32.mrb[0].mxu0
      %v6733 = vadd.f32 0.0, %v6732
      %v6734 = vpop.f32.mrb[0].mxu0
      %6735 = vmatprep.mubr.bf16.mxu0 0
      %6736 = vmatmul.mubr.bf16.gmra.mrb[0].mxu0 %v6581
      %v6737 = vpop.f32.mrb[0].mxu0
      %v6738 = vadd.f32 0.0, %v6737
      %v6739 = vpop.f32.mrb[0].mxu0
      %v6740 = vpop.f32.mrb[0].mxu0
      %v6741 = vadd.f32 0.0, %v6740
      %v6742 = vpop.f32.mrb[0].mxu0
      %6743 = vdwg.mxu0
      %v6744 = vadd.f32 %v6407, %v6618
      %v6745 = vadd.f32 %v6408, %v6621
      %v6746 = vadd.f32 %v6409, %v6626
      %v6747 = vadd.f32 %v6410, %v6629
      %v6748 = vadd.f32 %v6411, %v6634
      %v6749 = vadd.f32 %v6412, %v6637
      %v6750 = vadd.f32 %v6413, %v6642
      %v6751 = vadd.f32 %v6414, %v6645
      %v6752 = vadd.f32 %v6415, %v6650
      %v6753 = vadd.f32 %v6416, %v6653
      %v6754 = vadd.f32 %v6417, %v6658
      %v6755 = vadd.f32 %v6418, %v6661
      %v6756 = vadd.f32 %v6419, %v6666
      %v6757 = vadd.f32 %v6420, %v6669
      %v6758 = vadd.f32 %v6421, %v6674
      %v6759 = vadd.f32 %v6422, %v6677
      %v6760 = vadd.f32 %v6423, %v6682
      %v6761 = vadd.f32 %v6424, %v6685
      %v6762 = vadd.f32 %v6425, %v6690
      %v6763 = vadd.f32 %v6426, %v6693
      %v6764 = vadd.f32 %v6427, %v6698
      %v6765 = vadd.f32 %v6428, %v6701
      %v6766 = vadd.f32 %v6429, %v6706
      %v6767 = vadd.f32 %v6430, %v6709
      %v6768 = vadd.f32 %v6431, %v6714
      %v6769 = vadd.f32 %v6432, %v6717
      %v6770 = vadd.f32 %v6433, %v6722
      %v6771 = vadd.f32 %v6434, %v6725
      %v6772 = vadd.f32 %v6435, %v6730
      %v6773 = vadd.f32 %v6436, %v6733
      %v6774 = vadd.f32 %v6437, %v6738
      %v6775 = vadd.f32 %v6438, %v6741
      %v6776 = vld [vmem:[%s270] sm:$0x1]
      %v6778 = vlaneseq
      %v6779 = vshrl.u32 %v6778, 7
      %v6780 = vsub.s32 0, %v6779
      %v6781 = vrot.slane %v6776, %v6780
      %v6783 = vadd.f32 %v6744, %v6781
      %v6784 = vadd.f32 %v6745, %v6781
      %v6785 = vadd.f32 %v6746, %v6781
      %v6786 = vadd.f32 %v6747, %v6781
      %v6787 = vadd.f32 %v6748, %v6781
      %v6788 = vadd.f32 %v6749, %v6781
      %v6789 = vadd.f32 %v6750, %v6781
      %v6790 = vadd.f32 %v6751, %v6781
      %v6791 = vadd.f32 %v6752, %v6781
      %v6792 = vadd.f32 %v6753, %v6781
      %v6793 = vadd.f32 %v6754, %v6781
      %v6794 = vadd.f32 %v6755, %v6781
      %v6795 = vadd.f32 %v6756, %v6781
      %v6796 = vadd.f32 %v6757, %v6781
      %v6797 = vadd.f32 %v6758, %v6781
      %v6798 = vadd.f32 %v6759, %v6781
      %v6799 = vadd.f32 %v6760, %v6781
      %v6800 = vadd.f32 %v6761, %v6781
      %v6801 = vadd.f32 %v6762, %v6781
      %v6802 = vadd.f32 %v6763, %v6781
      %v6803 = vadd.f32 %v6764, %v6781
      %v6804 = vadd.f32 %v6765, %v6781
      %v6805 = vadd.f32 %v6766, %v6781
      %v6806 = vadd.f32 %v6767, %v6781
      %v6807 = vadd.f32 %v6768, %v6781
      %v6808 = vadd.f32 %v6769, %v6781
      %v6809 = vadd.f32 %v6770, %v6781
      %v6810 = vadd.f32 %v6771, %v6781
      %v6811 = vadd.f32 %v6772, %v6781
      %v6812 = vadd.f32 %v6773, %v6781
      %v6813 = vadd.f32 %v6774, %v6781
      %v6814 = vadd.f32 %v6775, %v6781
      %v6815 = vmax.f32 %v6783, 0.0
      %v6816 = vmax.f32 %v6784, 0.0
      %v6817 = vmax.f32 %v6785, 0.0
      %v6818 = vmax.f32 %v6786, 0.0
      %v6819 = vmax.f32 %v6787, 0.0
      %v6820 = vmax.f32 %v6788, 0.0
      %v6821 = vmax.f32 %v6789, 0.0
      %v6822 = vmax.f32 %v6790, 0.0
      %v6823 = vmax.f32 %v6791, 0.0
      %v6824 = vmax.f32 %v6792, 0.0
      %v6825 = vmax.f32 %v6793, 0.0
      %v6826 = vmax.f32 %v6794, 0.0
      %v6827 = vmax.f32 %v6795, 0.0
      %v6828 = vmax.f32 %v6796, 0.0
      %v6829 = vmax.f32 %v6797, 0.0
      %v6830 = vmax.f32 %v6798, 0.0
      %v6831 = vmax.f32 %v6799, 0.0
      %v6832 = vmax.f32 %v6800, 0.0
      %v6833 = vmax.f32 %v6801, 0.0
      %v6834 = vmax.f32 %v6802, 0.0
      %v6835 = vmax.f32 %v6803, 0.0
      %v6836 = vmax.f32 %v6804, 0.0
      %v6837 = vmax.f32 %v6805, 0.0
      %v6838 = vmax.f32 %v6806, 0.0
      %v6839 = vmax.f32 %v6807, 0.0
      %v6840 = vmax.f32 %v6808, 0.0
      %v6841 = vmax.f32 %v6809, 0.0
      %v6842 = vmax.f32 %v6810, 0.0
      %v6843 = vmax.f32 %v6811, 0.0
      %v6844 = vmax.f32 %v6812, 0.0
      %v6845 = vmax.f32 %v6813, 0.0
      %v6846 = vmax.f32 %v6814, 0.0
      %6847 = vst.msk [vmem:[%s278] sm:$0xff] %vm3860, %v6815
      %6848 = vst.msk [vmem:[%s278 + $0x8] sm:$0xff] %vm3860, %v6816
      %6849 = vst.msk [vmem:[%s278 + $0x10] sm:$0xff] %vm3860, %v6817
      %6850 = vst.msk [vmem:[%s278 + $0x18] sm:$0xff] %vm3860, %v6818
      %6851 = vst.msk [vmem:[%s278 + $0x20] sm:$0xff] %vm3860, %v6819
      %6852 = vst.msk [vmem:[%s278 + $0x28] sm:$0xff] %vm3860, %v6820
      %6853 = vst.msk [vmem:[%s278 + $0x30] sm:$0xff] %vm3860, %v6821
      %6854 = vst.msk [vmem:[%s278 + $0x38] sm:$0xff] %vm3860, %v6822
      %6855 = vst.msk [vmem:[%s278 + $0x40] sm:$0xff] %vm3860, %v6823
      %6856 = vst.msk [vmem:[%s278 + $0x48] sm:$0xff] %vm3860, %v6824
      %6857 = vst.msk [vmem:[%s278 + $0x50] sm:$0xff] %vm3860, %v6825
      %6858 = vst.msk [vmem:[%s278 + $0x58] sm:$0xff] %vm3860, %v6826
      %6859 = vst.msk [vmem:[%s278 + $0x60] sm:$0xff] %vm3860, %v6827
      %6860 = vst.msk [vmem:[%s278 + $0x68] sm:$0xff] %vm3860, %v6828
      %6861 = vst.msk [vmem:[%s278 + $0x70] sm:$0xff] %vm3860, %v6829
      %6862 = vst.msk [vmem:[%s278 + $0x78] sm:$0xff] %vm3860, %v6830
      %6863 = vst.msk [vmem:[%s278 + $0x80] sm:$0xff] %vm3860, %v6831
      %6864 = vst.msk [vmem:[%s278 + $0x88] sm:$0xff] %vm3860, %v6832
      %6865 = vst.msk [vmem:[%s278 + $0x90] sm:$0xff] %vm3860, %v6833
      %6866 = vst.msk [vmem:[%s278 + $0x98] sm:$0xff] %vm3860, %v6834
      %6867 = vst.msk [vmem:[%s278 + $0xa0] sm:$0xff] %vm3860, %v6835
      %6868 = vst.msk [vmem:[%s278 + $0xa8] sm:$0xff] %vm3860, %v6836
      %6869 = vst.msk [vmem:[%s278 + $0xb0] sm:$0xff] %vm3860, %v6837
      %6870 = vst.msk [vmem:[%s278 + $0xb8] sm:$0xff] %vm3860, %v6838
      %6871 = vst.msk [vmem:[%s278 + $0xc0] sm:$0xff] %vm3860, %v6839
      %6872 = vst.msk [vmem:[%s278 + $0xc8] sm:$0xff] %vm3860, %v6840
      %6873 = vst.msk [vmem:[%s278 + $0xd0] sm:$0xff] %vm3860, %v6841
      %6874 = vst.msk [vmem:[%s278 + $0xd8] sm:$0xff] %vm3860, %v6842
      %6875 = vst.msk [vmem:[%s278 + $0xe0] sm:$0xff] %vm3860, %v6843
      %6876 = vst.msk [vmem:[%s278 + $0xe8] sm:$0xff] %vm3860, %v6844
      %6877 = vst.msk [vmem:[%s278 + $0xf0] sm:$0xff] %vm3860, %v6845
      %6878 = vst.msk [vmem:[%s278 + $0xf8] sm:$0xff] %vm3860, %v6846
      %p6879 = scmp.lt.s32.totalorder %s21, 1
      %s6880 = scalar_select %p6879, %s21, 1
      %p6881 = scmp.lt.s32.totalorder %s20, 0
      %s6882 = scalar_select %p6881, %s20, 0
      %s6883 = smul.addr %s6880, 32
      %s6884 = sadd.s32 %s6882, %s6883
      %s6885 = smul.addr %s6884, 8
      %s6886 = scalar_lea.vmem %s5, %s6885
      // Predicated region
      $region41: #{tpu_custom_call.1} parent=39 // pred_check
        %p6887 = pneg %p168
      $region42: #{tpu_custom_call.1} parent=39 // pred_check_branch
        %6889 = sbr.rel (%p6887) target = $region44
      $region43: #{tpu_custom_call.1} parent=39 // pred_region
        _
      $region44: #{tpu_custom_call.1} parent=39 // pred_fallthru
        _
    $region40: #{tpu_custom_call.1} parent=5 // pred_fallthru
      _
    %p6890 = scmp.le.s32.totalorder 2, %s11
    // Predicated region
    $region45: #{tpu_custom_call.1} parent=5 // pred_check
      %p6891 = pneg %p6890
    $region46: #{tpu_custom_call.1} parent=5 // pred_check_branch
      %6893 = sbr.rel (%p6891) target = $region48
    $region47: #{tpu_custom_call.1} parent=5 // pred_region
      %s6894 = ssub.s32 %s11, 2
      // Predicated region
      $region49: #{tpu_custom_call.1} parent=47 // pred_check
        %p6895 = pneg %p174
      $region50: #{tpu_custom_call.1} parent=47 // pred_check_branch
        %6897 = sbr.rel (%p6895) target = $region52
      $region51: #{tpu_custom_call.1} parent=47 // pred_region
        %p6898 = scmp.lt.s32.totalorder %s23, 1
        %s6899 = scalar_select %p6898, %s23, 1
        %p6900 = scmp.lt.s32.totalorder %s22, 0
        %s6901 = scalar_select %p6900, %s22, 0
        %s6902 = smul.addr %s6899, 32
        %s6903 = sadd.s32 %s6901, %s6902
        %s6904 = smul.addr %s6903, 8
        %s6905 = scalar_lea.vmem %s5, %s6904
      $region52: #{tpu_custom_call.1} parent=47 // pred_fallthru
        _
    $region48: #{tpu_custom_call.1} parent=5 // pred_fallthru
      _
  $region6: #{tpu_custom_call.1} parent=0 // loop_footer
    %s15 = sadd.s32 1, %s11
  $region7: #{tpu_custom_call.1} parent=0 // loop_footer_branch
    %10 = sbr.rel target = $region3
  $region8: #{tpu_custom_call.1} parent=0 // loop_exit
    _

</llo_original>
